<compile_context>
chip_gen: v7x
topology: tpu7x:2x2x1
jax: 0.10.0
libtpu: 0.0.40
codegen_flags: <defaults>
</compile_context>

<pallas_src>
import functools

import jax
import jax.numpy as jnp
import numpy as np
from jax import lax
from jax.experimental import pallas as pl
from jax.experimental.pallas import tpu as pltpu


# ----------------------------- Pallas kernel ------------------------------ #

def _layer_norm(x, gamma, beta, eps=1e-5):
    mean = jnp.mean(x, axis=-1, keepdims=True)
    var = jnp.mean((x - mean) ** 2, axis=-1, keepdims=True)
    return (x - mean) * lax.rsqrt(var + eps) * gamma + beta        # EUP rsqrt


def _rpe_transformer_kernel(
    x_ref, mem_ref, pos_ref,
    wq_ref, bq_ref, wk_ref, bk_ref, wv_ref, bv_ref, wp_ref, bp_ref,
    wl_ref, bl_ref, g1_ref, be1_ref,
    we_ref, bee_ref, ws_ref, bs_ref, g2_ref, be2_ref,
    out_ref, attn_ref,
    k_scr, v_scr,                      # persistent VMEM scratch (H, M, dh) bf16
    *, C, H,
):
    dh = C // H
    scale = 1.0 / float(np.sqrt(dh))
    f32 = jnp.float32
    bf16 = jnp.bfloat16
    qi = pl.program_id(1)

    x = x_ref[0]                       # (TN, C) f32 query tile

    def split_heads(t):                # (L, C) -> (H, L, dh): lane slices + stack
        return jnp.stack([t[:, h * dh:(h + 1) * dh] for h in range(H)], axis=0)

    # K/V depend only on the batch index: compute once per batch element
    # (qi == 0; qi axis is "arbitrary") and cache head-major bf16 in scratch.
    @pl.when(qi == 0)
    def _():
        memb = mem_ref[0].astype(bf16)                              # (M, C)
        k = jnp.dot(memb, wk_ref[...], preferred_element_type=f32) + bk_ref[...]
        v = jnp.dot(memb, wv_ref[...], preferred_element_type=f32) + bv_ref[...]
        k_scr[...] = split_heads(k).astype(bf16)
        v_scr[...] = split_heads(v).astype(bf16)

    # Q projection: bf16 MXU operands, f32 accumulation + f32 bias.
    q = jnp.dot(x.astype(bf16), wq_ref[...], preferred_element_type=f32) + bq_ref[...]
    q_hf = split_heads(q)              # (H, TN, dh) f32
    q_h = q_hf.astype(bf16)

    # attention_scores_e for all heads: one head-batched MXU contraction.
    se = jnp.einsum('hnd,hmd->hnm', q_h, k_scr[...], preferred_element_type=f32)

    # attention_scores_p, algebraic RPE refactor (p = pos @ wp never built):
    #   sp[h,n,m] = pos[n,m,:] . (q_h[n,:] @ wp_h^T)  +  q_h[n,:] . bp_h
    g = jnp.einsum('hnd,hcd->hnc', q_h, wp_ref[...], preferred_element_type=f32)
    sp = jnp.einsum('hnc,nmc->hnm', g.astype(bf16), pos_ref[0],
                    preferred_element_type=f32)
    qb = jnp.sum(q_hf * bp_ref[...], axis=-1, keepdims=True)       # (H, TN, 1)

    # Softmax in f32; reciprocal on the EUP slot (approx=True ~1e-4 rel. err).
    s = (se + sp + qb) * scale
    s = s - jnp.max(s, axis=-1, keepdims=True)
    e = jnp.exp(s)
    attn = e * pl.reciprocal(jnp.sum(e, axis=-1, keepdims=True), approx=True)
    attn_ref[0] = attn.astype(attn_ref.dtype)

    # Context for all heads in one batched dot; heads merged with a single
    # lane-axis concatenate (no per-head masked stores).
    ctx = jnp.einsum('hnm,hmd->hnd', attn.astype(bf16), v_scr[...],
                     preferred_element_type=f32)
    hid = jnp.concatenate([ctx[h] for h in range(H)], axis=-1)     # (TN, C) f32

    # RPEAttentionLayer: output linear + residual + LayerNorm.
    hidden = jnp.dot(hid.astype(bf16), wl_ref[...],
                     preferred_element_type=f32) + bl_ref[...]
    res1 = _layer_norm(hidden + x, g1_ref[...], be1_ref[...])

    # AttentionOutput: expand -> ReLU -> squeeze -> residual + LayerNorm.
    expd = jnp.dot(res1.astype(bf16), we_ref[...],
                   preferred_element_type=f32) + bee_ref[...]
    expd = jnp.maximum(expd, 0.0)
    sqz = jnp.dot(expd.astype(bf16), ws_ref[...],
                  preferred_element_type=f32) + bs_ref[...]
    out_ref[0] = _layer_norm(res1 + sqz, g2_ref[...], be2_ref[...]).astype(out_ref.dtype)


# ------------------------------- Wrapper ----------------------------------- #

def _round_up(x, m):
    return ((x + m - 1) // m) * m


def _vmem_limit_bytes():
    # Capacity-driven limit: ~85% of physical VMEM (128 MiB on v5e/v6e,
    # 64 MiB per core on v7x), conservatively capped.
    try:
        cap = int(pltpu.get_tpu_info().vmem_capacity_bytes)
    except Exception:
        cap = 64 * 1024 * 1024          # conservative v7x-sized fallback
    return min(int(cap * 0.85), 112 * 1024 * 1024)


def _pick_tile_n(N, M, C, H, weight_bytes, attn_itemsize, budget_bytes, max_tile_n):
    """Largest query tile (multiple of 8) whose working set fits the budget."""
    dh = C // H

    def usage(tn):
        pos_tile = 2 * tn * M * C * 2                # bf16 pos, double-buffered
        io_tiles = 2 * 2 * tn * C * 4                # x + out tiles (f32)
        attn_tile = 2 * H * tn * M * attn_itemsize   # attention-score tile
        mem_tile = 2 * M * C * 4                     # memory_states tile
        kv_scr = 2 * H * M * dh * 2                  # cached K/V (bf16)
        live = (4 * H * tn * M * 4                   # se/sp/scores/exp
                + 2 * H * tn * C * 4                 # g + q_heads
                + 8 * tn * C * 4)                    # FFN / LayerNorm temporaries
        return (pos_tile + io_tiles + attn_tile + mem_tile + kv_scr
                + weight_bytes + live)

    tn = min(_round_up(max_tile_n, 8), _round_up(N, 8))
    while tn > 8 and usage(tn) > budget_bytes:
        tn -= 8
    tn = max(tn, 8)
    return N if tn >= N else tn


def rpe_transformer_layer(x, mem, pos, params, num_heads, *,
                          max_tile_n=256, attn_dtype=jnp.float32):
    B, N, C = x.shape
    M = mem.shape[1]
    H = num_heads
    assert C % H == 0
    dh = C // H
    bf16 = jnp.bfloat16

    # bf16 MXU operands: weight matrices and the dominant pos stream are bf16;
    # biases, LayerNorm affines and every element-wise op stay f32.
    pos_bf = pos.astype(bf16)
    wp_heads = jnp.transpose(params["wp"].reshape(C, H, dh), (1, 0, 2))  # (H, C, dh)
    bp_heads = jnp.transpose(params["bp"].reshape(1, H, dh), (1, 0, 2))  # (H, 1, dh)
    weight_args = [
        params["wq"].astype(bf16), params["bq"],
        params["wk"].astype(bf16), params["bk"],
        params["wv"].astype(bf16), params["bv"],
        wp_heads.astype(bf16), bp_heads,
        params["wl"].astype(bf16), params["bl"],
        params["g1"], params["be1"],
        params["we"].astype(bf16), params["bee"],
        params["ws"].astype(bf16), params["bs"],
        params["g2"], params["be2"],
    ]
    weight_bytes = 2 * sum(int(np.prod(w.shape)) * np.dtype(w.dtype).itemsize
                           for w in weight_args)

    vmem_limit = _vmem_limit_bytes()
    TN = _pick_tile_n(N, M, C, H, weight_bytes, np.dtype(attn_dtype).itemsize,
                      int(0.75 * vmem_limit), max_tile_n)
    n_q = pl.cdiv(N, TN)

    kernel = functools.partial(_rpe_transformer_kernel, C=C, H=H)

    def weight_spec(shape, single_buffered):
        zeros = (0,) * len(shape)
        idx = lambda b, qi, _z=zeros: _z               # grid-invariant block
        if single_buffered:
            # Block index never changes -> no need to double-buffer weights.
            return pl.BlockSpec(shape, idx, pipeline_mode=pl.Buffered(1))
        return pl.BlockSpec(shape, idx)

    def build(single_buffered_weights):
        in_specs = [
            pl.BlockSpec((1, TN, C), lambda b, qi: (b, qi, 0)),        # input_states
            pl.BlockSpec((1, M, C), lambda b, qi: (b, 0, 0)),          # memory_states
            pl.BlockSpec((1, TN, M, C), lambda b, qi: (b, qi, 0, 0)),  # position_states
        ]
        in_specs += [weight_spec(tuple(w.shape), single_buffered_weights)
                     for w in weight_args]
        out_specs = (
            pl.BlockSpec((1, TN, C), lambda b, qi: (b, qi, 0)),
            # TODO(synk): pad M to a multiple of 128 for fully lane-dense
            # attention-score stores at odd M sizes.
            pl.BlockSpec((1, H, TN, M), lambda b, qi: (b, 0, qi, 0)),
        )
        out_shape = (
            jax.ShapeDtypeStruct((B, N, C), jnp.float32),
            jax.ShapeDtypeStruct((B, H, N, M), attn_dtype),
        )
        return pl.pallas_call(
            kernel,
            grid=(B, n_q),
            in_specs=in_specs,
            out_specs=out_specs,
            out_shape=out_shape,
            scratch_shapes=[pltpu.VMEM((H, M, dh), bf16),     # cached K
                            pltpu.VMEM((H, M, dh), bf16)],    # cached V
            compiler_params=pltpu.CompilerParams(
                # batch axis "parallel" (megacore / v7x 2-TC sharding); query
                # axis "arbitrary" so the K/V scratch cache is valid.
                dimension_semantics=("parallel", "arbitrary"),
                vmem_limit_bytes=vmem_limit,
            ),
        )

    args = (x, mem, pos_bf, *weight_args)
    try:
        return build(True)(*args)
    except Exception:
        # TODO(synk): some Pallas versions reject pipeline_mode=pl.Buffered(1);
        # fall back to default double-buffered weight blocks (correctness is
        # identical, only VMEM usage differs).
        return build(False)(*args)


# ------------------------- Pure-JAX reference ------------------------------ #

def _ref_layer_norm(x, g, b, eps=1e-5):
    mu = jnp.mean(x, axis=-1, keepdims=True)
    var = jnp.mean((x - mu) ** 2, axis=-1, keepdims=True)
    return (x - mu) / jnp.sqrt(var + eps) * g + b


def reference_forward(x, mem, pos, params, num_heads):
    B, N, C = x.shape
    M = mem.shape[1]
    H = num_heads
    dh = C // H

    def split(t):  # (B, L, C) -> (B, H, L, dh)
        return t.reshape(t.shape[0], t.shape[1], H, dh).transpose(0, 2, 1, 3)

    q = split(x @ params["wq"] + params["bq"])
    k = split(mem @ params["wk"] + params["bk"])
    v = split(mem @ params["wv"] + params["bv"])
    p = (pos @ params["wp"] + params["bp"]).reshape(B, N, M, H, dh).transpose(0, 3, 1, 2, 4)

    se = jnp.einsum("bhnc,bhmc->bhnm", q, k)
    sp = jnp.einsum("bhnc,bhnmc->bhnm", q, p)
    scores = (se + sp) / np.sqrt(dh)
    attn = jax.nn.softmax(scores, axis=-1)
    hidden = jnp.einsum("bhnm,bhmc->bhnc", attn, v)
    hidden = hidden.transpose(0, 2, 1, 3).reshape(B, N, C)

    hidden = hidden @ params["wl"] + params["bl"]
    res1 = _ref_layer_norm(hidden + x, params["g1"], params["be1"])

    exp = jnp.maximum(res1 @ params["we"] + params["bee"], 0.0)
    sqz = exp @ params["ws"] + params["bs"]
    out = _ref_layer_norm(res1 + sqz, params["g2"], params["be2"])
    return out, attn


# --------------------------------- Main ------------------------------------ #

def make_params(key, d_model):
    C = d_model
    ks = jax.random.split(key, 8)
    scale = 0.02

    def lin(k, din, dout):
        return scale * jax.random.normal(k, (din, dout), jnp.float32)

    params = {
        "wq": lin(ks[0], C, C), "bq": jnp.zeros((1, C), jnp.float32),
        "wk": lin(ks[1], C, C), "bk": jnp.zeros((1, C), jnp.float32),
        "wv": lin(ks[2], C, C), "bv": jnp.zeros((1, C), jnp.float32),
        "wp": lin(ks[3], C, C), "bp": 0.01 * jnp.ones((1, C), jnp.float32),
        "wl": lin(ks[4], C, C), "bl": jnp.zeros((1, C), jnp.float32),
        "g1": jnp.ones((1, C), jnp.float32), "be1": jnp.zeros((1, C), jnp.float32),
        "we": lin(ks[5], C, 2 * C), "bee": 0.01 * jnp.ones((1, 2 * C), jnp.float32),
        "ws": lin(ks[6], 2 * C, C), "bs": 0.01 * jnp.ones((1, C), jnp.float32),
        "g2": jnp.ones((1, C), jnp.float32), "be2": jnp.zeros((1, C), jnp.float32),
    }
    return params


if __name__ == "__main__":
    B, N, M, C, H = 2, 8, 8, 32, 4

    key = jax.random.PRNGKey(0)
    kx, kmem, kpos, kp = jax.random.split(key, 4)
    x = jax.random.normal(kx, (B, N, C), jnp.float32)
    mem = jax.random.normal(kmem, (B, M, C), jnp.float32)
    pos = jax.random.normal(kpos, (B, N, M, C), jnp.float32)
    params = make_params(kp, C)

    out, attn = rpe_transformer_layer(x, mem, pos, params, H)
    out = jax.block_until_ready(out)
    attn = jax.block_until_ready(attn)

    ref_out, ref_attn = reference_forward(x, mem, pos, params, H)
    # bf16 MXU operands + approx softmax reciprocal => looser-than-f32 parity.
    np.testing.assert_allclose(np.asarray(out), np.asarray(ref_out), rtol=1e-2, atol=1e-2)
    np.testing.assert_allclose(np.asarray(attn), np.asarray(ref_attn), rtol=1e-2, atol=1e-2)

    print("KERNEL_OK")
</pallas_src>

<mosaic_0001>
module attributes {stable_mosaic.version = 11 : i64} {
  func.func @_rpe_transformer_kernel(%arg0: i32, %arg1: i32, %arg2: memref<1x8x32xf32, #tpu.memory_space<vmem>>, %arg3: memref<1x8x32xf32, #tpu.memory_space<vmem>>, %arg4: memref<1x8x8x32xbf16, #tpu.memory_space<vmem>>, %arg5: memref<32x32xbf16, #tpu.memory_space<vmem>>, %arg6: memref<1x32xf32, #tpu.memory_space<vmem>>, %arg7: memref<32x32xbf16, #tpu.memory_space<vmem>>, %arg8: memref<1x32xf32, #tpu.memory_space<vmem>>, %arg9: memref<32x32xbf16, #tpu.memory_space<vmem>>, %arg10: memref<1x32xf32, #tpu.memory_space<vmem>>, %arg11: memref<4x32x8xbf16, #tpu.memory_space<vmem>>, %arg12: memref<4x1x8xf32, #tpu.memory_space<vmem>>, %arg13: memref<32x32xbf16, #tpu.memory_space<vmem>>, %arg14: memref<1x32xf32, #tpu.memory_space<vmem>>, %arg15: memref<1x32xf32, #tpu.memory_space<vmem>>, %arg16: memref<1x32xf32, #tpu.memory_space<vmem>>, %arg17: memref<32x64xbf16, #tpu.memory_space<vmem>>, %arg18: memref<1x64xf32, #tpu.memory_space<vmem>>, %arg19: memref<64x32xbf16, #tpu.memory_space<vmem>>, %arg20: memref<1x32xf32, #tpu.memory_space<vmem>>, %arg21: memref<1x32xf32, #tpu.memory_space<vmem>>, %arg22: memref<1x32xf32, #tpu.memory_space<vmem>>, %arg23: memref<1x8x32xf32, #tpu.memory_space<vmem>>, %arg24: memref<1x4x8x8xf32, #tpu.memory_space<vmem>>, %arg25: memref<4x8x8xbf16, #tpu.memory_space<vmem>>, %arg26: memref<4x8x8xbf16, #tpu.memory_space<vmem>>) attributes {dimension_semantics = [#tpu.dimension_semantics<parallel>, #tpu.dimension_semantics<arbitrary>], iteration_bounds = array<i64: 2, 1>, scalar_prefetch = 0 : i64, scratch_operands = 2 : i64, tpu.core_type = #tpu.core_type<tc>, window_params = [{transform_indices = @transform_0, window_bounds = array<i64: 1, 8, 32>}, {transform_indices = @transform_1, window_bounds = array<i64: 1, 8, 32>}, {transform_indices = @transform_2, window_bounds = array<i64: 1, 8, 8, 32>}, {pipeline_mode = #tpu.pipeline_mode<synchronous>, transform_indices = @transform_3, window_bounds = array<i64: 32, 32>}, {pipeline_mode = #tpu.pipeline_mode<synchronous>, transform_indices = @transform_4, window_bounds = array<i64: 1, 32>}, {pipeline_mode = #tpu.pipeline_mode<synchronous>, transform_indices = @transform_5, window_bounds = array<i64: 32, 32>}, {pipeline_mode = #tpu.pipeline_mode<synchronous>, transform_indices = @transform_6, window_bounds = array<i64: 1, 32>}, {pipeline_mode = #tpu.pipeline_mode<synchronous>, transform_indices = @transform_7, window_bounds = array<i64: 32, 32>}, {pipeline_mode = #tpu.pipeline_mode<synchronous>, transform_indices = @transform_8, window_bounds = array<i64: 1, 32>}, {pipeline_mode = #tpu.pipeline_mode<synchronous>, transform_indices = @transform_9, window_bounds = array<i64: 4, 32, 8>}, {pipeline_mode = #tpu.pipeline_mode<synchronous>, transform_indices = @transform_10, window_bounds = array<i64: 4, 1, 8>}, {pipeline_mode = #tpu.pipeline_mode<synchronous>, transform_indices = @transform_11, window_bounds = array<i64: 32, 32>}, {pipeline_mode = #tpu.pipeline_mode<synchronous>, transform_indices = @transform_12, window_bounds = array<i64: 1, 32>}, {pipeline_mode = #tpu.pipeline_mode<synchronous>, transform_indices = @transform_13, window_bounds = array<i64: 1, 32>}, {pipeline_mode = #tpu.pipeline_mode<synchronous>, transform_indices = @transform_14, window_bounds = array<i64: 1, 32>}, {pipeline_mode = #tpu.pipeline_mode<synchronous>, transform_indices = @transform_15, window_bounds = array<i64: 32, 64>}, {pipeline_mode = #tpu.pipeline_mode<synchronous>, transform_indices = @transform_16, window_bounds = array<i64: 1, 64>}, {pipeline_mode = #tpu.pipeline_mode<synchronous>, transform_indices = @transform_17, window_bounds = array<i64: 64, 32>}, {pipeline_mode = #tpu.pipeline_mode<synchronous>, transform_indices = @transform_18, window_bounds = array<i64: 1, 32>}, {pipeline_mode = #tpu.pipeline_mode<synchronous>, transform_indices = @transform_19, window_bounds = array<i64: 1, 32>}, {pipeline_mode = #tpu.pipeline_mode<synchronous>, transform_indices = @transform_20, window_bounds = array<i64: 1, 32>}, {transform_indices = @transform_21, window_bounds = array<i64: 1, 8, 32>}, {transform_indices = @transform_22, window_bounds = array<i64: 1, 4, 8, 8>}]} {
    %c0 = arith.constant 0 : index
    %c0_0 = arith.constant 0 : index
    %c0_1 = arith.constant 0 : index
    %0 = vector.load %arg2[%c0, %c0_0, %c0_1] : memref<1x8x32xf32, #tpu.memory_space<vmem>>, vector<1x8x32xf32>
    %1 = vector.shape_cast %0 : vector<1x8x32xf32> to vector<8x32xf32>
    %c0_i32 = arith.constant 0 : i32
    %2 = arith.cmpi eq, %arg1, %c0_i32 : i32
    %3 = arith.extui %2 : i1 to i32
    %c0_i32_2 = arith.constant 0 : i32
    %4 = arith.cmpi ne, %3, %c0_i32_2 : i32
    scf.if %4 {
      %c0_72 = arith.constant 0 : index
      %c0_73 = arith.constant 0 : index
      %c0_74 = arith.constant 0 : index
      %138 = vector.load %arg3[%c0_72, %c0_73, %c0_74] : memref<1x8x32xf32, #tpu.memory_space<vmem>>, vector<1x8x32xf32>
      %139 = vector.shape_cast %138 : vector<1x8x32xf32> to vector<8x32xf32>
      %140 = arith.truncf %139 : vector<8x32xf32> to vector<8x32xbf16>
      %c0_75 = arith.constant 0 : index
      %c0_76 = arith.constant 0 : index
      %141 = vector.load %arg7[%c0_75, %c0_76] : memref<32x32xbf16, #tpu.memory_space<vmem>>, vector<32x32xbf16>
      %cst_77 = arith.constant dense<0.000000e+00> : vector<8x32xf32>
      %142 = tpu.matmul %140, %141, %cst_77 {dimension_numbers = #tpu.dot_dimension_numbers<[1], [0], [0], [1], [0, 0, 1, 1], [], []>} : vector<8x32xbf16>, vector<32x32xbf16>, vector<8x32xf32> -> vector<8x32xf32>
      %c0_78 = arith.constant 0 : index
      %c0_79 = arith.constant 0 : index
      %143 = vector.load %arg8[%c0_78, %c0_79] : memref<1x32xf32, #tpu.memory_space<vmem>>, vector<1x32xf32>
      %144 = vector.broadcast %143 : vector<1x32xf32> to vector<8x32xf32>
      %145 = arith.addf %142, %144 : vector<8x32xf32>
      %c0_80 = arith.constant 0 : index
      %c0_81 = arith.constant 0 : index
      %146 = vector.load %arg9[%c0_80, %c0_81] : memref<32x32xbf16, #tpu.memory_space<vmem>>, vector<32x32xbf16>
      %cst_82 = arith.constant dense<0.000000e+00> : vector<8x32xf32>
      %147 = tpu.matmul %140, %146, %cst_82 {dimension_numbers = #tpu.dot_dimension_numbers<[1], [0], [0], [1], [0, 0, 1, 1], [], []>} : vector<8x32xbf16>, vector<32x32xbf16>, vector<8x32xf32> -> vector<8x32xf32>
      %c0_83 = arith.constant 0 : index
      %c0_84 = arith.constant 0 : index
      %148 = vector.load %arg10[%c0_83, %c0_84] : memref<1x32xf32, #tpu.memory_space<vmem>>, vector<1x32xf32>
      %149 = vector.broadcast %148 : vector<1x32xf32> to vector<8x32xf32>
      %150 = arith.addf %147, %149 : vector<8x32xf32>
      %151 = vector.extract_strided_slice %145 {offsets = [0, 0], sizes = [8, 8], strides = [1, 1]} : vector<8x32xf32> to vector<8x8xf32>
      %152 = vector.extract_strided_slice %145 {offsets = [0, 8], sizes = [8, 8], strides = [1, 1]} : vector<8x32xf32> to vector<8x8xf32>
      %153 = vector.extract_strided_slice %145 {offsets = [0, 16], sizes = [8, 8], strides = [1, 1]} : vector<8x32xf32> to vector<8x8xf32>
      %154 = vector.extract_strided_slice %145 {offsets = [0, 24], sizes = [8, 8], strides = [1, 1]} : vector<8x32xf32> to vector<8x8xf32>
      %155 = vector.shape_cast %151 : vector<8x8xf32> to vector<1x8x8xf32>
      %156 = vector.shape_cast %152 : vector<8x8xf32> to vector<1x8x8xf32>
      %157 = vector.shape_cast %153 : vector<8x8xf32> to vector<1x8x8xf32>
      %158 = vector.shape_cast %154 : vector<8x8xf32> to vector<1x8x8xf32>
      %159 = tpu.concatenate %155, %156, %157, %158 in 0 : vector<1x8x8xf32>, vector<1x8x8xf32>, vector<1x8x8xf32>, vector<1x8x8xf32> -> vector<4x8x8xf32>
      %160 = arith.truncf %159 : vector<4x8x8xf32> to vector<4x8x8xbf16>
      %c0_85 = arith.constant 0 : index
      %c0_86 = arith.constant 0 : index
      %c0_87 = arith.constant 0 : index
      %161 = vector.load %arg25[%c0_85, %c0_86, %c0_87] : memref<4x8x8xbf16, #tpu.memory_space<vmem>>, vector<4x8x8xbf16>
      tpu.vector_store %arg25[%c0_85, %c0_86, %c0_87], %160 {strides = array<i32>} : memref<4x8x8xbf16, #tpu.memory_space<vmem>>, vector<4x8x8xbf16>,
      %162 = vector.extract_strided_slice %150 {offsets = [0, 0], sizes = [8, 8], strides = [1, 1]} : vector<8x32xf32> to vector<8x8xf32>
      %163 = vector.extract_strided_slice %150 {offsets = [0, 8], sizes = [8, 8], strides = [1, 1]} : vector<8x32xf32> to vector<8x8xf32>
      %164 = vector.extract_strided_slice %150 {offsets = [0, 16], sizes = [8, 8], strides = [1, 1]} : vector<8x32xf32> to vector<8x8xf32>
      %165 = vector.extract_strided_slice %150 {offsets = [0, 24], sizes = [8, 8], strides = [1, 1]} : vector<8x32xf32> to vector<8x8xf32>
      %166 = vector.shape_cast %162 : vector<8x8xf32> to vector<1x8x8xf32>
      %167 = vector.shape_cast %163 : vector<8x8xf32> to vector<1x8x8xf32>
      %168 = vector.shape_cast %164 : vector<8x8xf32> to vector<1x8x8xf32>
      %169 = vector.shape_cast %165 : vector<8x8xf32> to vector<1x8x8xf32>
      %170 = tpu.concatenate %166, %167, %168, %169 in 0 : vector<1x8x8xf32>, vector<1x8x8xf32>, vector<1x8x8xf32>, vector<1x8x8xf32> -> vector<4x8x8xf32>
      %171 = arith.truncf %170 : vector<4x8x8xf32> to vector<4x8x8xbf16>
      %c0_88 = arith.constant 0 : index
      %c0_89 = arith.constant 0 : index
      %c0_90 = arith.constant 0 : index
      %172 = vector.load %arg26[%c0_88, %c0_89, %c0_90] : memref<4x8x8xbf16, #tpu.memory_space<vmem>>, vector<4x8x8xbf16>
      tpu.vector_store %arg26[%c0_88, %c0_89, %c0_90], %171 {strides = array<i32>} : memref<4x8x8xbf16, #tpu.memory_space<vmem>>, vector<4x8x8xbf16>,
    } else {
    }
    %5 = arith.truncf %1 : vector<8x32xf32> to vector<8x32xbf16>
    %c0_3 = arith.constant 0 : index
    %c0_4 = arith.constant 0 : index
    %6 = vector.load %arg5[%c0_3, %c0_4] : memref<32x32xbf16, #tpu.memory_space<vmem>>, vector<32x32xbf16>
    %cst = arith.constant dense<0.000000e+00> : vector<8x32xf32>
    %7 = tpu.matmul %5, %6, %cst {dimension_numbers = #tpu.dot_dimension_numbers<[1], [0], [0], [1], [0, 0, 1, 1], [], []>} : vector<8x32xbf16>, vector<32x32xbf16>, vector<8x32xf32> -> vector<8x32xf32>
    %c0_5 = arith.constant 0 : index
    %c0_6 = arith.constant 0 : index
    %8 = vector.load %arg6[%c0_5, %c0_6] : memref<1x32xf32, #tpu.memory_space<vmem>>, vector<1x32xf32>
    %9 = vector.broadcast %8 : vector<1x32xf32> to vector<8x32xf32>
    %10 = arith.addf %7, %9 : vector<8x32xf32>
    %11 = vector.extract_strided_slice %10 {offsets = [0, 0], sizes = [8, 8], strides = [1, 1]} : vector<8x32xf32> to vector<8x8xf32>
    %12 = vector.extract_strided_slice %10 {offsets = [0, 8], sizes = [8, 8], strides = [1, 1]} : vector<8x32xf32> to vector<8x8xf32>
    %13 = vector.extract_strided_slice %10 {offsets = [0, 16], sizes = [8, 8], strides = [1, 1]} : vector<8x32xf32> to vector<8x8xf32>
    %14 = vector.extract_strided_slice %10 {offsets = [0, 24], sizes = [8, 8], strides = [1, 1]} : vector<8x32xf32> to vector<8x8xf32>
    %15 = vector.shape_cast %11 : vector<8x8xf32> to vector<1x8x8xf32>
    %16 = vector.shape_cast %12 : vector<8x8xf32> to vector<1x8x8xf32>
    %17 = vector.shape_cast %13 : vector<8x8xf32> to vector<1x8x8xf32>
    %18 = vector.shape_cast %14 : vector<8x8xf32> to vector<1x8x8xf32>
    %19 = tpu.concatenate %15, %16, %17, %18 in 0 : vector<1x8x8xf32>, vector<1x8x8xf32>, vector<1x8x8xf32>, vector<1x8x8xf32> -> vector<4x8x8xf32>
    %20 = arith.truncf %19 : vector<4x8x8xf32> to vector<4x8x8xbf16>
    %c0_7 = arith.constant 0 : index
    %c0_8 = arith.constant 0 : index
    %c0_9 = arith.constant 0 : index
    %21 = vector.load %arg25[%c0_7, %c0_8, %c0_9] : memref<4x8x8xbf16, #tpu.memory_space<vmem>>, vector<4x8x8xbf16>
    "tpu.trace_start"() <{level = 10 : i32, message = "hnd,hmd->hnm"}> : () -> ()
    %cst_10 = arith.constant dense<0.000000e+00> : vector<4x8x8xf32>
    %22 = tpu.matmul %20, %21, %cst_10 {dimension_numbers = #tpu.dot_dimension_numbers<[2], [2], [1], [1], [0, 0, 0, 1, 1, 1], [0], [0]>} : vector<4x8x8xbf16>, vector<4x8x8xbf16>, vector<4x8x8xf32> -> vector<4x8x8xf32>
    "tpu.trace_stop"() : () -> ()
    %c0_11 = arith.constant 0 : index
    %c0_12 = arith.constant 0 : index
    %c0_13 = arith.constant 0 : index
    %23 = vector.load %arg11[%c0_11, %c0_12, %c0_13] : memref<4x32x8xbf16, #tpu.memory_space<vmem>>, vector<4x32x8xbf16>
    "tpu.trace_start"() <{level = 10 : i32, message = "hnd,hcd->hnc"}> : () -> ()
    %cst_14 = arith.constant dense<0.000000e+00> : vector<4x8x32xf32>
    %24 = tpu.matmul %20, %23, %cst_14 {dimension_numbers = #tpu.dot_dimension_numbers<[2], [2], [1], [1], [0, 0, 0, 1, 1, 1], [0], [0]>} : vector<4x8x8xbf16>, vector<4x32x8xbf16>, vector<4x8x32xf32> -> vector<4x8x32xf32>
    "tpu.trace_stop"() : () -> ()
    %25 = arith.truncf %24 : vector<4x8x32xf32> to vector<4x8x32xbf16>
    %c0_15 = arith.constant 0 : index
    %c0_16 = arith.constant 0 : index
    %c0_17 = arith.constant 0 : index
    %c0_18 = arith.constant 0 : index
    %26 = vector.load %arg4[%c0_15, %c0_16, %c0_17, %c0_18] : memref<1x8x8x32xbf16, #tpu.memory_space<vmem>>, vector<1x8x8x32xbf16>
    %27 = vector.shape_cast %26 : vector<1x8x8x32xbf16> to vector<8x8x32xbf16>
    "tpu.trace_start"() <{level = 10 : i32, message = "hnc,nmc->hnm"}> : () -> ()
    %cst_19 = arith.constant dense<0.000000e+00> : vector<8x8x4xf32>
    %28 = tpu.matmul %27, %25, %cst_19 {dimension_numbers = #tpu.dot_dimension_numbers<[2], [2], [1], [0], [0, 0, 0, 1, 1, 0], [0], [1]>} : vector<8x8x32xbf16>, vector<4x8x32xbf16>, vector<8x8x4xf32> -> vector<8x8x4xf32>
    %29 = tpu.transpose %28, [2, 0, 1] : vector<8x8x4xf32> -> vector<4x8x8xf32>
    "tpu.trace_stop"() : () -> ()
    %c0_20 = arith.constant 0 : index
    %c0_21 = arith.constant 0 : index
    %c0_22 = arith.constant 0 : index
    %30 = vector.load %arg12[%c0_20, %c0_21, %c0_22] : memref<4x1x8xf32, #tpu.memory_space<vmem>>, vector<4x1x8xf32>
    %31 = vector.broadcast %30 : vector<4x1x8xf32> to vector<4x8x8xf32>
    %32 = arith.mulf %19, %31 : vector<4x8x8xf32>
    %cst_23 = arith.constant dense<0.000000e+00> : vector<4x8xf32>
    %33 = vector.multi_reduction <add>, %32, %cst_23 [2] : vector<4x8x8xf32> to vector<4x8xf32>
    %34 = vector.shape_cast %33 : vector<4x8xf32> to vector<4x8x1xf32>
    %35 = arith.addf %22, %29 : vector<4x8x8xf32>
    %36 = vector.broadcast %34 : vector<4x8x1xf32> to vector<4x8x8xf32>
    %37 = arith.addf %35, %36 : vector<4x8x8xf32>
    %cst_24 = arith.constant 0.353553385 : f32
    %38 = vector.broadcast %cst_24 : f32 to vector<4x8x8xf32>
    %39 = arith.mulf %37, %38 : vector<4x8x8xf32>
    %cst_25 = arith.constant dense<0xFF800000> : vector<4x8xf32>
    %40 = vector.multi_reduction <maximumf>, %39, %cst_25 [2] : vector<4x8x8xf32> to vector<4x8xf32>
    %41 = vector.shape_cast %40 : vector<4x8xf32> to vector<4x8x1xf32>
    %42 = vector.broadcast %41 : vector<4x8x1xf32> to vector<4x8x8xf32>
    %43 = arith.subf %39, %42 : vector<4x8x8xf32>
    %44 = math.exp %43 : vector<4x8x8xf32>
    %cst_26 = arith.constant dense<0.000000e+00> : vector<4x8xf32>
    %45 = vector.multi_reduction <add>, %44, %cst_26 [2] : vector<4x8x8xf32> to vector<4x8xf32>
    %46 = vector.shape_cast %45 : vector<4x8xf32> to vector<4x8x1xf32>
    %47 = tpu.reciprocal %46 {approx = true} : vector<4x8x1xf32> -> vector<4x8x1xf32>
    %48 = vector.broadcast %47 : vector<4x8x1xf32> to vector<4x8x8xf32>
    %49 = arith.mulf %44, %48 : vector<4x8x8xf32>
    %c0_27 = arith.constant 0 : index
    %c0_28 = arith.constant 0 : index
    %c0_29 = arith.constant 0 : index
    %c0_30 = arith.constant 0 : index
    %50 = vector.load %arg24[%c0_27, %c0_28, %c0_29, %c0_30] : memref<1x4x8x8xf32, #tpu.memory_space<vmem>>, vector<1x4x8x8xf32>
    %51 = vector.shape_cast %50 : vector<1x4x8x8xf32> to vector<4x8x8xf32>
    %52 = vector.shape_cast %49 : vector<4x8x8xf32> to vector<1x4x8x8xf32>
    tpu.vector_store %arg24[%c0_27, %c0_28, %c0_29, %c0_30], %52 {strides = array<i32>} : memref<1x4x8x8xf32, #tpu.memory_space<vmem>>, vector<1x4x8x8xf32>,
    %53 = arith.truncf %49 : vector<4x8x8xf32> to vector<4x8x8xbf16>
    %c0_31 = arith.constant 0 : index
    %c0_32 = arith.constant 0 : index
    %c0_33 = arith.constant 0 : index
    %54 = vector.load %arg26[%c0_31, %c0_32, %c0_33] : memref<4x8x8xbf16, #tpu.memory_space<vmem>>, vector<4x8x8xbf16>
    "tpu.trace_start"() <{level = 10 : i32, message = "hnm,hmd->hnd"}> : () -> ()
    %cst_34 = arith.constant dense<0.000000e+00> : vector<4x8x8xf32>
    %55 = tpu.matmul %53, %54, %cst_34 {dimension_numbers = #tpu.dot_dimension_numbers<[2], [1], [1], [2], [0, 0, 0, 1, 1, 2], [0], [0]>} : vector<4x8x8xbf16>, vector<4x8x8xbf16>, vector<4x8x8xf32> -> vector<4x8x8xf32>
    "tpu.trace_stop"() : () -> ()
    %56 = vector.extract_strided_slice %55 {offsets = [0, 0, 0], sizes = [1, 8, 8], strides = [1, 1, 1]} : vector<4x8x8xf32> to vector<1x8x8xf32>
    %57 = vector.shape_cast %56 : vector<1x8x8xf32> to vector<8x8xf32>
    %58 = vector.extract_strided_slice %55 {offsets = [1, 0, 0], sizes = [1, 8, 8], strides = [1, 1, 1]} : vector<4x8x8xf32> to vector<1x8x8xf32>
    %59 = vector.shape_cast %58 : vector<1x8x8xf32> to vector<8x8xf32>
    %60 = vector.extract_strided_slice %55 {offsets = [2, 0, 0], sizes = [1, 8, 8], strides = [1, 1, 1]} : vector<4x8x8xf32> to vector<1x8x8xf32>
    %61 = vector.shape_cast %60 : vector<1x8x8xf32> to vector<8x8xf32>
    %62 = vector.extract_strided_slice %55 {offsets = [3, 0, 0], sizes = [1, 8, 8], strides = [1, 1, 1]} : vector<4x8x8xf32> to vector<1x8x8xf32>
    %63 = vector.shape_cast %62 : vector<1x8x8xf32> to vector<8x8xf32>
    %64 = tpu.concatenate %57, %59, %61, %63 in 1 : vector<8x8xf32>, vector<8x8xf32>, vector<8x8xf32>, vector<8x8xf32> -> vector<8x32xf32>
    %65 = arith.truncf %64 : vector<8x32xf32> to vector<8x32xbf16>
    %c0_35 = arith.constant 0 : index
    %c0_36 = arith.constant 0 : index
    %66 = vector.load %arg13[%c0_35, %c0_36] : memref<32x32xbf16, #tpu.memory_space<vmem>>, vector<32x32xbf16>
    %cst_37 = arith.constant dense<0.000000e+00> : vector<8x32xf32>
    %67 = tpu.matmul %65, %66, %cst_37 {dimension_numbers = #tpu.dot_dimension_numbers<[1], [0], [0], [1], [0, 0, 1, 1], [], []>} : vector<8x32xbf16>, vector<32x32xbf16>, vector<8x32xf32> -> vector<8x32xf32>
    %c0_38 = arith.constant 0 : index
    %c0_39 = arith.constant 0 : index
    %68 = vector.load %arg14[%c0_38, %c0_39] : memref<1x32xf32, #tpu.memory_space<vmem>>, vector<1x32xf32>
    %69 = vector.broadcast %68 : vector<1x32xf32> to vector<8x32xf32>
    %70 = arith.addf %67, %69 : vector<8x32xf32>
    %71 = arith.addf %70, %1 : vector<8x32xf32>
    %c0_40 = arith.constant 0 : index
    %c0_41 = arith.constant 0 : index
    %72 = vector.load %arg15[%c0_40, %c0_41] : memref<1x32xf32, #tpu.memory_space<vmem>>, vector<1x32xf32>
    %c0_42 = arith.constant 0 : index
    %c0_43 = arith.constant 0 : index
    %73 = vector.load %arg16[%c0_42, %c0_43] : memref<1x32xf32, #tpu.memory_space<vmem>>, vector<1x32xf32>
    %cst_44 = arith.constant dense<0.000000e+00> : vector<8xf32>
    %74 = vector.multi_reduction <add>, %71, %cst_44 [1] : vector<8x32xf32> to vector<8xf32>
    %75 = vector.shape_cast %74 : vector<8xf32> to vector<8x1xf32>
    %cst_45 = arith.constant 3.200000e+01 : f32
    %76 = vector.broadcast %cst_45 : f32 to vector<8x1xf32>
    %77 = arith.divf %75, %76 : vector<8x1xf32>
    %78 = vector.broadcast %77 : vector<8x1xf32> to vector<8x32xf32>
    %79 = arith.subf %71, %78 : vector<8x32xf32>
    %80 = arith.mulf %79, %79 : vector<8x32xf32>
    %cst_46 = arith.constant dense<0.000000e+00> : vector<8xf32>
    %81 = vector.multi_reduction <add>, %80, %cst_46 [1] : vector<8x32xf32> to vector<8xf32>
    %82 = vector.shape_cast %81 : vector<8xf32> to vector<8x1xf32>
    %cst_47 = arith.constant 3.200000e+01 : f32
    %83 = vector.broadcast %cst_47 : f32 to vector<8x1xf32>
    %84 = arith.divf %82, %83 : vector<8x1xf32>
    %85 = vector.broadcast %77 : vector<8x1xf32> to vector<8x32xf32>
    %86 = arith.subf %71, %85 : vector<8x32xf32>
    %cst_48 = arith.constant 9.99999974E-6 : f32
    %87 = vector.broadcast %cst_48 : f32 to vector<8x1xf32>
    %88 = arith.addf %84, %87 : vector<8x1xf32>
    %89 = math.rsqrt %88 : vector<8x1xf32>
    %90 = vector.broadcast %89 : vector<8x1xf32> to vector<8x32xf32>
    %91 = arith.mulf %86, %90 : vector<8x32xf32>
    %92 = vector.broadcast %72 : vector<1x32xf32> to vector<8x32xf32>
    %93 = arith.mulf %91, %92 : vector<8x32xf32>
    %94 = vector.broadcast %73 : vector<1x32xf32> to vector<8x32xf32>
    %95 = arith.addf %93, %94 : vector<8x32xf32>
    %96 = arith.truncf %95 : vector<8x32xf32> to vector<8x32xbf16>
    %c0_49 = arith.constant 0 : index
    %c0_50 = arith.constant 0 : index
    %97 = vector.load %arg17[%c0_49, %c0_50] : memref<32x64xbf16, #tpu.memory_space<vmem>>, vector<32x64xbf16>
    %cst_51 = arith.constant dense<0.000000e+00> : vector<8x64xf32>
    %98 = tpu.matmul %96, %97, %cst_51 {dimension_numbers = #tpu.dot_dimension_numbers<[1], [0], [0], [1], [0, 0, 1, 1], [], []>} : vector<8x32xbf16>, vector<32x64xbf16>, vector<8x64xf32> -> vector<8x64xf32>
    %c0_52 = arith.constant 0 : index
    %c0_53 = arith.constant 0 : index
    %99 = vector.load %arg18[%c0_52, %c0_53] : memref<1x64xf32, #tpu.memory_space<vmem>>, vector<1x64xf32>
    %100 = vector.broadcast %99 : vector<1x64xf32> to vector<8x64xf32>
    %101 = arith.addf %98, %100 : vector<8x64xf32>
    %cst_54 = arith.constant 0.000000e+00 : f32
    %102 = vector.broadcast %cst_54 : f32 to vector<8x64xf32>
    %103 = arith.maximumf %101, %102 : vector<8x64xf32>
    %104 = arith.truncf %103 : vector<8x64xf32> to vector<8x64xbf16>
    %c0_55 = arith.constant 0 : index
    %c0_56 = arith.constant 0 : index
    %105 = vector.load %arg19[%c0_55, %c0_56] : memref<64x32xbf16, #tpu.memory_space<vmem>>, vector<64x32xbf16>
    %cst_57 = arith.constant dense<0.000000e+00> : vector<8x32xf32>
    %106 = tpu.matmul %104, %105, %cst_57 {dimension_numbers = #tpu.dot_dimension_numbers<[1], [0], [0], [1], [0, 0, 1, 1], [], []>} : vector<8x64xbf16>, vector<64x32xbf16>, vector<8x32xf32> -> vector<8x32xf32>
    %c0_58 = arith.constant 0 : index
    %c0_59 = arith.constant 0 : index
    %107 = vector.load %arg20[%c0_58, %c0_59] : memref<1x32xf32, #tpu.memory_space<vmem>>, vector<1x32xf32>
    %108 = vector.broadcast %107 : vector<1x32xf32> to vector<8x32xf32>
    %109 = arith.addf %106, %108 : vector<8x32xf32>
    %110 = arith.addf %95, %109 : vector<8x32xf32>
    %c0_60 = arith.constant 0 : index
    %c0_61 = arith.constant 0 : index
    %111 = vector.load %arg21[%c0_60, %c0_61] : memref<1x32xf32, #tpu.memory_space<vmem>>, vector<1x32xf32>
    %c0_62 = arith.constant 0 : index
    %c0_63 = arith.constant 0 : index
    %112 = vector.load %arg22[%c0_62, %c0_63] : memref<1x32xf32, #tpu.memory_space<vmem>>, vector<1x32xf32>
    %cst_64 = arith.constant dense<0.000000e+00> : vector<8xf32>
    %113 = vector.multi_reduction <add>, %110, %cst_64 [1] : vector<8x32xf32> to vector<8xf32>
    %114 = vector.shape_cast %113 : vector<8xf32> to vector<8x1xf32>
    %cst_65 = arith.constant 3.200000e+01 : f32
    %115 = vector.broadcast %cst_65 : f32 to vector<8x1xf32>
    %116 = arith.divf %114, %115 : vector<8x1xf32>
    %117 = vector.broadcast %116 : vector<8x1xf32> to vector<8x32xf32>
    %118 = arith.subf %110, %117 : vector<8x32xf32>
    %119 = arith.mulf %118, %118 : vector<8x32xf32>
    %cst_66 = arith.constant dense<0.000000e+00> : vector<8xf32>
    %120 = vector.multi_reduction <add>, %119, %cst_66 [1] : vector<8x32xf32> to vector<8xf32>
    %121 = vector.shape_cast %120 : vector<8xf32> to vector<8x1xf32>
    %cst_67 = arith.constant 3.200000e+01 : f32
    %122 = vector.broadcast %cst_67 : f32 to vector<8x1xf32>
    %123 = arith.divf %121, %122 : vector<8x1xf32>
    %124 = vector.broadcast %116 : vector<8x1xf32> to vector<8x32xf32>
    %125 = arith.subf %110, %124 : vector<8x32xf32>
    %cst_68 = arith.constant 9.99999974E-6 : f32
    %126 = vector.broadcast %cst_68 : f32 to vector<8x1xf32>
    %127 = arith.addf %123, %126 : vector<8x1xf32>
    %128 = math.rsqrt %127 : vector<8x1xf32>
    %129 = vector.broadcast %128 : vector<8x1xf32> to vector<8x32xf32>
    %130 = arith.mulf %125, %129 : vector<8x32xf32>
    %131 = vector.broadcast %111 : vector<1x32xf32> to vector<8x32xf32>
    %132 = arith.mulf %130, %131 : vector<8x32xf32>
    %133 = vector.broadcast %112 : vector<1x32xf32> to vector<8x32xf32>
    %134 = arith.addf %132, %133 : vector<8x32xf32>
    %c0_69 = arith.constant 0 : index
    %c0_70 = arith.constant 0 : index
    %c0_71 = arith.constant 0 : index
    %135 = vector.load %arg23[%c0_69, %c0_70, %c0_71] : memref<1x8x32xf32, #tpu.memory_space<vmem>>, vector<1x8x32xf32>
    %136 = vector.shape_cast %135 : vector<1x8x32xf32> to vector<8x32xf32>
    %137 = vector.shape_cast %134 : vector<8x32xf32> to vector<1x8x32xf32>
    tpu.vector_store %arg23[%c0_69, %c0_70, %c0_71], %137 {strides = array<i32>} : memref<1x8x32xf32, #tpu.memory_space<vmem>>, vector<1x8x32xf32>,
    return
  }
  func.func @transform_0(%arg0: i32, %arg1: i32) -> (i32, i32, i32) {
    %c0_i32 = arith.constant 0 : i32
    %c0_i32_0 = arith.constant 0 : i32
    return %arg0, %arg1, %c0_i32 : i32, i32, i32
  }
  func.func @transform_1(%arg0: i32, %arg1: i32) -> (i32, i32, i32) {
    %c0_i32 = arith.constant 0 : i32
    %c0_i32_0 = arith.constant 0 : i32
    %c0_i32_1 = arith.constant 0 : i32
    return %arg0, %c0_i32, %c0_i32_0 : i32, i32, i32
  }
  func.func @transform_2(%arg0: i32, %arg1: i32) -> (i32, i32, i32, i32) {
    %c0_i32 = arith.constant 0 : i32
    %c0_i32_0 = arith.constant 0 : i32
    %c0_i32_1 = arith.constant 0 : i32
    return %arg0, %arg1, %c0_i32, %c0_i32_0 : i32, i32, i32, i32
  }
  func.func @transform_3(%arg0: i32, %arg1: i32) -> (i32, i32) {
    %c0_i32 = arith.constant 0 : i32
    %c0_i32_0 = arith.constant 0 : i32
    %c0_i32_1 = arith.constant 0 : i32
    return %c0_i32, %c0_i32_0 : i32, i32
  }
  func.func @transform_4(%arg0: i32, %arg1: i32) -> (i32, i32) {
    %c0_i32 = arith.constant 0 : i32
    %c0_i32_0 = arith.constant 0 : i32
    %c0_i32_1 = arith.constant 0 : i32
    return %c0_i32, %c0_i32_0 : i32, i32
  }
  func.func @transform_5(%arg0: i32, %arg1: i32) -> (i32, i32) {
    %c0_i32 = arith.constant 0 : i32
    %c0_i32_0 = arith.constant 0 : i32
    %c0_i32_1 = arith.constant 0 : i32
    return %c0_i32, %c0_i32_0 : i32, i32
  }
  func.func @transform_6(%arg0: i32, %arg1: i32) -> (i32, i32) {
    %c0_i32 = arith.constant 0 : i32
    %c0_i32_0 = arith.constant 0 : i32
    %c0_i32_1 = arith.constant 0 : i32
    return %c0_i32, %c0_i32_0 : i32, i32
  }
  func.func @transform_7(%arg0: i32, %arg1: i32) -> (i32, i32) {
    %c0_i32 = arith.constant 0 : i32
    %c0_i32_0 = arith.constant 0 : i32
    %c0_i32_1 = arith.constant 0 : i32
    return %c0_i32, %c0_i32_0 : i32, i32
  }
  func.func @transform_8(%arg0: i32, %arg1: i32) -> (i32, i32) {
    %c0_i32 = arith.constant 0 : i32
    %c0_i32_0 = arith.constant 0 : i32
    %c0_i32_1 = arith.constant 0 : i32
    return %c0_i32, %c0_i32_0 : i32, i32
  }
  func.func @transform_9(%arg0: i32, %arg1: i32) -> (i32, i32, i32) {
    %c0_i32 = arith.constant 0 : i32
    %c0_i32_0 = arith.constant 0 : i32
    %c0_i32_1 = arith.constant 0 : i32
    %c0_i32_2 = arith.constant 0 : i32
    return %c0_i32, %c0_i32_0, %c0_i32_1 : i32, i32, i32
  }
  func.func @transform_10(%arg0: i32, %arg1: i32) -> (i32, i32, i32) {
    %c0_i32 = arith.constant 0 : i32
    %c0_i32_0 = arith.constant 0 : i32
    %c0_i32_1 = arith.constant 0 : i32
    %c0_i32_2 = arith.constant 0 : i32
    return %c0_i32, %c0_i32_0, %c0_i32_1 : i32, i32, i32
  }
  func.func @transform_11(%arg0: i32, %arg1: i32) -> (i32, i32) {
    %c0_i32 = arith.constant 0 : i32
    %c0_i32_0 = arith.constant 0 : i32
    %c0_i32_1 = arith.constant 0 : i32
    return %c0_i32, %c0_i32_0 : i32, i32
  }
  func.func @transform_12(%arg0: i32, %arg1: i32) -> (i32, i32) {
    %c0_i32 = arith.constant 0 : i32
    %c0_i32_0 = arith.constant 0 : i32
    %c0_i32_1 = arith.constant 0 : i32
    return %c0_i32, %c0_i32_0 : i32, i32
  }
  func.func @transform_13(%arg0: i32, %arg1: i32) -> (i32, i32) {
    %c0_i32 = arith.constant 0 : i32
    %c0_i32_0 = arith.constant 0 : i32
    %c0_i32_1 = arith.constant 0 : i32
    return %c0_i32, %c0_i32_0 : i32, i32
  }
  func.func @transform_14(%arg0: i32, %arg1: i32) -> (i32, i32) {
    %c0_i32 = arith.constant 0 : i32
    %c0_i32_0 = arith.constant 0 : i32
    %c0_i32_1 = arith.constant 0 : i32
    return %c0_i32, %c0_i32_0 : i32, i32
  }
  func.func @transform_15(%arg0: i32, %arg1: i32) -> (i32, i32) {
    %c0_i32 = arith.constant 0 : i32
    %c0_i32_0 = arith.constant 0 : i32
    %c0_i32_1 = arith.constant 0 : i32
    return %c0_i32, %c0_i32_0 : i32, i32
  }
  func.func @transform_16(%arg0: i32, %arg1: i32) -> (i32, i32) {
    %c0_i32 = arith.constant 0 : i32
    %c0_i32_0 = arith.constant 0 : i32
    %c0_i32_1 = arith.constant 0 : i32
    return %c0_i32, %c0_i32_0 : i32, i32
  }
  func.func @transform_17(%arg0: i32, %arg1: i32) -> (i32, i32) {
    %c0_i32 = arith.constant 0 : i32
    %c0_i32_0 = arith.constant 0 : i32
    %c0_i32_1 = arith.constant 0 : i32
    return %c0_i32, %c0_i32_0 : i32, i32
  }
  func.func @transform_18(%arg0: i32, %arg1: i32) -> (i32, i32) {
    %c0_i32 = arith.constant 0 : i32
    %c0_i32_0 = arith.constant 0 : i32
    %c0_i32_1 = arith.constant 0 : i32
    return %c0_i32, %c0_i32_0 : i32, i32
  }
  func.func @transform_19(%arg0: i32, %arg1: i32) -> (i32, i32) {
    %c0_i32 = arith.constant 0 : i32
    %c0_i32_0 = arith.constant 0 : i32
    %c0_i32_1 = arith.constant 0 : i32
    return %c0_i32, %c0_i32_0 : i32, i32
  }
  func.func @transform_20(%arg0: i32, %arg1: i32) -> (i32, i32) {
    %c0_i32 = arith.constant 0 : i32
    %c0_i32_0 = arith.constant 0 : i32
    %c0_i32_1 = arith.constant 0 : i32
    return %c0_i32, %c0_i32_0 : i32, i32
  }
  func.func @transform_21(%arg0: i32, %arg1: i32) -> (i32, i32, i32) {
    %c0_i32 = arith.constant 0 : i32
    %c0_i32_0 = arith.constant 0 : i32
    return %arg0, %arg1, %c0_i32 : i32, i32, i32
  }
  func.func @transform_22(%arg0: i32, %arg1: i32) -> (i32, i32, i32, i32) {
    %c0_i32 = arith.constant 0 : i32
    %c0_i32_0 = arith.constant 0 : i32
    %c0_i32_1 = arith.constant 0 : i32
    return %arg0, %c0_i32, %arg1, %c0_i32_0 : i32, i32, i32, i32
  }
}

module attributes {stable_mosaic.version = 11 : i64} {
  func.func @_rpe_transformer_kernel(%arg0: i32, %arg1: i32, %arg2: memref<1x8x32xf32, #tpu.memory_space<vmem>>, %arg3: memref<1x8x32xf32, #tpu.memory_space<vmem>>, %arg4: memref<1x8x8x32xbf16, #tpu.memory_space<vmem>>, %arg5: memref<32x32xbf16, #tpu.memory_space<vmem>>, %arg6: memref<1x32xf32, #tpu.memory_space<vmem>>, %arg7: memref<32x32xbf16, #tpu.memory_space<vmem>>, %arg8: memref<1x32xf32, #tpu.memory_space<vmem>>, %arg9: memref<32x32xbf16, #tpu.memory_space<vmem>>, %arg10: memref<1x32xf32, #tpu.memory_space<vmem>>, %arg11: memref<4x32x8xbf16, #tpu.memory_space<vmem>>, %arg12: memref<4x1x8xf32, #tpu.memory_space<vmem>>, %arg13: memref<32x32xbf16, #tpu.memory_space<vmem>>, %arg14: memref<1x32xf32, #tpu.memory_space<vmem>>, %arg15: memref<1x32xf32, #tpu.memory_space<vmem>>, %arg16: memref<1x32xf32, #tpu.memory_space<vmem>>, %arg17: memref<32x64xbf16, #tpu.memory_space<vmem>>, %arg18: memref<1x64xf32, #tpu.memory_space<vmem>>, %arg19: memref<64x32xbf16, #tpu.memory_space<vmem>>, %arg20: memref<1x32xf32, #tpu.memory_space<vmem>>, %arg21: memref<1x32xf32, #tpu.memory_space<vmem>>, %arg22: memref<1x32xf32, #tpu.memory_space<vmem>>, %arg23: memref<1x8x32xf32, #tpu.memory_space<vmem>>, %arg24: memref<1x4x8x8xf32, #tpu.memory_space<vmem>>, %arg25: memref<4x8x8xbf16, #tpu.memory_space<vmem>>, %arg26: memref<4x8x8xbf16, #tpu.memory_space<vmem>>) attributes {dimension_semantics = [#tpu.dimension_semantics<parallel>, #tpu.dimension_semantics<arbitrary>], iteration_bounds = array<i64: 2, 1>, scalar_prefetch = 0 : i64, scratch_operands = 2 : i64, tpu.core_type = #tpu.core_type<tc>, window_params = [{transform_indices = @transform_0, window_bounds = array<i64: 1, 8, 32>}, {transform_indices = @transform_1, window_bounds = array<i64: 1, 8, 32>}, {transform_indices = @transform_2, window_bounds = array<i64: 1, 8, 8, 32>}, {pipeline_mode = #tpu.pipeline_mode<synchronous>, transform_indices = @transform_3, window_bounds = array<i64: 32, 32>}, {pipeline_mode = #tpu.pipeline_mode<synchronous>, transform_indices = @transform_4, window_bounds = array<i64: 1, 32>}, {pipeline_mode = #tpu.pipeline_mode<synchronous>, transform_indices = @transform_5, window_bounds = array<i64: 32, 32>}, {pipeline_mode = #tpu.pipeline_mode<synchronous>, transform_indices = @transform_6, window_bounds = array<i64: 1, 32>}, {pipeline_mode = #tpu.pipeline_mode<synchronous>, transform_indices = @transform_7, window_bounds = array<i64: 32, 32>}, {pipeline_mode = #tpu.pipeline_mode<synchronous>, transform_indices = @transform_8, window_bounds = array<i64: 1, 32>}, {pipeline_mode = #tpu.pipeline_mode<synchronous>, transform_indices = @transform_9, window_bounds = array<i64: 4, 32, 8>}, {pipeline_mode = #tpu.pipeline_mode<synchronous>, transform_indices = @transform_10, window_bounds = array<i64: 4, 1, 8>}, {pipeline_mode = #tpu.pipeline_mode<synchronous>, transform_indices = @transform_11, window_bounds = array<i64: 32, 32>}, {pipeline_mode = #tpu.pipeline_mode<synchronous>, transform_indices = @transform_12, window_bounds = array<i64: 1, 32>}, {pipeline_mode = #tpu.pipeline_mode<synchronous>, transform_indices = @transform_13, window_bounds = array<i64: 1, 32>}, {pipeline_mode = #tpu.pipeline_mode<synchronous>, transform_indices = @transform_14, window_bounds = array<i64: 1, 32>}, {pipeline_mode = #tpu.pipeline_mode<synchronous>, transform_indices = @transform_15, window_bounds = array<i64: 32, 64>}, {pipeline_mode = #tpu.pipeline_mode<synchronous>, transform_indices = @transform_16, window_bounds = array<i64: 1, 64>}, {pipeline_mode = #tpu.pipeline_mode<synchronous>, transform_indices = @transform_17, window_bounds = array<i64: 64, 32>}, {pipeline_mode = #tpu.pipeline_mode<synchronous>, transform_indices = @transform_18, window_bounds = array<i64: 1, 32>}, {pipeline_mode = #tpu.pipeline_mode<synchronous>, transform_indices = @transform_19, window_bounds = array<i64: 1, 32>}, {pipeline_mode = #tpu.pipeline_mode<synchronous>, transform_indices = @transform_20, window_bounds = array<i64: 1, 32>}, {transform_indices = @transform_21, window_bounds = array<i64: 1, 8, 32>}, {transform_indices = @transform_22, window_bounds = array<i64: 1, 4, 8, 8>}]} {
    %c0 = arith.constant 0 : index
    %c0_0 = arith.constant 0 : index
    %c0_1 = arith.constant 0 : index
    %0 = vector.load %arg2[%c0, %c0_0, %c0_1] : memref<1x8x32xf32, #tpu.memory_space<vmem>>, vector<1x8x32xf32>
    %1 = vector.shape_cast %0 : vector<1x8x32xf32> to vector<8x32xf32>
    %c0_i32 = arith.constant 0 : i32
    %2 = arith.cmpi eq, %arg1, %c0_i32 : i32
    %3 = arith.extui %2 : i1 to i32
    %c0_i32_2 = arith.constant 0 : i32
    %4 = arith.cmpi ne, %3, %c0_i32_2 : i32
    scf.if %4 {
      %c0_72 = arith.constant 0 : index
      %c0_73 = arith.constant 0 : index
      %c0_74 = arith.constant 0 : index
      %138 = vector.load %arg3[%c0_72, %c0_73, %c0_74] : memref<1x8x32xf32, #tpu.memory_space<vmem>>, vector<1x8x32xf32>
      %139 = vector.shape_cast %138 : vector<1x8x32xf32> to vector<8x32xf32>
      %140 = arith.truncf %139 : vector<8x32xf32> to vector<8x32xbf16>
      %c0_75 = arith.constant 0 : index
      %c0_76 = arith.constant 0 : index
      %141 = vector.load %arg7[%c0_75, %c0_76] : memref<32x32xbf16, #tpu.memory_space<vmem>>, vector<32x32xbf16>
      %cst_77 = arith.constant dense<0.000000e+00> : vector<8x32xf32>
      %142 = tpu.matmul %140, %141, %cst_77 {dimension_numbers = #tpu.dot_dimension_numbers<[1], [0], [0], [1], [0, 0, 1, 1], [], []>} : vector<8x32xbf16>, vector<32x32xbf16>, vector<8x32xf32> -> vector<8x32xf32>
      %c0_78 = arith.constant 0 : index
      %c0_79 = arith.constant 0 : index
      %143 = vector.load %arg8[%c0_78, %c0_79] : memref<1x32xf32, #tpu.memory_space<vmem>>, vector<1x32xf32>
      %144 = vector.broadcast %143 : vector<1x32xf32> to vector<8x32xf32>
      %145 = arith.addf %142, %144 : vector<8x32xf32>
      %c0_80 = arith.constant 0 : index
      %c0_81 = arith.constant 0 : index
      %146 = vector.load %arg9[%c0_80, %c0_81] : memref<32x32xbf16, #tpu.memory_space<vmem>>, vector<32x32xbf16>
      %cst_82 = arith.constant dense<0.000000e+00> : vector<8x32xf32>
      %147 = tpu.matmul %140, %146, %cst_82 {dimension_numbers = #tpu.dot_dimension_numbers<[1], [0], [0], [1], [0, 0, 1, 1], [], []>} : vector<8x32xbf16>, vector<32x32xbf16>, vector<8x32xf32> -> vector<8x32xf32>
      %c0_83 = arith.constant 0 : index
      %c0_84 = arith.constant 0 : index
      %148 = vector.load %arg10[%c0_83, %c0_84] : memref<1x32xf32, #tpu.memory_space<vmem>>, vector<1x32xf32>
      %149 = vector.broadcast %148 : vector<1x32xf32> to vector<8x32xf32>
      %150 = arith.addf %147, %149 : vector<8x32xf32>
      %151 = vector.extract_strided_slice %145 {offsets = [0, 0], sizes = [8, 8], strides = [1, 1]} : vector<8x32xf32> to vector<8x8xf32>
      %152 = vector.extract_strided_slice %145 {offsets = [0, 8], sizes = [8, 8], strides = [1, 1]} : vector<8x32xf32> to vector<8x8xf32>
      %153 = vector.extract_strided_slice %145 {offsets = [0, 16], sizes = [8, 8], strides = [1, 1]} : vector<8x32xf32> to vector<8x8xf32>
      %154 = vector.extract_strided_slice %145 {offsets = [0, 24], sizes = [8, 8], strides = [1, 1]} : vector<8x32xf32> to vector<8x8xf32>
      %155 = vector.shape_cast %151 : vector<8x8xf32> to vector<1x8x8xf32>
      %156 = vector.shape_cast %152 : vector<8x8xf32> to vector<1x8x8xf32>
      %157 = vector.shape_cast %153 : vector<8x8xf32> to vector<1x8x8xf32>
      %158 = vector.shape_cast %154 : vector<8x8xf32> to vector<1x8x8xf32>
      %159 = tpu.concatenate %155, %156, %157, %158 in 0 : vector<1x8x8xf32>, vector<1x8x8xf32>, vector<1x8x8xf32>, vector<1x8x8xf32> -> vector<4x8x8xf32>
      %160 = arith.truncf %159 : vector<4x8x8xf32> to vector<4x8x8xbf16>
      %c0_85 = arith.constant 0 : index
      %c0_86 = arith.constant 0 : index
      %c0_87 = arith.constant 0 : index
      %161 = vector.load %arg25[%c0_85, %c0_86, %c0_87] : memref<4x8x8xbf16, #tpu.memory_space<vmem>>, vector<4x8x8xbf16>
      tpu.vector_store %arg25[%c0_85, %c0_86, %c0_87], %160 {strides = array<i32>} : memref<4x8x8xbf16, #tpu.memory_space<vmem>>, vector<4x8x8xbf16>,
      %162 = vector.extract_strided_slice %150 {offsets = [0, 0], sizes = [8, 8], strides = [1, 1]} : vector<8x32xf32> to vector<8x8xf32>
      %163 = vector.extract_strided_slice %150 {offsets = [0, 8], sizes = [8, 8], strides = [1, 1]} : vector<8x32xf32> to vector<8x8xf32>
      %164 = vector.extract_strided_slice %150 {offsets = [0, 16], sizes = [8, 8], strides = [1, 1]} : vector<8x32xf32> to vector<8x8xf32>
      %165 = vector.extract_strided_slice %150 {offsets = [0, 24], sizes = [8, 8], strides = [1, 1]} : vector<8x32xf32> to vector<8x8xf32>
      %166 = vector.shape_cast %162 : vector<8x8xf32> to vector<1x8x8xf32>
      %167 = vector.shape_cast %163 : vector<8x8xf32> to vector<1x8x8xf32>
      %168 = vector.shape_cast %164 : vector<8x8xf32> to vector<1x8x8xf32>
      %169 = vector.shape_cast %165 : vector<8x8xf32> to vector<1x8x8xf32>
      %170 = tpu.concatenate %166, %167, %168, %169 in 0 : vector<1x8x8xf32>, vector<1x8x8xf32>, vector<1x8x8xf32>, vector<1x8x8xf32> -> vector<4x8x8xf32>
      %171 = arith.truncf %170 : vector<4x8x8xf32> to vector<4x8x8xbf16>
      %c0_88 = arith.constant 0 : index
      %c0_89 = arith.constant 0 : index
      %c0_90 = arith.constant 0 : index
      %172 = vector.load %arg26[%c0_88, %c0_89, %c0_90] : memref<4x8x8xbf16, #tpu.memory_space<vmem>>, vector<4x8x8xbf16>
      tpu.vector_store %arg26[%c0_88, %c0_89, %c0_90], %171 {strides = array<i32>} : memref<4x8x8xbf16, #tpu.memory_space<vmem>>, vector<4x8x8xbf16>,
    } else {
    }
    %5 = arith.truncf %1 : vector<8x32xf32> to vector<8x32xbf16>
    %c0_3 = arith.constant 0 : index
    %c0_4 = arith.constant 0 : index
    %6 = vector.load %arg5[%c0_3, %c0_4] : memref<32x32xbf16, #tpu.memory_space<vmem>>, vector<32x32xbf16>
    %cst = arith.constant dense<0.000000e+00> : vector<8x32xf32>
    %7 = tpu.matmul %5, %6, %cst {dimension_numbers = #tpu.dot_dimension_numbers<[1], [0], [0], [1], [0, 0, 1, 1], [], []>} : vector<8x32xbf16>, vector<32x32xbf16>, vector<8x32xf32> -> vector<8x32xf32>
    %c0_5 = arith.constant 0 : index
    %c0_6 = arith.constant 0 : index
    %8 = vector.load %arg6[%c0_5, %c0_6] : memref<1x32xf32, #tpu.memory_space<vmem>>, vector<1x32xf32>
    %9 = vector.broadcast %8 : vector<1x32xf32> to vector<8x32xf32>
    %10 = arith.addf %7, %9 : vector<8x32xf32>
    %11 = vector.extract_strided_slice %10 {offsets = [0, 0], sizes = [8, 8], strides = [1, 1]} : vector<8x32xf32> to vector<8x8xf32>
    %12 = vector.extract_strided_slice %10 {offsets = [0, 8], sizes = [8, 8], strides = [1, 1]} : vector<8x32xf32> to vector<8x8xf32>
    %13 = vector.extract_strided_slice %10 {offsets = [0, 16], sizes = [8, 8], strides = [1, 1]} : vector<8x32xf32> to vector<8x8xf32>
    %14 = vector.extract_strided_slice %10 {offsets = [0, 24], sizes = [8, 8], strides = [1, 1]} : vector<8x32xf32> to vector<8x8xf32>
    %15 = vector.shape_cast %11 : vector<8x8xf32> to vector<1x8x8xf32>
    %16 = vector.shape_cast %12 : vector<8x8xf32> to vector<1x8x8xf32>
    %17 = vector.shape_cast %13 : vector<8x8xf32> to vector<1x8x8xf32>
    %18 = vector.shape_cast %14 : vector<8x8xf32> to vector<1x8x8xf32>
    %19 = tpu.concatenate %15, %16, %17, %18 in 0 : vector<1x8x8xf32>, vector<1x8x8xf32>, vector<1x8x8xf32>, vector<1x8x8xf32> -> vector<4x8x8xf32>
    %20 = arith.truncf %19 : vector<4x8x8xf32> to vector<4x8x8xbf16>
    %c0_7 = arith.constant 0 : index
    %c0_8 = arith.constant 0 : index
    %c0_9 = arith.constant 0 : index
    %21 = vector.load %arg25[%c0_7, %c0_8, %c0_9] : memref<4x8x8xbf16, #tpu.memory_space<vmem>>, vector<4x8x8xbf16>
    "tpu.trace_start"() <{level = 10 : i32, message = "hnd,hmd->hnm"}> : () -> ()
    %cst_10 = arith.constant dense<0.000000e+00> : vector<4x8x8xf32>
    %22 = tpu.matmul %20, %21, %cst_10 {dimension_numbers = #tpu.dot_dimension_numbers<[2], [2], [1], [1], [0, 0, 0, 1, 1, 1], [0], [0]>} : vector<4x8x8xbf16>, vector<4x8x8xbf16>, vector<4x8x8xf32> -> vector<4x8x8xf32>
    "tpu.trace_stop"() : () -> ()
    %c0_11 = arith.constant 0 : index
    %c0_12 = arith.constant 0 : index
    %c0_13 = arith.constant 0 : index
    %23 = vector.load %arg11[%c0_11, %c0_12, %c0_13] : memref<4x32x8xbf16, #tpu.memory_space<vmem>>, vector<4x32x8xbf16>
    "tpu.trace_start"() <{level = 10 : i32, message = "hnd,hcd->hnc"}> : () -> ()
    %cst_14 = arith.constant dense<0.000000e+00> : vector<4x8x32xf32>
    %24 = tpu.matmul %20, %23, %cst_14 {dimension_numbers = #tpu.dot_dimension_numbers<[2], [2], [1], [1], [0, 0, 0, 1, 1, 1], [0], [0]>} : vector<4x8x8xbf16>, vector<4x32x8xbf16>, vector<4x8x32xf32> -> vector<4x8x32xf32>
    "tpu.trace_stop"() : () -> ()
    %25 = arith.truncf %24 : vector<4x8x32xf32> to vector<4x8x32xbf16>
    %c0_15 = arith.constant 0 : index
    %c0_16 = arith.constant 0 : index
    %c0_17 = arith.constant 0 : index
    %c0_18 = arith.constant 0 : index
    %26 = vector.load %arg4[%c0_15, %c0_16, %c0_17, %c0_18] : memref<1x8x8x32xbf16, #tpu.memory_space<vmem>>, vector<1x8x8x32xbf16>
    %27 = vector.shape_cast %26 : vector<1x8x8x32xbf16> to vector<8x8x32xbf16>
    "tpu.trace_start"() <{level = 10 : i32, message = "hnc,nmc->hnm"}> : () -> ()
    %cst_19 = arith.constant dense<0.000000e+00> : vector<8x8x4xf32>
    %28 = tpu.matmul %27, %25, %cst_19 {dimension_numbers = #tpu.dot_dimension_numbers<[2], [2], [1], [0], [0, 0, 0, 1, 1, 0], [0], [1]>} : vector<8x8x32xbf16>, vector<4x8x32xbf16>, vector<8x8x4xf32> -> vector<8x8x4xf32>
    %29 = tpu.transpose %28, [2, 0, 1] : vector<8x8x4xf32> -> vector<4x8x8xf32>
    "tpu.trace_stop"() : () -> ()
    %c0_20 = arith.constant 0 : index
    %c0_21 = arith.constant 0 : index
    %c0_22 = arith.constant 0 : index
    %30 = vector.load %arg12[%c0_20, %c0_21, %c0_22] : memref<4x1x8xf32, #tpu.memory_space<vmem>>, vector<4x1x8xf32>
    %31 = vector.broadcast %30 : vector<4x1x8xf32> to vector<4x8x8xf32>
    %32 = arith.mulf %19, %31 : vector<4x8x8xf32>
    %cst_23 = arith.constant dense<0.000000e+00> : vector<4x8xf32>
    %33 = vector.multi_reduction <add>, %32, %cst_23 [2] : vector<4x8x8xf32> to vector<4x8xf32>
    %34 = vector.shape_cast %33 : vector<4x8xf32> to vector<4x8x1xf32>
    %35 = arith.addf %22, %29 : vector<4x8x8xf32>
    %36 = vector.broadcast %34 : vector<4x8x1xf32> to vector<4x8x8xf32>
    %37 = arith.addf %35, %36 : vector<4x8x8xf32>
    %cst_24 = arith.constant 0.353553385 : f32
    %38 = vector.broadcast %cst_24 : f32 to vector<4x8x8xf32>
    %39 = arith.mulf %37, %38 : vector<4x8x8xf32>
    %cst_25 = arith.constant dense<0xFF800000> : vector<4x8xf32>
    %40 = vector.multi_reduction <maximumf>, %39, %cst_25 [2] : vector<4x8x8xf32> to vector<4x8xf32>
    %41 = vector.shape_cast %40 : vector<4x8xf32> to vector<4x8x1xf32>
    %42 = vector.broadcast %41 : vector<4x8x1xf32> to vector<4x8x8xf32>
    %43 = arith.subf %39, %42 : vector<4x8x8xf32>
    %44 = math.exp %43 : vector<4x8x8xf32>
    %cst_26 = arith.constant dense<0.000000e+00> : vector<4x8xf32>
    %45 = vector.multi_reduction <add>, %44, %cst_26 [2] : vector<4x8x8xf32> to vector<4x8xf32>
    %46 = vector.shape_cast %45 : vector<4x8xf32> to vector<4x8x1xf32>
    %47 = tpu.reciprocal %46 {approx = true} : vector<4x8x1xf32> -> vector<4x8x1xf32>
    %48 = vector.broadcast %47 : vector<4x8x1xf32> to vector<4x8x8xf32>
    %49 = arith.mulf %44, %48 : vector<4x8x8xf32>
    %c0_27 = arith.constant 0 : index
    %c0_28 = arith.constant 0 : index
    %c0_29 = arith.constant 0 : index
    %c0_30 = arith.constant 0 : index
    %50 = vector.load %arg24[%c0_27, %c0_28, %c0_29, %c0_30] : memref<1x4x8x8xf32, #tpu.memory_space<vmem>>, vector<1x4x8x8xf32>
    %51 = vector.shape_cast %50 : vector<1x4x8x8xf32> to vector<4x8x8xf32>
    %52 = vector.shape_cast %49 : vector<4x8x8xf32> to vector<1x4x8x8xf32>
    tpu.vector_store %arg24[%c0_27, %c0_28, %c0_29, %c0_30], %52 {strides = array<i32>} : memref<1x4x8x8xf32, #tpu.memory_space<vmem>>, vector<1x4x8x8xf32>,
    %53 = arith.truncf %49 : vector<4x8x8xf32> to vector<4x8x8xbf16>
    %c0_31 = arith.constant 0 : index
    %c0_32 = arith.constant 0 : index
    %c0_33 = arith.constant 0 : index
    %54 = vector.load %arg26[%c0_31, %c0_32, %c0_33] : memref<4x8x8xbf16, #tpu.memory_space<vmem>>, vector<4x8x8xbf16>
    "tpu.trace_start"() <{level = 10 : i32, message = "hnm,hmd->hnd"}> : () -> ()
    %cst_34 = arith.constant dense<0.000000e+00> : vector<4x8x8xf32>
    %55 = tpu.matmul %53, %54, %cst_34 {dimension_numbers = #tpu.dot_dimension_numbers<[2], [1], [1], [2], [0, 0, 0, 1, 1, 2], [0], [0]>} : vector<4x8x8xbf16>, vector<4x8x8xbf16>, vector<4x8x8xf32> -> vector<4x8x8xf32>
    "tpu.trace_stop"() : () -> ()
    %56 = vector.extract_strided_slice %55 {offsets = [0, 0, 0], sizes = [1, 8, 8], strides = [1, 1, 1]} : vector<4x8x8xf32> to vector<1x8x8xf32>
    %57 = vector.shape_cast %56 : vector<1x8x8xf32> to vector<8x8xf32>
    %58 = vector.extract_strided_slice %55 {offsets = [1, 0, 0], sizes = [1, 8, 8], strides = [1, 1, 1]} : vector<4x8x8xf32> to vector<1x8x8xf32>
    %59 = vector.shape_cast %58 : vector<1x8x8xf32> to vector<8x8xf32>
    %60 = vector.extract_strided_slice %55 {offsets = [2, 0, 0], sizes = [1, 8, 8], strides = [1, 1, 1]} : vector<4x8x8xf32> to vector<1x8x8xf32>
    %61 = vector.shape_cast %60 : vector<1x8x8xf32> to vector<8x8xf32>
    %62 = vector.extract_strided_slice %55 {offsets = [3, 0, 0], sizes = [1, 8, 8], strides = [1, 1, 1]} : vector<4x8x8xf32> to vector<1x8x8xf32>
    %63 = vector.shape_cast %62 : vector<1x8x8xf32> to vector<8x8xf32>
    %64 = tpu.concatenate %57, %59, %61, %63 in 1 : vector<8x8xf32>, vector<8x8xf32>, vector<8x8xf32>, vector<8x8xf32> -> vector<8x32xf32>
    %65 = arith.truncf %64 : vector<8x32xf32> to vector<8x32xbf16>
    %c0_35 = arith.constant 0 : index
    %c0_36 = arith.constant 0 : index
    %66 = vector.load %arg13[%c0_35, %c0_36] : memref<32x32xbf16, #tpu.memory_space<vmem>>, vector<32x32xbf16>
    %cst_37 = arith.constant dense<0.000000e+00> : vector<8x32xf32>
    %67 = tpu.matmul %65, %66, %cst_37 {dimension_numbers = #tpu.dot_dimension_numbers<[1], [0], [0], [1], [0, 0, 1, 1], [], []>} : vector<8x32xbf16>, vector<32x32xbf16>, vector<8x32xf32> -> vector<8x32xf32>
    %c0_38 = arith.constant 0 : index
    %c0_39 = arith.constant 0 : index
    %68 = vector.load %arg14[%c0_38, %c0_39] : memref<1x32xf32, #tpu.memory_space<vmem>>, vector<1x32xf32>
    %69 = vector.broadcast %68 : vector<1x32xf32> to vector<8x32xf32>
    %70 = arith.addf %67, %69 : vector<8x32xf32>
    %71 = arith.addf %70, %1 : vector<8x32xf32>
    %c0_40 = arith.constant 0 : index
    %c0_41 = arith.constant 0 : index
    %72 = vector.load %arg15[%c0_40, %c0_41] : memref<1x32xf32, #tpu.memory_space<vmem>>, vector<1x32xf32>
    %c0_42 = arith.constant 0 : index
    %c0_43 = arith.constant 0 : index
    %73 = vector.load %arg16[%c0_42, %c0_43] : memref<1x32xf32, #tpu.memory_space<vmem>>, vector<1x32xf32>
    %cst_44 = arith.constant dense<0.000000e+00> : vector<8xf32>
    %74 = vector.multi_reduction <add>, %71, %cst_44 [1] : vector<8x32xf32> to vector<8xf32>
    %75 = vector.shape_cast %74 : vector<8xf32> to vector<8x1xf32>
    %cst_45 = arith.constant 3.200000e+01 : f32
    %76 = vector.broadcast %cst_45 : f32 to vector<8x1xf32>
    %77 = arith.divf %75, %76 : vector<8x1xf32>
    %78 = vector.broadcast %77 : vector<8x1xf32> to vector<8x32xf32>
    %79 = arith.subf %71, %78 : vector<8x32xf32>
    %80 = arith.mulf %79, %79 : vector<8x32xf32>
    %cst_46 = arith.constant dense<0.000000e+00> : vector<8xf32>
    %81 = vector.multi_reduction <add>, %80, %cst_46 [1] : vector<8x32xf32> to vector<8xf32>
    %82 = vector.shape_cast %81 : vector<8xf32> to vector<8x1xf32>
    %cst_47 = arith.constant 3.200000e+01 : f32
    %83 = vector.broadcast %cst_47 : f32 to vector<8x1xf32>
    %84 = arith.divf %82, %83 : vector<8x1xf32>
    %85 = vector.broadcast %77 : vector<8x1xf32> to vector<8x32xf32>
    %86 = arith.subf %71, %85 : vector<8x32xf32>
    %cst_48 = arith.constant 9.99999974E-6 : f32
    %87 = vector.broadcast %cst_48 : f32 to vector<8x1xf32>
    %88 = arith.addf %84, %87 : vector<8x1xf32>
    %89 = math.rsqrt %88 : vector<8x1xf32>
    %90 = vector.broadcast %89 : vector<8x1xf32> to vector<8x32xf32>
    %91 = arith.mulf %86, %90 : vector<8x32xf32>
    %92 = vector.broadcast %72 : vector<1x32xf32> to vector<8x32xf32>
    %93 = arith.mulf %91, %92 : vector<8x32xf32>
    %94 = vector.broadcast %73 : vector<1x32xf32> to vector<8x32xf32>
    %95 = arith.addf %93, %94 : vector<8x32xf32>
    %96 = arith.truncf %95 : vector<8x32xf32> to vector<8x32xbf16>
    %c0_49 = arith.constant 0 : index
    %c0_50 = arith.constant 0 : index
    %97 = vector.load %arg17[%c0_49, %c0_50] : memref<32x64xbf16, #tpu.memory_space<vmem>>, vector<32x64xbf16>
    %cst_51 = arith.constant dense<0.000000e+00> : vector<8x64xf32>
    %98 = tpu.matmul %96, %97, %cst_51 {dimension_numbers = #tpu.dot_dimension_numbers<[1], [0], [0], [1], [0, 0, 1, 1], [], []>} : vector<8x32xbf16>, vector<32x64xbf16>, vector<8x64xf32> -> vector<8x64xf32>
    %c0_52 = arith.constant 0 : index
    %c0_53 = arith.constant 0 : index
    %99 = vector.load %arg18[%c0_52, %c0_53] : memref<1x64xf32, #tpu.memory_space<vmem>>, vector<1x64xf32>
    %100 = vector.broadcast %99 : vector<1x64xf32> to vector<8x64xf32>
    %101 = arith.addf %98, %100 : vector<8x64xf32>
    %cst_54 = arith.constant 0.000000e+00 : f32
    %102 = vector.broadcast %cst_54 : f32 to vector<8x64xf32>
    %103 = arith.maximumf %101, %102 : vector<8x64xf32>
    %104 = arith.truncf %103 : vector<8x64xf32> to vector<8x64xbf16>
    %c0_55 = arith.constant 0 : index
    %c0_56 = arith.constant 0 : index
    %105 = vector.load %arg19[%c0_55, %c0_56] : memref<64x32xbf16, #tpu.memory_space<vmem>>, vector<64x32xbf16>
    %cst_57 = arith.constant dense<0.000000e+00> : vector<8x32xf32>
    %106 = tpu.matmul %104, %105, %cst_57 {dimension_numbers = #tpu.dot_dimension_numbers<[1], [0], [0], [1], [0, 0, 1, 1], [], []>} : vector<8x64xbf16>, vector<64x32xbf16>, vector<8x32xf32> -> vector<8x32xf32>
    %c0_58 = arith.constant 0 : index
    %c0_59 = arith.constant 0 : index
    %107 = vector.load %arg20[%c0_58, %c0_59] : memref<1x32xf32, #tpu.memory_space<vmem>>, vector<1x32xf32>
    %108 = vector.broadcast %107 : vector<1x32xf32> to vector<8x32xf32>
    %109 = arith.addf %106, %108 : vector<8x32xf32>
    %110 = arith.addf %95, %109 : vector<8x32xf32>
    %c0_60 = arith.constant 0 : index
    %c0_61 = arith.constant 0 : index
    %111 = vector.load %arg21[%c0_60, %c0_61] : memref<1x32xf32, #tpu.memory_space<vmem>>, vector<1x32xf32>
    %c0_62 = arith.constant 0 : index
    %c0_63 = arith.constant 0 : index
    %112 = vector.load %arg22[%c0_62, %c0_63] : memref<1x32xf32, #tpu.memory_space<vmem>>, vector<1x32xf32>
    %cst_64 = arith.constant dense<0.000000e+00> : vector<8xf32>
    %113 = vector.multi_reduction <add>, %110, %cst_64 [1] : vector<8x32xf32> to vector<8xf32>
    %114 = vector.shape_cast %113 : vector<8xf32> to vector<8x1xf32>
    %cst_65 = arith.constant 3.200000e+01 : f32
    %115 = vector.broadcast %cst_65 : f32 to vector<8x1xf32>
    %116 = arith.divf %114, %115 : vector<8x1xf32>
    %117 = vector.broadcast %116 : vector<8x1xf32> to vector<8x32xf32>
    %118 = arith.subf %110, %117 : vector<8x32xf32>
    %119 = arith.mulf %118, %118 : vector<8x32xf32>
    %cst_66 = arith.constant dense<0.000000e+00> : vector<8xf32>
    %120 = vector.multi_reduction <add>, %119, %cst_66 [1] : vector<8x32xf32> to vector<8xf32>
    %121 = vector.shape_cast %120 : vector<8xf32> to vector<8x1xf32>
    %cst_67 = arith.constant 3.200000e+01 : f32
    %122 = vector.broadcast %cst_67 : f32 to vector<8x1xf32>
    %123 = arith.divf %121, %122 : vector<8x1xf32>
    %124 = vector.broadcast %116 : vector<8x1xf32> to vector<8x32xf32>
    %125 = arith.subf %110, %124 : vector<8x32xf32>
    %cst_68 = arith.constant 9.99999974E-6 : f32
    %126 = vector.broadcast %cst_68 : f32 to vector<8x1xf32>
    %127 = arith.addf %123, %126 : vector<8x1xf32>
    %128 = math.rsqrt %127 : vector<8x1xf32>
    %129 = vector.broadcast %128 : vector<8x1xf32> to vector<8x32xf32>
    %130 = arith.mulf %125, %129 : vector<8x32xf32>
    %131 = vector.broadcast %111 : vector<1x32xf32> to vector<8x32xf32>
    %132 = arith.mulf %130, %131 : vector<8x32xf32>
    %133 = vector.broadcast %112 : vector<1x32xf32> to vector<8x32xf32>
    %134 = arith.addf %132, %133 : vector<8x32xf32>
    %c0_69 = arith.constant 0 : index
    %c0_70 = arith.constant 0 : index
    %c0_71 = arith.constant 0 : index
    %135 = vector.load %arg23[%c0_69, %c0_70, %c0_71] : memref<1x8x32xf32, #tpu.memory_space<vmem>>, vector<1x8x32xf32>
    %136 = vector.shape_cast %135 : vector<1x8x32xf32> to vector<8x32xf32>
    %137 = vector.shape_cast %134 : vector<8x32xf32> to vector<1x8x32xf32>
    tpu.vector_store %arg23[%c0_69, %c0_70, %c0_71], %137 {strides = array<i32>} : memref<1x8x32xf32, #tpu.memory_space<vmem>>, vector<1x8x32xf32>,
    return
  }
  func.func @transform_0(%arg0: i32, %arg1: i32) -> (i32, i32, i32) {
    %c0_i32 = arith.constant 0 : i32
    %c0_i32_0 = arith.constant 0 : i32
    return %arg0, %arg1, %c0_i32 : i32, i32, i32
  }
  func.func @transform_1(%arg0: i32, %arg1: i32) -> (i32, i32, i32) {
    %c0_i32 = arith.constant 0 : i32
    %c0_i32_0 = arith.constant 0 : i32
    %c0_i32_1 = arith.constant 0 : i32
    return %arg0, %c0_i32, %c0_i32_0 : i32, i32, i32
  }
  func.func @transform_2(%arg0: i32, %arg1: i32) -> (i32, i32, i32, i32) {
    %c0_i32 = arith.constant 0 : i32
    %c0_i32_0 = arith.constant 0 : i32
    %c0_i32_1 = arith.constant 0 : i32
    return %arg0, %arg1, %c0_i32, %c0_i32_0 : i32, i32, i32, i32
  }
  func.func @transform_3(%arg0: i32, %arg1: i32) -> (i32, i32) {
    %c0_i32 = arith.constant 0 : i32
    %c0_i32_0 = arith.constant 0 : i32
    %c0_i32_1 = arith.constant 0 : i32
    return %c0_i32, %c0_i32_0 : i32, i32
  }
  func.func @transform_4(%arg0: i32, %arg1: i32) -> (i32, i32) {
    %c0_i32 = arith.constant 0 : i32
    %c0_i32_0 = arith.constant 0 : i32
    %c0_i32_1 = arith.constant 0 : i32
    return %c0_i32, %c0_i32_0 : i32, i32
  }
  func.func @transform_5(%arg0: i32, %arg1: i32) -> (i32, i32) {
    %c0_i32 = arith.constant 0 : i32
    %c0_i32_0 = arith.constant 0 : i32
    %c0_i32_1 = arith.constant 0 : i32
    return %c0_i32, %c0_i32_0 : i32, i32
  }
  func.func @transform_6(%arg0: i32, %arg1: i32) -> (i32, i32) {
    %c0_i32 = arith.constant 0 : i32
    %c0_i32_0 = arith.constant 0 : i32
    %c0_i32_1 = arith.constant 0 : i32
    return %c0_i32, %c0_i32_0 : i32, i32
  }
  func.func @transform_7(%arg0: i32, %arg1: i32) -> (i32, i32) {
    %c0_i32 = arith.constant 0 : i32
    %c0_i32_0 = arith.constant 0 : i32
    %c0_i32_1 = arith.constant 0 : i32
    return %c0_i32, %c0_i32_0 : i32, i32
  }
  func.func @transform_8(%arg0: i32, %arg1: i32) -> (i32, i32) {
    %c0_i32 = arith.constant 0 : i32
    %c0_i32_0 = arith.constant 0 : i32
    %c0_i32_1 = arith.constant 0 : i32
    return %c0_i32, %c0_i32_0 : i32, i32
  }
  func.func @transform_9(%arg0: i32, %arg1: i32) -> (i32, i32, i32) {
    %c0_i32 = arith.constant 0 : i32
    %c0_i32_0 = arith.constant 0 : i32
    %c0_i32_1 = arith.constant 0 : i32
    %c0_i32_2 = arith.constant 0 : i32
    return %c0_i32, %c0_i32_0, %c0_i32_1 : i32, i32, i32
  }
  func.func @transform_10(%arg0: i32, %arg1: i32) -> (i32, i32, i32) {
    %c0_i32 = arith.constant 0 : i32
    %c0_i32_0 = arith.constant 0 : i32
    %c0_i32_1 = arith.constant 0 : i32
    %c0_i32_2 = arith.constant 0 : i32
    return %c0_i32, %c0_i32_0, %c0_i32_1 : i32, i32, i32
  }
  func.func @transform_11(%arg0: i32, %arg1: i32) -> (i32, i32) {
    %c0_i32 = arith.constant 0 : i32
    %c0_i32_0 = arith.constant 0 : i32
    %c0_i32_1 = arith.constant 0 : i32
    return %c0_i32, %c0_i32_0 : i32, i32
  }
  func.func @transform_12(%arg0: i32, %arg1: i32) -> (i32, i32) {
    %c0_i32 = arith.constant 0 : i32
    %c0_i32_0 = arith.constant 0 : i32
    %c0_i32_1 = arith.constant 0 : i32
    return %c0_i32, %c0_i32_0 : i32, i32
  }
  func.func @transform_13(%arg0: i32, %arg1: i32) -> (i32, i32) {
    %c0_i32 = arith.constant 0 : i32
    %c0_i32_0 = arith.constant 0 : i32
    %c0_i32_1 = arith.constant 0 : i32
    return %c0_i32, %c0_i32_0 : i32, i32
  }
  func.func @transform_14(%arg0: i32, %arg1: i32) -> (i32, i32) {
    %c0_i32 = arith.constant 0 : i32
    %c0_i32_0 = arith.constant 0 : i32
    %c0_i32_1 = arith.constant 0 : i32
    return %c0_i32, %c0_i32_0 : i32, i32
  }
  func.func @transform_15(%arg0: i32, %arg1: i32) -> (i32, i32) {
    %c0_i32 = arith.constant 0 : i32
    %c0_i32_0 = arith.constant 0 : i32
    %c0_i32_1 = arith.constant 0 : i32
    return %c0_i32, %c0_i32_0 : i32, i32
  }
  func.func @transform_16(%arg0: i32, %arg1: i32) -> (i32, i32) {
    %c0_i32 = arith.constant 0 : i32
    %c0_i32_0 = arith.constant 0 : i32
    %c0_i32_1 = arith.constant 0 : i32
    return %c0_i32, %c0_i32_0 : i32, i32
  }
  func.func @transform_17(%arg0: i32, %arg1: i32) -> (i32, i32) {
    %c0_i32 = arith.constant 0 : i32
    %c0_i32_0 = arith.constant 0 : i32
    %c0_i32_1 = arith.constant 0 : i32
    return %c0_i32, %c0_i32_0 : i32, i32
  }
  func.func @transform_18(%arg0: i32, %arg1: i32) -> (i32, i32) {
    %c0_i32 = arith.constant 0 : i32
    %c0_i32_0 = arith.constant 0 : i32
    %c0_i32_1 = arith.constant 0 : i32
    return %c0_i32, %c0_i32_0 : i32, i32
  }
  func.func @transform_19(%arg0: i32, %arg1: i32) -> (i32, i32) {
    %c0_i32 = arith.constant 0 : i32
    %c0_i32_0 = arith.constant 0 : i32
    %c0_i32_1 = arith.constant 0 : i32
    return %c0_i32, %c0_i32_0 : i32, i32
  }
  func.func @transform_20(%arg0: i32, %arg1: i32) -> (i32, i32) {
    %c0_i32 = arith.constant 0 : i32
    %c0_i32_0 = arith.constant 0 : i32
    %c0_i32_1 = arith.constant 0 : i32
    return %c0_i32, %c0_i32_0 : i32, i32
  }
  func.func @transform_21(%arg0: i32, %arg1: i32) -> (i32, i32, i32) {
    %c0_i32 = arith.constant 0 : i32
    %c0_i32_0 = arith.constant 0 : i32
    return %arg0, %arg1, %c0_i32 : i32, i32, i32
  }
  func.func @transform_22(%arg0: i32, %arg1: i32) -> (i32, i32, i32, i32) {
    %c0_i32 = arith.constant 0 : i32
    %c0_i32_0 = arith.constant 0 : i32
    %c0_i32_1 = arith.constant 0 : i32
    return %arg0, %c0_i32, %arg1, %c0_i32_0 : i32, i32, i32, i32
  }
}

</mosaic_0001>

<llo_original>
// kernel: tpu_custom_call.1
$region0: #{tpu_custom_call.1}
  #allocation0 [shape = 'u32[]', space=smem, size = 0x4, offset = 0x4, fixed_abs, tag = 'smem constant byte address 0x4 - core index']
  #allocation1 [shape = 'u32[144,128]{1,0:T(1,128)}', space=vmem, size = 0x12000, scoped, tag = 'internal scratch']
  #allocation2 [shape = 'bf16[4,8,8]{2,1,0:T(8,128)(2,1)}', space=vmem, size = 0x2000, scoped, tag = 'scratch operand']
  #allocation3 [shape = 'bf16[4,8,8]{2,1,0:T(8,128)(2,1)}', space=vmem, size = 0x2000, scoped, tag = 'scratch operand']
  %s0 = inlined_call_operand.vmem [shape: f32[2,8,32], index: 0, kind: input, shape index: {}]
  %s1 = inlined_call_operand.vmem [shape: f32[2,8,32], index: 1, kind: input, shape index: {}]
  %s2 = inlined_call_operand.vmem [shape: bf16[2,8,8,32], index: 2, kind: input, shape index: {}]
  %s3 = inlined_call_operand.vmem [shape: bf16[32,32], index: 3, kind: input, shape index: {}]
  %s4 = inlined_call_operand.vmem [shape: f32[1,32], index: 4, kind: input, shape index: {}]
  %s5 = inlined_call_operand.hbm [shape: bf16[32,32], index: 5, kind: input, shape index: {}]
  %s6 = inlined_call_operand.hbm [shape: f32[1,32], index: 6, kind: input, shape index: {}]
  %s7 = inlined_call_operand.hbm [shape: bf16[32,32], index: 7, kind: input, shape index: {}]
  %s8 = inlined_call_operand.hbm [shape: f32[1,32], index: 8, kind: input, shape index: {}]
  %s9 = inlined_call_operand.vmem [shape: bf16[4,32,8], index: 9, kind: input, shape index: {}]
  %s10 = inlined_call_operand.hbm [shape: f32[4,1,8], index: 10, kind: input, shape index: {}]
  %s11 = inlined_call_operand.vmem [shape: bf16[32,32], index: 11, kind: input, shape index: {}]
  %s12 = inlined_call_operand.hbm [shape: f32[1,32], index: 12, kind: input, shape index: {}]
  %s13 = inlined_call_operand.hbm [shape: f32[1,32], index: 13, kind: input, shape index: {}]
  %s14 = inlined_call_operand.vmem [shape: f32[1,32], index: 14, kind: input, shape index: {}]
  %s15 = inlined_call_operand.vmem [shape: bf16[32,64], index: 15, kind: input, shape index: {}]
  %s16 = inlined_call_operand.vmem [shape: f32[1,64], index: 16, kind: input, shape index: {}]
  %s17 = inlined_call_operand.vmem [shape: bf16[64,32], index: 17, kind: input, shape index: {}]
  %s18 = inlined_call_operand.vmem [shape: f32[1,32], index: 18, kind: input, shape index: {}]
  %s19 = inlined_call_operand.vmem [shape: f32[1,32], index: 19, kind: input, shape index: {}]
  %s20 = inlined_call_operand.vmem [shape: f32[1,32], index: 20, kind: input, shape index: {}]
  %s21 = inlined_call_operand.hbm [shape: f32[2,8,32], index: 21, kind: output, shape index: {0}]
  %s22 = inlined_call_operand.hbm [shape: f32[2,4,8,8], index: 22, kind: output, shape index: {1}]
  %23 = xla_tuple %s21, %s22
  %s24 = sld [smem:[#allocation0]]
  $region157: #{tpu_custom_call.1} parent=0
    _
  %s26 = ssub.s32 1, %s24
  %s27 = scalar_select 0, %s26, %s24
  $region1: #{tpu_custom_call.1} parent=0
    #allocation4 [shape = 'u8[8192]{0}', space=vmem, size = 0x2000, scoped, tag = 'input window, operand 5, single buffered']
    #allocation5 [shape = 's32[2]{0}', space=sflag, size = 0x8, scoped, tag = 'scoped memory for tpu_custom_call.1']
    #allocation6 [shape = 's32[2]{0}', space=sflag, size = 0x8, scoped, tag = 'scoped memory for tpu_custom_call.1']
    #allocation7 [shape = 'u8[512]{0}', space=vmem, size = 0x400, scoped, tag = 'input window, operand 6, single buffered']
    #allocation8 [shape = 's32[1]{0}', space=sflag, size = 0x4, scoped, tag = 'scoped memory for tpu_custom_call.1']
    #allocation9 [shape = 'u8[8192]{0}', space=vmem, size = 0x2000, scoped, tag = 'input window, operand 7, single buffered']
    #allocation10 [shape = 'u8[512]{0}', space=vmem, size = 0x400, scoped, tag = 'input window, operand 8, single buffered']
    #allocation11 [shape = 's32[1]{0}', space=sflag, size = 0x4, scoped, tag = 'scoped memory for tpu_custom_call.1']
    #allocation12 [shape = 'u8[2048]{0}', space=vmem, size = 0x800, scoped, tag = 'input window, operand 10, single buffered']
    #allocation13 [shape = 'u8[512]{0}', space=vmem, size = 0x400, scoped, tag = 'input window, operand 12, single buffered']
    #allocation14 [shape = 's32[1]{0}', space=sflag, size = 0x4, scoped, tag = 'scoped memory for tpu_custom_call.1']
    #allocation15 [shape = 'u8[512]{0}', space=vmem, size = 0x400, scoped, tag = 'input window, operand 13, single buffered']
    #allocation16 [shape = 'u8[8192]{0}', space=vmem, size = 0x2000, scoped, tag = 'output window, operand 0']
    #allocation17 [shape = 'u8[32768]{0}', space=vmem, size = 0x8000, scoped, tag = 'output window, operand 1']
    #allocation18 [shape = 's32[2]{0}', space=sflag, size = 0x8, scoped, tag = 'scoped memory for tpu_custom_call.1']
    %28 = vsyncpa [#allocation5], 0
    %29 = vsyncpa [#allocation8], 0
    %30 = vsyncpa [#allocation11], 0
    %31 = vsyncpa [#allocation14], 0
    %32 = vsyncpa [#allocation6], 0
    %s33 = scalar_lea.sflag [#allocation6], 1
    %34 = vsyncpa %s33, 0
    %35 = vsyncpa [#allocation18], 0
    %s36 = scalar_lea.sflag [#allocation18], 1
    %37 = vsyncpa %s36, 0
    loop: start=0, step=1, limit=4
    $region2: #{tpu_custom_call.1} parent=1 // loop_pre_header
      _
    $region3: #{tpu_custom_call.1} parent=1 // loop_header
      %s39 = sphi 0, %s43
      %p40 = scmp.ge.s32.totalorder %s39, 4
      %s46 = sphi 0, %s58
      %s47 = sphi 0, %s54
      %s48 = sphi 0, %s46
      %s49 = sphi 0, %s47
      %s50 = sphi 0, %s48
      %s51 = sphi 0, %s49
      %s63 = sphi 0, %s65
      %s66 = sphi 0, %s63
      %s67 = sphi 0, %s66
      %s83 = sphi 0, %s67
      %s89 = sphi 0, %s91
      %s92 = sphi 0, %s89
      %s93 = sphi 0, %s92
      %s109 = sphi 0, %s93
      %s117 = sphi 0, %s119
      %s120 = sphi 0, %s117
      %s121 = sphi 0, %s120
      %s137 = sphi 0, %s121
      %s141 = sphi 0, %s141
      %s143 = sphi 0, %s141
      %s144 = sphi 0, %s143
      %s158 = sphi 0, %s144
      %s162 = sphi 0, %s162
      %s164 = sphi 0, %s162
      %s165 = sphi 0, %s164
      %s179 = sphi 0, %s165
      %s183 = sphi 0, %s183
      %s185 = sphi 0, %s183
      %s186 = sphi 0, %s185
      %s200 = sphi 0, %s186
      %s204 = sphi 0, %s204
      %s206 = sphi 0, %s204
      %s207 = sphi 0, %s206
      %s221 = sphi 0, %s207
      %s225 = sphi 0, %s225
      %s227 = sphi 0, %s225
      %s228 = sphi 0, %s227
      %s242 = sphi 0, %s228
      %s246 = sphi 0, %s246
      %s248 = sphi 0, %s246
      %s249 = sphi 0, %s248
      %s263 = sphi 0, %s249
      %s267 = sphi 0, %s267
      %s269 = sphi 0, %s267
      %s270 = sphi 0, %s269
      %s284 = sphi 0, %s270
      %s288 = sphi 0, %s288
      %s290 = sphi 0, %s288
      %s291 = sphi 0, %s290
      %s305 = sphi 0, %s291
      %s309 = sphi 0, %s309
      %s311 = sphi 0, %s309
      %s312 = sphi 0, %s311
      %s326 = sphi 0, %s312
      %s330 = sphi 0, %s330
      %s332 = sphi 0, %s330
      %s333 = sphi 0, %s332
      %s347 = sphi 0, %s333
      %s351 = sphi 0, %s351
      %s353 = sphi 0, %s351
      %s354 = sphi 0, %s353
      %s368 = sphi 0, %s354
      %s372 = sphi 0, %s372
      %s374 = sphi 0, %s372
      %s375 = sphi 0, %s374
      %s389 = sphi 0, %s375
      %s393 = sphi 0, %s393
      %s395 = sphi 0, %s393
      %s396 = sphi 0, %s395
      %s410 = sphi 0, %s396
      %s414 = sphi 0, %s414
      %s416 = sphi 0, %s414
      %s417 = sphi 0, %s416
      %s431 = sphi 0, %s417
      %s435 = sphi 0, %s435
      %s437 = sphi 0, %s435
      %s438 = sphi 0, %s437
      %s452 = sphi 0, %s438
      %s456 = sphi 0, %s456
      %s458 = sphi 0, %s456
      %s459 = sphi 0, %s458
      %s473 = sphi 0, %s459
      %s477 = sphi 0, %s477
      %s479 = sphi 0, %s477
      %s480 = sphi 0, %s479
      %s494 = sphi 0, %s480
      %s498 = sphi 0, %s498
      %s500 = sphi 0, %s498
      %s501 = sphi 0, %s500
      %s515 = sphi 0, %s501
      %s523 = sphi 0, %s525
      %s526 = sphi 0, %s523
      %s527 = sphi 0, %s526
      %s543 = sphi 0, %s527
      %s551 = sphi 0, %s553
      %s554 = sphi 0, %s551
      %s555 = sphi 0, %s554
      %s571 = sphi 0, %s555
    $region4: #{tpu_custom_call.1} parent=1 // loop_header_branch
      %42 = sbr.rel (%p40) target = $region8
    $region5: #{tpu_custom_call.1} parent=1 // loop_body
      %s44 = ssub.s32 %s39, 1
      %s45 = ssub.s32 %s39, 2
      %s52 = sadd.s32 1, %s47
      %p53 = scmp.ge.s32.totalorder %s52, 1
      %s54 = scalar_select %p53, 0, %s52
      %s55 = sadd.s32 1, %s46
      %s56 = scalar_select %p53, %s55, %s46
      %p57 = scmp.ge.s32.totalorder %s56, 2
      %s58 = scalar_select %p57, 0, %s56
      %s59 = ssub.s32 %s46, %s58
      %s60 = ssub.s32 %s47, %s54
      %s61 = sor.u32 %s59, %s60
      %p62 = scmp.eq.s32.totalorder %s61, 0
      %s64 = sadd.s32 %s63, 1
      %s65 = scalar_select %p62, %s63, %s64
      %p68 = pneg %p62
      %p69 = scmp.eq.s32.totalorder %s39, 1
      %p70 = por %p68, %p69
      %p71 = scmp.ne.s32.totalorder %s63, %s66
      %p72 = scmp.eq.s32.totalorder %s39, 0
      %p73 = por %p71, %p72
      %p74 = scmp.ne.s32.totalorder %s63, %s66
      %p75 = scmp.eq.s32.totalorder %s44, 1
      %p76 = por %p74, %p75
      %p77 = scmp.ne.s32.totalorder %s66, %s67
      %p78 = scmp.eq.s32.totalorder %s44, 0
      %p79 = por %p77, %p78
      %p80 = scmp.ne.s32.totalorder %s66, %s67
      %p81 = scmp.eq.s32.totalorder %s45, 1
      %p82 = por %p80, %p81
      %p84 = scmp.ne.s32.totalorder %s67, %s83
      %p85 = scmp.eq.s32.totalorder %s45, 0
      %p86 = por %p84, %p85
      %s87 = ssub.s32 %s46, %s58
      %p88 = scmp.eq.s32.totalorder %s87, 0
      %s90 = sadd.s32 %s89, 1
      %s91 = scalar_select %p88, %s89, %s90
      %p94 = pneg %p88
      %p95 = scmp.eq.s32.totalorder %s39, 1
      %p96 = por %p94, %p95
      %p97 = scmp.ne.s32.totalorder %s89, %s92
      %p98 = scmp.eq.s32.totalorder %s39, 0
      %p99 = por %p97, %p98
      %p100 = scmp.ne.s32.totalorder %s89, %s92
      %p101 = scmp.eq.s32.totalorder %s44, 1
      %p102 = por %p100, %p101
      %p103 = scmp.ne.s32.totalorder %s92, %s93
      %p104 = scmp.eq.s32.totalorder %s44, 0
      %p105 = por %p103, %p104
      %p106 = scmp.ne.s32.totalorder %s92, %s93
      %p107 = scmp.eq.s32.totalorder %s45, 1
      %p108 = por %p106, %p107
      %p110 = scmp.ne.s32.totalorder %s93, %s109
      %p111 = scmp.eq.s32.totalorder %s45, 0
      %p112 = por %p110, %p111
      %s113 = ssub.s32 %s46, %s58
      %s114 = ssub.s32 %s47, %s54
      %s115 = sor.u32 %s113, %s114
      %p116 = scmp.eq.s32.totalorder %s115, 0
      %s118 = sadd.s32 %s117, 1
      %s119 = scalar_select %p116, %s117, %s118
      %p122 = pneg %p116
      %p123 = scmp.eq.s32.totalorder %s39, 1
      %p124 = por %p122, %p123
      %p125 = scmp.ne.s32.totalorder %s117, %s120
      %p126 = scmp.eq.s32.totalorder %s39, 0
      %p127 = por %p125, %p126
      %p128 = scmp.ne.s32.totalorder %s117, %s120
      %p129 = scmp.eq.s32.totalorder %s44, 1
      %p130 = por %p128, %p129
      %p131 = scmp.ne.s32.totalorder %s120, %s121
      %p132 = scmp.eq.s32.totalorder %s44, 0
      %p133 = por %p131, %p132
      %p134 = scmp.ne.s32.totalorder %s120, %s121
      %p135 = scmp.eq.s32.totalorder %s45, 1
      %p136 = por %p134, %p135
      %p138 = scmp.ne.s32.totalorder %s121, %s137
      %p139 = scmp.eq.s32.totalorder %s45, 0
      %p140 = por %p138, %p139
      %s142 = sadd.s32 %s141, 1
      %p145 = scmp.eq.s32.totalorder %s39, 1
      %p146 = scmp.ne.s32.totalorder %s141, %s143
      %p147 = scmp.eq.s32.totalorder %s39, 0
      %p148 = por %p146, %p147
      %p149 = scmp.ne.s32.totalorder %s141, %s143
      %p150 = scmp.eq.s32.totalorder %s44, 1
      %p151 = por %p149, %p150
      %p152 = scmp.ne.s32.totalorder %s143, %s144
      %p153 = scmp.eq.s32.totalorder %s44, 0
      %p154 = por %p152, %p153
      %p155 = scmp.ne.s32.totalorder %s143, %s144
      %p156 = scmp.eq.s32.totalorder %s45, 1
      %p157 = por %p155, %p156
      %p159 = scmp.ne.s32.totalorder %s144, %s158
      %p160 = scmp.eq.s32.totalorder %s45, 0
      %p161 = por %p159, %p160
      %s163 = sadd.s32 %s162, 1
      %p166 = scmp.eq.s32.totalorder %s39, 1
      %p167 = scmp.ne.s32.totalorder %s162, %s164
      %p168 = scmp.eq.s32.totalorder %s39, 0
      %p169 = por %p167, %p168
      %p170 = scmp.ne.s32.totalorder %s162, %s164
      %p171 = scmp.eq.s32.totalorder %s44, 1
      %p172 = por %p170, %p171
      %p173 = scmp.ne.s32.totalorder %s164, %s165
      %p174 = scmp.eq.s32.totalorder %s44, 0
      %p175 = por %p173, %p174
      %p176 = scmp.ne.s32.totalorder %s164, %s165
      %p177 = scmp.eq.s32.totalorder %s45, 1
      %p178 = por %p176, %p177
      %p180 = scmp.ne.s32.totalorder %s165, %s179
      %p181 = scmp.eq.s32.totalorder %s45, 0
      %p182 = por %p180, %p181
      %s184 = sadd.s32 %s183, 1
      %p187 = scmp.eq.s32.totalorder %s39, 1
      %p188 = scmp.ne.s32.totalorder %s183, %s185
      %p189 = scmp.eq.s32.totalorder %s39, 0
      %p190 = por %p188, %p189
      %p191 = scmp.ne.s32.totalorder %s183, %s185
      %p192 = scmp.eq.s32.totalorder %s44, 1
      %p193 = por %p191, %p192
      %p194 = scmp.ne.s32.totalorder %s185, %s186
      %p195 = scmp.eq.s32.totalorder %s44, 0
      %p196 = por %p194, %p195
      %p197 = scmp.ne.s32.totalorder %s185, %s186
      %p198 = scmp.eq.s32.totalorder %s45, 1
      %p199 = por %p197, %p198
      %p201 = scmp.ne.s32.totalorder %s186, %s200
      %p202 = scmp.eq.s32.totalorder %s45, 0
      %p203 = por %p201, %p202
      %s205 = sadd.s32 %s204, 1
      %p208 = scmp.eq.s32.totalorder %s39, 1
      %p209 = scmp.ne.s32.totalorder %s204, %s206
      %p210 = scmp.eq.s32.totalorder %s39, 0
      %p211 = por %p209, %p210
      %p212 = scmp.ne.s32.totalorder %s204, %s206
      %p213 = scmp.eq.s32.totalorder %s44, 1
      %p214 = por %p212, %p213
      %p215 = scmp.ne.s32.totalorder %s206, %s207
      %p216 = scmp.eq.s32.totalorder %s44, 0
      %p217 = por %p215, %p216
      %p218 = scmp.ne.s32.totalorder %s206, %s207
      %p219 = scmp.eq.s32.totalorder %s45, 1
      %p220 = por %p218, %p219
      %p222 = scmp.ne.s32.totalorder %s207, %s221
      %p223 = scmp.eq.s32.totalorder %s45, 0
      %p224 = por %p222, %p223
      %s226 = sadd.s32 %s225, 1
      %p229 = scmp.eq.s32.totalorder %s39, 1
      %p230 = scmp.ne.s32.totalorder %s225, %s227
      %p231 = scmp.eq.s32.totalorder %s39, 0
      %p232 = por %p230, %p231
      %p233 = scmp.ne.s32.totalorder %s225, %s227
      %p234 = scmp.eq.s32.totalorder %s44, 1
      %p235 = por %p233, %p234
      %p236 = scmp.ne.s32.totalorder %s227, %s228
      %p237 = scmp.eq.s32.totalorder %s44, 0
      %p238 = por %p236, %p237
      %p239 = scmp.ne.s32.totalorder %s227, %s228
      %p240 = scmp.eq.s32.totalorder %s45, 1
      %p241 = por %p239, %p240
      %p243 = scmp.ne.s32.totalorder %s228, %s242
      %p244 = scmp.eq.s32.totalorder %s45, 0
      %p245 = por %p243, %p244
      %s247 = sadd.s32 %s246, 1
      %p250 = scmp.eq.s32.totalorder %s39, 1
      %p251 = scmp.ne.s32.totalorder %s246, %s248
      %p252 = scmp.eq.s32.totalorder %s39, 0
      %p253 = por %p251, %p252
      %p254 = scmp.ne.s32.totalorder %s246, %s248
      %p255 = scmp.eq.s32.totalorder %s44, 1
      %p256 = por %p254, %p255
      %p257 = scmp.ne.s32.totalorder %s248, %s249
      %p258 = scmp.eq.s32.totalorder %s44, 0
      %p259 = por %p257, %p258
      %p260 = scmp.ne.s32.totalorder %s248, %s249
      %p261 = scmp.eq.s32.totalorder %s45, 1
      %p262 = por %p260, %p261
      %p264 = scmp.ne.s32.totalorder %s249, %s263
      %p265 = scmp.eq.s32.totalorder %s45, 0
      %p266 = por %p264, %p265
      %s268 = sadd.s32 %s267, 1
      %p271 = scmp.eq.s32.totalorder %s39, 1
      %p272 = scmp.ne.s32.totalorder %s267, %s269
      %p273 = scmp.eq.s32.totalorder %s39, 0
      %p274 = por %p272, %p273
      %p275 = scmp.ne.s32.totalorder %s267, %s269
      %p276 = scmp.eq.s32.totalorder %s44, 1
      %p277 = por %p275, %p276
      %p278 = scmp.ne.s32.totalorder %s269, %s270
      %p279 = scmp.eq.s32.totalorder %s44, 0
      %p280 = por %p278, %p279
      %p281 = scmp.ne.s32.totalorder %s269, %s270
      %p282 = scmp.eq.s32.totalorder %s45, 1
      %p283 = por %p281, %p282
      %p285 = scmp.ne.s32.totalorder %s270, %s284
      %p286 = scmp.eq.s32.totalorder %s45, 0
      %p287 = por %p285, %p286
      %s289 = sadd.s32 %s288, 1
      %p292 = scmp.eq.s32.totalorder %s39, 1
      %p293 = scmp.ne.s32.totalorder %s288, %s290
      %p294 = scmp.eq.s32.totalorder %s39, 0
      %p295 = por %p293, %p294
      %p296 = scmp.ne.s32.totalorder %s288, %s290
      %p297 = scmp.eq.s32.totalorder %s44, 1
      %p298 = por %p296, %p297
      %p299 = scmp.ne.s32.totalorder %s290, %s291
      %p300 = scmp.eq.s32.totalorder %s44, 0
      %p301 = por %p299, %p300
      %p302 = scmp.ne.s32.totalorder %s290, %s291
      %p303 = scmp.eq.s32.totalorder %s45, 1
      %p304 = por %p302, %p303
      %p306 = scmp.ne.s32.totalorder %s291, %s305
      %p307 = scmp.eq.s32.totalorder %s45, 0
      %p308 = por %p306, %p307
      %s310 = sadd.s32 %s309, 1
      %p313 = scmp.eq.s32.totalorder %s39, 1
      %p314 = scmp.ne.s32.totalorder %s309, %s311
      %p315 = scmp.eq.s32.totalorder %s39, 0
      %p316 = por %p314, %p315
      %p317 = scmp.ne.s32.totalorder %s309, %s311
      %p318 = scmp.eq.s32.totalorder %s44, 1
      %p319 = por %p317, %p318
      %p320 = scmp.ne.s32.totalorder %s311, %s312
      %p321 = scmp.eq.s32.totalorder %s44, 0
      %p322 = por %p320, %p321
      %p323 = scmp.ne.s32.totalorder %s311, %s312
      %p324 = scmp.eq.s32.totalorder %s45, 1
      %p325 = por %p323, %p324
      %p327 = scmp.ne.s32.totalorder %s312, %s326
      %p328 = scmp.eq.s32.totalorder %s45, 0
      %p329 = por %p327, %p328
      %s331 = sadd.s32 %s330, 1
      %p334 = scmp.eq.s32.totalorder %s39, 1
      %p335 = scmp.ne.s32.totalorder %s330, %s332
      %p336 = scmp.eq.s32.totalorder %s39, 0
      %p337 = por %p335, %p336
      %p338 = scmp.ne.s32.totalorder %s330, %s332
      %p339 = scmp.eq.s32.totalorder %s44, 1
      %p340 = por %p338, %p339
      %p341 = scmp.ne.s32.totalorder %s332, %s333
      %p342 = scmp.eq.s32.totalorder %s44, 0
      %p343 = por %p341, %p342
      %p344 = scmp.ne.s32.totalorder %s332, %s333
      %p345 = scmp.eq.s32.totalorder %s45, 1
      %p346 = por %p344, %p345
      %p348 = scmp.ne.s32.totalorder %s333, %s347
      %p349 = scmp.eq.s32.totalorder %s45, 0
      %p350 = por %p348, %p349
      %s352 = sadd.s32 %s351, 1
      %p355 = scmp.eq.s32.totalorder %s39, 1
      %p356 = scmp.ne.s32.totalorder %s351, %s353
      %p357 = scmp.eq.s32.totalorder %s39, 0
      %p358 = por %p356, %p357
      %p359 = scmp.ne.s32.totalorder %s351, %s353
      %p360 = scmp.eq.s32.totalorder %s44, 1
      %p361 = por %p359, %p360
      %p362 = scmp.ne.s32.totalorder %s353, %s354
      %p363 = scmp.eq.s32.totalorder %s44, 0
      %p364 = por %p362, %p363
      %p365 = scmp.ne.s32.totalorder %s353, %s354
      %p366 = scmp.eq.s32.totalorder %s45, 1
      %p367 = por %p365, %p366
      %p369 = scmp.ne.s32.totalorder %s354, %s368
      %p370 = scmp.eq.s32.totalorder %s45, 0
      %p371 = por %p369, %p370
      %s373 = sadd.s32 %s372, 1
      %p376 = scmp.eq.s32.totalorder %s39, 1
      %p377 = scmp.ne.s32.totalorder %s372, %s374
      %p378 = scmp.eq.s32.totalorder %s39, 0
      %p379 = por %p377, %p378
      %p380 = scmp.ne.s32.totalorder %s372, %s374
      %p381 = scmp.eq.s32.totalorder %s44, 1
      %p382 = por %p380, %p381
      %p383 = scmp.ne.s32.totalorder %s374, %s375
      %p384 = scmp.eq.s32.totalorder %s44, 0
      %p385 = por %p383, %p384
      %p386 = scmp.ne.s32.totalorder %s374, %s375
      %p387 = scmp.eq.s32.totalorder %s45, 1
      %p388 = por %p386, %p387
      %p390 = scmp.ne.s32.totalorder %s375, %s389
      %p391 = scmp.eq.s32.totalorder %s45, 0
      %p392 = por %p390, %p391
      %s394 = sadd.s32 %s393, 1
      %p397 = scmp.eq.s32.totalorder %s39, 1
      %p398 = scmp.ne.s32.totalorder %s393, %s395
      %p399 = scmp.eq.s32.totalorder %s39, 0
      %p400 = por %p398, %p399
      %p401 = scmp.ne.s32.totalorder %s393, %s395
      %p402 = scmp.eq.s32.totalorder %s44, 1
      %p403 = por %p401, %p402
      %p404 = scmp.ne.s32.totalorder %s395, %s396
      %p405 = scmp.eq.s32.totalorder %s44, 0
      %p406 = por %p404, %p405
      %p407 = scmp.ne.s32.totalorder %s395, %s396
      %p408 = scmp.eq.s32.totalorder %s45, 1
      %p409 = por %p407, %p408
      %p411 = scmp.ne.s32.totalorder %s396, %s410
      %p412 = scmp.eq.s32.totalorder %s45, 0
      %p413 = por %p411, %p412
      %s415 = sadd.s32 %s414, 1
      %p418 = scmp.eq.s32.totalorder %s39, 1
      %p419 = scmp.ne.s32.totalorder %s414, %s416
      %p420 = scmp.eq.s32.totalorder %s39, 0
      %p421 = por %p419, %p420
      %p422 = scmp.ne.s32.totalorder %s414, %s416
      %p423 = scmp.eq.s32.totalorder %s44, 1
      %p424 = por %p422, %p423
      %p425 = scmp.ne.s32.totalorder %s416, %s417
      %p426 = scmp.eq.s32.totalorder %s44, 0
      %p427 = por %p425, %p426
      %p428 = scmp.ne.s32.totalorder %s416, %s417
      %p429 = scmp.eq.s32.totalorder %s45, 1
      %p430 = por %p428, %p429
      %p432 = scmp.ne.s32.totalorder %s417, %s431
      %p433 = scmp.eq.s32.totalorder %s45, 0
      %p434 = por %p432, %p433
      %s436 = sadd.s32 %s435, 1
      %p439 = scmp.eq.s32.totalorder %s39, 1
      %p440 = scmp.ne.s32.totalorder %s435, %s437
      %p441 = scmp.eq.s32.totalorder %s39, 0
      %p442 = por %p440, %p441
      %p443 = scmp.ne.s32.totalorder %s435, %s437
      %p444 = scmp.eq.s32.totalorder %s44, 1
      %p445 = por %p443, %p444
      %p446 = scmp.ne.s32.totalorder %s437, %s438
      %p447 = scmp.eq.s32.totalorder %s44, 0
      %p448 = por %p446, %p447
      %p449 = scmp.ne.s32.totalorder %s437, %s438
      %p450 = scmp.eq.s32.totalorder %s45, 1
      %p451 = por %p449, %p450
      %p453 = scmp.ne.s32.totalorder %s438, %s452
      %p454 = scmp.eq.s32.totalorder %s45, 0
      %p455 = por %p453, %p454
      %s457 = sadd.s32 %s456, 1
      %p460 = scmp.eq.s32.totalorder %s39, 1
      %p461 = scmp.ne.s32.totalorder %s456, %s458
      %p462 = scmp.eq.s32.totalorder %s39, 0
      %p463 = por %p461, %p462
      %p464 = scmp.ne.s32.totalorder %s456, %s458
      %p465 = scmp.eq.s32.totalorder %s44, 1
      %p466 = por %p464, %p465
      %p467 = scmp.ne.s32.totalorder %s458, %s459
      %p468 = scmp.eq.s32.totalorder %s44, 0
      %p469 = por %p467, %p468
      %p470 = scmp.ne.s32.totalorder %s458, %s459
      %p471 = scmp.eq.s32.totalorder %s45, 1
      %p472 = por %p470, %p471
      %p474 = scmp.ne.s32.totalorder %s459, %s473
      %p475 = scmp.eq.s32.totalorder %s45, 0
      %p476 = por %p474, %p475
      %s478 = sadd.s32 %s477, 1
      %p481 = scmp.eq.s32.totalorder %s39, 1
      %p482 = scmp.ne.s32.totalorder %s477, %s479
      %p483 = scmp.eq.s32.totalorder %s39, 0
      %p484 = por %p482, %p483
      %p485 = scmp.ne.s32.totalorder %s477, %s479
      %p486 = scmp.eq.s32.totalorder %s44, 1
      %p487 = por %p485, %p486
      %p488 = scmp.ne.s32.totalorder %s479, %s480
      %p489 = scmp.eq.s32.totalorder %s44, 0
      %p490 = por %p488, %p489
      %p491 = scmp.ne.s32.totalorder %s479, %s480
      %p492 = scmp.eq.s32.totalorder %s45, 1
      %p493 = por %p491, %p492
      %p495 = scmp.ne.s32.totalorder %s480, %s494
      %p496 = scmp.eq.s32.totalorder %s45, 0
      %p497 = por %p495, %p496
      %s499 = sadd.s32 %s498, 1
      %p502 = scmp.eq.s32.totalorder %s39, 1
      %p503 = scmp.ne.s32.totalorder %s498, %s500
      %p504 = scmp.eq.s32.totalorder %s39, 0
      %p505 = por %p503, %p504
      %p506 = scmp.ne.s32.totalorder %s498, %s500
      %p507 = scmp.eq.s32.totalorder %s44, 1
      %p508 = por %p506, %p507
      %p509 = scmp.ne.s32.totalorder %s500, %s501
      %p510 = scmp.eq.s32.totalorder %s44, 0
      %p511 = por %p509, %p510
      %p512 = scmp.ne.s32.totalorder %s500, %s501
      %p513 = scmp.eq.s32.totalorder %s45, 1
      %p514 = por %p512, %p513
      %p516 = scmp.ne.s32.totalorder %s501, %s515
      %p517 = scmp.eq.s32.totalorder %s45, 0
      %p518 = por %p516, %p517
      %s519 = ssub.s32 %s46, %s58
      %s520 = ssub.s32 %s47, %s54
      %s521 = sor.u32 %s519, %s520
      %p522 = scmp.eq.s32.totalorder %s521, 0
      %s524 = sadd.s32 %s523, 1
      %s525 = scalar_select %p522, %s523, %s524
      %p528 = pneg %p522
      %p529 = scmp.eq.s32.totalorder %s39, 1
      %p530 = por %p528, %p529
      %p531 = scmp.ne.s32.totalorder %s523, %s526
      %p532 = scmp.eq.s32.totalorder %s39, 0
      %p533 = por %p531, %p532
      %p534 = scmp.ne.s32.totalorder %s523, %s526
      %p535 = scmp.eq.s32.totalorder %s44, 1
      %p536 = por %p534, %p535
      %p537 = scmp.ne.s32.totalorder %s526, %s527
      %p538 = scmp.eq.s32.totalorder %s44, 0
      %p539 = por %p537, %p538
      %p540 = scmp.ne.s32.totalorder %s526, %s527
      %p541 = scmp.eq.s32.totalorder %s45, 1
      %p542 = por %p540, %p541
      %p544 = scmp.ne.s32.totalorder %s527, %s543
      %p545 = scmp.eq.s32.totalorder %s45, 0
      %p546 = por %p544, %p545
      %s547 = ssub.s32 %s46, %s58
      %s548 = ssub.s32 %s47, %s54
      %s549 = sor.u32 %s547, %s548
      %p550 = scmp.eq.s32.totalorder %s549, 0
      %s552 = sadd.s32 %s551, 1
      %s553 = scalar_select %p550, %s551, %s552
      %p556 = pneg %p550
      %p557 = scmp.eq.s32.totalorder %s39, 1
      %p558 = por %p556, %p557
      %p559 = scmp.ne.s32.totalorder %s551, %s554
      %p560 = scmp.eq.s32.totalorder %s39, 0
      %p561 = por %p559, %p560
      %p562 = scmp.ne.s32.totalorder %s551, %s554
      %p563 = scmp.eq.s32.totalorder %s44, 1
      %p564 = por %p562, %p563
      %p565 = scmp.ne.s32.totalorder %s554, %s555
      %p566 = scmp.eq.s32.totalorder %s44, 0
      %p567 = por %p565, %p566
      %p568 = scmp.ne.s32.totalorder %s554, %s555
      %p569 = scmp.eq.s32.totalorder %s45, 1
      %p570 = por %p568, %p569
      %p572 = scmp.ne.s32.totalorder %s555, %s571
      %p573 = scmp.eq.s32.totalorder %s45, 0
      %p574 = por %p572, %p573
      %p575 = scmp.le.s32.totalorder 1, %s39
      %p576 = scmp.lt.s32.totalorder %s39, 3
      %p577 = pnand %p575, %p576
      %p578 = pneg %p577
      // Predicated region
      $region9: #{tpu_custom_call.1} parent=5 // pred_check
        _
      $region10: #{tpu_custom_call.1} parent=5 // pred_check_branch
        %580 = sbr.rel (%p577) target = $region12
      $region11: #{tpu_custom_call.1} parent=5 // pred_region
        %s581 = ssub.s32 %s39, 1
        // Predicated region
        $region13: #{tpu_custom_call.1} parent=11 // pred_check
          %p582 = pneg %p154
        $region14: #{tpu_custom_call.1} parent=11 // pred_check_branch
          %584 = sbr.rel (%p582) target = $region16
        $region15: #{tpu_custom_call.1} parent=11 // pred_region
          _
        $region16: #{tpu_custom_call.1} parent=11 // pred_fallthru
          _
        // Predicated region
        $region17: #{tpu_custom_call.1} parent=11 // pred_check
          %p585 = pneg %p175
        $region18: #{tpu_custom_call.1} parent=11 // pred_check_branch
          %587 = sbr.rel (%p585) target = $region20
        $region19: #{tpu_custom_call.1} parent=11 // pred_region
          _
        $region20: #{tpu_custom_call.1} parent=11 // pred_fallthru
          _
        // Predicated region
        $region21: #{tpu_custom_call.1} parent=11 // pred_check
          %p588 = pneg %p196
        $region22: #{tpu_custom_call.1} parent=11 // pred_check_branch
          %590 = sbr.rel (%p588) target = $region24
        $region23: #{tpu_custom_call.1} parent=11 // pred_region
          %s592 = ssub.s32 256, 256
          %593 = vsyncadd [#allocation5], %s592
          %s594 = sshll.u32 [#allocation4], 4
          %s595 = int_to_ptr.vmem [resolvable:$true] %s594
          %600 = dma.hbm_to_vmem [thread:$0]  %s5, 256, %s595, [#allocation5], 64, 64, 4
        $region24: #{tpu_custom_call.1} parent=11 // pred_fallthru
          _
        // Predicated region
        $region25: #{tpu_custom_call.1} parent=11 // pred_check
          %p601 = pneg %p217
        $region26: #{tpu_custom_call.1} parent=11 // pred_check_branch
          %603 = sbr.rel (%p601) target = $region28
        $region27: #{tpu_custom_call.1} parent=11 // pred_region
          %s605 = ssub.s32 16, 16
          %606 = vsyncadd [#allocation8], %s605
          %s608 = sshll.u32 [#allocation7], 4
          %s609 = int_to_ptr.vmem [resolvable:$true] %s608
          %611 = dma.hbm_to_vmem [thread:$0]  %s6, 16, %s609, [#allocation8]
        $region28: #{tpu_custom_call.1} parent=11 // pred_fallthru
          _
        // Predicated region
        $region29: #{tpu_custom_call.1} parent=11 // pred_check
          %p612 = pneg %p238
        $region30: #{tpu_custom_call.1} parent=11 // pred_check_branch
          %614 = sbr.rel (%p612) target = $region32
        $region31: #{tpu_custom_call.1} parent=11 // pred_region
          %s616 = ssub.s32 256, 256
          %617 = vsyncadd [#allocation8], %s616
          %s618 = sshll.u32 [#allocation9], 4
          %s619 = int_to_ptr.vmem [resolvable:$true] %s618
          %624 = dma.hbm_to_vmem [thread:$0]  %s7, 256, %s619, [#allocation8], 64, 64, 4
        $region32: #{tpu_custom_call.1} parent=11 // pred_fallthru
          _
        // Predicated region
        $region33: #{tpu_custom_call.1} parent=11 // pred_check
          %p625 = pneg %p259
        $region34: #{tpu_custom_call.1} parent=11 // pred_check_branch
          %627 = sbr.rel (%p625) target = $region36
        $region35: #{tpu_custom_call.1} parent=11 // pred_region
          %s629 = ssub.s32 16, 16
          %630 = vsyncadd [#allocation11], %s629
          %s632 = sshll.u32 [#allocation10], 4
          %s633 = int_to_ptr.vmem [resolvable:$true] %s632
          %635 = dma.hbm_to_vmem [thread:$0]  %s8, 16, %s633, [#allocation11]
        $region36: #{tpu_custom_call.1} parent=11 // pred_fallthru
          _
        // Predicated region
        $region37: #{tpu_custom_call.1} parent=11 // pred_check
          %p636 = pneg %p280
        $region38: #{tpu_custom_call.1} parent=11 // pred_check_branch
          %638 = sbr.rel (%p636) target = $region40
        $region39: #{tpu_custom_call.1} parent=11 // pred_region
          _
        $region40: #{tpu_custom_call.1} parent=11 // pred_fallthru
          _
        // Predicated region
        $region41: #{tpu_custom_call.1} parent=11 // pred_check
          %p639 = pneg %p301
        $region42: #{tpu_custom_call.1} parent=11 // pred_check_branch
          %641 = sbr.rel (%p639) target = $region44
        $region43: #{tpu_custom_call.1} parent=11 // pred_region
          %s643 = ssub.s32 64, 64
          %644 = vsyncadd [#allocation11], %s643
          %s645 = sshll.u32 [#allocation12], 4
          %s646 = int_to_ptr.vmem [resolvable:$true] %s645
          %651 = dma.hbm_to_vmem [thread:$0]  %s10, 64, %s646, [#allocation11], 16, 16, 1
        $region44: #{tpu_custom_call.1} parent=11 // pred_fallthru
          _
        // Predicated region
        $region45: #{tpu_custom_call.1} parent=11 // pred_check
          %p652 = pneg %p322
        $region46: #{tpu_custom_call.1} parent=11 // pred_check_branch
          %654 = sbr.rel (%p652) target = $region48
        $region47: #{tpu_custom_call.1} parent=11 // pred_region
          _
        $region48: #{tpu_custom_call.1} parent=11 // pred_fallthru
          _
        // Predicated region
        $region49: #{tpu_custom_call.1} parent=11 // pred_check
          %p655 = pneg %p343
        $region50: #{tpu_custom_call.1} parent=11 // pred_check_branch
          %657 = sbr.rel (%p655) target = $region52
        $region51: #{tpu_custom_call.1} parent=11 // pred_region
          %s659 = ssub.s32 16, 16
          %660 = vsyncadd [#allocation14], %s659
          %s662 = sshll.u32 [#allocation13], 4
          %s663 = int_to_ptr.vmem [resolvable:$true] %s662
          %665 = dma.hbm_to_vmem [thread:$0]  %s12, 16, %s663, [#allocation14]
        $region52: #{tpu_custom_call.1} parent=11 // pred_fallthru
          _
        // Predicated region
        $region53: #{tpu_custom_call.1} parent=11 // pred_check
          %p666 = pneg %p364
        $region54: #{tpu_custom_call.1} parent=11 // pred_check_branch
          %668 = sbr.rel (%p666) target = $region56
        $region55: #{tpu_custom_call.1} parent=11 // pred_region
          %s670 = ssub.s32 16, 16
          %671 = vsyncadd [#allocation14], %s670
          %s673 = sshll.u32 [#allocation15], 4
          %s674 = int_to_ptr.vmem [resolvable:$true] %s673
          %676 = dma.hbm_to_vmem [thread:$0]  %s13, 16, %s674, [#allocation14]
        $region56: #{tpu_custom_call.1} parent=11 // pred_fallthru
          _
        // Predicated region
        $region57: #{tpu_custom_call.1} parent=11 // pred_check
          %p677 = pneg %p385
        $region58: #{tpu_custom_call.1} parent=11 // pred_check_branch
          %679 = sbr.rel (%p677) target = $region60
        $region59: #{tpu_custom_call.1} parent=11 // pred_region
          _
        $region60: #{tpu_custom_call.1} parent=11 // pred_fallthru
          _
        // Predicated region
        $region61: #{tpu_custom_call.1} parent=11 // pred_check
          %p680 = pneg %p406
        $region62: #{tpu_custom_call.1} parent=11 // pred_check_branch
          %682 = sbr.rel (%p680) target = $region64
        $region63: #{tpu_custom_call.1} parent=11 // pred_region
          _
        $region64: #{tpu_custom_call.1} parent=11 // pred_fallthru
          _
        // Predicated region
        $region65: #{tpu_custom_call.1} parent=11 // pred_check
          %p683 = pneg %p427
        $region66: #{tpu_custom_call.1} parent=11 // pred_check_branch
          %685 = sbr.rel (%p683) target = $region68
        $region67: #{tpu_custom_call.1} parent=11 // pred_region
          _
        $region68: #{tpu_custom_call.1} parent=11 // pred_fallthru
          _
        // Predicated region
        $region69: #{tpu_custom_call.1} parent=11 // pred_check
          %p686 = pneg %p448
        $region70: #{tpu_custom_call.1} parent=11 // pred_check_branch
          %688 = sbr.rel (%p686) target = $region72
        $region71: #{tpu_custom_call.1} parent=11 // pred_region
          _
        $region72: #{tpu_custom_call.1} parent=11 // pred_fallthru
          _
        // Predicated region
        $region73: #{tpu_custom_call.1} parent=11 // pred_check
          %p689 = pneg %p469
        $region74: #{tpu_custom_call.1} parent=11 // pred_check_branch
          %691 = sbr.rel (%p689) target = $region76
        $region75: #{tpu_custom_call.1} parent=11 // pred_region
          _
        $region76: #{tpu_custom_call.1} parent=11 // pred_fallthru
          _
        // Predicated region
        $region77: #{tpu_custom_call.1} parent=11 // pred_check
          %p692 = pneg %p490
        $region78: #{tpu_custom_call.1} parent=11 // pred_check_branch
          %694 = sbr.rel (%p692) target = $region80
        $region79: #{tpu_custom_call.1} parent=11 // pred_region
          _
        $region80: #{tpu_custom_call.1} parent=11 // pred_fallthru
          _
        // Predicated region
        $region81: #{tpu_custom_call.1} parent=11 // pred_check
          %p695 = pneg %p511
        $region82: #{tpu_custom_call.1} parent=11 // pred_check_branch
          %697 = sbr.rel (%p695) target = $region84
        $region83: #{tpu_custom_call.1} parent=11 // pred_region
          _
        $region84: #{tpu_custom_call.1} parent=11 // pred_fallthru
          _
      $region12: #{tpu_custom_call.1} parent=5 // pred_fallthru
        _
      %p698 = scmp.lt.s32.totalorder %s39, 2
      // Predicated region
      $region85: #{tpu_custom_call.1} parent=5 // pred_check
        %p699 = pneg %p698
      $region86: #{tpu_custom_call.1} parent=5 // pred_check_branch
        %701 = sbr.rel (%p699) target = $region88
      $region87: #{tpu_custom_call.1} parent=5 // pred_region
        // Predicated region
        $region89: #{tpu_custom_call.1} parent=87 // pred_check
          %p702 = pneg %p73
        $region90: #{tpu_custom_call.1} parent=87 // pred_check_branch
          %704 = sbr.rel (%p702) target = $region92
        $region91: #{tpu_custom_call.1} parent=87 // pred_region
          %p705 = scmp.lt.s32.totalorder %s46, 1
          %s706 = scalar_select %p705, %s46, 1
          %p707 = scmp.lt.s32.totalorder %s47, 0
          %s708 = scalar_select %p707, %s47, 0
          %s709 = sadd.s32 %s708, %s706
          %s710 = smul.addr %s709, 8
          %s711 = scalar_lea.vmem %s0, %s710
        $region92: #{tpu_custom_call.1} parent=87 // pred_fallthru
          _
        // Predicated region
        $region93: #{tpu_custom_call.1} parent=87 // pred_check
          %p712 = pneg %p99
        $region94: #{tpu_custom_call.1} parent=87 // pred_check_branch
          %714 = sbr.rel (%p712) target = $region96
        $region95: #{tpu_custom_call.1} parent=87 // pred_region
          %p715 = scmp.lt.s32.totalorder %s46, 1
          %s716 = scalar_select %p715, %s46, 1
          %s717 = smul.addr %s716, 8
          %s718 = scalar_lea.vmem %s1, %s717
        $region96: #{tpu_custom_call.1} parent=87 // pred_fallthru
          _
        // Predicated region
        $region97: #{tpu_custom_call.1} parent=87 // pred_check
          %p719 = pneg %p127
        $region98: #{tpu_custom_call.1} parent=87 // pred_check_branch
          %721 = sbr.rel (%p719) target = $region100
        $region99: #{tpu_custom_call.1} parent=87 // pred_region
          %s722 = smul.u32 8, %s47
          %p723 = scmp.lt.s32.totalorder %s46, 1
          %s724 = scalar_select %p723, %s46, 1
          %p725 = scmp.lt.s32.totalorder %s722, 7
          %s726 = scalar_select %p725, %s722, 7
          %s727 = smul.addr %s724, 8
          %s728 = sadd.s32 %s726, %s727
          %s729 = smul.addr %s728, 4
          %s730 = scalar_lea.vmem %s2, %s729
          %s731 = smul.u32 8, %s47
        $region100: #{tpu_custom_call.1} parent=87 // pred_fallthru
          _
      $region88: #{tpu_custom_call.1} parent=5 // pred_fallthru
        _
      %p732 = scmp.le.s32.totalorder 1, %s39
      %p733 = scmp.lt.s32.totalorder %s39, 3
      %p734 = pnand %p732, %p733
      %p735 = pneg %p734
      // Predicated region
      $region101: #{tpu_custom_call.1} parent=5 // pred_check
        _
      $region102: #{tpu_custom_call.1} parent=5 // pred_check_branch
        %737 = sbr.rel (%p734) target = $region104
      $region103: #{tpu_custom_call.1} parent=5 // pred_region
        %s738 = ssub.s32 %s39, 1
        // Predicated region
        $region105: #{tpu_custom_call.1} parent=103 // pred_check
          %p739 = pneg %p196
        $region106: #{tpu_custom_call.1} parent=103 // pred_check_branch
          %741 = sbr.rel (%p739) target = $region108
        $region107: #{tpu_custom_call.1} parent=103 // pred_region
          %742 = dma.done [#allocation5], 256
        $region108: #{tpu_custom_call.1} parent=103 // pred_fallthru
          _
        // Predicated region
        $region109: #{tpu_custom_call.1} parent=103 // pred_check
          %p743 = pneg %p217
        $region110: #{tpu_custom_call.1} parent=103 // pred_check_branch
          %745 = sbr.rel (%p743) target = $region112
        $region111: #{tpu_custom_call.1} parent=103 // pred_region
          %746 = dma.done [#allocation8], 16
        $region112: #{tpu_custom_call.1} parent=103 // pred_fallthru
          _
        // Predicated region
        $region113: #{tpu_custom_call.1} parent=103 // pred_check
          %p747 = pneg %p238
        $region114: #{tpu_custom_call.1} parent=103 // pred_check_branch
          %749 = sbr.rel (%p747) target = $region116
        $region115: #{tpu_custom_call.1} parent=103 // pred_region
          %750 = dma.done [#allocation8], 256
        $region116: #{tpu_custom_call.1} parent=103 // pred_fallthru
          _
        // Predicated region
        $region117: #{tpu_custom_call.1} parent=103 // pred_check
          %p751 = pneg %p259
        $region118: #{tpu_custom_call.1} parent=103 // pred_check_branch
          %753 = sbr.rel (%p751) target = $region120
        $region119: #{tpu_custom_call.1} parent=103 // pred_region
          %754 = dma.done [#allocation11], 16
        $region120: #{tpu_custom_call.1} parent=103 // pred_fallthru
          _
        // Predicated region
        $region121: #{tpu_custom_call.1} parent=103 // pred_check
          %p755 = pneg %p301
        $region122: #{tpu_custom_call.1} parent=103 // pred_check_branch
          %757 = sbr.rel (%p755) target = $region124
        $region123: #{tpu_custom_call.1} parent=103 // pred_region
          %758 = dma.done [#allocation11], 64
        $region124: #{tpu_custom_call.1} parent=103 // pred_fallthru
          _
        // Predicated region
        $region125: #{tpu_custom_call.1} parent=103 // pred_check
          %p759 = pneg %p343
        $region126: #{tpu_custom_call.1} parent=103 // pred_check_branch
          %761 = sbr.rel (%p759) target = $region128
        $region127: #{tpu_custom_call.1} parent=103 // pred_region
          %762 = dma.done [#allocation14], 16
        $region128: #{tpu_custom_call.1} parent=103 // pred_fallthru
          _
        // Predicated region
        $region129: #{tpu_custom_call.1} parent=103 // pred_check
          %p763 = pneg %p364
        $region130: #{tpu_custom_call.1} parent=103 // pred_check_branch
          %765 = sbr.rel (%p763) target = $region132
        $region131: #{tpu_custom_call.1} parent=103 // pred_region
          %766 = dma.done [#allocation14], 16
        $region132: #{tpu_custom_call.1} parent=103 // pred_fallthru
          _
        %p767 = scmp.lt.s32.totalorder %s48, 1
        %s768 = scalar_select %p767, %s48, 1
        %p769 = scmp.lt.s32.totalorder %s49, 0
        %s770 = scalar_select %p769, %s49, 0
        %s771 = sadd.s32 %s770, %s768
        %s772 = smul.addr %s771, 8
        %s773 = scalar_lea.vmem %s0, %s772
        %p774 = pneg %p79
        %p775 = pneg %p76
        %p776 = scmp.lt.s32.totalorder %s48, 1
        %s777 = scalar_select %p776, %s48, 1
        %s778 = smul.addr %s777, 8
        %s779 = scalar_lea.vmem %s1, %s778
        %p780 = pneg %p105
        %p781 = pneg %p102
        %s782 = smul.u32 8, %s49
        %p783 = scmp.lt.s32.totalorder %s48, 1
        %s784 = scalar_select %p783, %s48, 1
        %p785 = scmp.lt.s32.totalorder %s782, 7
        %s786 = scalar_select %p785, %s782, 7
        %s787 = smul.addr %s784, 8
        %s788 = sadd.s32 %s786, %s787
        %s789 = smul.addr %s788, 4
        %s790 = scalar_lea.vmem %s2, %s789
        %p791 = pneg %p133
        %p792 = pneg %p130
        %p793 = pneg %p154
        %p794 = pneg %p151
        %p795 = pneg %p175
        %p796 = pneg %p172
        %p797 = pneg %p196
        %p798 = pneg %p193
        %p799 = pneg %p217
        %p800 = pneg %p214
        %p801 = pneg %p238
        %p802 = pneg %p235
        %p803 = pneg %p259
        %p804 = pneg %p256
        %p805 = pneg %p280
        %p806 = pneg %p277
        %p807 = pneg %p301
        %p808 = pneg %p298
        %p809 = pneg %p322
        %p810 = pneg %p319
        %p811 = pneg %p343
        %p812 = pneg %p340
        %p813 = pneg %p364
        %p814 = pneg %p361
        %p815 = pneg %p385
        %p816 = pneg %p382
        %p817 = pneg %p406
        %p818 = pneg %p403
        %p819 = pneg %p427
        %p820 = pneg %p424
        %p821 = pneg %p448
        %p822 = pneg %p445
        %p823 = pneg %p469
        %p824 = pneg %p466
        %p825 = pneg %p490
        %p826 = pneg %p487
        %p827 = pneg %p511
        %p828 = pneg %p508
        %p829 = pneg %p539
        %p830 = pneg %p536
        %s831 = sand.u32 %s526, 1
        %s832 = scalar_lea.sflag [#allocation6], %s831
        %s833 = sand.u32 %s526, 1
        %s834 = smul.addr %s833, 8
        %s835 = scalar_lea.vmem [#allocation16], %s834
        %p836 = pneg %p567
        %p837 = pneg %p564
        %s838 = sand.u32 %s554, 1
        %s839 = scalar_lea.sflag [#allocation18], %s838
        %s840 = sand.u32 %s554, 1
        %s841 = smul.addr %s840, 32
        %s842 = scalar_lea.vmem [#allocation17], %s841
        %p843 = scmp.lt.s32.totalorder %s48, 1
        %s844 = scalar_select %p843, %s48, 1
        %p845 = scmp.lt.s32.totalorder %s49, 0
        %s846 = scalar_select %p845, %s49, 0
        %s847 = sadd.s32 %s846, %s844
        %s848 = smul.addr %s847, 8
        %s849 = scalar_lea.vmem %s0, %s848
        %p850 = scmp.lt.s32.totalorder %s48, 1
        %s851 = scalar_select %p850, %s48, 1
        %s852 = smul.addr %s851, 8
        %s853 = scalar_lea.vmem %s1, %s852
        %s854 = smul.u32 8, %s49
        %p855 = scmp.lt.s32.totalorder %s48, 1
        %s856 = scalar_select %p855, %s48, 1
        %p857 = scmp.lt.s32.totalorder %s854, 7
        %s858 = scalar_select %p857, %s854, 7
        %s859 = smul.addr %s856, 8
        %s860 = sadd.s32 %s858, %s859
        %s861 = smul.addr %s860, 4
        %s862 = scalar_lea.vmem %s2, %s861
        %s863 = smul.u32 8, %s49
        %v865 = vld [vmem:[%s849] sm:$0xff]
        %p866 = scmp.eq.s32.totalorder %s49, 0
        // Predicated region
        $region133: #{tpu_custom_call.1} parent=103 // pred_check
          %p867 = pneg %p866
        $region134: #{tpu_custom_call.1} parent=103 // pred_check_branch
          %869 = sbr.rel (%p867) target = $region136
        $region135: #{tpu_custom_call.1} parent=103 // pred_region
          %v870 = vld [vmem:[%s853] sm:$0xff]
          %v871 = vpack.c.bf16 %v870, %v870
          %v872 = vld [vmem:[#allocation4] sm:$0xf]
          %v873 = vld [vmem:[#allocation4 + $0x4] sm:$0xf]
          %v874 = vld [vmem:[#allocation4 + $0x8] sm:$0xf]
          %v875 = vld [vmem:[#allocation4 + $0xc] sm:$0xf]
          %v876 = vld [vmem:[#allocation7] sm:$0x1]
          %v878 = vlaneseq
          %v879 = vshrl.u32 %v878, 7
          %v880 = vsub.s32 0, %v879
          %v881 = vrot.slane %v876, %v880
          %v887 = vunpack.c.l.b16 %v872
          %v888 = vunpack.c.l.b16 %v873
          %v889 = vunpack.c.l.b16 %v874
          %v890 = vunpack.c.l.b16 %v875
          %v891 = vpack.c.b16 %v888, %v887
          %v892 = vpack.c.b16 %v890, %v889
          %vm895 = vcmask 261120
          %v897 = vsel %vm895, %v871, 0
          %899 = vmatprep.subr.bf16.mxu0 0
          %900 = vmatpush1.bf16.msra.mxu0 %v891
          %901 = vmatprep.subr.bf16.mxu0 0
          %902 = vmatpush1.bf16.msra.mxu0 %v892
          %903 = vmatprep.subr.bf16.mxu0 0
          %904 = vmatpush1.bf16.msra.mxu0 0
          %905 = vmatprep.subr.bf16.mxu0 0
          %906 = vmatpush1.bf16.msra.mxu0 0
          %907 = vmatprep.subr.bf16.mxu0 0
          %908 = vmatpush1.bf16.msra.mxu0 0
          %909 = vmatprep.subr.bf16.mxu0 0
          %910 = vmatpush1.bf16.msra.mxu0 0
          %911 = vmatprep.subr.bf16.mxu0 0
          %912 = vmatpush1.bf16.msra.mxu0 0
          %913 = vmatprep.subr.bf16.mxu0 0
          %914 = vmatpush1.bf16.msra.mxu0 0
          %915 = vmatprep.subr.bf16.mxu0 0
          %916 = vmatpush1.bf16.msra.mxu0 0
          %917 = vmatprep.subr.bf16.mxu0 0
          %918 = vmatpush1.bf16.msra.mxu0 0
          %919 = vmatprep.subr.bf16.mxu0 0
          %920 = vmatpush1.bf16.msra.mxu0 0
          %921 = vmatprep.subr.bf16.mxu0 0
          %922 = vmatpush1.bf16.msra.mxu0 0
          %923 = vmatprep.subr.bf16.mxu0 0
          %924 = vmatpush1.bf16.msra.mxu0 0
          %925 = vmatprep.subr.bf16.mxu0 0
          %926 = vmatpush1.bf16.msra.mxu0 0
          %927 = vmatprep.subr.bf16.mxu0 0
          %928 = vmatpush1.bf16.msra.mxu0 0
          %929 = vmatprep.subr.bf16.mxu0 0
          %930 = vmatpush1.bf16.msra.mxu0 0
          %931 = vmatprep.mubr.bf16.mxu0 0
          %932 = vmatmul.mubr.bf16.gmra.mrb[0].mxu0 %v897
          %v933 = vpop.f32.mrb[0].mxu0
          %v934 = vadd.f32 %v881, %v933
          %v935 = vpop.f32.mrb[0].mxu0
          %v936 = vpop.f32.mrb[0].mxu0
          %v937 = vpop.f32.mrb[0].mxu0
          %938 = vdwg.mxu0
          %v939 = vld [vmem:[#allocation9] sm:$0xf]
          %v940 = vld [vmem:[#allocation9 + $0x4] sm:$0xf]
          %v941 = vld [vmem:[#allocation9 + $0x8] sm:$0xf]
          %v942 = vld [vmem:[#allocation9 + $0xc] sm:$0xf]
          %v943 = vld [vmem:[#allocation10] sm:$0x1]
          %v945 = vlaneseq
          %v946 = vshrl.u32 %v945, 7
          %v947 = vsub.s32 0, %v946
          %v948 = vrot.slane %v943, %v947
          %v954 = vunpack.c.l.b16 %v939
          %v955 = vunpack.c.l.b16 %v940
          %v956 = vunpack.c.l.b16 %v941
          %v957 = vunpack.c.l.b16 %v942
          %v958 = vpack.c.b16 %v955, %v954
          %v959 = vpack.c.b16 %v957, %v956
          %962 = vmatprep.subr.bf16.mxu0 0
          %963 = vmatpush1.bf16.msra.mxu0 %v958
          %964 = vmatprep.subr.bf16.mxu0 0
          %965 = vmatpush1.bf16.msra.mxu0 %v959
          %966 = vmatprep.subr.bf16.mxu0 0
          %967 = vmatpush1.bf16.msra.mxu0 0
          %968 = vmatprep.subr.bf16.mxu0 0
          %969 = vmatpush1.bf16.msra.mxu0 0
          %970 = vmatprep.subr.bf16.mxu0 0
          %971 = vmatpush1.bf16.msra.mxu0 0
          %972 = vmatprep.subr.bf16.mxu0 0
          %973 = vmatpush1.bf16.msra.mxu0 0
          %974 = vmatprep.subr.bf16.mxu0 0
          %975 = vmatpush1.bf16.msra.mxu0 0
          %976 = vmatprep.subr.bf16.mxu0 0
          %977 = vmatpush1.bf16.msra.mxu0 0
          %978 = vmatprep.subr.bf16.mxu0 0
          %979 = vmatpush1.bf16.msra.mxu0 0
          %980 = vmatprep.subr.bf16.mxu0 0
          %981 = vmatpush1.bf16.msra.mxu0 0
          %982 = vmatprep.subr.bf16.mxu0 0
          %983 = vmatpush1.bf16.msra.mxu0 0
          %984 = vmatprep.subr.bf16.mxu0 0
          %985 = vmatpush1.bf16.msra.mxu0 0
          %986 = vmatprep.subr.bf16.mxu0 0
          %987 = vmatpush1.bf16.msra.mxu0 0
          %988 = vmatprep.subr.bf16.mxu0 0
          %989 = vmatpush1.bf16.msra.mxu0 0
          %990 = vmatprep.subr.bf16.mxu0 0
          %991 = vmatpush1.bf16.msra.mxu0 0
          %992 = vmatprep.subr.bf16.mxu0 0
          %993 = vmatpush1.bf16.msra.mxu0 0
          %994 = vmatprep.mubr.bf16.mxu0 0
          %995 = vmatmul.mubr.bf16.gmra.mrb[0].mxu0 %v897
          %v996 = vpop.f32.mrb[0].mxu0
          %v997 = vadd.f32 %v948, %v996
          %v998 = vpop.f32.mrb[0].mxu0
          %v999 = vpop.f32.mrb[0].mxu0
          %v1000 = vpop.f32.mrb[0].mxu0
          %1001 = vdwg.mxu0
          %1003 = vrot.lane.b32.xlu0 %v934, 120
          %v1004 = vpop.permute.xlu0 %1003
          %1006 = vrot.lane.b32.xlu0 %v934, 112
          %v1007 = vpop.permute.xlu0 %1006
          %1009 = vrot.lane.b32.xlu0 %v934, 104
          %v1010 = vpop.permute.xlu0 %1009
          %v1012 = vpack.c.bf16 %v934, %v934
          %v1013 = vpack.c.bf16 %v1004, %v1004
          %v1014 = vpack.c.bf16 %v1007, %v1007
          %v1015 = vpack.c.bf16 %v1010, %v1010
          %vm1016 = vcmask 60416
          %1017 = vst.msk [vmem:[#allocation2] sm:$0xf] %vm1016, %v1012
          %1018 = vst.msk [vmem:[#allocation2 + $0x4] sm:$0xf] %vm1016, %v1013
          %1019 = vst.msk [vmem:[#allocation2 + $0x8] sm:$0xf] %vm1016, %v1014
          %1020 = vst.msk [vmem:[#allocation2 + $0xc] sm:$0xf] %vm1016, %v1015
          %1022 = vrot.lane.b32.xlu0 %v997, 120
          %v1023 = vpop.permute.xlu0 %1022
          %1025 = vrot.lane.b32.xlu0 %v997, 112
          %v1026 = vpop.permute.xlu0 %1025
          %1028 = vrot.lane.b32.xlu0 %v997, 104
          %v1029 = vpop.permute.xlu0 %1028
          %v1031 = vpack.c.bf16 %v997, %v997
          %v1032 = vpack.c.bf16 %v1023, %v1023
          %v1033 = vpack.c.bf16 %v1026, %v1026
          %v1034 = vpack.c.bf16 %v1029, %v1029
          %1035 = vst.msk [vmem:[#allocation3] sm:$0xf] %vm1016, %v1031
          %1036 = vst.msk [vmem:[#allocation3 + $0x4] sm:$0xf] %vm1016, %v1032
          %1037 = vst.msk [vmem:[#allocation3 + $0x8] sm:$0xf] %vm1016, %v1033
          %1038 = vst.msk [vmem:[#allocation3 + $0xc] sm:$0xf] %vm1016, %v1034
        $region136: #{tpu_custom_call.1} parent=103 // pred_fallthru
          _
        %v1039 = vpack.c.bf16 %v865, %v865
        %v1040 = vld [vmem:[%s3] sm:$0xf]
        %v1041 = vld [vmem:[%s3 + $0x4] sm:$0xf]
        %v1042 = vld [vmem:[%s3 + $0x8] sm:$0xf]
        %v1043 = vld [vmem:[%s3 + $0xc] sm:$0xf]
        %v1044 = vld [vmem:[%s4] sm:$0x1]
        %v1046 = vlaneseq
        %v1047 = vshrl.u32 %v1046, 7
        %v1048 = vsub.s32 0, %v1047
        %v1049 = vrot.slane %v1044, %v1048
        %v1055 = vunpack.c.l.b16 %v1040
        %v1056 = vunpack.c.l.b16 %v1041
        %v1057 = vunpack.c.l.b16 %v1042
        %v1058 = vunpack.c.l.b16 %v1043
        %v1059 = vpack.c.b16 %v1056, %v1055
        %v1060 = vpack.c.b16 %v1058, %v1057
        %vm1063 = vcmask 261120
        %v1065 = vsel %vm1063, %v1039, 0
        %1067 = vmatprep.subr.bf16.mxu0 0
        %1068 = vmatpush1.bf16.msra.mxu0 %v1059
        %1069 = vmatprep.subr.bf16.mxu0 0
        %1070 = vmatpush1.bf16.msra.mxu0 %v1060
        %1071 = vmatprep.subr.bf16.mxu0 0
        %1072 = vmatpush1.bf16.msra.mxu0 0
        %1073 = vmatprep.subr.bf16.mxu0 0
        %1074 = vmatpush1.bf16.msra.mxu0 0
        %1075 = vmatprep.subr.bf16.mxu0 0
        %1076 = vmatpush1.bf16.msra.mxu0 0
        %1077 = vmatprep.subr.bf16.mxu0 0
        %1078 = vmatpush1.bf16.msra.mxu0 0
        %1079 = vmatprep.subr.bf16.mxu0 0
        %1080 = vmatpush1.bf16.msra.mxu0 0
        %1081 = vmatprep.subr.bf16.mxu0 0
        %1082 = vmatpush1.bf16.msra.mxu0 0
        %1083 = vmatprep.subr.bf16.mxu0 0
        %1084 = vmatpush1.bf16.msra.mxu0 0
        %1085 = vmatprep.subr.bf16.mxu0 0
        %1086 = vmatpush1.bf16.msra.mxu0 0
        %1087 = vmatprep.subr.bf16.mxu0 0
        %1088 = vmatpush1.bf16.msra.mxu0 0
        %1089 = vmatprep.subr.bf16.mxu0 0
        %1090 = vmatpush1.bf16.msra.mxu0 0
        %1091 = vmatprep.subr.bf16.mxu0 0
        %1092 = vmatpush1.bf16.msra.mxu0 0
        %1093 = vmatprep.subr.bf16.mxu0 0
        %1094 = vmatpush1.bf16.msra.mxu0 0
        %1095 = vmatprep.subr.bf16.mxu0 0
        %1096 = vmatpush1.bf16.msra.mxu0 0
        %1097 = vmatprep.subr.bf16.mxu0 0
        %1098 = vmatpush1.bf16.msra.mxu0 0
        %1099 = vmatprep.mubr.bf16.mxu0 0
        %1100 = vmatmul.mubr.bf16.gmra.mrb[0].mxu0 %v1065
        %v1101 = vpop.f32.mrb[0].mxu0
        %v1102 = vadd.f32 %v1049, %v1101
        %v1103 = vpop.f32.mrb[0].mxu0
        %v1104 = vpop.f32.mrb[0].mxu0
        %v1105 = vpop.f32.mrb[0].mxu0
        %1106 = vdwg.mxu0
        %1108 = vrot.lane.b32.xlu0 %v1102, 120
        %v1109 = vpop.permute.xlu0 %1108
        %1111 = vrot.lane.b32.xlu0 %v1102, 112
        %v1112 = vpop.permute.xlu0 %1111
        %1114 = vrot.lane.b32.xlu0 %v1102, 104
        %v1115 = vpop.permute.xlu0 %1114
        %v1117 = vpack.c.bf16 %v1102, %v1102
        %v1118 = vpack.c.bf16 %v1109, %v1109
        %v1119 = vpack.c.bf16 %v1112, %v1112
        %v1120 = vpack.c.bf16 %v1115, %v1115
        %v1121 = vld [vmem:[#allocation2] sm:$0xf]
        %v1122 = vld [vmem:[#allocation2 + $0x4] sm:$0xf]
        %v1123 = vld [vmem:[#allocation2 + $0x8] sm:$0xf]
        %v1124 = vld [vmem:[#allocation2 + $0xc] sm:$0xf]
        %v1125 = vld [vmem:[%s9] sm:$0xf]
        %v1126 = vld [vmem:[%s9 + $0x4] sm:$0xf]
        %v1127 = vld [vmem:[%s9 + $0x8] sm:$0xf]
        %v1128 = vld [vmem:[%s9 + $0xc] sm:$0xf]
        %v1129 = vld [vmem:[%s9 + $0x10] sm:$0xf]
        %v1130 = vld [vmem:[%s9 + $0x14] sm:$0xf]
        %v1131 = vld [vmem:[%s9 + $0x18] sm:$0xf]
        %v1132 = vld [vmem:[%s9 + $0x1c] sm:$0xf]
        %v1133 = vld [vmem:[%s9 + $0x20] sm:$0xf]
        %v1134 = vld [vmem:[%s9 + $0x24] sm:$0xf]
        %v1135 = vld [vmem:[%s9 + $0x28] sm:$0xf]
        %v1136 = vld [vmem:[%s9 + $0x2c] sm:$0xf]
        %v1137 = vld [vmem:[%s9 + $0x30] sm:$0xf]
        %v1138 = vld [vmem:[%s9 + $0x34] sm:$0xf]
        %v1139 = vld [vmem:[%s9 + $0x38] sm:$0xf]
        %v1140 = vld [vmem:[%s9 + $0x3c] sm:$0xf]
        %v1145 = vunpack.c.l.b16 %v1125
        %v1146 = vunpack.c.l.b16 %v1126
        %v1147 = vunpack.c.l.b16 %v1127
        %v1148 = vunpack.c.l.b16 %v1128
        %v1149 = vpack.c.b16 %v1146, %v1145
        %v1150 = vpack.c.b16 %v1148, %v1147
        %vm1151 = vcmask 64512
        %v1153 = vsel %vm1151, %v1117, 0
        %v1156 = vsel %vm1151, %v1149, 0
        %v1159 = vsel %vm1151, %v1150, 0
        %1161 = vmatprep.subr.bf16.mxu0 0
        %1162 = vmatpush1.bf16.xpose.msra.mxu0 %v1156
        %1163 = vmatprep.subr.bf16.mxu0 0
        %1164 = vmatpush1.bf16.xpose.msra.mxu0 %v1159
        %1165 = vmatprep.subr.bf16.mxu0 0
        %1166 = vmatpush1.bf16.xpose.msra.mxu0 0
        %1167 = vmatprep.subr.bf16.mxu0 0
        %1168 = vmatpush1.bf16.xpose.msra.mxu0 0
        %1169 = vmatprep.subr.bf16.mxu0 0
        %1170 = vmatpush1.bf16.xpose.msra.mxu0 0
        %1171 = vmatprep.subr.bf16.mxu0 0
        %1172 = vmatpush1.bf16.xpose.msra.mxu0 0
        %1173 = vmatprep.subr.bf16.mxu0 0
        %1174 = vmatpush1.bf16.xpose.msra.mxu0 0
        %1175 = vmatprep.subr.bf16.mxu0 0
        %1176 = vmatpush1.bf16.xpose.msra.mxu0 0
        %1177 = vmatprep.subr.bf16.mxu0 0
        %1178 = vmatpush1.bf16.xpose.msra.mxu0 0
        %1179 = vmatprep.subr.bf16.mxu0 0
        %1180 = vmatpush1.bf16.xpose.msra.mxu0 0
        %1181 = vmatprep.subr.bf16.mxu0 0
        %1182 = vmatpush1.bf16.xpose.msra.mxu0 0
        %1183 = vmatprep.subr.bf16.mxu0 0
        %1184 = vmatpush1.bf16.xpose.msra.mxu0 0
        %1185 = vmatprep.subr.bf16.mxu0 0
        %1186 = vmatpush1.bf16.xpose.msra.mxu0 0
        %1187 = vmatprep.subr.bf16.mxu0 0
        %1188 = vmatpush1.bf16.xpose.msra.mxu0 0
        %1189 = vmatprep.subr.bf16.mxu0 0
        %1190 = vmatpush1.bf16.xpose.msra.mxu0 0
        %1191 = vmatprep.subr.bf16.mxu0 0
        %1192 = vmatpush1.bf16.xpose.msra.mxu0 0
        %1193 = vmatprep.mubr.bf16.mxu0 0
        %1194 = vmatmul.mubr.bf16.gmra.mrb[0].mxu0 %v1153
        %v1195 = vpop.f32.mrb[0].mxu0
        %v1196 = vadd.f32 0.0, %v1195
        %v1197 = vpop.f32.mrb[0].mxu0
        %v1198 = vpop.f32.mrb[0].mxu0
        %v1199 = vpop.f32.mrb[0].mxu0
        %1200 = vdwg.mxu0
        %v1205 = vunpack.c.l.b16 %v1129
        %v1206 = vunpack.c.l.b16 %v1130
        %v1207 = vunpack.c.l.b16 %v1131
        %v1208 = vunpack.c.l.b16 %v1132
        %v1209 = vpack.c.b16 %v1206, %v1205
        %v1210 = vpack.c.b16 %v1208, %v1207
        %v1212 = vsel %vm1151, %v1118, 0
        %v1215 = vsel %vm1151, %v1209, 0
        %v1218 = vsel %vm1151, %v1210, 0
        %1220 = vmatprep.subr.bf16.mxu0 0
        %1221 = vmatpush1.bf16.xpose.msra.mxu0 %v1215
        %1222 = vmatprep.subr.bf16.mxu0 0
        %1223 = vmatpush1.bf16.xpose.msra.mxu0 %v1218
        %1224 = vmatprep.subr.bf16.mxu0 0
        %1225 = vmatpush1.bf16.xpose.msra.mxu0 0
        %1226 = vmatprep.subr.bf16.mxu0 0
        %1227 = vmatpush1.bf16.xpose.msra.mxu0 0
        %1228 = vmatprep.subr.bf16.mxu0 0
        %1229 = vmatpush1.bf16.xpose.msra.mxu0 0
        %1230 = vmatprep.subr.bf16.mxu0 0
        %1231 = vmatpush1.bf16.xpose.msra.mxu0 0
        %1232 = vmatprep.subr.bf16.mxu0 0
        %1233 = vmatpush1.bf16.xpose.msra.mxu0 0
        %1234 = vmatprep.subr.bf16.mxu0 0
        %1235 = vmatpush1.bf16.xpose.msra.mxu0 0
        %1236 = vmatprep.subr.bf16.mxu0 0
        %1237 = vmatpush1.bf16.xpose.msra.mxu0 0
        %1238 = vmatprep.subr.bf16.mxu0 0
        %1239 = vmatpush1.bf16.xpose.msra.mxu0 0
        %1240 = vmatprep.subr.bf16.mxu0 0
        %1241 = vmatpush1.bf16.xpose.msra.mxu0 0
        %1242 = vmatprep.subr.bf16.mxu0 0
        %1243 = vmatpush1.bf16.xpose.msra.mxu0 0
        %1244 = vmatprep.subr.bf16.mxu0 0
        %1245 = vmatpush1.bf16.xpose.msra.mxu0 0
        %1246 = vmatprep.subr.bf16.mxu0 0
        %1247 = vmatpush1.bf16.xpose.msra.mxu0 0
        %1248 = vmatprep.subr.bf16.mxu0 0
        %1249 = vmatpush1.bf16.xpose.msra.mxu0 0
        %1250 = vmatprep.subr.bf16.mxu0 0
        %1251 = vmatpush1.bf16.xpose.msra.mxu0 0
        %1252 = vmatprep.mubr.bf16.mxu0 0
        %1253 = vmatmul.mubr.bf16.gmra.mrb[0].mxu0 %v1212
        %v1254 = vpop.f32.mrb[0].mxu0
        %v1255 = vadd.f32 0.0, %v1254
        %v1256 = vpop.f32.mrb[0].mxu0
        %v1257 = vpop.f32.mrb[0].mxu0
        %v1258 = vpop.f32.mrb[0].mxu0
        %1259 = vdwg.mxu0
        %v1264 = vunpack.c.l.b16 %v1133
        %v1265 = vunpack.c.l.b16 %v1134
        %v1266 = vunpack.c.l.b16 %v1135
        %v1267 = vunpack.c.l.b16 %v1136
        %v1268 = vpack.c.b16 %v1265, %v1264
        %v1269 = vpack.c.b16 %v1267, %v1266
        %v1271 = vsel %vm1151, %v1119, 0
        %v1274 = vsel %vm1151, %v1268, 0
        %v1277 = vsel %vm1151, %v1269, 0
        %1279 = vmatprep.subr.bf16.mxu0 0
        %1280 = vmatpush1.bf16.xpose.msra.mxu0 %v1274
        %1281 = vmatprep.subr.bf16.mxu0 0
        %1282 = vmatpush1.bf16.xpose.msra.mxu0 %v1277
        %1283 = vmatprep.subr.bf16.mxu0 0
        %1284 = vmatpush1.bf16.xpose.msra.mxu0 0
        %1285 = vmatprep.subr.bf16.mxu0 0
        %1286 = vmatpush1.bf16.xpose.msra.mxu0 0
        %1287 = vmatprep.subr.bf16.mxu0 0
        %1288 = vmatpush1.bf16.xpose.msra.mxu0 0
        %1289 = vmatprep.subr.bf16.mxu0 0
        %1290 = vmatpush1.bf16.xpose.msra.mxu0 0
        %1291 = vmatprep.subr.bf16.mxu0 0
        %1292 = vmatpush1.bf16.xpose.msra.mxu0 0
        %1293 = vmatprep.subr.bf16.mxu0 0
        %1294 = vmatpush1.bf16.xpose.msra.mxu0 0
        %1295 = vmatprep.subr.bf16.mxu0 0
        %1296 = vmatpush1.bf16.xpose.msra.mxu0 0
        %1297 = vmatprep.subr.bf16.mxu0 0
        %1298 = vmatpush1.bf16.xpose.msra.mxu0 0
        %1299 = vmatprep.subr.bf16.mxu0 0
        %1300 = vmatpush1.bf16.xpose.msra.mxu0 0
        %1301 = vmatprep.subr.bf16.mxu0 0
        %1302 = vmatpush1.bf16.xpose.msra.mxu0 0
        %1303 = vmatprep.subr.bf16.mxu0 0
        %1304 = vmatpush1.bf16.xpose.msra.mxu0 0
        %1305 = vmatprep.subr.bf16.mxu0 0
        %1306 = vmatpush1.bf16.xpose.msra.mxu0 0
        %1307 = vmatprep.subr.bf16.mxu0 0
        %1308 = vmatpush1.bf16.xpose.msra.mxu0 0
        %1309 = vmatprep.subr.bf16.mxu0 0
        %1310 = vmatpush1.bf16.xpose.msra.mxu0 0
        %1311 = vmatprep.mubr.bf16.mxu0 0
        %1312 = vmatmul.mubr.bf16.gmra.mrb[0].mxu0 %v1271
        %v1313 = vpop.f32.mrb[0].mxu0
        %v1314 = vadd.f32 0.0, %v1313
        %v1315 = vpop.f32.mrb[0].mxu0
        %v1316 = vpop.f32.mrb[0].mxu0
        %v1317 = vpop.f32.mrb[0].mxu0
        %1318 = vdwg.mxu0
        %v1323 = vunpack.c.l.b16 %v1137
        %v1324 = vunpack.c.l.b16 %v1138
        %v1325 = vunpack.c.l.b16 %v1139
        %v1326 = vunpack.c.l.b16 %v1140
        %v1327 = vpack.c.b16 %v1324, %v1323
        %v1328 = vpack.c.b16 %v1326, %v1325
        %v1330 = vsel %vm1151, %v1120, 0
        %v1333 = vsel %vm1151, %v1327, 0
        %v1336 = vsel %vm1151, %v1328, 0
        %1338 = vmatprep.subr.bf16.mxu0 0
        %1339 = vmatpush1.bf16.xpose.msra.mxu0 %v1333
        %1340 = vmatprep.subr.bf16.mxu0 0
        %1341 = vmatpush1.bf16.xpose.msra.mxu0 %v1336
        %1342 = vmatprep.subr.bf16.mxu0 0
        %1343 = vmatpush1.bf16.xpose.msra.mxu0 0
        %1344 = vmatprep.subr.bf16.mxu0 0
        %1345 = vmatpush1.bf16.xpose.msra.mxu0 0
        %1346 = vmatprep.subr.bf16.mxu0 0
        %1347 = vmatpush1.bf16.xpose.msra.mxu0 0
        %1348 = vmatprep.subr.bf16.mxu0 0
        %1349 = vmatpush1.bf16.xpose.msra.mxu0 0
        %1350 = vmatprep.subr.bf16.mxu0 0
        %1351 = vmatpush1.bf16.xpose.msra.mxu0 0
        %1352 = vmatprep.subr.bf16.mxu0 0
        %1353 = vmatpush1.bf16.xpose.msra.mxu0 0
        %1354 = vmatprep.subr.bf16.mxu0 0
        %1355 = vmatpush1.bf16.xpose.msra.mxu0 0
        %1356 = vmatprep.subr.bf16.mxu0 0
        %1357 = vmatpush1.bf16.xpose.msra.mxu0 0
        %1358 = vmatprep.subr.bf16.mxu0 0
        %1359 = vmatpush1.bf16.xpose.msra.mxu0 0
        %1360 = vmatprep.subr.bf16.mxu0 0
        %1361 = vmatpush1.bf16.xpose.msra.mxu0 0
        %1362 = vmatprep.subr.bf16.mxu0 0
        %1363 = vmatpush1.bf16.xpose.msra.mxu0 0
        %1364 = vmatprep.subr.bf16.mxu0 0
        %1365 = vmatpush1.bf16.xpose.msra.mxu0 0
        %1366 = vmatprep.subr.bf16.mxu0 0
        %1367 = vmatpush1.bf16.xpose.msra.mxu0 0
        %1368 = vmatprep.subr.bf16.mxu0 0
        %1369 = vmatpush1.bf16.xpose.msra.mxu0 0
        %1370 = vmatprep.mubr.bf16.mxu0 0
        %1371 = vmatmul.mubr.bf16.gmra.mrb[0].mxu0 %v1330
        %v1372 = vpop.f32.mrb[0].mxu0
        %v1373 = vadd.f32 0.0, %v1372
        %v1374 = vpop.f32.mrb[0].mxu0
        %v1375 = vpop.f32.mrb[0].mxu0
        %v1376 = vpop.f32.mrb[0].mxu0
        %1377 = vdwg.mxu0
        %v1378 = vpack.c.bf16 %v1196, %v1196
        %v1379 = vpack.c.bf16 %v1255, %v1255
        %v1380 = vpack.c.bf16 %v1314, %v1314
        %v1381 = vpack.c.bf16 %v1373, %v1373
        %v1382 = vld [vmem:[%s862] sm:$0xf]
        %v1383 = vld [vmem:[%s862 + $0x4] sm:$0xf]
        %v1384 = vld [vmem:[%s862 + $0x8] sm:$0xf]
        %v1385 = vld [vmem:[%s862 + $0xc] sm:$0xf]
        %v1386 = vld [vmem:[%s862 + $0x10] sm:$0xf]
        %v1387 = vld [vmem:[%s862 + $0x14] sm:$0xf]
        %v1388 = vld [vmem:[%s862 + $0x18] sm:$0xf]
        %v1389 = vld [vmem:[%s862 + $0x1c] sm:$0xf]
        %1390 = vxpose.xlu0.c.b16.start [1/8] %v1378, 128
        %1391 = vxpose.xlu0.c.b16.cont [2/8] 0, 128
        %1392 = vxpose.xlu0.c.b16.cont [3/8] 0, 128
        %1393 = vxpose.xlu0.c.b16.cont [4/8] 0, 128
        %1394 = vxpose.xlu0.c.b16.cont [5/8] 0, 128
        %1395 = vxpose.xlu0.c.b16.cont [6/8] 0, 128
        %1396 = vxpose.xlu0.c.b16.cont [7/8] 0, 128
        %1397 = vxpose.xlu0.c.b16.end [8/8] 0, 128
        %v1398 = vpop.trf.xlu0
        %v1399 = vpop.trf.xlu0
        %v1400 = vpop.trf.xlu0
        %v1401 = vpop.trf.xlu0
        %v1402 = vpop.trf.xlu0
        %v1403 = vpop.trf.xlu0
        %v1404 = vpop.trf.xlu0
        %v1405 = vpop.trf.xlu0
        %1406 = vxpose.xlu0.c.b16.start [1/8] %v1379, 128
        %1407 = vxpose.xlu0.c.b16.cont [2/8] 0, 128
        %1408 = vxpose.xlu0.c.b16.cont [3/8] 0, 128
        %1409 = vxpose.xlu0.c.b16.cont [4/8] 0, 128
        %1410 = vxpose.xlu0.c.b16.cont [5/8] 0, 128
        %1411 = vxpose.xlu0.c.b16.cont [6/8] 0, 128
        %1412 = vxpose.xlu0.c.b16.cont [7/8] 0, 128
        %1413 = vxpose.xlu0.c.b16.end [8/8] 0, 128
        %v1414 = vpop.trf.xlu0
        %v1415 = vpop.trf.xlu0
        %v1416 = vpop.trf.xlu0
        %v1417 = vpop.trf.xlu0
        %v1418 = vpop.trf.xlu0
        %v1419 = vpop.trf.xlu0
        %v1420 = vpop.trf.xlu0
        %v1421 = vpop.trf.xlu0
        %1422 = vxpose.xlu0.c.b16.start [1/8] %v1380, 128
        %1423 = vxpose.xlu0.c.b16.cont [2/8] 0, 128
        %1424 = vxpose.xlu0.c.b16.cont [3/8] 0, 128
        %1425 = vxpose.xlu0.c.b16.cont [4/8] 0, 128
        %1426 = vxpose.xlu0.c.b16.cont [5/8] 0, 128
        %1427 = vxpose.xlu0.c.b16.cont [6/8] 0, 128
        %1428 = vxpose.xlu0.c.b16.cont [7/8] 0, 128
        %1429 = vxpose.xlu0.c.b16.end [8/8] 0, 128
        %v1430 = vpop.trf.xlu0
        %v1431 = vpop.trf.xlu0
        %v1432 = vpop.trf.xlu0
        %v1433 = vpop.trf.xlu0
        %v1434 = vpop.trf.xlu0
        %v1435 = vpop.trf.xlu0
        %v1436 = vpop.trf.xlu0
        %v1437 = vpop.trf.xlu0
        %1438 = vxpose.xlu0.c.b16.start [1/8] %v1381, 128
        %1439 = vxpose.xlu0.c.b16.cont [2/8] 0, 128
        %1440 = vxpose.xlu0.c.b16.cont [3/8] 0, 128
        %1441 = vxpose.xlu0.c.b16.cont [4/8] 0, 128
        %1442 = vxpose.xlu0.c.b16.cont [5/8] 0, 128
        %1443 = vxpose.xlu0.c.b16.cont [6/8] 0, 128
        %1444 = vxpose.xlu0.c.b16.cont [7/8] 0, 128
        %1445 = vxpose.xlu0.c.b16.end [8/8] 0, 128
        %v1446 = vpop.trf.xlu0
        %v1447 = vpop.trf.xlu0
        %v1448 = vpop.trf.xlu0
        %v1449 = vpop.trf.xlu0
        %v1450 = vpop.trf.xlu0
        %v1451 = vpop.trf.xlu0
        %v1452 = vpop.trf.xlu0
        %v1453 = vpop.trf.xlu0
        %v1456 = vpack.i.b16 %v1414, %v1398
        %v1458 = vshrl.u32 %v1398, 16
        %v1459 = vshrl.u32 %v1414, 16
        %v1460 = vpack.i.b16 %v1459, %v1458
        %v1464 = vpack.i.b16 %v1446, %v1430
        %v1466 = vshrl.u32 %v1430, 16
        %v1467 = vshrl.u32 %v1446, 16
        %v1468 = vpack.i.b16 %v1467, %v1466
        %v1471 = vpack.i.b16 0, 0
        %v1473 = vshrl.u32 0, 16
        %v1474 = vpack.i.b16 %v1473, %v1473
        %v1478 = vpack.i.b16 %v1415, %v1399
        %v1480 = vshrl.u32 %v1399, 16
        %v1481 = vshrl.u32 %v1415, 16
        %v1482 = vpack.i.b16 %v1481, %v1480
        %v1486 = vpack.i.b16 %v1447, %v1431
        %v1488 = vshrl.u32 %v1431, 16
        %v1489 = vshrl.u32 %v1447, 16
        %v1490 = vpack.i.b16 %v1489, %v1488
        %v1492 = vcombine.high %v1456, %v1471
        %v1494 = vunpack.c.l.s4 1983009808
        %v1495 = vunpack.c.0.s8 %v1494
        %v1496 = vlaneseq
        %v1497 = vshrl.u32 %v1496, 7
        %v1498 = vsub.s32 %v1495, %v1497
        %v1499 = vrot.slane %v1456, %v1498
        %v1501 = vunpack.c.l.s4 1983009808
        %v1502 = vunpack.c.0.s8 %v1501
        %v1503 = vlaneseq
        %v1504 = vshrl.u32 %v1503, 7
        %v1505 = vsub.s32 %v1502, %v1504
        %v1506 = vrot.slane %v1492, %v1505
        %v1507 = vcombine.high %v1464, %v1471
        %v1509 = vunpack.c.l.s4 1983009808
        %v1510 = vunpack.c.0.s8 %v1509
        %v1511 = vlaneseq
        %v1512 = vshrl.u32 %v1511, 7
        %v1513 = vsub.s32 %v1510, %v1512
        %v1514 = vrot.slane %v1464, %v1513
        %v1516 = vunpack.c.l.s4 1983009808
        %v1517 = vunpack.c.0.s8 %v1516
        %v1518 = vlaneseq
        %v1519 = vshrl.u32 %v1518, 7
        %v1520 = vsub.s32 %v1517, %v1519
        %v1521 = vrot.slane %v1507, %v1520
        %v1522 = vcombine.low %v1499, %v1514
        %v1523 = vcombine.high %v1499, %v1514
        %v1525 = vunpack.c.l.s4 1934713408
        %v1526 = vunpack.c.0.s8 %v1525
        %v1527 = vlaneseq
        %v1528 = vshrl.u32 %v1527, 7
        %v1529 = vsub.s32 %v1526, %v1528
        %v1530 = vrot.slane %v1522, %v1529
        %v1532 = vunpack.c.l.s4 1934713408
        %v1533 = vunpack.c.0.s8 %v1532
        %v1534 = vlaneseq
        %v1535 = vshrl.u32 %v1534, 7
        %v1536 = vsub.s32 %v1533, %v1535
        %v1537 = vrot.slane %v1523, %v1536
        %v1538 = vcombine.low %v1506, %v1521
        %v1539 = vcombine.high %v1506, %v1521
        %v1541 = vunpack.c.l.s4 1934713408
        %v1542 = vunpack.c.0.s8 %v1541
        %v1543 = vlaneseq
        %v1544 = vshrl.u32 %v1543, 7
        %v1545 = vsub.s32 %v1542, %v1544
        %v1546 = vrot.slane %v1538, %v1545
        %v1548 = vunpack.c.l.s4 1934713408
        %v1549 = vunpack.c.0.s8 %v1548
        %v1550 = vlaneseq
        %v1551 = vshrl.u32 %v1550, 7
        %v1552 = vsub.s32 %v1549, %v1551
        %v1553 = vrot.slane %v1539, %v1552
        %v1554 = vcombine.high %v1530, 0
        %v1555 = vcombine.high %v1537, 0
        %v1556 = vcombine.high %v1546, 0
        %v1557 = vcombine.high %v1553, 0
        %v1558 = vcombine.high %v1460, %v1474
        %v1560 = vunpack.c.l.s4 1983009808
        %v1561 = vunpack.c.0.s8 %v1560
        %v1562 = vlaneseq
        %v1563 = vshrl.u32 %v1562, 7
        %v1564 = vsub.s32 %v1561, %v1563
        %v1565 = vrot.slane %v1460, %v1564
        %v1567 = vunpack.c.l.s4 1983009808
        %v1568 = vunpack.c.0.s8 %v1567
        %v1569 = vlaneseq
        %v1570 = vshrl.u32 %v1569, 7
        %v1571 = vsub.s32 %v1568, %v1570
        %v1572 = vrot.slane %v1558, %v1571
        %v1573 = vcombine.high %v1468, %v1474
        %v1575 = vunpack.c.l.s4 1983009808
        %v1576 = vunpack.c.0.s8 %v1575
        %v1577 = vlaneseq
        %v1578 = vshrl.u32 %v1577, 7
        %v1579 = vsub.s32 %v1576, %v1578
        %v1580 = vrot.slane %v1468, %v1579
        %v1582 = vunpack.c.l.s4 1983009808
        %v1583 = vunpack.c.0.s8 %v1582
        %v1584 = vlaneseq
        %v1585 = vshrl.u32 %v1584, 7
        %v1586 = vsub.s32 %v1583, %v1585
        %v1587 = vrot.slane %v1573, %v1586
        %v1588 = vcombine.low %v1565, %v1580
        %v1589 = vcombine.high %v1565, %v1580
        %v1591 = vunpack.c.l.s4 1934713408
        %v1592 = vunpack.c.0.s8 %v1591
        %v1593 = vlaneseq
        %v1594 = vshrl.u32 %v1593, 7
        %v1595 = vsub.s32 %v1592, %v1594
        %v1596 = vrot.slane %v1588, %v1595
        %v1598 = vunpack.c.l.s4 1934713408
        %v1599 = vunpack.c.0.s8 %v1598
        %v1600 = vlaneseq
        %v1601 = vshrl.u32 %v1600, 7
        %v1602 = vsub.s32 %v1599, %v1601
        %v1603 = vrot.slane %v1589, %v1602
        %v1604 = vcombine.low %v1572, %v1587
        %v1605 = vcombine.high %v1572, %v1587
        %v1607 = vunpack.c.l.s4 1934713408
        %v1608 = vunpack.c.0.s8 %v1607
        %v1609 = vlaneseq
        %v1610 = vshrl.u32 %v1609, 7
        %v1611 = vsub.s32 %v1608, %v1610
        %v1612 = vrot.slane %v1604, %v1611
        %v1614 = vunpack.c.l.s4 1934713408
        %v1615 = vunpack.c.0.s8 %v1614
        %v1616 = vlaneseq
        %v1617 = vshrl.u32 %v1616, 7
        %v1618 = vsub.s32 %v1615, %v1617
        %v1619 = vrot.slane %v1605, %v1618
        %v1620 = vcombine.high %v1596, 0
        %v1621 = vcombine.high %v1603, 0
        %v1622 = vcombine.high %v1612, 0
        %v1623 = vcombine.high %v1619, 0
        %v1624 = vcombine.high %v1478, %v1471
        %v1626 = vunpack.c.l.s4 1983009808
        %v1627 = vunpack.c.0.s8 %v1626
        %v1628 = vlaneseq
        %v1629 = vshrl.u32 %v1628, 7
        %v1630 = vsub.s32 %v1627, %v1629
        %v1631 = vrot.slane %v1478, %v1630
        %v1633 = vunpack.c.l.s4 1983009808
        %v1634 = vunpack.c.0.s8 %v1633
        %v1635 = vlaneseq
        %v1636 = vshrl.u32 %v1635, 7
        %v1637 = vsub.s32 %v1634, %v1636
        %v1638 = vrot.slane %v1624, %v1637
        %v1639 = vcombine.high %v1486, %v1471
        %v1641 = vunpack.c.l.s4 1983009808
        %v1642 = vunpack.c.0.s8 %v1641
        %v1643 = vlaneseq
        %v1644 = vshrl.u32 %v1643, 7
        %v1645 = vsub.s32 %v1642, %v1644
        %v1646 = vrot.slane %v1486, %v1645
        %v1648 = vunpack.c.l.s4 1983009808
        %v1649 = vunpack.c.0.s8 %v1648
        %v1650 = vlaneseq
        %v1651 = vshrl.u32 %v1650, 7
        %v1652 = vsub.s32 %v1649, %v1651
        %v1653 = vrot.slane %v1639, %v1652
        %v1654 = vcombine.low %v1631, %v1646
        %v1655 = vcombine.high %v1631, %v1646
        %v1657 = vunpack.c.l.s4 1934713408
        %v1658 = vunpack.c.0.s8 %v1657
        %v1659 = vlaneseq
        %v1660 = vshrl.u32 %v1659, 7
        %v1661 = vsub.s32 %v1658, %v1660
        %v1662 = vrot.slane %v1654, %v1661
        %v1664 = vunpack.c.l.s4 1934713408
        %v1665 = vunpack.c.0.s8 %v1664
        %v1666 = vlaneseq
        %v1667 = vshrl.u32 %v1666, 7
        %v1668 = vsub.s32 %v1665, %v1667
        %v1669 = vrot.slane %v1655, %v1668
        %v1670 = vcombine.low %v1638, %v1653
        %v1671 = vcombine.high %v1638, %v1653
        %v1673 = vunpack.c.l.s4 1934713408
        %v1674 = vunpack.c.0.s8 %v1673
        %v1675 = vlaneseq
        %v1676 = vshrl.u32 %v1675, 7
        %v1677 = vsub.s32 %v1674, %v1676
        %v1678 = vrot.slane %v1670, %v1677
        %v1680 = vunpack.c.l.s4 1934713408
        %v1681 = vunpack.c.0.s8 %v1680
        %v1682 = vlaneseq
        %v1683 = vshrl.u32 %v1682, 7
        %v1684 = vsub.s32 %v1681, %v1683
        %v1685 = vrot.slane %v1671, %v1684
        %v1686 = vcombine.high %v1662, 0
        %v1687 = vcombine.high %v1669, 0
        %v1688 = vcombine.high %v1678, 0
        %v1689 = vcombine.high %v1685, 0
        %v1690 = vcombine.high %v1482, %v1474
        %v1692 = vunpack.c.l.s4 1983009808
        %v1693 = vunpack.c.0.s8 %v1692
        %v1694 = vlaneseq
        %v1695 = vshrl.u32 %v1694, 7
        %v1696 = vsub.s32 %v1693, %v1695
        %v1697 = vrot.slane %v1482, %v1696
        %v1699 = vunpack.c.l.s4 1983009808
        %v1700 = vunpack.c.0.s8 %v1699
        %v1701 = vlaneseq
        %v1702 = vshrl.u32 %v1701, 7
        %v1703 = vsub.s32 %v1700, %v1702
        %v1704 = vrot.slane %v1690, %v1703
        %v1705 = vcombine.high %v1490, %v1474
        %v1707 = vunpack.c.l.s4 1983009808
        %v1708 = vunpack.c.0.s8 %v1707
        %v1709 = vlaneseq
        %v1710 = vshrl.u32 %v1709, 7
        %v1711 = vsub.s32 %v1708, %v1710
        %v1712 = vrot.slane %v1490, %v1711
        %v1714 = vunpack.c.l.s4 1983009808
        %v1715 = vunpack.c.0.s8 %v1714
        %v1716 = vlaneseq
        %v1717 = vshrl.u32 %v1716, 7
        %v1718 = vsub.s32 %v1715, %v1717
        %v1719 = vrot.slane %v1705, %v1718
        %v1720 = vcombine.low %v1697, %v1712
        %v1721 = vcombine.high %v1697, %v1712
        %v1723 = vunpack.c.l.s4 1934713408
        %v1724 = vunpack.c.0.s8 %v1723
        %v1725 = vlaneseq
        %v1726 = vshrl.u32 %v1725, 7
        %v1727 = vsub.s32 %v1724, %v1726
        %v1728 = vrot.slane %v1720, %v1727
        %v1730 = vunpack.c.l.s4 1934713408
        %v1731 = vunpack.c.0.s8 %v1730
        %v1732 = vlaneseq
        %v1733 = vshrl.u32 %v1732, 7
        %v1734 = vsub.s32 %v1731, %v1733
        %v1735 = vrot.slane %v1721, %v1734
        %v1736 = vcombine.low %v1704, %v1719
        %v1737 = vcombine.high %v1704, %v1719
        %v1739 = vunpack.c.l.s4 1934713408
        %v1740 = vunpack.c.0.s8 %v1739
        %v1741 = vlaneseq
        %v1742 = vshrl.u32 %v1741, 7
        %v1743 = vsub.s32 %v1740, %v1742
        %v1744 = vrot.slane %v1736, %v1743
        %v1746 = vunpack.c.l.s4 1934713408
        %v1747 = vunpack.c.0.s8 %v1746
        %v1748 = vlaneseq
        %v1749 = vshrl.u32 %v1748, 7
        %v1750 = vsub.s32 %v1747, %v1749
        %v1751 = vrot.slane %v1737, %v1750
        %v1752 = vcombine.high %v1728, 0
        %v1753 = vcombine.high %v1735, 0
        %v1754 = vcombine.high %v1744, 0
        %v1755 = vcombine.high %v1751, 0
        %1756 = vxpose.xlu0.c.b16.start [1/8] %v1530, 128
        %1757 = vxpose.xlu0.c.b16.cont [2/8] 0, 128
        %1758 = vxpose.xlu0.c.b16.cont [3/8] 0, 128
        %1759 = vxpose.xlu0.c.b16.cont [4/8] 0, 128
        %1760 = vxpose.xlu0.c.b16.cont [5/8] 0, 128
        %1761 = vxpose.xlu0.c.b16.cont [6/8] 0, 128
        %1762 = vxpose.xlu0.c.b16.cont [7/8] 0, 128
        %1763 = vxpose.xlu0.c.b16.end [8/8] 0, 128
        %v1764 = vpop.trf.xlu0
        %v1765 = vpop.trf.xlu0
        %v1766 = vpop.trf.xlu0
        %v1767 = vpop.trf.xlu0
        %v1768 = vpop.trf.xlu0
        %v1769 = vpop.trf.xlu0
        %v1770 = vpop.trf.xlu0
        %v1771 = vpop.trf.xlu0
        %1772 = vxpose.xlu0.c.b16.start [1/8] %v1596, 128
        %1773 = vxpose.xlu0.c.b16.cont [2/8] 0, 128
        %1774 = vxpose.xlu0.c.b16.cont [3/8] 0, 128
        %1775 = vxpose.xlu0.c.b16.cont [4/8] 0, 128
        %1776 = vxpose.xlu0.c.b16.cont [5/8] 0, 128
        %1777 = vxpose.xlu0.c.b16.cont [6/8] 0, 128
        %1778 = vxpose.xlu0.c.b16.cont [7/8] 0, 128
        %1779 = vxpose.xlu0.c.b16.end [8/8] 0, 128
        %v1780 = vpop.trf.xlu0
        %v1781 = vpop.trf.xlu0
        %v1782 = vpop.trf.xlu0
        %v1783 = vpop.trf.xlu0
        %v1784 = vpop.trf.xlu0
        %v1785 = vpop.trf.xlu0
        %v1786 = vpop.trf.xlu0
        %v1787 = vpop.trf.xlu0
        %1788 = vxpose.xlu0.c.b16.start [1/8] %v1554, 128
        %1789 = vxpose.xlu0.c.b16.cont [2/8] 0, 128
        %1790 = vxpose.xlu0.c.b16.cont [3/8] 0, 128
        %1791 = vxpose.xlu0.c.b16.cont [4/8] 0, 128
        %1792 = vxpose.xlu0.c.b16.cont [5/8] 0, 128
        %1793 = vxpose.xlu0.c.b16.cont [6/8] 0, 128
        %1794 = vxpose.xlu0.c.b16.cont [7/8] 0, 128
        %1795 = vxpose.xlu0.c.b16.end [8/8] 0, 128
        %v1796 = vpop.trf.xlu0
        %v1797 = vpop.trf.xlu0
        %v1798 = vpop.trf.xlu0
        %v1799 = vpop.trf.xlu0
        %v1800 = vpop.trf.xlu0
        %v1801 = vpop.trf.xlu0
        %v1802 = vpop.trf.xlu0
        %v1803 = vpop.trf.xlu0
        %1804 = vxpose.xlu0.c.b16.start [1/8] %v1620, 128
        %1805 = vxpose.xlu0.c.b16.cont [2/8] 0, 128
        %1806 = vxpose.xlu0.c.b16.cont [3/8] 0, 128
        %1807 = vxpose.xlu0.c.b16.cont [4/8] 0, 128
        %1808 = vxpose.xlu0.c.b16.cont [5/8] 0, 128
        %1809 = vxpose.xlu0.c.b16.cont [6/8] 0, 128
        %1810 = vxpose.xlu0.c.b16.cont [7/8] 0, 128
        %1811 = vxpose.xlu0.c.b16.end [8/8] 0, 128
        %v1812 = vpop.trf.xlu0
        %v1813 = vpop.trf.xlu0
        %v1814 = vpop.trf.xlu0
        %v1815 = vpop.trf.xlu0
        %v1816 = vpop.trf.xlu0
        %v1817 = vpop.trf.xlu0
        %v1818 = vpop.trf.xlu0
        %v1819 = vpop.trf.xlu0
        %1820 = vxpose.xlu0.c.b16.start [1/8] %v1537, 128
        %1821 = vxpose.xlu0.c.b16.cont [2/8] 0, 128
        %1822 = vxpose.xlu0.c.b16.cont [3/8] 0, 128
        %1823 = vxpose.xlu0.c.b16.cont [4/8] 0, 128
        %1824 = vxpose.xlu0.c.b16.cont [5/8] 0, 128
        %1825 = vxpose.xlu0.c.b16.cont [6/8] 0, 128
        %1826 = vxpose.xlu0.c.b16.cont [7/8] 0, 128
        %1827 = vxpose.xlu0.c.b16.end [8/8] 0, 128
        %v1828 = vpop.trf.xlu0
        %v1829 = vpop.trf.xlu0
        %v1830 = vpop.trf.xlu0
        %v1831 = vpop.trf.xlu0
        %v1832 = vpop.trf.xlu0
        %v1833 = vpop.trf.xlu0
        %v1834 = vpop.trf.xlu0
        %v1835 = vpop.trf.xlu0
        %1836 = vxpose.xlu0.c.b16.start [1/8] %v1603, 128
        %1837 = vxpose.xlu0.c.b16.cont [2/8] 0, 128
        %1838 = vxpose.xlu0.c.b16.cont [3/8] 0, 128
        %1839 = vxpose.xlu0.c.b16.cont [4/8] 0, 128
        %1840 = vxpose.xlu0.c.b16.cont [5/8] 0, 128
        %1841 = vxpose.xlu0.c.b16.cont [6/8] 0, 128
        %1842 = vxpose.xlu0.c.b16.cont [7/8] 0, 128
        %1843 = vxpose.xlu0.c.b16.end [8/8] 0, 128
        %v1844 = vpop.trf.xlu0
        %v1845 = vpop.trf.xlu0
        %v1846 = vpop.trf.xlu0
        %v1847 = vpop.trf.xlu0
        %v1848 = vpop.trf.xlu0
        %v1849 = vpop.trf.xlu0
        %v1850 = vpop.trf.xlu0
        %v1851 = vpop.trf.xlu0
        %1852 = vxpose.xlu0.c.b16.start [1/8] %v1555, 128
        %1853 = vxpose.xlu0.c.b16.cont [2/8] 0, 128
        %1854 = vxpose.xlu0.c.b16.cont [3/8] 0, 128
        %1855 = vxpose.xlu0.c.b16.cont [4/8] 0, 128
        %1856 = vxpose.xlu0.c.b16.cont [5/8] 0, 128
        %1857 = vxpose.xlu0.c.b16.cont [6/8] 0, 128
        %1858 = vxpose.xlu0.c.b16.cont [7/8] 0, 128
        %1859 = vxpose.xlu0.c.b16.end [8/8] 0, 128
        %v1860 = vpop.trf.xlu0
        %v1861 = vpop.trf.xlu0
        %v1862 = vpop.trf.xlu0
        %v1863 = vpop.trf.xlu0
        %v1864 = vpop.trf.xlu0
        %v1865 = vpop.trf.xlu0
        %v1866 = vpop.trf.xlu0
        %v1867 = vpop.trf.xlu0
        %1868 = vxpose.xlu0.c.b16.start [1/8] %v1621, 128
        %1869 = vxpose.xlu0.c.b16.cont [2/8] 0, 128
        %1870 = vxpose.xlu0.c.b16.cont [3/8] 0, 128
        %1871 = vxpose.xlu0.c.b16.cont [4/8] 0, 128
        %1872 = vxpose.xlu0.c.b16.cont [5/8] 0, 128
        %1873 = vxpose.xlu0.c.b16.cont [6/8] 0, 128
        %1874 = vxpose.xlu0.c.b16.cont [7/8] 0, 128
        %1875 = vxpose.xlu0.c.b16.end [8/8] 0, 128
        %v1876 = vpop.trf.xlu0
        %v1877 = vpop.trf.xlu0
        %v1878 = vpop.trf.xlu0
        %v1879 = vpop.trf.xlu0
        %v1880 = vpop.trf.xlu0
        %v1881 = vpop.trf.xlu0
        %v1882 = vpop.trf.xlu0
        %v1883 = vpop.trf.xlu0
        %1884 = vxpose.xlu0.c.b16.start [1/8] %v1546, 128
        %1885 = vxpose.xlu0.c.b16.cont [2/8] 0, 128
        %1886 = vxpose.xlu0.c.b16.cont [3/8] 0, 128
        %1887 = vxpose.xlu0.c.b16.cont [4/8] 0, 128
        %1888 = vxpose.xlu0.c.b16.cont [5/8] 0, 128
        %1889 = vxpose.xlu0.c.b16.cont [6/8] 0, 128
        %1890 = vxpose.xlu0.c.b16.cont [7/8] 0, 128
        %1891 = vxpose.xlu0.c.b16.end [8/8] 0, 128
        %v1892 = vpop.trf.xlu0
        %v1893 = vpop.trf.xlu0
        %v1894 = vpop.trf.xlu0
        %v1895 = vpop.trf.xlu0
        %v1896 = vpop.trf.xlu0
        %v1897 = vpop.trf.xlu0
        %v1898 = vpop.trf.xlu0
        %v1899 = vpop.trf.xlu0
        %1900 = vxpose.xlu0.c.b16.start [1/8] %v1612, 128
        %1901 = vxpose.xlu0.c.b16.cont [2/8] 0, 128
        %1902 = vxpose.xlu0.c.b16.cont [3/8] 0, 128
        %1903 = vxpose.xlu0.c.b16.cont [4/8] 0, 128
        %1904 = vxpose.xlu0.c.b16.cont [5/8] 0, 128
        %1905 = vxpose.xlu0.c.b16.cont [6/8] 0, 128
        %1906 = vxpose.xlu0.c.b16.cont [7/8] 0, 128
        %1907 = vxpose.xlu0.c.b16.end [8/8] 0, 128
        %v1908 = vpop.trf.xlu0
        %v1909 = vpop.trf.xlu0
        %v1910 = vpop.trf.xlu0
        %v1911 = vpop.trf.xlu0
        %v1912 = vpop.trf.xlu0
        %v1913 = vpop.trf.xlu0
        %v1914 = vpop.trf.xlu0
        %v1915 = vpop.trf.xlu0
        %1916 = vxpose.xlu0.c.b16.start [1/8] %v1556, 128
        %1917 = vxpose.xlu0.c.b16.cont [2/8] 0, 128
        %1918 = vxpose.xlu0.c.b16.cont [3/8] 0, 128
        %1919 = vxpose.xlu0.c.b16.cont [4/8] 0, 128
        %1920 = vxpose.xlu0.c.b16.cont [5/8] 0, 128
        %1921 = vxpose.xlu0.c.b16.cont [6/8] 0, 128
        %1922 = vxpose.xlu0.c.b16.cont [7/8] 0, 128
        %1923 = vxpose.xlu0.c.b16.end [8/8] 0, 128
        %v1924 = vpop.trf.xlu0
        %v1925 = vpop.trf.xlu0
        %v1926 = vpop.trf.xlu0
        %v1927 = vpop.trf.xlu0
        %v1928 = vpop.trf.xlu0
        %v1929 = vpop.trf.xlu0
        %v1930 = vpop.trf.xlu0
        %v1931 = vpop.trf.xlu0
        %1932 = vxpose.xlu0.c.b16.start [1/8] %v1622, 128
        %1933 = vxpose.xlu0.c.b16.cont [2/8] 0, 128
        %1934 = vxpose.xlu0.c.b16.cont [3/8] 0, 128
        %1935 = vxpose.xlu0.c.b16.cont [4/8] 0, 128
        %1936 = vxpose.xlu0.c.b16.cont [5/8] 0, 128
        %1937 = vxpose.xlu0.c.b16.cont [6/8] 0, 128
        %1938 = vxpose.xlu0.c.b16.cont [7/8] 0, 128
        %1939 = vxpose.xlu0.c.b16.end [8/8] 0, 128
        %v1940 = vpop.trf.xlu0
        %v1941 = vpop.trf.xlu0
        %v1942 = vpop.trf.xlu0
        %v1943 = vpop.trf.xlu0
        %v1944 = vpop.trf.xlu0
        %v1945 = vpop.trf.xlu0
        %v1946 = vpop.trf.xlu0
        %v1947 = vpop.trf.xlu0
        %1948 = vxpose.xlu0.c.b16.start [1/8] %v1553, 128
        %1949 = vxpose.xlu0.c.b16.cont [2/8] 0, 128
        %1950 = vxpose.xlu0.c.b16.cont [3/8] 0, 128
        %1951 = vxpose.xlu0.c.b16.cont [4/8] 0, 128
        %1952 = vxpose.xlu0.c.b16.cont [5/8] 0, 128
        %1953 = vxpose.xlu0.c.b16.cont [6/8] 0, 128
        %1954 = vxpose.xlu0.c.b16.cont [7/8] 0, 128
        %1955 = vxpose.xlu0.c.b16.end [8/8] 0, 128
        %v1956 = vpop.trf.xlu0
        %v1957 = vpop.trf.xlu0
        %v1958 = vpop.trf.xlu0
        %v1959 = vpop.trf.xlu0
        %v1960 = vpop.trf.xlu0
        %v1961 = vpop.trf.xlu0
        %v1962 = vpop.trf.xlu0
        %v1963 = vpop.trf.xlu0
        %1964 = vxpose.xlu0.c.b16.start [1/8] %v1619, 128
        %1965 = vxpose.xlu0.c.b16.cont [2/8] 0, 128
        %1966 = vxpose.xlu0.c.b16.cont [3/8] 0, 128
        %1967 = vxpose.xlu0.c.b16.cont [4/8] 0, 128
        %1968 = vxpose.xlu0.c.b16.cont [5/8] 0, 128
        %1969 = vxpose.xlu0.c.b16.cont [6/8] 0, 128
        %1970 = vxpose.xlu0.c.b16.cont [7/8] 0, 128
        %1971 = vxpose.xlu0.c.b16.end [8/8] 0, 128
        %v1972 = vpop.trf.xlu0
        %v1973 = vpop.trf.xlu0
        %v1974 = vpop.trf.xlu0
        %v1975 = vpop.trf.xlu0
        %v1976 = vpop.trf.xlu0
        %v1977 = vpop.trf.xlu0
        %v1978 = vpop.trf.xlu0
        %v1979 = vpop.trf.xlu0
        %1980 = vxpose.xlu0.c.b16.start [1/8] %v1557, 128
        %1981 = vxpose.xlu0.c.b16.cont [2/8] 0, 128
        %1982 = vxpose.xlu0.c.b16.cont [3/8] 0, 128
        %1983 = vxpose.xlu0.c.b16.cont [4/8] 0, 128
        %1984 = vxpose.xlu0.c.b16.cont [5/8] 0, 128
        %1985 = vxpose.xlu0.c.b16.cont [6/8] 0, 128
        %1986 = vxpose.xlu0.c.b16.cont [7/8] 0, 128
        %1987 = vxpose.xlu0.c.b16.end [8/8] 0, 128
        %v1988 = vpop.trf.xlu0
        %v1989 = vpop.trf.xlu0
        %v1990 = vpop.trf.xlu0
        %v1991 = vpop.trf.xlu0
        %v1992 = vpop.trf.xlu0
        %v1993 = vpop.trf.xlu0
        %v1994 = vpop.trf.xlu0
        %v1995 = vpop.trf.xlu0
        %1996 = vxpose.xlu0.c.b16.start [1/8] %v1623, 128
        %1997 = vxpose.xlu0.c.b16.cont [2/8] 0, 128
        %1998 = vxpose.xlu0.c.b16.cont [3/8] 0, 128
        %1999 = vxpose.xlu0.c.b16.cont [4/8] 0, 128
        %2000 = vxpose.xlu0.c.b16.cont [5/8] 0, 128
        %2001 = vxpose.xlu0.c.b16.cont [6/8] 0, 128
        %2002 = vxpose.xlu0.c.b16.cont [7/8] 0, 128
        %2003 = vxpose.xlu0.c.b16.end [8/8] 0, 128
        %v2004 = vpop.trf.xlu0
        %v2005 = vpop.trf.xlu0
        %v2006 = vpop.trf.xlu0
        %v2007 = vpop.trf.xlu0
        %v2008 = vpop.trf.xlu0
        %v2009 = vpop.trf.xlu0
        %v2010 = vpop.trf.xlu0
        %v2011 = vpop.trf.xlu0
        %2012 = vxpose.xlu0.c.b16.start [1/8] %v1662, 128
        %2013 = vxpose.xlu0.c.b16.cont [2/8] 0, 128
        %2014 = vxpose.xlu0.c.b16.cont [3/8] 0, 128
        %2015 = vxpose.xlu0.c.b16.cont [4/8] 0, 128
        %2016 = vxpose.xlu0.c.b16.cont [5/8] 0, 128
        %2017 = vxpose.xlu0.c.b16.cont [6/8] 0, 128
        %2018 = vxpose.xlu0.c.b16.cont [7/8] 0, 128
        %2019 = vxpose.xlu0.c.b16.end [8/8] 0, 128
        %v2020 = vpop.trf.xlu0
        %v2021 = vpop.trf.xlu0
        %v2022 = vpop.trf.xlu0
        %v2023 = vpop.trf.xlu0
        %v2024 = vpop.trf.xlu0
        %v2025 = vpop.trf.xlu0
        %v2026 = vpop.trf.xlu0
        %v2027 = vpop.trf.xlu0
        %2028 = vxpose.xlu0.c.b16.start [1/8] %v1728, 128
        %2029 = vxpose.xlu0.c.b16.cont [2/8] 0, 128
        %2030 = vxpose.xlu0.c.b16.cont [3/8] 0, 128
        %2031 = vxpose.xlu0.c.b16.cont [4/8] 0, 128
        %2032 = vxpose.xlu0.c.b16.cont [5/8] 0, 128
        %2033 = vxpose.xlu0.c.b16.cont [6/8] 0, 128
        %2034 = vxpose.xlu0.c.b16.cont [7/8] 0, 128
        %2035 = vxpose.xlu0.c.b16.end [8/8] 0, 128
        %v2036 = vpop.trf.xlu0
        %v2037 = vpop.trf.xlu0
        %v2038 = vpop.trf.xlu0
        %v2039 = vpop.trf.xlu0
        %v2040 = vpop.trf.xlu0
        %v2041 = vpop.trf.xlu0
        %v2042 = vpop.trf.xlu0
        %v2043 = vpop.trf.xlu0
        %2044 = vxpose.xlu0.c.b16.start [1/8] %v1686, 128
        %2045 = vxpose.xlu0.c.b16.cont [2/8] 0, 128
        %2046 = vxpose.xlu0.c.b16.cont [3/8] 0, 128
        %2047 = vxpose.xlu0.c.b16.cont [4/8] 0, 128
        %2048 = vxpose.xlu0.c.b16.cont [5/8] 0, 128
        %2049 = vxpose.xlu0.c.b16.cont [6/8] 0, 128
        %2050 = vxpose.xlu0.c.b16.cont [7/8] 0, 128
        %2051 = vxpose.xlu0.c.b16.end [8/8] 0, 128
        %v2052 = vpop.trf.xlu0
        %v2053 = vpop.trf.xlu0
        %v2054 = vpop.trf.xlu0
        %v2055 = vpop.trf.xlu0
        %v2056 = vpop.trf.xlu0
        %v2057 = vpop.trf.xlu0
        %v2058 = vpop.trf.xlu0
        %v2059 = vpop.trf.xlu0
        %2060 = vxpose.xlu0.c.b16.start [1/8] %v1752, 128
        %2061 = vxpose.xlu0.c.b16.cont [2/8] 0, 128
        %2062 = vxpose.xlu0.c.b16.cont [3/8] 0, 128
        %2063 = vxpose.xlu0.c.b16.cont [4/8] 0, 128
        %2064 = vxpose.xlu0.c.b16.cont [5/8] 0, 128
        %2065 = vxpose.xlu0.c.b16.cont [6/8] 0, 128
        %2066 = vxpose.xlu0.c.b16.cont [7/8] 0, 128
        %2067 = vxpose.xlu0.c.b16.end [8/8] 0, 128
        %v2068 = vpop.trf.xlu0
        %v2069 = vpop.trf.xlu0
        %v2070 = vpop.trf.xlu0
        %v2071 = vpop.trf.xlu0
        %v2072 = vpop.trf.xlu0
        %v2073 = vpop.trf.xlu0
        %v2074 = vpop.trf.xlu0
        %v2075 = vpop.trf.xlu0
        %2076 = vxpose.xlu0.c.b16.start [1/8] %v1669, 128
        %2077 = vxpose.xlu0.c.b16.cont [2/8] 0, 128
        %2078 = vxpose.xlu0.c.b16.cont [3/8] 0, 128
        %2079 = vxpose.xlu0.c.b16.cont [4/8] 0, 128
        %2080 = vxpose.xlu0.c.b16.cont [5/8] 0, 128
        %2081 = vxpose.xlu0.c.b16.cont [6/8] 0, 128
        %2082 = vxpose.xlu0.c.b16.cont [7/8] 0, 128
        %2083 = vxpose.xlu0.c.b16.end [8/8] 0, 128
        %v2084 = vpop.trf.xlu0
        %v2085 = vpop.trf.xlu0
        %v2086 = vpop.trf.xlu0
        %v2087 = vpop.trf.xlu0
        %v2088 = vpop.trf.xlu0
        %v2089 = vpop.trf.xlu0
        %v2090 = vpop.trf.xlu0
        %v2091 = vpop.trf.xlu0
        %2092 = vxpose.xlu0.c.b16.start [1/8] %v1735, 128
        %2093 = vxpose.xlu0.c.b16.cont [2/8] 0, 128
        %2094 = vxpose.xlu0.c.b16.cont [3/8] 0, 128
        %2095 = vxpose.xlu0.c.b16.cont [4/8] 0, 128
        %2096 = vxpose.xlu0.c.b16.cont [5/8] 0, 128
        %2097 = vxpose.xlu0.c.b16.cont [6/8] 0, 128
        %2098 = vxpose.xlu0.c.b16.cont [7/8] 0, 128
        %2099 = vxpose.xlu0.c.b16.end [8/8] 0, 128
        %v2100 = vpop.trf.xlu0
        %v2101 = vpop.trf.xlu0
        %v2102 = vpop.trf.xlu0
        %v2103 = vpop.trf.xlu0
        %v2104 = vpop.trf.xlu0
        %v2105 = vpop.trf.xlu0
        %v2106 = vpop.trf.xlu0
        %v2107 = vpop.trf.xlu0
        %2108 = vxpose.xlu0.c.b16.start [1/8] %v1687, 128
        %2109 = vxpose.xlu0.c.b16.cont [2/8] 0, 128
        %2110 = vxpose.xlu0.c.b16.cont [3/8] 0, 128
        %2111 = vxpose.xlu0.c.b16.cont [4/8] 0, 128
        %2112 = vxpose.xlu0.c.b16.cont [5/8] 0, 128
        %2113 = vxpose.xlu0.c.b16.cont [6/8] 0, 128
        %2114 = vxpose.xlu0.c.b16.cont [7/8] 0, 128
        %2115 = vxpose.xlu0.c.b16.end [8/8] 0, 128
        %v2116 = vpop.trf.xlu0
        %v2117 = vpop.trf.xlu0
        %v2118 = vpop.trf.xlu0
        %v2119 = vpop.trf.xlu0
        %v2120 = vpop.trf.xlu0
        %v2121 = vpop.trf.xlu0
        %v2122 = vpop.trf.xlu0
        %v2123 = vpop.trf.xlu0
        %2124 = vxpose.xlu0.c.b16.start [1/8] %v1753, 128
        %2125 = vxpose.xlu0.c.b16.cont [2/8] 0, 128
        %2126 = vxpose.xlu0.c.b16.cont [3/8] 0, 128
        %2127 = vxpose.xlu0.c.b16.cont [4/8] 0, 128
        %2128 = vxpose.xlu0.c.b16.cont [5/8] 0, 128
        %2129 = vxpose.xlu0.c.b16.cont [6/8] 0, 128
        %2130 = vxpose.xlu0.c.b16.cont [7/8] 0, 128
        %2131 = vxpose.xlu0.c.b16.end [8/8] 0, 128
        %v2132 = vpop.trf.xlu0
        %v2133 = vpop.trf.xlu0
        %v2134 = vpop.trf.xlu0
        %v2135 = vpop.trf.xlu0
        %v2136 = vpop.trf.xlu0
        %v2137 = vpop.trf.xlu0
        %v2138 = vpop.trf.xlu0
        %v2139 = vpop.trf.xlu0
        %2140 = vxpose.xlu0.c.b16.start [1/8] %v1678, 128
        %2141 = vxpose.xlu0.c.b16.cont [2/8] 0, 128
        %2142 = vxpose.xlu0.c.b16.cont [3/8] 0, 128
        %2143 = vxpose.xlu0.c.b16.cont [4/8] 0, 128
        %2144 = vxpose.xlu0.c.b16.cont [5/8] 0, 128
        %2145 = vxpose.xlu0.c.b16.cont [6/8] 0, 128
        %2146 = vxpose.xlu0.c.b16.cont [7/8] 0, 128
        %2147 = vxpose.xlu0.c.b16.end [8/8] 0, 128
        %v2148 = vpop.trf.xlu0
        %v2149 = vpop.trf.xlu0
        %v2150 = vpop.trf.xlu0
        %v2151 = vpop.trf.xlu0
        %v2152 = vpop.trf.xlu0
        %v2153 = vpop.trf.xlu0
        %v2154 = vpop.trf.xlu0
        %v2155 = vpop.trf.xlu0
        %2156 = vxpose.xlu0.c.b16.start [1/8] %v1744, 128
        %2157 = vxpose.xlu0.c.b16.cont [2/8] 0, 128
        %2158 = vxpose.xlu0.c.b16.cont [3/8] 0, 128
        %2159 = vxpose.xlu0.c.b16.cont [4/8] 0, 128
        %2160 = vxpose.xlu0.c.b16.cont [5/8] 0, 128
        %2161 = vxpose.xlu0.c.b16.cont [6/8] 0, 128
        %2162 = vxpose.xlu0.c.b16.cont [7/8] 0, 128
        %2163 = vxpose.xlu0.c.b16.end [8/8] 0, 128
        %v2164 = vpop.trf.xlu0
        %v2165 = vpop.trf.xlu0
        %v2166 = vpop.trf.xlu0
        %v2167 = vpop.trf.xlu0
        %v2168 = vpop.trf.xlu0
        %v2169 = vpop.trf.xlu0
        %v2170 = vpop.trf.xlu0
        %v2171 = vpop.trf.xlu0
        %2172 = vxpose.xlu0.c.b16.start [1/8] %v1688, 128
        %2173 = vxpose.xlu0.c.b16.cont [2/8] 0, 128
        %2174 = vxpose.xlu0.c.b16.cont [3/8] 0, 128
        %2175 = vxpose.xlu0.c.b16.cont [4/8] 0, 128
        %2176 = vxpose.xlu0.c.b16.cont [5/8] 0, 128
        %2177 = vxpose.xlu0.c.b16.cont [6/8] 0, 128
        %2178 = vxpose.xlu0.c.b16.cont [7/8] 0, 128
        %2179 = vxpose.xlu0.c.b16.end [8/8] 0, 128
        %v2180 = vpop.trf.xlu0
        %v2181 = vpop.trf.xlu0
        %v2182 = vpop.trf.xlu0
        %v2183 = vpop.trf.xlu0
        %v2184 = vpop.trf.xlu0
        %v2185 = vpop.trf.xlu0
        %v2186 = vpop.trf.xlu0
        %v2187 = vpop.trf.xlu0
        %2188 = vxpose.xlu0.c.b16.start [1/8] %v1754, 128
        %2189 = vxpose.xlu0.c.b16.cont [2/8] 0, 128
        %2190 = vxpose.xlu0.c.b16.cont [3/8] 0, 128
        %2191 = vxpose.xlu0.c.b16.cont [4/8] 0, 128
        %2192 = vxpose.xlu0.c.b16.cont [5/8] 0, 128
        %2193 = vxpose.xlu0.c.b16.cont [6/8] 0, 128
        %2194 = vxpose.xlu0.c.b16.cont [7/8] 0, 128
        %2195 = vxpose.xlu0.c.b16.end [8/8] 0, 128
        %v2196 = vpop.trf.xlu0
        %v2197 = vpop.trf.xlu0
        %v2198 = vpop.trf.xlu0
        %v2199 = vpop.trf.xlu0
        %v2200 = vpop.trf.xlu0
        %v2201 = vpop.trf.xlu0
        %v2202 = vpop.trf.xlu0
        %v2203 = vpop.trf.xlu0
        %2204 = vxpose.xlu0.c.b16.start [1/8] %v1685, 128
        %2205 = vxpose.xlu0.c.b16.cont [2/8] 0, 128
        %2206 = vxpose.xlu0.c.b16.cont [3/8] 0, 128
        %2207 = vxpose.xlu0.c.b16.cont [4/8] 0, 128
        %2208 = vxpose.xlu0.c.b16.cont [5/8] 0, 128
        %2209 = vxpose.xlu0.c.b16.cont [6/8] 0, 128
        %2210 = vxpose.xlu0.c.b16.cont [7/8] 0, 128
        %2211 = vxpose.xlu0.c.b16.end [8/8] 0, 128
        %v2212 = vpop.trf.xlu0
        %v2213 = vpop.trf.xlu0
        %v2214 = vpop.trf.xlu0
        %v2215 = vpop.trf.xlu0
        %v2216 = vpop.trf.xlu0
        %v2217 = vpop.trf.xlu0
        %v2218 = vpop.trf.xlu0
        %v2219 = vpop.trf.xlu0
        %2220 = vxpose.xlu0.c.b16.start [1/8] %v1751, 128
        %2221 = vxpose.xlu0.c.b16.cont [2/8] 0, 128
        %2222 = vxpose.xlu0.c.b16.cont [3/8] 0, 128
        %2223 = vxpose.xlu0.c.b16.cont [4/8] 0, 128
        %2224 = vxpose.xlu0.c.b16.cont [5/8] 0, 128
        %2225 = vxpose.xlu0.c.b16.cont [6/8] 0, 128
        %2226 = vxpose.xlu0.c.b16.cont [7/8] 0, 128
        %2227 = vxpose.xlu0.c.b16.end [8/8] 0, 128
        %v2228 = vpop.trf.xlu0
        %v2229 = vpop.trf.xlu0
        %v2230 = vpop.trf.xlu0
        %v2231 = vpop.trf.xlu0
        %v2232 = vpop.trf.xlu0
        %v2233 = vpop.trf.xlu0
        %v2234 = vpop.trf.xlu0
        %v2235 = vpop.trf.xlu0
        %2236 = vxpose.xlu0.c.b16.start [1/8] %v1689, 128
        %2237 = vxpose.xlu0.c.b16.cont [2/8] 0, 128
        %2238 = vxpose.xlu0.c.b16.cont [3/8] 0, 128
        %2239 = vxpose.xlu0.c.b16.cont [4/8] 0, 128
        %2240 = vxpose.xlu0.c.b16.cont [5/8] 0, 128
        %2241 = vxpose.xlu0.c.b16.cont [6/8] 0, 128
        %2242 = vxpose.xlu0.c.b16.cont [7/8] 0, 128
        %2243 = vxpose.xlu0.c.b16.end [8/8] 0, 128
        %v2244 = vpop.trf.xlu0
        %v2245 = vpop.trf.xlu0
        %v2246 = vpop.trf.xlu0
        %v2247 = vpop.trf.xlu0
        %v2248 = vpop.trf.xlu0
        %v2249 = vpop.trf.xlu0
        %v2250 = vpop.trf.xlu0
        %v2251 = vpop.trf.xlu0
        %2252 = vxpose.xlu0.c.b16.start [1/8] %v1755, 128
        %2253 = vxpose.xlu0.c.b16.cont [2/8] 0, 128
        %2254 = vxpose.xlu0.c.b16.cont [3/8] 0, 128
        %2255 = vxpose.xlu0.c.b16.cont [4/8] 0, 128
        %2256 = vxpose.xlu0.c.b16.cont [5/8] 0, 128
        %2257 = vxpose.xlu0.c.b16.cont [6/8] 0, 128
        %2258 = vxpose.xlu0.c.b16.cont [7/8] 0, 128
        %2259 = vxpose.xlu0.c.b16.end [8/8] 0, 128
        %v2260 = vpop.trf.xlu0
        %v2261 = vpop.trf.xlu0
        %v2262 = vpop.trf.xlu0
        %v2263 = vpop.trf.xlu0
        %v2264 = vpop.trf.xlu0
        %v2265 = vpop.trf.xlu0
        %v2266 = vpop.trf.xlu0
        %v2267 = vpop.trf.xlu0
        %v2268 = vcombine.low %v1764, %v1828
        %v2270 = vunpack.c.l.s4 1983009808
        %v2271 = vunpack.c.0.s8 %v2270
        %v2272 = vlaneseq
        %v2273 = vshrl.u32 %v2272, 7
        %v2274 = vsub.s32 %v2271, %v2273
        %v2275 = vrot.slane %v2268, %v2274
        %v2276 = vcombine.low %v1796, %v1860
        %v2278 = vunpack.c.l.s4 1983009808
        %v2279 = vunpack.c.0.s8 %v2278
        %v2280 = vlaneseq
        %v2281 = vshrl.u32 %v2280, 7
        %v2282 = vsub.s32 %v2279, %v2281
        %v2283 = vrot.slane %v2276, %v2282
        %v2284 = vcombine.low %v1892, %v1956
        %v2286 = vunpack.c.l.s4 1983009808
        %v2287 = vunpack.c.0.s8 %v2286
        %v2288 = vlaneseq
        %v2289 = vshrl.u32 %v2288, 7
        %v2290 = vsub.s32 %v2287, %v2289
        %v2291 = vrot.slane %v2284, %v2290
        %v2292 = vcombine.low %v1924, %v1988
        %v2294 = vunpack.c.l.s4 1983009808
        %v2295 = vunpack.c.0.s8 %v2294
        %v2296 = vlaneseq
        %v2297 = vshrl.u32 %v2296, 7
        %v2298 = vsub.s32 %v2295, %v2297
        %v2299 = vrot.slane %v2292, %v2298
        %v2300 = vcombine.low %v2275, %v2283
        %v2301 = vcombine.high %v2275, %v2283
        %v2303 = vunpack.c.l.s4 1934713408
        %v2304 = vunpack.c.0.s8 %v2303
        %v2305 = vlaneseq
        %v2306 = vshrl.u32 %v2305, 7
        %v2307 = vsub.s32 %v2304, %v2306
        %v2308 = vrot.slane %v2300, %v2307
        %v2310 = vunpack.c.l.s4 1934713408
        %v2311 = vunpack.c.0.s8 %v2310
        %v2312 = vlaneseq
        %v2313 = vshrl.u32 %v2312, 7
        %v2314 = vsub.s32 %v2311, %v2313
        %v2315 = vrot.slane %v2301, %v2314
        %v2316 = vcombine.low %v2291, %v2299
        %v2317 = vcombine.high %v2291, %v2299
        %v2319 = vunpack.c.l.s4 1934713408
        %v2320 = vunpack.c.0.s8 %v2319
        %v2321 = vlaneseq
        %v2322 = vshrl.u32 %v2321, 7
        %v2323 = vsub.s32 %v2320, %v2322
        %v2324 = vrot.slane %v2316, %v2323
        %v2326 = vunpack.c.l.s4 1934713408
        %v2327 = vunpack.c.0.s8 %v2326
        %v2328 = vlaneseq
        %v2329 = vshrl.u32 %v2328, 7
        %v2330 = vsub.s32 %v2327, %v2329
        %v2331 = vrot.slane %v2317, %v2330
        %v2332 = vcombine.low %v2308, %v2324
        %v2333 = vcombine.high %v2308, %v2324
        %v2334 = vcombine.low %v2315, %v2331
        %v2335 = vcombine.high %v2315, %v2331
        %v2336 = vcombine.low %v1780, %v1844
        %v2338 = vunpack.c.l.s4 1983009808
        %v2339 = vunpack.c.0.s8 %v2338
        %v2340 = vlaneseq
        %v2341 = vshrl.u32 %v2340, 7
        %v2342 = vsub.s32 %v2339, %v2341
        %v2343 = vrot.slane %v2336, %v2342
        %v2344 = vcombine.low %v1812, %v1876
        %v2346 = vunpack.c.l.s4 1983009808
        %v2347 = vunpack.c.0.s8 %v2346
        %v2348 = vlaneseq
        %v2349 = vshrl.u32 %v2348, 7
        %v2350 = vsub.s32 %v2347, %v2349
        %v2351 = vrot.slane %v2344, %v2350
        %v2352 = vcombine.low %v1908, %v1972
        %v2354 = vunpack.c.l.s4 1983009808
        %v2355 = vunpack.c.0.s8 %v2354
        %v2356 = vlaneseq
        %v2357 = vshrl.u32 %v2356, 7
        %v2358 = vsub.s32 %v2355, %v2357
        %v2359 = vrot.slane %v2352, %v2358
        %v2360 = vcombine.low %v1940, %v2004
        %v2362 = vunpack.c.l.s4 1983009808
        %v2363 = vunpack.c.0.s8 %v2362
        %v2364 = vlaneseq
        %v2365 = vshrl.u32 %v2364, 7
        %v2366 = vsub.s32 %v2363, %v2365
        %v2367 = vrot.slane %v2360, %v2366
        %v2368 = vcombine.low %v2343, %v2351
        %v2369 = vcombine.high %v2343, %v2351
        %v2371 = vunpack.c.l.s4 1934713408
        %v2372 = vunpack.c.0.s8 %v2371
        %v2373 = vlaneseq
        %v2374 = vshrl.u32 %v2373, 7
        %v2375 = vsub.s32 %v2372, %v2374
        %v2376 = vrot.slane %v2368, %v2375
        %v2378 = vunpack.c.l.s4 1934713408
        %v2379 = vunpack.c.0.s8 %v2378
        %v2380 = vlaneseq
        %v2381 = vshrl.u32 %v2380, 7
        %v2382 = vsub.s32 %v2379, %v2381
        %v2383 = vrot.slane %v2369, %v2382
        %v2384 = vcombine.low %v2359, %v2367
        %v2385 = vcombine.high %v2359, %v2367
        %v2387 = vunpack.c.l.s4 1934713408
        %v2388 = vunpack.c.0.s8 %v2387
        %v2389 = vlaneseq
        %v2390 = vshrl.u32 %v2389, 7
        %v2391 = vsub.s32 %v2388, %v2390
        %v2392 = vrot.slane %v2384, %v2391
        %v2394 = vunpack.c.l.s4 1934713408
        %v2395 = vunpack.c.0.s8 %v2394
        %v2396 = vlaneseq
        %v2397 = vshrl.u32 %v2396, 7
        %v2398 = vsub.s32 %v2395, %v2397
        %v2399 = vrot.slane %v2385, %v2398
        %v2400 = vcombine.low %v2376, %v2392
        %v2401 = vcombine.high %v2376, %v2392
        %v2402 = vcombine.low %v2383, %v2399
        %v2403 = vcombine.high %v2383, %v2399
        %v2404 = vcombine.low %v2020, %v2084
        %v2406 = vunpack.c.l.s4 1983009808
        %v2407 = vunpack.c.0.s8 %v2406
        %v2408 = vlaneseq
        %v2409 = vshrl.u32 %v2408, 7
        %v2410 = vsub.s32 %v2407, %v2409
        %v2411 = vrot.slane %v2404, %v2410
        %v2412 = vcombine.low %v2052, %v2116
        %v2414 = vunpack.c.l.s4 1983009808
        %v2415 = vunpack.c.0.s8 %v2414
        %v2416 = vlaneseq
        %v2417 = vshrl.u32 %v2416, 7
        %v2418 = vsub.s32 %v2415, %v2417
        %v2419 = vrot.slane %v2412, %v2418
        %v2420 = vcombine.low %v2148, %v2212
        %v2422 = vunpack.c.l.s4 1983009808
        %v2423 = vunpack.c.0.s8 %v2422
        %v2424 = vlaneseq
        %v2425 = vshrl.u32 %v2424, 7
        %v2426 = vsub.s32 %v2423, %v2425
        %v2427 = vrot.slane %v2420, %v2426
        %v2428 = vcombine.low %v2180, %v2244
        %v2430 = vunpack.c.l.s4 1983009808
        %v2431 = vunpack.c.0.s8 %v2430
        %v2432 = vlaneseq
        %v2433 = vshrl.u32 %v2432, 7
        %v2434 = vsub.s32 %v2431, %v2433
        %v2435 = vrot.slane %v2428, %v2434
        %v2436 = vcombine.low %v2411, %v2419
        %v2437 = vcombine.high %v2411, %v2419
        %v2439 = vunpack.c.l.s4 1934713408
        %v2440 = vunpack.c.0.s8 %v2439
        %v2441 = vlaneseq
        %v2442 = vshrl.u32 %v2441, 7
        %v2443 = vsub.s32 %v2440, %v2442
        %v2444 = vrot.slane %v2436, %v2443
        %v2446 = vunpack.c.l.s4 1934713408
        %v2447 = vunpack.c.0.s8 %v2446
        %v2448 = vlaneseq
        %v2449 = vshrl.u32 %v2448, 7
        %v2450 = vsub.s32 %v2447, %v2449
        %v2451 = vrot.slane %v2437, %v2450
        %v2452 = vcombine.low %v2427, %v2435
        %v2453 = vcombine.high %v2427, %v2435
        %v2455 = vunpack.c.l.s4 1934713408
        %v2456 = vunpack.c.0.s8 %v2455
        %v2457 = vlaneseq
        %v2458 = vshrl.u32 %v2457, 7
        %v2459 = vsub.s32 %v2456, %v2458
        %v2460 = vrot.slane %v2452, %v2459
        %v2462 = vunpack.c.l.s4 1934713408
        %v2463 = vunpack.c.0.s8 %v2462
        %v2464 = vlaneseq
        %v2465 = vshrl.u32 %v2464, 7
        %v2466 = vsub.s32 %v2463, %v2465
        %v2467 = vrot.slane %v2453, %v2466
        %v2468 = vcombine.low %v2444, %v2460
        %v2469 = vcombine.high %v2444, %v2460
        %v2470 = vcombine.low %v2451, %v2467
        %v2471 = vcombine.high %v2451, %v2467
        %v2472 = vcombine.low %v2036, %v2100
        %v2474 = vunpack.c.l.s4 1983009808
        %v2475 = vunpack.c.0.s8 %v2474
        %v2476 = vlaneseq
        %v2477 = vshrl.u32 %v2476, 7
        %v2478 = vsub.s32 %v2475, %v2477
        %v2479 = vrot.slane %v2472, %v2478
        %v2480 = vcombine.low %v2068, %v2132
        %v2482 = vunpack.c.l.s4 1983009808
        %v2483 = vunpack.c.0.s8 %v2482
        %v2484 = vlaneseq
        %v2485 = vshrl.u32 %v2484, 7
        %v2486 = vsub.s32 %v2483, %v2485
        %v2487 = vrot.slane %v2480, %v2486
        %v2488 = vcombine.low %v2164, %v2228
        %v2490 = vunpack.c.l.s4 1983009808
        %v2491 = vunpack.c.0.s8 %v2490
        %v2492 = vlaneseq
        %v2493 = vshrl.u32 %v2492, 7
        %v2494 = vsub.s32 %v2491, %v2493
        %v2495 = vrot.slane %v2488, %v2494
        %v2496 = vcombine.low %v2196, %v2260
        %v2498 = vunpack.c.l.s4 1983009808
        %v2499 = vunpack.c.0.s8 %v2498
        %v2500 = vlaneseq
        %v2501 = vshrl.u32 %v2500, 7
        %v2502 = vsub.s32 %v2499, %v2501
        %v2503 = vrot.slane %v2496, %v2502
        %v2504 = vcombine.low %v2479, %v2487
        %v2505 = vcombine.high %v2479, %v2487
        %v2507 = vunpack.c.l.s4 1934713408
        %v2508 = vunpack.c.0.s8 %v2507
        %v2509 = vlaneseq
        %v2510 = vshrl.u32 %v2509, 7
        %v2511 = vsub.s32 %v2508, %v2510
        %v2512 = vrot.slane %v2504, %v2511
        %v2514 = vunpack.c.l.s4 1934713408
        %v2515 = vunpack.c.0.s8 %v2514
        %v2516 = vlaneseq
        %v2517 = vshrl.u32 %v2516, 7
        %v2518 = vsub.s32 %v2515, %v2517
        %v2519 = vrot.slane %v2505, %v2518
        %v2520 = vcombine.low %v2495, %v2503
        %v2521 = vcombine.high %v2495, %v2503
        %v2523 = vunpack.c.l.s4 1934713408
        %v2524 = vunpack.c.0.s8 %v2523
        %v2525 = vlaneseq
        %v2526 = vshrl.u32 %v2525, 7
        %v2527 = vsub.s32 %v2524, %v2526
        %v2528 = vrot.slane %v2520, %v2527
        %v2530 = vunpack.c.l.s4 1934713408
        %v2531 = vunpack.c.0.s8 %v2530
        %v2532 = vlaneseq
        %v2533 = vshrl.u32 %v2532, 7
        %v2534 = vsub.s32 %v2531, %v2533
        %v2535 = vrot.slane %v2521, %v2534
        %v2536 = vcombine.low %v2512, %v2528
        %v2537 = vcombine.high %v2512, %v2528
        %v2538 = vcombine.low %v2519, %v2535
        %v2539 = vcombine.high %v2519, %v2535
        %v2542 = vpack.i.b16 %v2400, %v2332
        %v2544 = vshrl.u32 %v2332, 16
        %v2545 = vshrl.u32 %v2400, 16
        %v2546 = vpack.i.b16 %v2545, %v2544
        %v2550 = vpack.i.b16 %v2401, %v2333
        %v2552 = vshrl.u32 %v2333, 16
        %v2553 = vshrl.u32 %v2401, 16
        %v2554 = vpack.i.b16 %v2553, %v2552
        %v2558 = vpack.i.b16 %v2402, %v2334
        %v2560 = vshrl.u32 %v2334, 16
        %v2561 = vshrl.u32 %v2402, 16
        %v2562 = vpack.i.b16 %v2561, %v2560
        %v2566 = vpack.i.b16 %v2403, %v2335
        %v2568 = vshrl.u32 %v2335, 16
        %v2569 = vshrl.u32 %v2403, 16
        %v2570 = vpack.i.b16 %v2569, %v2568
        %v2574 = vpack.i.b16 %v2536, %v2468
        %v2576 = vshrl.u32 %v2468, 16
        %v2577 = vshrl.u32 %v2536, 16
        %v2578 = vpack.i.b16 %v2577, %v2576
        %v2582 = vpack.i.b16 %v2537, %v2469
        %v2584 = vshrl.u32 %v2469, 16
        %v2585 = vshrl.u32 %v2537, 16
        %v2586 = vpack.i.b16 %v2585, %v2584
        %v2590 = vpack.i.b16 %v2538, %v2470
        %v2592 = vshrl.u32 %v2470, 16
        %v2593 = vshrl.u32 %v2538, 16
        %v2594 = vpack.i.b16 %v2593, %v2592
        %v2598 = vpack.i.b16 %v2539, %v2471
        %v2600 = vshrl.u32 %v2471, 16
        %v2601 = vshrl.u32 %v2539, 16
        %v2602 = vpack.i.b16 %v2601, %v2600
        %v2605 = vsel %vm1063, %v1382, 0
        %2607 = vmatprep.subr.bf16.mxu0 0
        %2608 = vmatpush1.bf16.msra.mxu0 %v2542
        %2609 = vmatprep.subr.bf16.mxu0 0
        %2610 = vmatpush1.bf16.msra.mxu0 %v2574
        %2611 = vmatprep.subr.bf16.mxu0 0
        %2612 = vmatpush1.bf16.msra.mxu0 0
        %2613 = vmatprep.subr.bf16.mxu0 0
        %2614 = vmatpush1.bf16.msra.mxu0 0
        %2615 = vmatprep.subr.bf16.mxu0 0
        %2616 = vmatpush1.bf16.msra.mxu0 0
        %2617 = vmatprep.subr.bf16.mxu0 0
        %2618 = vmatpush1.bf16.msra.mxu0 0
        %2619 = vmatprep.subr.bf16.mxu0 0
        %2620 = vmatpush1.bf16.msra.mxu0 0
        %2621 = vmatprep.subr.bf16.mxu0 0
        %2622 = vmatpush1.bf16.msra.mxu0 0
        %2623 = vmatprep.subr.bf16.mxu0 0
        %2624 = vmatpush1.bf16.msra.mxu0 0
        %2625 = vmatprep.subr.bf16.mxu0 0
        %2626 = vmatpush1.bf16.msra.mxu0 0
        %2627 = vmatprep.subr.bf16.mxu0 0
        %2628 = vmatpush1.bf16.msra.mxu0 0
        %2629 = vmatprep.subr.bf16.mxu0 0
        %2630 = vmatpush1.bf16.msra.mxu0 0
        %2631 = vmatprep.subr.bf16.mxu0 0
        %2632 = vmatpush1.bf16.msra.mxu0 0
        %2633 = vmatprep.subr.bf16.mxu0 0
        %2634 = vmatpush1.bf16.msra.mxu0 0
        %2635 = vmatprep.subr.bf16.mxu0 0
        %2636 = vmatpush1.bf16.msra.mxu0 0
        %2637 = vmatprep.subr.bf16.mxu0 0
        %2638 = vmatpush1.bf16.msra.mxu0 0
        %2639 = vmatprep.mubr.bf16.mxu0 0
        %2640 = vmatmul.mubr.bf16.gmra.mrb[0].mxu0 %v2605
        %v2641 = vpop.f32.mrb[0].mxu0
        %v2642 = vadd.f32 0.0, %v2641
        %v2643 = vpop.f32.mrb[0].mxu0
        %v2644 = vpop.f32.mrb[0].mxu0
        %v2645 = vpop.f32.mrb[0].mxu0
        %2646 = vdwg.mxu0
        %v2648 = vsel %vm1063, %v1383, 0
        %2650 = vmatprep.subr.bf16.mxu0 0
        %2651 = vmatpush1.bf16.msra.mxu0 %v2546
        %2652 = vmatprep.subr.bf16.mxu0 0
        %2653 = vmatpush1.bf16.msra.mxu0 %v2578
        %2654 = vmatprep.subr.bf16.mxu0 0
        %2655 = vmatpush1.bf16.msra.mxu0 0
        %2656 = vmatprep.subr.bf16.mxu0 0
        %2657 = vmatpush1.bf16.msra.mxu0 0
        %2658 = vmatprep.subr.bf16.mxu0 0
        %2659 = vmatpush1.bf16.msra.mxu0 0
        %2660 = vmatprep.subr.bf16.mxu0 0
        %2661 = vmatpush1.bf16.msra.mxu0 0
        %2662 = vmatprep.subr.bf16.mxu0 0
        %2663 = vmatpush1.bf16.msra.mxu0 0
        %2664 = vmatprep.subr.bf16.mxu0 0
        %2665 = vmatpush1.bf16.msra.mxu0 0
        %2666 = vmatprep.subr.bf16.mxu0 0
        %2667 = vmatpush1.bf16.msra.mxu0 0
        %2668 = vmatprep.subr.bf16.mxu0 0
        %2669 = vmatpush1.bf16.msra.mxu0 0
        %2670 = vmatprep.subr.bf16.mxu0 0
        %2671 = vmatpush1.bf16.msra.mxu0 0
        %2672 = vmatprep.subr.bf16.mxu0 0
        %2673 = vmatpush1.bf16.msra.mxu0 0
        %2674 = vmatprep.subr.bf16.mxu0 0
        %2675 = vmatpush1.bf16.msra.mxu0 0
        %2676 = vmatprep.subr.bf16.mxu0 0
        %2677 = vmatpush1.bf16.msra.mxu0 0
        %2678 = vmatprep.subr.bf16.mxu0 0
        %2679 = vmatpush1.bf16.msra.mxu0 0
        %2680 = vmatprep.subr.bf16.mxu0 0
        %2681 = vmatpush1.bf16.msra.mxu0 0
        %2682 = vmatprep.mubr.bf16.mxu0 0
        %2683 = vmatmul.mubr.bf16.gmra.mrb[0].mxu0 %v2648
        %v2684 = vpop.f32.mrb[0].mxu0
        %v2685 = vadd.f32 0.0, %v2684
        %v2686 = vpop.f32.mrb[0].mxu0
        %v2687 = vpop.f32.mrb[0].mxu0
        %v2688 = vpop.f32.mrb[0].mxu0
        %2689 = vdwg.mxu0
        %v2691 = vsel %vm1063, %v1384, 0
        %2693 = vmatprep.subr.bf16.mxu0 0
        %2694 = vmatpush1.bf16.msra.mxu0 %v2550
        %2695 = vmatprep.subr.bf16.mxu0 0
        %2696 = vmatpush1.bf16.msra.mxu0 %v2582
        %2697 = vmatprep.subr.bf16.mxu0 0
        %2698 = vmatpush1.bf16.msra.mxu0 0
        %2699 = vmatprep.subr.bf16.mxu0 0
        %2700 = vmatpush1.bf16.msra.mxu0 0
        %2701 = vmatprep.subr.bf16.mxu0 0
        %2702 = vmatpush1.bf16.msra.mxu0 0
        %2703 = vmatprep.subr.bf16.mxu0 0
        %2704 = vmatpush1.bf16.msra.mxu0 0
        %2705 = vmatprep.subr.bf16.mxu0 0
        %2706 = vmatpush1.bf16.msra.mxu0 0
        %2707 = vmatprep.subr.bf16.mxu0 0
        %2708 = vmatpush1.bf16.msra.mxu0 0
        %2709 = vmatprep.subr.bf16.mxu0 0
        %2710 = vmatpush1.bf16.msra.mxu0 0
        %2711 = vmatprep.subr.bf16.mxu0 0
        %2712 = vmatpush1.bf16.msra.mxu0 0
        %2713 = vmatprep.subr.bf16.mxu0 0
        %2714 = vmatpush1.bf16.msra.mxu0 0
        %2715 = vmatprep.subr.bf16.mxu0 0
        %2716 = vmatpush1.bf16.msra.mxu0 0
        %2717 = vmatprep.subr.bf16.mxu0 0
        %2718 = vmatpush1.bf16.msra.mxu0 0
        %2719 = vmatprep.subr.bf16.mxu0 0
        %2720 = vmatpush1.bf16.msra.mxu0 0
        %2721 = vmatprep.subr.bf16.mxu0 0
        %2722 = vmatpush1.bf16.msra.mxu0 0
        %2723 = vmatprep.subr.bf16.mxu0 0
        %2724 = vmatpush1.bf16.msra.mxu0 0
        %2725 = vmatprep.mubr.bf16.mxu0 0
        %2726 = vmatmul.mubr.bf16.gmra.mrb[0].mxu0 %v2691
        %v2727 = vpop.f32.mrb[0].mxu0
        %v2728 = vadd.f32 0.0, %v2727
        %v2729 = vpop.f32.mrb[0].mxu0
        %v2730 = vpop.f32.mrb[0].mxu0
        %v2731 = vpop.f32.mrb[0].mxu0
        %2732 = vdwg.mxu0
        %v2734 = vsel %vm1063, %v1385, 0
        %2736 = vmatprep.subr.bf16.mxu0 0
        %2737 = vmatpush1.bf16.msra.mxu0 %v2554
        %2738 = vmatprep.subr.bf16.mxu0 0
        %2739 = vmatpush1.bf16.msra.mxu0 %v2586
        %2740 = vmatprep.subr.bf16.mxu0 0
        %2741 = vmatpush1.bf16.msra.mxu0 0
        %2742 = vmatprep.subr.bf16.mxu0 0
        %2743 = vmatpush1.bf16.msra.mxu0 0
        %2744 = vmatprep.subr.bf16.mxu0 0
        %2745 = vmatpush1.bf16.msra.mxu0 0
        %2746 = vmatprep.subr.bf16.mxu0 0
        %2747 = vmatpush1.bf16.msra.mxu0 0
        %2748 = vmatprep.subr.bf16.mxu0 0
        %2749 = vmatpush1.bf16.msra.mxu0 0
        %2750 = vmatprep.subr.bf16.mxu0 0
        %2751 = vmatpush1.bf16.msra.mxu0 0
        %2752 = vmatprep.subr.bf16.mxu0 0
        %2753 = vmatpush1.bf16.msra.mxu0 0
        %2754 = vmatprep.subr.bf16.mxu0 0
        %2755 = vmatpush1.bf16.msra.mxu0 0
        %2756 = vmatprep.subr.bf16.mxu0 0
        %2757 = vmatpush1.bf16.msra.mxu0 0
        %2758 = vmatprep.subr.bf16.mxu0 0
        %2759 = vmatpush1.bf16.msra.mxu0 0
        %2760 = vmatprep.subr.bf16.mxu0 0
        %2761 = vmatpush1.bf16.msra.mxu0 0
        %2762 = vmatprep.subr.bf16.mxu0 0
        %2763 = vmatpush1.bf16.msra.mxu0 0
        %2764 = vmatprep.subr.bf16.mxu0 0
        %2765 = vmatpush1.bf16.msra.mxu0 0
        %2766 = vmatprep.subr.bf16.mxu0 0
        %2767 = vmatpush1.bf16.msra.mxu0 0
        %2768 = vmatprep.mubr.bf16.mxu0 0
        %2769 = vmatmul.mubr.bf16.gmra.mrb[0].mxu0 %v2734
        %v2770 = vpop.f32.mrb[0].mxu0
        %v2771 = vadd.f32 0.0, %v2770
        %v2772 = vpop.f32.mrb[0].mxu0
        %v2773 = vpop.f32.mrb[0].mxu0
        %v2774 = vpop.f32.mrb[0].mxu0
        %2775 = vdwg.mxu0
        %v2777 = vsel %vm1063, %v1386, 0
        %2779 = vmatprep.subr.bf16.mxu0 0
        %2780 = vmatpush1.bf16.msra.mxu0 %v2558
        %2781 = vmatprep.subr.bf16.mxu0 0
        %2782 = vmatpush1.bf16.msra.mxu0 %v2590
        %2783 = vmatprep.subr.bf16.mxu0 0
        %2784 = vmatpush1.bf16.msra.mxu0 0
        %2785 = vmatprep.subr.bf16.mxu0 0
        %2786 = vmatpush1.bf16.msra.mxu0 0
        %2787 = vmatprep.subr.bf16.mxu0 0
        %2788 = vmatpush1.bf16.msra.mxu0 0
        %2789 = vmatprep.subr.bf16.mxu0 0
        %2790 = vmatpush1.bf16.msra.mxu0 0
        %2791 = vmatprep.subr.bf16.mxu0 0
        %2792 = vmatpush1.bf16.msra.mxu0 0
        %2793 = vmatprep.subr.bf16.mxu0 0
        %2794 = vmatpush1.bf16.msra.mxu0 0
        %2795 = vmatprep.subr.bf16.mxu0 0
        %2796 = vmatpush1.bf16.msra.mxu0 0
        %2797 = vmatprep.subr.bf16.mxu0 0
        %2798 = vmatpush1.bf16.msra.mxu0 0
        %2799 = vmatprep.subr.bf16.mxu0 0
        %2800 = vmatpush1.bf16.msra.mxu0 0
        %2801 = vmatprep.subr.bf16.mxu0 0
        %2802 = vmatpush1.bf16.msra.mxu0 0
        %2803 = vmatprep.subr.bf16.mxu0 0
        %2804 = vmatpush1.bf16.msra.mxu0 0
        %2805 = vmatprep.subr.bf16.mxu0 0
        %2806 = vmatpush1.bf16.msra.mxu0 0
        %2807 = vmatprep.subr.bf16.mxu0 0
        %2808 = vmatpush1.bf16.msra.mxu0 0
        %2809 = vmatprep.subr.bf16.mxu0 0
        %2810 = vmatpush1.bf16.msra.mxu0 0
        %2811 = vmatprep.mubr.bf16.mxu0 0
        %2812 = vmatmul.mubr.bf16.gmra.mrb[0].mxu0 %v2777
        %v2813 = vpop.f32.mrb[0].mxu0
        %v2814 = vadd.f32 0.0, %v2813
        %v2815 = vpop.f32.mrb[0].mxu0
        %v2816 = vpop.f32.mrb[0].mxu0
        %v2817 = vpop.f32.mrb[0].mxu0
        %2818 = vdwg.mxu0
        %v2820 = vsel %vm1063, %v1387, 0
        %2822 = vmatprep.subr.bf16.mxu0 0
        %2823 = vmatpush1.bf16.msra.mxu0 %v2562
        %2824 = vmatprep.subr.bf16.mxu0 0
        %2825 = vmatpush1.bf16.msra.mxu0 %v2594
        %2826 = vmatprep.subr.bf16.mxu0 0
        %2827 = vmatpush1.bf16.msra.mxu0 0
        %2828 = vmatprep.subr.bf16.mxu0 0
        %2829 = vmatpush1.bf16.msra.mxu0 0
        %2830 = vmatprep.subr.bf16.mxu0 0
        %2831 = vmatpush1.bf16.msra.mxu0 0
        %2832 = vmatprep.subr.bf16.mxu0 0
        %2833 = vmatpush1.bf16.msra.mxu0 0
        %2834 = vmatprep.subr.bf16.mxu0 0
        %2835 = vmatpush1.bf16.msra.mxu0 0
        %2836 = vmatprep.subr.bf16.mxu0 0
        %2837 = vmatpush1.bf16.msra.mxu0 0
        %2838 = vmatprep.subr.bf16.mxu0 0
        %2839 = vmatpush1.bf16.msra.mxu0 0
        %2840 = vmatprep.subr.bf16.mxu0 0
        %2841 = vmatpush1.bf16.msra.mxu0 0
        %2842 = vmatprep.subr.bf16.mxu0 0
        %2843 = vmatpush1.bf16.msra.mxu0 0
        %2844 = vmatprep.subr.bf16.mxu0 0
        %2845 = vmatpush1.bf16.msra.mxu0 0
        %2846 = vmatprep.subr.bf16.mxu0 0
        %2847 = vmatpush1.bf16.msra.mxu0 0
        %2848 = vmatprep.subr.bf16.mxu0 0
        %2849 = vmatpush1.bf16.msra.mxu0 0
        %2850 = vmatprep.subr.bf16.mxu0 0
        %2851 = vmatpush1.bf16.msra.mxu0 0
        %2852 = vmatprep.subr.bf16.mxu0 0
        %2853 = vmatpush1.bf16.msra.mxu0 0
        %2854 = vmatprep.mubr.bf16.mxu0 0
        %2855 = vmatmul.mubr.bf16.gmra.mrb[0].mxu0 %v2820
        %v2856 = vpop.f32.mrb[0].mxu0
        %v2857 = vadd.f32 0.0, %v2856
        %v2858 = vpop.f32.mrb[0].mxu0
        %v2859 = vpop.f32.mrb[0].mxu0
        %v2860 = vpop.f32.mrb[0].mxu0
        %2861 = vdwg.mxu0
        %v2863 = vsel %vm1063, %v1388, 0
        %2865 = vmatprep.subr.bf16.mxu0 0
        %2866 = vmatpush1.bf16.msra.mxu0 %v2566
        %2867 = vmatprep.subr.bf16.mxu0 0
        %2868 = vmatpush1.bf16.msra.mxu0 %v2598
        %2869 = vmatprep.subr.bf16.mxu0 0
        %2870 = vmatpush1.bf16.msra.mxu0 0
        %2871 = vmatprep.subr.bf16.mxu0 0
        %2872 = vmatpush1.bf16.msra.mxu0 0
        %2873 = vmatprep.subr.bf16.mxu0 0
        %2874 = vmatpush1.bf16.msra.mxu0 0
        %2875 = vmatprep.subr.bf16.mxu0 0
        %2876 = vmatpush1.bf16.msra.mxu0 0
        %2877 = vmatprep.subr.bf16.mxu0 0
        %2878 = vmatpush1.bf16.msra.mxu0 0
        %2879 = vmatprep.subr.bf16.mxu0 0
        %2880 = vmatpush1.bf16.msra.mxu0 0
        %2881 = vmatprep.subr.bf16.mxu0 0
        %2882 = vmatpush1.bf16.msra.mxu0 0
        %2883 = vmatprep.subr.bf16.mxu0 0
        %2884 = vmatpush1.bf16.msra.mxu0 0
        %2885 = vmatprep.subr.bf16.mxu0 0
        %2886 = vmatpush1.bf16.msra.mxu0 0
        %2887 = vmatprep.subr.bf16.mxu0 0
        %2888 = vmatpush1.bf16.msra.mxu0 0
        %2889 = vmatprep.subr.bf16.mxu0 0
        %2890 = vmatpush1.bf16.msra.mxu0 0
        %2891 = vmatprep.subr.bf16.mxu0 0
        %2892 = vmatpush1.bf16.msra.mxu0 0
        %2893 = vmatprep.subr.bf16.mxu0 0
        %2894 = vmatpush1.bf16.msra.mxu0 0
        %2895 = vmatprep.subr.bf16.mxu0 0
        %2896 = vmatpush1.bf16.msra.mxu0 0
        %2897 = vmatprep.mubr.bf16.mxu0 0
        %2898 = vmatmul.mubr.bf16.gmra.mrb[0].mxu0 %v2863
        %v2899 = vpop.f32.mrb[0].mxu0
        %v2900 = vadd.f32 0.0, %v2899
        %v2901 = vpop.f32.mrb[0].mxu0
        %v2902 = vpop.f32.mrb[0].mxu0
        %v2903 = vpop.f32.mrb[0].mxu0
        %2904 = vdwg.mxu0
        %v2906 = vsel %vm1063, %v1389, 0
        %2908 = vmatprep.subr.bf16.mxu0 0
        %2909 = vmatpush1.bf16.msra.mxu0 %v2570
        %2910 = vmatprep.subr.bf16.mxu0 0
        %2911 = vmatpush1.bf16.msra.mxu0 %v2602
        %2912 = vmatprep.subr.bf16.mxu0 0
        %2913 = vmatpush1.bf16.msra.mxu0 0
        %2914 = vmatprep.subr.bf16.mxu0 0
        %2915 = vmatpush1.bf16.msra.mxu0 0
        %2916 = vmatprep.subr.bf16.mxu0 0
        %2917 = vmatpush1.bf16.msra.mxu0 0
        %2918 = vmatprep.subr.bf16.mxu0 0
        %2919 = vmatpush1.bf16.msra.mxu0 0
        %2920 = vmatprep.subr.bf16.mxu0 0
        %2921 = vmatpush1.bf16.msra.mxu0 0
        %2922 = vmatprep.subr.bf16.mxu0 0
        %2923 = vmatpush1.bf16.msra.mxu0 0
        %2924 = vmatprep.subr.bf16.mxu0 0
        %2925 = vmatpush1.bf16.msra.mxu0 0
        %2926 = vmatprep.subr.bf16.mxu0 0
        %2927 = vmatpush1.bf16.msra.mxu0 0
        %2928 = vmatprep.subr.bf16.mxu0 0
        %2929 = vmatpush1.bf16.msra.mxu0 0
        %2930 = vmatprep.subr.bf16.mxu0 0
        %2931 = vmatpush1.bf16.msra.mxu0 0
        %2932 = vmatprep.subr.bf16.mxu0 0
        %2933 = vmatpush1.bf16.msra.mxu0 0
        %2934 = vmatprep.subr.bf16.mxu0 0
        %2935 = vmatpush1.bf16.msra.mxu0 0
        %2936 = vmatprep.subr.bf16.mxu0 0
        %2937 = vmatpush1.bf16.msra.mxu0 0
        %2938 = vmatprep.subr.bf16.mxu0 0
        %2939 = vmatpush1.bf16.msra.mxu0 0
        %2940 = vmatprep.mubr.bf16.mxu0 0
        %2941 = vmatmul.mubr.bf16.gmra.mrb[0].mxu0 %v2906
        %v2942 = vpop.f32.mrb[0].mxu0
        %v2943 = vadd.f32 0.0, %v2942
        %v2944 = vpop.f32.mrb[0].mxu0
        %v2945 = vpop.f32.mrb[0].mxu0
        %v2946 = vpop.f32.mrb[0].mxu0
        %2947 = vdwg.mxu0
        %2948 = vxpose.xlu0.b32.start [1/16] %v2642, 128
        %2949 = vxpose.xlu0.b32.cont [2/16] 0.0, 128
        %2950 = vxpose.xlu0.b32.cont [3/16] 0.0, 128
        %2951 = vxpose.xlu0.b32.cont [4/16] 0.0, 128
        %2952 = vxpose.xlu0.b32.cont [5/16] 0.0, 128
        %2953 = vxpose.xlu0.b32.cont [6/16] 0.0, 128
        %2954 = vxpose.xlu0.b32.cont [7/16] 0.0, 128
        %2955 = vxpose.xlu0.b32.cont [8/16] 0.0, 128
        %2956 = vxpose.xlu0.b32.cont [9/16] 0.0, 128
        %2957 = vxpose.xlu0.b32.cont [10/16] 0.0, 128
        %2958 = vxpose.xlu0.b32.cont [11/16] 0.0, 128
        %2959 = vxpose.xlu0.b32.cont [12/16] 0.0, 128
        %2960 = vxpose.xlu0.b32.cont [13/16] 0.0, 128
        %2961 = vxpose.xlu0.b32.cont [14/16] 0.0, 128
        %2962 = vxpose.xlu0.b32.cont [15/16] 0.0, 128
        %2963 = vxpose.xlu0.b32.end [16/16] 0.0, 128
        %v2964 = vpop.trf.xlu0
        %v2965 = vpop.trf.xlu0
        %v2966 = vpop.trf.xlu0
        %v2967 = vpop.trf.xlu0
        %v2968 = vpop.trf.xlu0
        %v2969 = vpop.trf.xlu0
        %v2970 = vpop.trf.xlu0
        %v2971 = vpop.trf.xlu0
        %v2972 = vpop.trf.xlu0
        %v2973 = vpop.trf.xlu0
        %v2974 = vpop.trf.xlu0
        %v2975 = vpop.trf.xlu0
        %v2976 = vpop.trf.xlu0
        %v2977 = vpop.trf.xlu0
        %v2978 = vpop.trf.xlu0
        %v2979 = vpop.trf.xlu0
        %2980 = vxpose.xlu0.b32.start [1/16] %v2685, 128
        %2981 = vxpose.xlu0.b32.cont [2/16] 0.0, 128
        %2982 = vxpose.xlu0.b32.cont [3/16] 0.0, 128
        %2983 = vxpose.xlu0.b32.cont [4/16] 0.0, 128
        %2984 = vxpose.xlu0.b32.cont [5/16] 0.0, 128
        %2985 = vxpose.xlu0.b32.cont [6/16] 0.0, 128
        %2986 = vxpose.xlu0.b32.cont [7/16] 0.0, 128
        %2987 = vxpose.xlu0.b32.cont [8/16] 0.0, 128
        %2988 = vxpose.xlu0.b32.cont [9/16] 0.0, 128
        %2989 = vxpose.xlu0.b32.cont [10/16] 0.0, 128
        %2990 = vxpose.xlu0.b32.cont [11/16] 0.0, 128
        %2991 = vxpose.xlu0.b32.cont [12/16] 0.0, 128
        %2992 = vxpose.xlu0.b32.cont [13/16] 0.0, 128
        %2993 = vxpose.xlu0.b32.cont [14/16] 0.0, 128
        %2994 = vxpose.xlu0.b32.cont [15/16] 0.0, 128
        %2995 = vxpose.xlu0.b32.end [16/16] 0.0, 128
        %v2996 = vpop.trf.xlu0
        %v2997 = vpop.trf.xlu0
        %v2998 = vpop.trf.xlu0
        %v2999 = vpop.trf.xlu0
        %v3000 = vpop.trf.xlu0
        %v3001 = vpop.trf.xlu0
        %v3002 = vpop.trf.xlu0
        %v3003 = vpop.trf.xlu0
        %v3004 = vpop.trf.xlu0
        %v3005 = vpop.trf.xlu0
        %v3006 = vpop.trf.xlu0
        %v3007 = vpop.trf.xlu0
        %v3008 = vpop.trf.xlu0
        %v3009 = vpop.trf.xlu0
        %v3010 = vpop.trf.xlu0
        %v3011 = vpop.trf.xlu0
        %3012 = vxpose.xlu0.b32.start [1/16] %v2728, 128
        %3013 = vxpose.xlu0.b32.cont [2/16] 0.0, 128
        %3014 = vxpose.xlu0.b32.cont [3/16] 0.0, 128
        %3015 = vxpose.xlu0.b32.cont [4/16] 0.0, 128
        %3016 = vxpose.xlu0.b32.cont [5/16] 0.0, 128
        %3017 = vxpose.xlu0.b32.cont [6/16] 0.0, 128
        %3018 = vxpose.xlu0.b32.cont [7/16] 0.0, 128
        %3019 = vxpose.xlu0.b32.cont [8/16] 0.0, 128
        %3020 = vxpose.xlu0.b32.cont [9/16] 0.0, 128
        %3021 = vxpose.xlu0.b32.cont [10/16] 0.0, 128
        %3022 = vxpose.xlu0.b32.cont [11/16] 0.0, 128
        %3023 = vxpose.xlu0.b32.cont [12/16] 0.0, 128
        %3024 = vxpose.xlu0.b32.cont [13/16] 0.0, 128
        %3025 = vxpose.xlu0.b32.cont [14/16] 0.0, 128
        %3026 = vxpose.xlu0.b32.cont [15/16] 0.0, 128
        %3027 = vxpose.xlu0.b32.end [16/16] 0.0, 128
        %v3028 = vpop.trf.xlu0
        %v3029 = vpop.trf.xlu0
        %v3030 = vpop.trf.xlu0
        %v3031 = vpop.trf.xlu0
        %v3032 = vpop.trf.xlu0
        %v3033 = vpop.trf.xlu0
        %v3034 = vpop.trf.xlu0
        %v3035 = vpop.trf.xlu0
        %v3036 = vpop.trf.xlu0
        %v3037 = vpop.trf.xlu0
        %v3038 = vpop.trf.xlu0
        %v3039 = vpop.trf.xlu0
        %v3040 = vpop.trf.xlu0
        %v3041 = vpop.trf.xlu0
        %v3042 = vpop.trf.xlu0
        %v3043 = vpop.trf.xlu0
        %3044 = vxpose.xlu0.b32.start [1/16] %v2771, 128
        %3045 = vxpose.xlu0.b32.cont [2/16] 0.0, 128
        %3046 = vxpose.xlu0.b32.cont [3/16] 0.0, 128
        %3047 = vxpose.xlu0.b32.cont [4/16] 0.0, 128
        %3048 = vxpose.xlu0.b32.cont [5/16] 0.0, 128
        %3049 = vxpose.xlu0.b32.cont [6/16] 0.0, 128
        %3050 = vxpose.xlu0.b32.cont [7/16] 0.0, 128
        %3051 = vxpose.xlu0.b32.cont [8/16] 0.0, 128
        %3052 = vxpose.xlu0.b32.cont [9/16] 0.0, 128
        %3053 = vxpose.xlu0.b32.cont [10/16] 0.0, 128
        %3054 = vxpose.xlu0.b32.cont [11/16] 0.0, 128
        %3055 = vxpose.xlu0.b32.cont [12/16] 0.0, 128
        %3056 = vxpose.xlu0.b32.cont [13/16] 0.0, 128
        %3057 = vxpose.xlu0.b32.cont [14/16] 0.0, 128
        %3058 = vxpose.xlu0.b32.cont [15/16] 0.0, 128
        %3059 = vxpose.xlu0.b32.end [16/16] 0.0, 128
        %v3060 = vpop.trf.xlu0
        %v3061 = vpop.trf.xlu0
        %v3062 = vpop.trf.xlu0
        %v3063 = vpop.trf.xlu0
        %v3064 = vpop.trf.xlu0
        %v3065 = vpop.trf.xlu0
        %v3066 = vpop.trf.xlu0
        %v3067 = vpop.trf.xlu0
        %v3068 = vpop.trf.xlu0
        %v3069 = vpop.trf.xlu0
        %v3070 = vpop.trf.xlu0
        %v3071 = vpop.trf.xlu0
        %v3072 = vpop.trf.xlu0
        %v3073 = vpop.trf.xlu0
        %v3074 = vpop.trf.xlu0
        %v3075 = vpop.trf.xlu0
        %3076 = vxpose.xlu0.b32.start [1/16] %v2814, 128
        %3077 = vxpose.xlu0.b32.cont [2/16] 0.0, 128
        %3078 = vxpose.xlu0.b32.cont [3/16] 0.0, 128
        %3079 = vxpose.xlu0.b32.cont [4/16] 0.0, 128
        %3080 = vxpose.xlu0.b32.cont [5/16] 0.0, 128
        %3081 = vxpose.xlu0.b32.cont [6/16] 0.0, 128
        %3082 = vxpose.xlu0.b32.cont [7/16] 0.0, 128
        %3083 = vxpose.xlu0.b32.cont [8/16] 0.0, 128
        %3084 = vxpose.xlu0.b32.cont [9/16] 0.0, 128
        %3085 = vxpose.xlu0.b32.cont [10/16] 0.0, 128
        %3086 = vxpose.xlu0.b32.cont [11/16] 0.0, 128
        %3087 = vxpose.xlu0.b32.cont [12/16] 0.0, 128
        %3088 = vxpose.xlu0.b32.cont [13/16] 0.0, 128
        %3089 = vxpose.xlu0.b32.cont [14/16] 0.0, 128
        %3090 = vxpose.xlu0.b32.cont [15/16] 0.0, 128
        %3091 = vxpose.xlu0.b32.end [16/16] 0.0, 128
        %v3092 = vpop.trf.xlu0
        %v3093 = vpop.trf.xlu0
        %v3094 = vpop.trf.xlu0
        %v3095 = vpop.trf.xlu0
        %v3096 = vpop.trf.xlu0
        %v3097 = vpop.trf.xlu0
        %v3098 = vpop.trf.xlu0
        %v3099 = vpop.trf.xlu0
        %v3100 = vpop.trf.xlu0
        %v3101 = vpop.trf.xlu0
        %v3102 = vpop.trf.xlu0
        %v3103 = vpop.trf.xlu0
        %v3104 = vpop.trf.xlu0
        %v3105 = vpop.trf.xlu0
        %v3106 = vpop.trf.xlu0
        %v3107 = vpop.trf.xlu0
        %3108 = vxpose.xlu0.b32.start [1/16] %v2857, 128
        %3109 = vxpose.xlu0.b32.cont [2/16] 0.0, 128
        %3110 = vxpose.xlu0.b32.cont [3/16] 0.0, 128
        %3111 = vxpose.xlu0.b32.cont [4/16] 0.0, 128
        %3112 = vxpose.xlu0.b32.cont [5/16] 0.0, 128
        %3113 = vxpose.xlu0.b32.cont [6/16] 0.0, 128
        %3114 = vxpose.xlu0.b32.cont [7/16] 0.0, 128
        %3115 = vxpose.xlu0.b32.cont [8/16] 0.0, 128
        %3116 = vxpose.xlu0.b32.cont [9/16] 0.0, 128
        %3117 = vxpose.xlu0.b32.cont [10/16] 0.0, 128
        %3118 = vxpose.xlu0.b32.cont [11/16] 0.0, 128
        %3119 = vxpose.xlu0.b32.cont [12/16] 0.0, 128
        %3120 = vxpose.xlu0.b32.cont [13/16] 0.0, 128
        %3121 = vxpose.xlu0.b32.cont [14/16] 0.0, 128
        %3122 = vxpose.xlu0.b32.cont [15/16] 0.0, 128
        %3123 = vxpose.xlu0.b32.end [16/16] 0.0, 128
        %v3124 = vpop.trf.xlu0
        %v3125 = vpop.trf.xlu0
        %v3126 = vpop.trf.xlu0
        %v3127 = vpop.trf.xlu0
        %v3128 = vpop.trf.xlu0
        %v3129 = vpop.trf.xlu0
        %v3130 = vpop.trf.xlu0
        %v3131 = vpop.trf.xlu0
        %v3132 = vpop.trf.xlu0
        %v3133 = vpop.trf.xlu0
        %v3134 = vpop.trf.xlu0
        %v3135 = vpop.trf.xlu0
        %v3136 = vpop.trf.xlu0
        %v3137 = vpop.trf.xlu0
        %v3138 = vpop.trf.xlu0
        %v3139 = vpop.trf.xlu0
        %3140 = vxpose.xlu0.b32.start [1/16] %v2900, 128
        %3141 = vxpose.xlu0.b32.cont [2/16] 0.0, 128
        %3142 = vxpose.xlu0.b32.cont [3/16] 0.0, 128
        %3143 = vxpose.xlu0.b32.cont [4/16] 0.0, 128
        %3144 = vxpose.xlu0.b32.cont [5/16] 0.0, 128
        %3145 = vxpose.xlu0.b32.cont [6/16] 0.0, 128
        %3146 = vxpose.xlu0.b32.cont [7/16] 0.0, 128
        %3147 = vxpose.xlu0.b32.cont [8/16] 0.0, 128
        %3148 = vxpose.xlu0.b32.cont [9/16] 0.0, 128
        %3149 = vxpose.xlu0.b32.cont [10/16] 0.0, 128
        %3150 = vxpose.xlu0.b32.cont [11/16] 0.0, 128
        %3151 = vxpose.xlu0.b32.cont [12/16] 0.0, 128
        %3152 = vxpose.xlu0.b32.cont [13/16] 0.0, 128
        %3153 = vxpose.xlu0.b32.cont [14/16] 0.0, 128
        %3154 = vxpose.xlu0.b32.cont [15/16] 0.0, 128
        %3155 = vxpose.xlu0.b32.end [16/16] 0.0, 128
        %v3156 = vpop.trf.xlu0
        %v3157 = vpop.trf.xlu0
        %v3158 = vpop.trf.xlu0
        %v3159 = vpop.trf.xlu0
        %v3160 = vpop.trf.xlu0
        %v3161 = vpop.trf.xlu0
        %v3162 = vpop.trf.xlu0
        %v3163 = vpop.trf.xlu0
        %v3164 = vpop.trf.xlu0
        %v3165 = vpop.trf.xlu0
        %v3166 = vpop.trf.xlu0
        %v3167 = vpop.trf.xlu0
        %v3168 = vpop.trf.xlu0
        %v3169 = vpop.trf.xlu0
        %v3170 = vpop.trf.xlu0
        %v3171 = vpop.trf.xlu0
        %3172 = vxpose.xlu0.b32.start [1/16] %v2943, 128
        %3173 = vxpose.xlu0.b32.cont [2/16] 0.0, 128
        %3174 = vxpose.xlu0.b32.cont [3/16] 0.0, 128
        %3175 = vxpose.xlu0.b32.cont [4/16] 0.0, 128
        %3176 = vxpose.xlu0.b32.cont [5/16] 0.0, 128
        %3177 = vxpose.xlu0.b32.cont [6/16] 0.0, 128
        %3178 = vxpose.xlu0.b32.cont [7/16] 0.0, 128
        %3179 = vxpose.xlu0.b32.cont [8/16] 0.0, 128
        %3180 = vxpose.xlu0.b32.cont [9/16] 0.0, 128
        %3181 = vxpose.xlu0.b32.cont [10/16] 0.0, 128
        %3182 = vxpose.xlu0.b32.cont [11/16] 0.0, 128
        %3183 = vxpose.xlu0.b32.cont [12/16] 0.0, 128
        %3184 = vxpose.xlu0.b32.cont [13/16] 0.0, 128
        %3185 = vxpose.xlu0.b32.cont [14/16] 0.0, 128
        %3186 = vxpose.xlu0.b32.cont [15/16] 0.0, 128
        %3187 = vxpose.xlu0.b32.end [16/16] 0.0, 128
        %v3188 = vpop.trf.xlu0
        %v3189 = vpop.trf.xlu0
        %v3190 = vpop.trf.xlu0
        %v3191 = vpop.trf.xlu0
        %v3192 = vpop.trf.xlu0
        %v3193 = vpop.trf.xlu0
        %v3194 = vpop.trf.xlu0
        %v3195 = vpop.trf.xlu0
        %v3196 = vpop.trf.xlu0
        %v3197 = vpop.trf.xlu0
        %v3198 = vpop.trf.xlu0
        %v3199 = vpop.trf.xlu0
        %v3200 = vpop.trf.xlu0
        %v3201 = vpop.trf.xlu0
        %v3202 = vpop.trf.xlu0
        %v3203 = vpop.trf.xlu0
        %v3204 = vcombine.low %v2964, %v3028
        %v3206 = vunpack.c.l.s4 1983009808
        %v3207 = vunpack.c.0.s8 %v3206
        %v3208 = vlaneseq
        %v3209 = vshrl.u32 %v3208, 7
        %v3210 = vsub.s32 %v3207, %v3209
        %v3211 = vrot.slane %v3204, %v3210
        %v3212 = vcombine.low %v2996, %v3060
        %v3214 = vunpack.c.l.s4 1983009808
        %v3215 = vunpack.c.0.s8 %v3214
        %v3216 = vlaneseq
        %v3217 = vshrl.u32 %v3216, 7
        %v3218 = vsub.s32 %v3215, %v3217
        %v3219 = vrot.slane %v3212, %v3218
        %v3220 = vcombine.low %v3092, %v3156
        %v3222 = vunpack.c.l.s4 1983009808
        %v3223 = vunpack.c.0.s8 %v3222
        %v3224 = vlaneseq
        %v3225 = vshrl.u32 %v3224, 7
        %v3226 = vsub.s32 %v3223, %v3225
        %v3227 = vrot.slane %v3220, %v3226
        %v3228 = vcombine.low %v3124, %v3188
        %v3230 = vunpack.c.l.s4 1983009808
        %v3231 = vunpack.c.0.s8 %v3230
        %v3232 = vlaneseq
        %v3233 = vshrl.u32 %v3232, 7
        %v3234 = vsub.s32 %v3231, %v3233
        %v3235 = vrot.slane %v3228, %v3234
        %v3236 = vcombine.low %v3211, %v3219
        %v3237 = vcombine.high %v3211, %v3219
        %v3239 = vunpack.c.l.s4 1934713408
        %v3240 = vunpack.c.0.s8 %v3239
        %v3241 = vlaneseq
        %v3242 = vshrl.u32 %v3241, 7
        %v3243 = vsub.s32 %v3240, %v3242
        %v3244 = vrot.slane %v3236, %v3243
        %v3246 = vunpack.c.l.s4 1934713408
        %v3247 = vunpack.c.0.s8 %v3246
        %v3248 = vlaneseq
        %v3249 = vshrl.u32 %v3248, 7
        %v3250 = vsub.s32 %v3247, %v3249
        %v3251 = vrot.slane %v3237, %v3250
        %v3252 = vcombine.low %v3227, %v3235
        %v3253 = vcombine.high %v3227, %v3235
        %v3255 = vunpack.c.l.s4 1934713408
        %v3256 = vunpack.c.0.s8 %v3255
        %v3257 = vlaneseq
        %v3258 = vshrl.u32 %v3257, 7
        %v3259 = vsub.s32 %v3256, %v3258
        %v3260 = vrot.slane %v3252, %v3259
        %v3262 = vunpack.c.l.s4 1934713408
        %v3263 = vunpack.c.0.s8 %v3262
        %v3264 = vlaneseq
        %v3265 = vshrl.u32 %v3264, 7
        %v3266 = vsub.s32 %v3263, %v3265
        %v3267 = vrot.slane %v3253, %v3266
        %v3268 = vcombine.low %v3244, %v3260
        %v3269 = vcombine.high %v3244, %v3260
        %v3270 = vcombine.low %v3251, %v3267
        %v3271 = vcombine.high %v3251, %v3267
        %v3272 = vld [vmem:[#allocation12] sm:$0x1]
        %v3273 = vld [vmem:[#allocation12 + $0x1] sm:$0x1]
        %v3274 = vld [vmem:[#allocation12 + $0x2] sm:$0x1]
        %v3275 = vld [vmem:[#allocation12 + $0x3] sm:$0x1]
        %v3280 = vlaneseq
        %v3281 = vshrl.u32 %v3280, 7
        %v3282 = vsub.s32 0, %v3281
        %v3283 = vrot.slane %v3272, %v3282
        %v3284 = vlaneseq
        %v3285 = vshrl.u32 %v3284, 7
        %v3286 = vsub.s32 0, %v3285
        %v3287 = vrot.slane %v3273, %v3286
        %v3288 = vlaneseq
        %v3289 = vshrl.u32 %v3288, 7
        %v3290 = vsub.s32 0, %v3289
        %v3291 = vrot.slane %v3274, %v3290
        %v3292 = vlaneseq
        %v3293 = vshrl.u32 %v3292, 7
        %v3294 = vsub.s32 0, %v3293
        %v3295 = vrot.slane %v3275, %v3294
        %v3300 = vmul.f32 %v1102, %v3283
        %v3301 = vmul.f32 %v1109, %v3287
        %v3302 = vmul.f32 %v1112, %v3291
        %v3303 = vmul.f32 %v1115, %v3295
        %v3304 = vsel %vm1151, %v3300, 0.0
        %3305 = vadd.xlane.f32.xlu0 %v3304
        %v3306 = vpop.xlane.xlu0 %3305
        %v3307 = vsel %vm1151, %v3301, 0.0
        %3308 = vadd.xlane.f32.xlu0 %v3307
        %v3309 = vpop.xlane.xlu0 %3308
        %v3310 = vsel %vm1151, %v3302, 0.0
        %3311 = vadd.xlane.f32.xlu0 %v3310
        %v3312 = vpop.xlane.xlu0 %3311
        %v3313 = vsel %vm1151, %v3303, 0.0
        %3314 = vadd.xlane.f32.xlu0 %v3313
        %v3315 = vpop.xlane.xlu0 %3314
        %v3317 = vsel %vm1151, %v1121, 0
        %3319 = vmatprep.subr.bf16.mxu0 0
        %3320 = vmatpush1.bf16.xpose.msra.mxu0 %v3317
        %3321 = vmatprep.subr.bf16.mxu0 0
        %3322 = vmatpush1.bf16.xpose.msra.mxu0 0
        %3323 = vmatprep.subr.bf16.mxu0 0
        %3324 = vmatpush1.bf16.xpose.msra.mxu0 0
        %3325 = vmatprep.subr.bf16.mxu0 0
        %3326 = vmatpush1.bf16.xpose.msra.mxu0 0
        %3327 = vmatprep.subr.bf16.mxu0 0
        %3328 = vmatpush1.bf16.xpose.msra.mxu0 0
        %3329 = vmatprep.subr.bf16.mxu0 0
        %3330 = vmatpush1.bf16.xpose.msra.mxu0 0
        %3331 = vmatprep.subr.bf16.mxu0 0
        %3332 = vmatpush1.bf16.xpose.msra.mxu0 0
        %3333 = vmatprep.subr.bf16.mxu0 0
        %3334 = vmatpush1.bf16.xpose.msra.mxu0 0
        %3335 = vmatprep.subr.bf16.mxu0 0
        %3336 = vmatpush1.bf16.xpose.msra.mxu0 0
        %3337 = vmatprep.subr.bf16.mxu0 0
        %3338 = vmatpush1.bf16.xpose.msra.mxu0 0
        %3339 = vmatprep.subr.bf16.mxu0 0
        %3340 = vmatpush1.bf16.xpose.msra.mxu0 0
        %3341 = vmatprep.subr.bf16.mxu0 0
        %3342 = vmatpush1.bf16.xpose.msra.mxu0 0
        %3343 = vmatprep.subr.bf16.mxu0 0
        %3344 = vmatpush1.bf16.xpose.msra.mxu0 0
        %3345 = vmatprep.subr.bf16.mxu0 0
        %3346 = vmatpush1.bf16.xpose.msra.mxu0 0
        %3347 = vmatprep.subr.bf16.mxu0 0
        %3348 = vmatpush1.bf16.xpose.msra.mxu0 0
        %3349 = vmatprep.subr.bf16.mxu0 0
        %3350 = vmatpush1.bf16.xpose.msra.mxu0 0
        %3351 = vmatprep.mubr.bf16.mxu0 0
        %3352 = vmatmul.mubr.bf16.gmra.mrb[0].mxu0 %v1153
        %v3353 = vpop.f32.mrb[0].mxu0
        %v3354 = vadd.f32 %v3268, %v3353
        %v3355 = vpop.f32.mrb[0].mxu0
        %v3356 = vpop.f32.mrb[0].mxu0
        %v3357 = vpop.f32.mrb[0].mxu0
        %3358 = vdwg.mxu0
        %v3360 = vsel %vm1151, %v1122, 0
        %3362 = vmatprep.subr.bf16.mxu0 0
        %3363 = vmatpush1.bf16.xpose.msra.mxu0 %v3360
        %3364 = vmatprep.subr.bf16.mxu0 0
        %3365 = vmatpush1.bf16.xpose.msra.mxu0 0
        %3366 = vmatprep.subr.bf16.mxu0 0
        %3367 = vmatpush1.bf16.xpose.msra.mxu0 0
        %3368 = vmatprep.subr.bf16.mxu0 0
        %3369 = vmatpush1.bf16.xpose.msra.mxu0 0
        %3370 = vmatprep.subr.bf16.mxu0 0
        %3371 = vmatpush1.bf16.xpose.msra.mxu0 0
        %3372 = vmatprep.subr.bf16.mxu0 0
        %3373 = vmatpush1.bf16.xpose.msra.mxu0 0
        %3374 = vmatprep.subr.bf16.mxu0 0
        %3375 = vmatpush1.bf16.xpose.msra.mxu0 0
        %3376 = vmatprep.subr.bf16.mxu0 0
        %3377 = vmatpush1.bf16.xpose.msra.mxu0 0
        %3378 = vmatprep.subr.bf16.mxu0 0
        %3379 = vmatpush1.bf16.xpose.msra.mxu0 0
        %3380 = vmatprep.subr.bf16.mxu0 0
        %3381 = vmatpush1.bf16.xpose.msra.mxu0 0
        %3382 = vmatprep.subr.bf16.mxu0 0
        %3383 = vmatpush1.bf16.xpose.msra.mxu0 0
        %3384 = vmatprep.subr.bf16.mxu0 0
        %3385 = vmatpush1.bf16.xpose.msra.mxu0 0
        %3386 = vmatprep.subr.bf16.mxu0 0
        %3387 = vmatpush1.bf16.xpose.msra.mxu0 0
        %3388 = vmatprep.subr.bf16.mxu0 0
        %3389 = vmatpush1.bf16.xpose.msra.mxu0 0
        %3390 = vmatprep.subr.bf16.mxu0 0
        %3391 = vmatpush1.bf16.xpose.msra.mxu0 0
        %3392 = vmatprep.subr.bf16.mxu0 0
        %3393 = vmatpush1.bf16.xpose.msra.mxu0 0
        %3394 = vmatprep.mubr.bf16.mxu0 0
        %3395 = vmatmul.mubr.bf16.gmra.mrb[0].mxu0 %v1212
        %v3396 = vpop.f32.mrb[0].mxu0
        %v3397 = vadd.f32 %v3269, %v3396
        %v3398 = vpop.f32.mrb[0].mxu0
        %v3399 = vpop.f32.mrb[0].mxu0
        %v3400 = vpop.f32.mrb[0].mxu0
        %3401 = vdwg.mxu0
        %v3403 = vsel %vm1151, %v1123, 0
        %3405 = vmatprep.subr.bf16.mxu0 0
        %3406 = vmatpush1.bf16.xpose.msra.mxu0 %v3403
        %3407 = vmatprep.subr.bf16.mxu0 0
        %3408 = vmatpush1.bf16.xpose.msra.mxu0 0
        %3409 = vmatprep.subr.bf16.mxu0 0
        %3410 = vmatpush1.bf16.xpose.msra.mxu0 0
        %3411 = vmatprep.subr.bf16.mxu0 0
        %3412 = vmatpush1.bf16.xpose.msra.mxu0 0
        %3413 = vmatprep.subr.bf16.mxu0 0
        %3414 = vmatpush1.bf16.xpose.msra.mxu0 0
        %3415 = vmatprep.subr.bf16.mxu0 0
        %3416 = vmatpush1.bf16.xpose.msra.mxu0 0
        %3417 = vmatprep.subr.bf16.mxu0 0
        %3418 = vmatpush1.bf16.xpose.msra.mxu0 0
        %3419 = vmatprep.subr.bf16.mxu0 0
        %3420 = vmatpush1.bf16.xpose.msra.mxu0 0
        %3421 = vmatprep.subr.bf16.mxu0 0
        %3422 = vmatpush1.bf16.xpose.msra.mxu0 0
        %3423 = vmatprep.subr.bf16.mxu0 0
        %3424 = vmatpush1.bf16.xpose.msra.mxu0 0
        %3425 = vmatprep.subr.bf16.mxu0 0
        %3426 = vmatpush1.bf16.xpose.msra.mxu0 0
        %3427 = vmatprep.subr.bf16.mxu0 0
        %3428 = vmatpush1.bf16.xpose.msra.mxu0 0
        %3429 = vmatprep.subr.bf16.mxu0 0
        %3430 = vmatpush1.bf16.xpose.msra.mxu0 0
        %3431 = vmatprep.subr.bf16.mxu0 0
        %3432 = vmatpush1.bf16.xpose.msra.mxu0 0
        %3433 = vmatprep.subr.bf16.mxu0 0
        %3434 = vmatpush1.bf16.xpose.msra.mxu0 0
        %3435 = vmatprep.subr.bf16.mxu0 0
        %3436 = vmatpush1.bf16.xpose.msra.mxu0 0
        %3437 = vmatprep.mubr.bf16.mxu0 0
        %3438 = vmatmul.mubr.bf16.gmra.mrb[0].mxu0 %v1271
        %v3439 = vpop.f32.mrb[0].mxu0
        %v3440 = vadd.f32 %v3270, %v3439
        %v3441 = vpop.f32.mrb[0].mxu0
        %v3442 = vpop.f32.mrb[0].mxu0
        %v3443 = vpop.f32.mrb[0].mxu0
        %3444 = vdwg.mxu0
        %v3446 = vsel %vm1151, %v1124, 0
        %3448 = vmatprep.subr.bf16.mxu0 0
        %3449 = vmatpush1.bf16.xpose.msra.mxu0 %v3446
        %3450 = vmatprep.subr.bf16.mxu0 0
        %3451 = vmatpush1.bf16.xpose.msra.mxu0 0
        %3452 = vmatprep.subr.bf16.mxu0 0
        %3453 = vmatpush1.bf16.xpose.msra.mxu0 0
        %3454 = vmatprep.subr.bf16.mxu0 0
        %3455 = vmatpush1.bf16.xpose.msra.mxu0 0
        %3456 = vmatprep.subr.bf16.mxu0 0
        %3457 = vmatpush1.bf16.xpose.msra.mxu0 0
        %3458 = vmatprep.subr.bf16.mxu0 0
        %3459 = vmatpush1.bf16.xpose.msra.mxu0 0
        %3460 = vmatprep.subr.bf16.mxu0 0
        %3461 = vmatpush1.bf16.xpose.msra.mxu0 0
        %3462 = vmatprep.subr.bf16.mxu0 0
        %3463 = vmatpush1.bf16.xpose.msra.mxu0 0
        %3464 = vmatprep.subr.bf16.mxu0 0
        %3465 = vmatpush1.bf16.xpose.msra.mxu0 0
        %3466 = vmatprep.subr.bf16.mxu0 0
        %3467 = vmatpush1.bf16.xpose.msra.mxu0 0
        %3468 = vmatprep.subr.bf16.mxu0 0
        %3469 = vmatpush1.bf16.xpose.msra.mxu0 0
        %3470 = vmatprep.subr.bf16.mxu0 0
        %3471 = vmatpush1.bf16.xpose.msra.mxu0 0
        %3472 = vmatprep.subr.bf16.mxu0 0
        %3473 = vmatpush1.bf16.xpose.msra.mxu0 0
        %3474 = vmatprep.subr.bf16.mxu0 0
        %3475 = vmatpush1.bf16.xpose.msra.mxu0 0
        %3476 = vmatprep.subr.bf16.mxu0 0
        %3477 = vmatpush1.bf16.xpose.msra.mxu0 0
        %3478 = vmatprep.subr.bf16.mxu0 0
        %3479 = vmatpush1.bf16.xpose.msra.mxu0 0
        %3480 = vmatprep.mubr.bf16.mxu0 0
        %3481 = vmatmul.mubr.bf16.gmra.mrb[0].mxu0 %v1330
        %v3482 = vpop.f32.mrb[0].mxu0
        %v3483 = vadd.f32 %v3271, %v3482
        %v3484 = vpop.f32.mrb[0].mxu0
        %v3485 = vpop.f32.mrb[0].mxu0
        %v3486 = vpop.f32.mrb[0].mxu0
        %3487 = vdwg.mxu0
        %v3488 = vadd.f32 %v3354, %v3306
        %v3489 = vadd.f32 %v3397, %v3309
        %v3490 = vadd.f32 %v3440, %v3312
        %v3491 = vadd.f32 %v3483, %v3315
        %v3492 = vmul.f32 %v3488, 0.35355338
        %v3493 = vmul.f32 %v3489, 0.35355338
        %v3494 = vmul.f32 %v3490, 0.35355338
        %v3495 = vmul.f32 %v3491, 0.35355338
        %v3496 = vsel %vm1151, %v3492, -inf
        %3497 = vmax.xlane.f32.xlu0 %v3496
        %v3498 = vpop.xlane.xlu0 %3497
        %v3499 = vsel %vm1151, %v3493, -inf
        %3500 = vmax.xlane.f32.xlu0 %v3499
        %v3501 = vpop.xlane.xlu0 %3500
        %v3502 = vsel %vm1151, %v3494, -inf
        %3503 = vmax.xlane.f32.xlu0 %v3502
        %v3504 = vpop.xlane.xlu0 %3503
        %v3505 = vsel %vm1151, %v3495, -inf
        %3506 = vmax.xlane.f32.xlu0 %v3505
        %v3507 = vpop.xlane.xlu0 %3506
        %v3508 = vsub.f32 %v3492, %v3498
        %v3509 = vsub.f32 %v3493, %v3501
        %v3510 = vsub.f32 %v3494, %v3504
        %v3511 = vsub.f32 %v3495, %v3507
        %v3512 = vmul.f32 %v3508, 1.442695
        %v3513 = vpow.pop %v3512
        %v3514 = vmul.f32 %v3509, 1.442695
        %v3515 = vpow.pop %v3514
        %v3516 = vmul.f32 %v3510, 1.442695
        %v3517 = vpow.pop %v3516
        %v3518 = vmul.f32 %v3511, 1.442695
        %v3519 = vpow.pop %v3518
        %v3520 = vsel %vm1151, %v3513, 0.0
        %3521 = vadd.xlane.f32.xlu0 %v3520
        %v3522 = vpop.xlane.xlu0 %3521
        %v3523 = vsel %vm1151, %v3515, 0.0
        %3524 = vadd.xlane.f32.xlu0 %v3523
        %v3525 = vpop.xlane.xlu0 %3524
        %v3526 = vsel %vm1151, %v3517, 0.0
        %3527 = vadd.xlane.f32.xlu0 %v3526
        %v3528 = vpop.xlane.xlu0 %3527
        %v3529 = vsel %vm1151, %v3519, 0.0
        %3530 = vadd.xlane.f32.xlu0 %v3529
        %v3531 = vpop.xlane.xlu0 %3530
        %v3532 = vrcp.pop %v3522
        %v3533 = vrcp.pop %v3525
        %v3534 = vrcp.pop %v3528
        %v3535 = vrcp.pop %v3531
        %v3536 = vmul.f32 %v3513, %v3532
        %v3537 = vmul.f32 %v3515, %v3533
        %v3538 = vmul.f32 %v3517, %v3534
        %v3539 = vmul.f32 %v3519, %v3535
        %3540 = vst.msk [vmem:[%s842] sm:$0xff] %vm1151, %v3536
        %3541 = vst.msk [vmem:[%s842 + $0x8] sm:$0xff] %vm1151, %v3537
        %3542 = vst.msk [vmem:[%s842 + $0x10] sm:$0xff] %vm1151, %v3538
        %3543 = vst.msk [vmem:[%s842 + $0x18] sm:$0xff] %vm1151, %v3539
        %v3544 = vpack.c.bf16 %v3536, %v3536
        %v3545 = vpack.c.bf16 %v3537, %v3537
        %v3546 = vpack.c.bf16 %v3538, %v3538
        %v3547 = vpack.c.bf16 %v3539, %v3539
        %v3548 = vld [vmem:[#allocation3] sm:$0xf]
        %v3549 = vld [vmem:[#allocation3 + $0x4] sm:$0xf]
        %v3550 = vld [vmem:[#allocation3 + $0x8] sm:$0xf]
        %v3551 = vld [vmem:[#allocation3 + $0xc] sm:$0xf]
        %v3553 = vsel %vm1151, %v3544, 0
        %vm3555 = vcmask 1043456
        %v3557 = vsel %vm3555, %v3548, 0
        %3559 = vmatprep.subr.bf16.mxu0 0
        %3560 = vmatpush1.bf16.msra.mxu0 %v3557
        %3561 = vmatprep.subr.bf16.mxu0 0
        %3562 = vmatpush1.bf16.msra.mxu0 0
        %3563 = vmatprep.subr.bf16.mxu0 0
        %3564 = vmatpush1.bf16.msra.mxu0 0
        %3565 = vmatprep.subr.bf16.mxu0 0
        %3566 = vmatpush1.bf16.msra.mxu0 0
        %3567 = vmatprep.subr.bf16.mxu0 0
        %3568 = vmatpush1.bf16.msra.mxu0 0
        %3569 = vmatprep.subr.bf16.mxu0 0
        %3570 = vmatpush1.bf16.msra.mxu0 0
        %3571 = vmatprep.subr.bf16.mxu0 0
        %3572 = vmatpush1.bf16.msra.mxu0 0
        %3573 = vmatprep.subr.bf16.mxu0 0
        %3574 = vmatpush1.bf16.msra.mxu0 0
        %3575 = vmatprep.subr.bf16.mxu0 0
        %3576 = vmatpush1.bf16.msra.mxu0 0
        %3577 = vmatprep.subr.bf16.mxu0 0
        %3578 = vmatpush1.bf16.msra.mxu0 0
        %3579 = vmatprep.subr.bf16.mxu0 0
        %3580 = vmatpush1.bf16.msra.mxu0 0
        %3581 = vmatprep.subr.bf16.mxu0 0
        %3582 = vmatpush1.bf16.msra.mxu0 0
        %3583 = vmatprep.subr.bf16.mxu0 0
        %3584 = vmatpush1.bf16.msra.mxu0 0
        %3585 = vmatprep.subr.bf16.mxu0 0
        %3586 = vmatpush1.bf16.msra.mxu0 0
        %3587 = vmatprep.subr.bf16.mxu0 0
        %3588 = vmatpush1.bf16.msra.mxu0 0
        %3589 = vmatprep.subr.bf16.mxu0 0
        %3590 = vmatpush1.bf16.msra.mxu0 0
        %3591 = vmatprep.mubr.bf16.mxu0 0
        %3592 = vmatmul.mubr.bf16.gmra.mrb[0].mxu0 %v3553
        %v3593 = vpop.f32.mrb[0].mxu0
        %v3594 = vadd.f32 0.0, %v3593
        %v3595 = vpop.f32.mrb[0].mxu0
        %v3596 = vpop.f32.mrb[0].mxu0
        %v3597 = vpop.f32.mrb[0].mxu0
        %3598 = vdwg.mxu0
        %v3600 = vsel %vm1151, %v3545, 0
        %v3603 = vsel %vm3555, %v3549, 0
        %3605 = vmatprep.subr.bf16.mxu0 0
        %3606 = vmatpush1.bf16.msra.mxu0 %v3603
        %3607 = vmatprep.subr.bf16.mxu0 0
        %3608 = vmatpush1.bf16.msra.mxu0 0
        %3609 = vmatprep.subr.bf16.mxu0 0
        %3610 = vmatpush1.bf16.msra.mxu0 0
        %3611 = vmatprep.subr.bf16.mxu0 0
        %3612 = vmatpush1.bf16.msra.mxu0 0
        %3613 = vmatprep.subr.bf16.mxu0 0
        %3614 = vmatpush1.bf16.msra.mxu0 0
        %3615 = vmatprep.subr.bf16.mxu0 0
        %3616 = vmatpush1.bf16.msra.mxu0 0
        %3617 = vmatprep.subr.bf16.mxu0 0
        %3618 = vmatpush1.bf16.msra.mxu0 0
        %3619 = vmatprep.subr.bf16.mxu0 0
        %3620 = vmatpush1.bf16.msra.mxu0 0
        %3621 = vmatprep.subr.bf16.mxu0 0
        %3622 = vmatpush1.bf16.msra.mxu0 0
        %3623 = vmatprep.subr.bf16.mxu0 0
        %3624 = vmatpush1.bf16.msra.mxu0 0
        %3625 = vmatprep.subr.bf16.mxu0 0
        %3626 = vmatpush1.bf16.msra.mxu0 0
        %3627 = vmatprep.subr.bf16.mxu0 0
        %3628 = vmatpush1.bf16.msra.mxu0 0
        %3629 = vmatprep.subr.bf16.mxu0 0
        %3630 = vmatpush1.bf16.msra.mxu0 0
        %3631 = vmatprep.subr.bf16.mxu0 0
        %3632 = vmatpush1.bf16.msra.mxu0 0
        %3633 = vmatprep.subr.bf16.mxu0 0
        %3634 = vmatpush1.bf16.msra.mxu0 0
        %3635 = vmatprep.subr.bf16.mxu0 0
        %3636 = vmatpush1.bf16.msra.mxu0 0
        %3637 = vmatprep.mubr.bf16.mxu0 0
        %3638 = vmatmul.mubr.bf16.gmra.mrb[0].mxu0 %v3600
        %v3639 = vpop.f32.mrb[0].mxu0
        %v3640 = vadd.f32 0.0, %v3639
        %v3641 = vpop.f32.mrb[0].mxu0
        %v3642 = vpop.f32.mrb[0].mxu0
        %v3643 = vpop.f32.mrb[0].mxu0
        %3644 = vdwg.mxu0
        %v3646 = vsel %vm1151, %v3546, 0
        %v3649 = vsel %vm3555, %v3550, 0
        %3651 = vmatprep.subr.bf16.mxu0 0
        %3652 = vmatpush1.bf16.msra.mxu0 %v3649
        %3653 = vmatprep.subr.bf16.mxu0 0
        %3654 = vmatpush1.bf16.msra.mxu0 0
        %3655 = vmatprep.subr.bf16.mxu0 0
        %3656 = vmatpush1.bf16.msra.mxu0 0
        %3657 = vmatprep.subr.bf16.mxu0 0
        %3658 = vmatpush1.bf16.msra.mxu0 0
        %3659 = vmatprep.subr.bf16.mxu0 0
        %3660 = vmatpush1.bf16.msra.mxu0 0
        %3661 = vmatprep.subr.bf16.mxu0 0
        %3662 = vmatpush1.bf16.msra.mxu0 0
        %3663 = vmatprep.subr.bf16.mxu0 0
        %3664 = vmatpush1.bf16.msra.mxu0 0
        %3665 = vmatprep.subr.bf16.mxu0 0
        %3666 = vmatpush1.bf16.msra.mxu0 0
        %3667 = vmatprep.subr.bf16.mxu0 0
        %3668 = vmatpush1.bf16.msra.mxu0 0
        %3669 = vmatprep.subr.bf16.mxu0 0
        %3670 = vmatpush1.bf16.msra.mxu0 0
        %3671 = vmatprep.subr.bf16.mxu0 0
        %3672 = vmatpush1.bf16.msra.mxu0 0
        %3673 = vmatprep.subr.bf16.mxu0 0
        %3674 = vmatpush1.bf16.msra.mxu0 0
        %3675 = vmatprep.subr.bf16.mxu0 0
        %3676 = vmatpush1.bf16.msra.mxu0 0
        %3677 = vmatprep.subr.bf16.mxu0 0
        %3678 = vmatpush1.bf16.msra.mxu0 0
        %3679 = vmatprep.subr.bf16.mxu0 0
        %3680 = vmatpush1.bf16.msra.mxu0 0
        %3681 = vmatprep.subr.bf16.mxu0 0
        %3682 = vmatpush1.bf16.msra.mxu0 0
        %3683 = vmatprep.mubr.bf16.mxu0 0
        %3684 = vmatmul.mubr.bf16.gmra.mrb[0].mxu0 %v3646
        %v3685 = vpop.f32.mrb[0].mxu0
        %v3686 = vadd.f32 0.0, %v3685
        %v3687 = vpop.f32.mrb[0].mxu0
        %v3688 = vpop.f32.mrb[0].mxu0
        %v3689 = vpop.f32.mrb[0].mxu0
        %3690 = vdwg.mxu0
        %v3692 = vsel %vm1151, %v3547, 0
        %v3695 = vsel %vm3555, %v3551, 0
        %3697 = vmatprep.subr.bf16.mxu0 0
        %3698 = vmatpush1.bf16.msra.mxu0 %v3695
        %3699 = vmatprep.subr.bf16.mxu0 0
        %3700 = vmatpush1.bf16.msra.mxu0 0
        %3701 = vmatprep.subr.bf16.mxu0 0
        %3702 = vmatpush1.bf16.msra.mxu0 0
        %3703 = vmatprep.subr.bf16.mxu0 0
        %3704 = vmatpush1.bf16.msra.mxu0 0
        %3705 = vmatprep.subr.bf16.mxu0 0
        %3706 = vmatpush1.bf16.msra.mxu0 0
        %3707 = vmatprep.subr.bf16.mxu0 0
        %3708 = vmatpush1.bf16.msra.mxu0 0
        %3709 = vmatprep.subr.bf16.mxu0 0
        %3710 = vmatpush1.bf16.msra.mxu0 0
        %3711 = vmatprep.subr.bf16.mxu0 0
        %3712 = vmatpush1.bf16.msra.mxu0 0
        %3713 = vmatprep.subr.bf16.mxu0 0
        %3714 = vmatpush1.bf16.msra.mxu0 0
        %3715 = vmatprep.subr.bf16.mxu0 0
        %3716 = vmatpush1.bf16.msra.mxu0 0
        %3717 = vmatprep.subr.bf16.mxu0 0
        %3718 = vmatpush1.bf16.msra.mxu0 0
        %3719 = vmatprep.subr.bf16.mxu0 0
        %3720 = vmatpush1.bf16.msra.mxu0 0
        %3721 = vmatprep.subr.bf16.mxu0 0
        %3722 = vmatpush1.bf16.msra.mxu0 0
        %3723 = vmatprep.subr.bf16.mxu0 0
        %3724 = vmatpush1.bf16.msra.mxu0 0
        %3725 = vmatprep.subr.bf16.mxu0 0
        %3726 = vmatpush1.bf16.msra.mxu0 0
        %3727 = vmatprep.subr.bf16.mxu0 0
        %3728 = vmatpush1.bf16.msra.mxu0 0
        %3729 = vmatprep.mubr.bf16.mxu0 0
        %3730 = vmatmul.mubr.bf16.gmra.mrb[0].mxu0 %v3692
        %v3731 = vpop.f32.mrb[0].mxu0
        %v3732 = vadd.f32 0.0, %v3731
        %v3733 = vpop.f32.mrb[0].mxu0
        %v3734 = vpop.f32.mrb[0].mxu0
        %v3735 = vpop.f32.mrb[0].mxu0
        %3736 = vdwg.mxu0
        %3738 = vrot.lane.b32.xlu0 %v3640, 8
        %v3739 = vpop.permute.xlu0 %3738
        %3742 = vrot.lane.b32.xlu0 %v3686, 16
        %v3743 = vpop.permute.xlu0 %3742
        %3746 = vrot.lane.b32.xlu0 %v3732, 24
        %v3747 = vpop.permute.xlu0 %3746
        %v3749 = vsel %vm1151, %v3594, %v3739
        %vm3750 = vcmask 130048
        %v3751 = vsel %vm3750, %v3749, %v3743
        %vm3752 = vcmask 195584
        %v3753 = vsel %vm3752, %v3751, %v3747
        %v3754 = vpack.c.bf16 %v3753, %v3753
        %v3755 = vld [vmem:[%s11] sm:$0xf]
        %v3756 = vld [vmem:[%s11 + $0x4] sm:$0xf]
        %v3757 = vld [vmem:[%s11 + $0x8] sm:$0xf]
        %v3758 = vld [vmem:[%s11 + $0xc] sm:$0xf]
        %v3759 = vld [vmem:[#allocation13] sm:$0x1]
        %v3761 = vlaneseq
        %v3762 = vshrl.u32 %v3761, 7
        %v3763 = vsub.s32 0, %v3762
        %v3764 = vrot.slane %v3759, %v3763
        %v3770 = vunpack.c.l.b16 %v3755
        %v3771 = vunpack.c.l.b16 %v3756
        %v3772 = vunpack.c.l.b16 %v3757
        %v3773 = vunpack.c.l.b16 %v3758
        %v3774 = vpack.c.b16 %v3771, %v3770
        %v3775 = vpack.c.b16 %v3773, %v3772
        %v3779 = vsel %vm1063, %v3754, 0
        %3781 = vmatprep.subr.bf16.mxu0 0
        %3782 = vmatpush1.bf16.msra.mxu0 %v3774
        %3783 = vmatprep.subr.bf16.mxu0 0
        %3784 = vmatpush1.bf16.msra.mxu0 %v3775
        %3785 = vmatprep.subr.bf16.mxu0 0
        %3786 = vmatpush1.bf16.msra.mxu0 0
        %3787 = vmatprep.subr.bf16.mxu0 0
        %3788 = vmatpush1.bf16.msra.mxu0 0
        %3789 = vmatprep.subr.bf16.mxu0 0
        %3790 = vmatpush1.bf16.msra.mxu0 0
        %3791 = vmatprep.subr.bf16.mxu0 0
        %3792 = vmatpush1.bf16.msra.mxu0 0
        %3793 = vmatprep.subr.bf16.mxu0 0
        %3794 = vmatpush1.bf16.msra.mxu0 0
        %3795 = vmatprep.subr.bf16.mxu0 0
        %3796 = vmatpush1.bf16.msra.mxu0 0
        %3797 = vmatprep.subr.bf16.mxu0 0
        %3798 = vmatpush1.bf16.msra.mxu0 0
        %3799 = vmatprep.subr.bf16.mxu0 0
        %3800 = vmatpush1.bf16.msra.mxu0 0
        %3801 = vmatprep.subr.bf16.mxu0 0
        %3802 = vmatpush1.bf16.msra.mxu0 0
        %3803 = vmatprep.subr.bf16.mxu0 0
        %3804 = vmatpush1.bf16.msra.mxu0 0
        %3805 = vmatprep.subr.bf16.mxu0 0
        %3806 = vmatpush1.bf16.msra.mxu0 0
        %3807 = vmatprep.subr.bf16.mxu0 0
        %3808 = vmatpush1.bf16.msra.mxu0 0
        %3809 = vmatprep.subr.bf16.mxu0 0
        %3810 = vmatpush1.bf16.msra.mxu0 0
        %3811 = vmatprep.subr.bf16.mxu0 0
        %3812 = vmatpush1.bf16.msra.mxu0 0
        %3813 = vmatprep.mubr.bf16.mxu0 0
        %3814 = vmatmul.mubr.bf16.gmra.mrb[0].mxu0 %v3779
        %v3815 = vpop.f32.mrb[0].mxu0
        %v3816 = vadd.f32 %v3764, %v3815
        %v3817 = vpop.f32.mrb[0].mxu0
        %v3818 = vpop.f32.mrb[0].mxu0
        %v3819 = vpop.f32.mrb[0].mxu0
        %3820 = vdwg.mxu0
        %v3821 = vadd.f32 %v3816, %v865
        %v3822 = vld [vmem:[#allocation15] sm:$0x1]
        %v3823 = vld [vmem:[%s14] sm:$0x1]
        %v3824 = vsel %vm1063, %v3821, 0.0
        %3825 = vadd.xlane.f32.xlu0 %v3824
        %v3826 = vpop.xlane.xlu0 %3825
        %v3827 = vrcp.pop 32.0
        %v3828 = vmul.f32 %v3826, %v3827
        %v3829 = vsub.f32 %v3821, %v3828
        %v3830 = vmul.f32 %v3829, %v3829
        %v3831 = vsel %vm1063, %v3830, 0.0
        %3832 = vadd.xlane.f32.xlu0 %v3831
        %v3833 = vpop.xlane.xlu0 %3832
        %v3834 = vmul.f32 %v3833, %v3827
        %v3835 = vadd.f32 %v3834, 1e-05
        %v3836 = vrsqrt.pop %v3835
        %v3837 = vmul.f32 %v3829, %v3836
        %v3839 = vlaneseq
        %v3840 = vshrl.u32 %v3839, 7
        %v3841 = vsub.s32 0, %v3840
        %v3842 = vrot.slane %v3822, %v3841
        %v3844 = vmul.f32 %v3837, %v3842
        %v3846 = vlaneseq
        %v3847 = vshrl.u32 %v3846, 7
        %v3848 = vsub.s32 0, %v3847
        %v3849 = vrot.slane %v3823, %v3848
        %v3851 = vadd.f32 %v3844, %v3849
        %v3852 = vpack.c.bf16 %v3851, %v3851
        %v3853 = vld [vmem:[%s15] sm:$0xf]
        %v3854 = vld [vmem:[%s15 + $0x4] sm:$0xf]
        %v3855 = vld [vmem:[%s15 + $0x8] sm:$0xf]
        %v3856 = vld [vmem:[%s15 + $0xc] sm:$0xf]
        %v3857 = vld [vmem:[%s16] sm:$0x1]
        %v3859 = vlaneseq
        %v3860 = vshrl.u32 %v3859, 7
        %v3861 = vsub.s32 0, %v3860
        %v3862 = vrot.slane %v3857, %v3861
        %v3868 = vunpack.c.l.b16 %v3853
        %v3869 = vunpack.c.l.b16 %v3854
        %v3870 = vunpack.c.l.b16 %v3855
        %v3871 = vunpack.c.l.b16 %v3856
        %v3872 = vpack.c.b16 %v3869, %v3868
        %v3873 = vpack.c.b16 %v3871, %v3870
        %v3877 = vsel %vm1063, %v3852, 0
        %3879 = vmatprep.subr.bf16.mxu0 0
        %3880 = vmatpush1.bf16.msra.mxu0 %v3872
        %3881 = vmatprep.subr.bf16.mxu0 0
        %3882 = vmatpush1.bf16.msra.mxu0 %v3873
        %3883 = vmatprep.subr.bf16.mxu0 0
        %3884 = vmatpush1.bf16.msra.mxu0 0
        %3885 = vmatprep.subr.bf16.mxu0 0
        %3886 = vmatpush1.bf16.msra.mxu0 0
        %3887 = vmatprep.subr.bf16.mxu0 0
        %3888 = vmatpush1.bf16.msra.mxu0 0
        %3889 = vmatprep.subr.bf16.mxu0 0
        %3890 = vmatpush1.bf16.msra.mxu0 0
        %3891 = vmatprep.subr.bf16.mxu0 0
        %3892 = vmatpush1.bf16.msra.mxu0 0
        %3893 = vmatprep.subr.bf16.mxu0 0
        %3894 = vmatpush1.bf16.msra.mxu0 0
        %3895 = vmatprep.subr.bf16.mxu0 0
        %3896 = vmatpush1.bf16.msra.mxu0 0
        %3897 = vmatprep.subr.bf16.mxu0 0
        %3898 = vmatpush1.bf16.msra.mxu0 0
        %3899 = vmatprep.subr.bf16.mxu0 0
        %3900 = vmatpush1.bf16.msra.mxu0 0
        %3901 = vmatprep.subr.bf16.mxu0 0
        %3902 = vmatpush1.bf16.msra.mxu0 0
        %3903 = vmatprep.subr.bf16.mxu0 0
        %3904 = vmatpush1.bf16.msra.mxu0 0
        %3905 = vmatprep.subr.bf16.mxu0 0
        %3906 = vmatpush1.bf16.msra.mxu0 0
        %3907 = vmatprep.subr.bf16.mxu0 0
        %3908 = vmatpush1.bf16.msra.mxu0 0
        %3909 = vmatprep.subr.bf16.mxu0 0
        %3910 = vmatpush1.bf16.msra.mxu0 0
        %3911 = vmatprep.mubr.bf16.mxu0 0
        %3912 = vmatmul.mubr.bf16.gmra.mrb[0].mxu0 %v3877
        %v3913 = vpop.f32.mrb[0].mxu0
        %v3914 = vadd.f32 %v3862, %v3913
        %v3915 = vpop.f32.mrb[0].mxu0
        %v3916 = vpop.f32.mrb[0].mxu0
        %v3917 = vpop.f32.mrb[0].mxu0
        %3918 = vdwg.mxu0
        %v3919 = vmax.f32 %v3914, 0.0
        %v3920 = vpack.c.bf16 %v3919, %v3919
        %v3921 = vld [vmem:[%s17] sm:$0xf]
        %v3922 = vld [vmem:[%s17 + $0x4] sm:$0xf]
        %v3923 = vld [vmem:[%s17 + $0x8] sm:$0xf]
        %v3924 = vld [vmem:[%s17 + $0xc] sm:$0xf]
        %v3925 = vld [vmem:[%s17 + $0x10] sm:$0xf]
        %v3926 = vld [vmem:[%s17 + $0x14] sm:$0xf]
        %v3927 = vld [vmem:[%s17 + $0x18] sm:$0xf]
        %v3928 = vld [vmem:[%s17 + $0x1c] sm:$0xf]
        %v3929 = vld [vmem:[%s18] sm:$0x1]
        %v3931 = vlaneseq
        %v3932 = vshrl.u32 %v3931, 7
        %v3933 = vsub.s32 0, %v3932
        %v3934 = vrot.slane %v3929, %v3933
        %v3944 = vunpack.c.l.b16 %v3921
        %v3945 = vunpack.c.l.b16 %v3922
        %v3946 = vunpack.c.l.b16 %v3923
        %v3947 = vunpack.c.l.b16 %v3924
        %v3948 = vunpack.c.l.b16 %v3925
        %v3949 = vunpack.c.l.b16 %v3926
        %v3950 = vunpack.c.l.b16 %v3927
        %v3951 = vunpack.c.l.b16 %v3928
        %v3952 = vpack.c.b16 %v3945, %v3944
        %v3953 = vpack.c.b16 %v3947, %v3946
        %v3954 = vpack.c.b16 %v3949, %v3948
        %v3955 = vpack.c.b16 %v3951, %v3950
        %vm3960 = vcmask 523264
        %v3962 = vsel %vm3960, %v3920, 0
        %3964 = vmatprep.subr.bf16.mxu0 0
        %3965 = vmatpush1.bf16.msra.mxu0 %v3952
        %3966 = vmatprep.subr.bf16.mxu0 0
        %3967 = vmatpush1.bf16.msra.mxu0 %v3953
        %3968 = vmatprep.subr.bf16.mxu0 0
        %3969 = vmatpush1.bf16.msra.mxu0 %v3954
        %3970 = vmatprep.subr.bf16.mxu0 0
        %3971 = vmatpush1.bf16.msra.mxu0 %v3955
        %3972 = vmatprep.subr.bf16.mxu0 0
        %3973 = vmatpush1.bf16.msra.mxu0 0
        %3974 = vmatprep.subr.bf16.mxu0 0
        %3975 = vmatpush1.bf16.msra.mxu0 0
        %3976 = vmatprep.subr.bf16.mxu0 0
        %3977 = vmatpush1.bf16.msra.mxu0 0
        %3978 = vmatprep.subr.bf16.mxu0 0
        %3979 = vmatpush1.bf16.msra.mxu0 0
        %3980 = vmatprep.subr.bf16.mxu0 0
        %3981 = vmatpush1.bf16.msra.mxu0 0
        %3982 = vmatprep.subr.bf16.mxu0 0
        %3983 = vmatpush1.bf16.msra.mxu0 0
        %3984 = vmatprep.subr.bf16.mxu0 0
        %3985 = vmatpush1.bf16.msra.mxu0 0
        %3986 = vmatprep.subr.bf16.mxu0 0
        %3987 = vmatpush1.bf16.msra.mxu0 0
        %3988 = vmatprep.subr.bf16.mxu0 0
        %3989 = vmatpush1.bf16.msra.mxu0 0
        %3990 = vmatprep.subr.bf16.mxu0 0
        %3991 = vmatpush1.bf16.msra.mxu0 0
        %3992 = vmatprep.subr.bf16.mxu0 0
        %3993 = vmatpush1.bf16.msra.mxu0 0
        %3994 = vmatprep.subr.bf16.mxu0 0
        %3995 = vmatpush1.bf16.msra.mxu0 0
        %3996 = vmatprep.mubr.bf16.mxu0 0
        %3997 = vmatmul.mubr.bf16.gmra.mrb[0].mxu0 %v3962
        %v3998 = vpop.f32.mrb[0].mxu0
        %v3999 = vadd.f32 %v3934, %v3998
        %v4000 = vpop.f32.mrb[0].mxu0
        %v4001 = vpop.f32.mrb[0].mxu0
        %v4002 = vpop.f32.mrb[0].mxu0
        %4003 = vdwg.mxu0
        %v4004 = vadd.f32 %v3851, %v3999
        %v4005 = vld [vmem:[%s19] sm:$0x1]
        %v4006 = vld [vmem:[%s20] sm:$0x1]
        %v4007 = vsel %vm1063, %v4004, 0.0
        %4008 = vadd.xlane.f32.xlu0 %v4007
        %v4009 = vpop.xlane.xlu0 %4008
        %v4010 = vmul.f32 %v4009, %v3827
        %v4011 = vsub.f32 %v4004, %v4010
        %v4012 = vmul.f32 %v4011, %v4011
        %v4013 = vsel %vm1063, %v4012, 0.0
        %4014 = vadd.xlane.f32.xlu0 %v4013
        %v4015 = vpop.xlane.xlu0 %4014
        %v4016 = vmul.f32 %v4015, %v3827
        %v4017 = vadd.f32 %v4016, 1e-05
        %v4018 = vrsqrt.pop %v4017
        %v4019 = vmul.f32 %v4011, %v4018
        %v4021 = vlaneseq
        %v4022 = vshrl.u32 %v4021, 7
        %v4023 = vsub.s32 0, %v4022
        %v4024 = vrot.slane %v4005, %v4023
        %v4026 = vmul.f32 %v4019, %v4024
        %v4028 = vlaneseq
        %v4029 = vshrl.u32 %v4028, 7
        %v4030 = vsub.s32 0, %v4029
        %v4031 = vrot.slane %v4006, %v4030
        %v4033 = vadd.f32 %v4026, %v4031
        %4034 = vst.msk [vmem:[%s835] sm:$0xff] %vm1063, %v4033
        %s4035 = sand.u32 %s526, 1
        %s4036 = scalar_lea.sflag [#allocation6], %s4035
        %s4037 = sand.u32 %s526, 1
        %s4038 = smul.addr %s4037, 8
        %s4039 = scalar_lea.vmem [#allocation16], %s4038
        %s4040 = sand.u32 %s554, 1
        %s4041 = scalar_lea.sflag [#allocation18], %s4040
        %s4042 = sand.u32 %s554, 1
        %s4043 = smul.addr %s4042, 32
        %s4044 = scalar_lea.vmem [#allocation17], %s4043
        // Predicated region
        $region137: #{tpu_custom_call.1} parent=103 // pred_check
          %p4045 = pneg %p536
        $region138: #{tpu_custom_call.1} parent=103 // pred_check_branch
          %4047 = sbr.rel (%p4045) target = $region140
        $region139: #{tpu_custom_call.1} parent=103 // pred_region
          %s4049 = ssub.s32 128, 128
          %4050 = vsyncadd %s4036, %s4049
          %s4051 = sadd.s32 %s49, %s48
          %s4052 = smul.addr %s4051, 128
          %s4053 = scalar_lea.hbm %s21, %s4052
          %s4055 = sshll.u32 %s4039, 4
          %s4056 = int_to_ptr.vmem [resolvable:$true] %s4055
          %4058 = dma.vmem_to_hbm [thread:$0]  %s4056, 128, %s4053, %s4036
        $region140: #{tpu_custom_call.1} parent=103 // pred_fallthru
          _
        // Predicated region
        $region141: #{tpu_custom_call.1} parent=103 // pred_check
          %p4059 = pneg %p564
        $region142: #{tpu_custom_call.1} parent=103 // pred_check_branch
          %4061 = sbr.rel (%p4059) target = $region144
        $region143: #{tpu_custom_call.1} parent=103 // pred_region
          %s4063 = ssub.s32 512, 512
          %4064 = vsyncadd %s4041, %s4063
          %s4065 = smul.addr %s48, 4
          %s4066 = sadd.s32 %s49, %s4065
          %s4067 = smul.addr %s4066, 128
          %s4068 = scalar_lea.hbm %s22, %s4067
          %s4069 = sshll.u32 %s4044, 4
          %s4070 = int_to_ptr.vmem [resolvable:$true] %s4069
          %4075 = dma.vmem_to_hbm [thread:$0]  %s4070, 512, %s4068, %s4041, 128, 128, 8
        $region144: #{tpu_custom_call.1} parent=103 // pred_fallthru
          _
      $region104: #{tpu_custom_call.1} parent=5 // pred_fallthru
        _
      %p4076 = scmp.le.s32.totalorder 2, %s39
      // Predicated region
      $region145: #{tpu_custom_call.1} parent=5 // pred_check
        %p4077 = pneg %p4076
      $region146: #{tpu_custom_call.1} parent=5 // pred_check_branch
        %4079 = sbr.rel (%p4077) target = $region148
      $region147: #{tpu_custom_call.1} parent=5 // pred_region
        %s4080 = ssub.s32 %s39, 2
        // Predicated region
        $region149: #{tpu_custom_call.1} parent=147 // pred_check
          %p4081 = pneg %p542
        $region150: #{tpu_custom_call.1} parent=147 // pred_check_branch
          %4083 = sbr.rel (%p4081) target = $region152
        $region151: #{tpu_custom_call.1} parent=147 // pred_region
          %s4084 = sand.u32 %s527, 1
          %s4085 = scalar_lea.sflag [#allocation6], %s4084
          %s4086 = sand.u32 %s527, 1
          %s4087 = smul.addr %s4086, 8
          %s4088 = scalar_lea.vmem [#allocation16], %s4087
          %4089 = dma.done %s4085, 128
        $region152: #{tpu_custom_call.1} parent=147 // pred_fallthru
          _
        // Predicated region
        $region153: #{tpu_custom_call.1} parent=147 // pred_check
          %p4090 = pneg %p570
        $region154: #{tpu_custom_call.1} parent=147 // pred_check_branch
          %4092 = sbr.rel (%p4090) target = $region156
        $region155: #{tpu_custom_call.1} parent=147 // pred_region
          %s4093 = sand.u32 %s555, 1
          %s4094 = scalar_lea.sflag [#allocation18], %s4093
          %s4095 = sand.u32 %s555, 1
          %s4096 = smul.addr %s4095, 32
          %s4097 = scalar_lea.vmem [#allocation17], %s4096
          %4098 = dma.done %s4094, 512
        $region156: #{tpu_custom_call.1} parent=147 // pred_fallthru
          _
      $region148: #{tpu_custom_call.1} parent=5 // pred_fallthru
        _
    $region6: #{tpu_custom_call.1} parent=1 // loop_footer
      %s43 = sadd.s32 1, %s39
    $region7: #{tpu_custom_call.1} parent=1 // loop_footer_branch
      %38 = sbr.rel target = $region3
    $region8: #{tpu_custom_call.1} parent=1 // loop_exit
      _
    %4099 = vsyncpa [#allocation5], 1
    %s4100 = scalar_lea.sflag [#allocation5], 1
    %4101 = vsyncpa %s4100, 1
    %4102 = vsyncpa [#allocation8], 1
    %4103 = vsyncpa [#allocation11], 1
    %4104 = vsyncpa [#allocation14], 1
    %4105 = vsyncpa [#allocation6], 1
    %s4106 = scalar_lea.sflag [#allocation6], 1
    %4107 = vsyncpa %s4106, 1
    %4108 = vsyncpa [#allocation18], 1
    %s4109 = scalar_lea.sflag [#allocation18], 1
    %4110 = vsyncpa %s4109, 1

// kernel: tpu_custom_call.1
$region0: #{tpu_custom_call.1}
  #allocation0 [shape = 'u32[]', space=smem, size = 0x4, offset = 0x4, fixed_abs, tag = 'smem constant byte address 0x4 - core index']
  #allocation1 [shape = 'u32[144,128]{1,0:T(1,128)}', space=vmem, size = 0x12000, scoped, tag = 'internal scratch']
  #allocation2 [shape = 'bf16[4,8,8]{2,1,0:T(8,128)(2,1)}', space=vmem, size = 0x2000, scoped, tag = 'scratch operand']
  #allocation3 [shape = 'bf16[4,8,8]{2,1,0:T(8,128)(2,1)}', space=vmem, size = 0x2000, scoped, tag = 'scratch operand']
  %s0 = inlined_call_operand.vmem [shape: f32[2,8,32], index: 0, kind: input, shape index: {}]
  %s1 = inlined_call_operand.vmem [shape: f32[2,8,32], index: 1, kind: input, shape index: {}]
  %s2 = inlined_call_operand.vmem [shape: bf16[2,8,8,32], index: 2, kind: input, shape index: {}]
  %s3 = inlined_call_operand.vmem [shape: bf16[32,32], index: 3, kind: input, shape index: {}]
  %s4 = inlined_call_operand.vmem [shape: f32[1,32], index: 4, kind: input, shape index: {}]
  %s5 = inlined_call_operand.hbm [shape: bf16[32,32], index: 5, kind: input, shape index: {}]
  %s6 = inlined_call_operand.hbm [shape: f32[1,32], index: 6, kind: input, shape index: {}]
  %s7 = inlined_call_operand.hbm [shape: bf16[32,32], index: 7, kind: input, shape index: {}]
  %s8 = inlined_call_operand.hbm [shape: f32[1,32], index: 8, kind: input, shape index: {}]
  %s9 = inlined_call_operand.vmem [shape: bf16[4,32,8], index: 9, kind: input, shape index: {}]
  %s10 = inlined_call_operand.hbm [shape: f32[4,1,8], index: 10, kind: input, shape index: {}]
  %s11 = inlined_call_operand.vmem [shape: bf16[32,32], index: 11, kind: input, shape index: {}]
  %s12 = inlined_call_operand.hbm [shape: f32[1,32], index: 12, kind: input, shape index: {}]
  %s13 = inlined_call_operand.hbm [shape: f32[1,32], index: 13, kind: input, shape index: {}]
  %s14 = inlined_call_operand.vmem [shape: f32[1,32], index: 14, kind: input, shape index: {}]
  %s15 = inlined_call_operand.vmem [shape: bf16[32,64], index: 15, kind: input, shape index: {}]
  %s16 = inlined_call_operand.vmem [shape: f32[1,64], index: 16, kind: input, shape index: {}]
  %s17 = inlined_call_operand.vmem [shape: bf16[64,32], index: 17, kind: input, shape index: {}]
  %s18 = inlined_call_operand.vmem [shape: f32[1,32], index: 18, kind: input, shape index: {}]
  %s19 = inlined_call_operand.vmem [shape: f32[1,32], index: 19, kind: input, shape index: {}]
  %s20 = inlined_call_operand.vmem [shape: f32[1,32], index: 20, kind: input, shape index: {}]
  %s21 = inlined_call_operand.hbm [shape: f32[2,8,32], index: 21, kind: output, shape index: {0}]
  %s22 = inlined_call_operand.hbm [shape: f32[2,4,8,8], index: 22, kind: output, shape index: {1}]
  %23 = xla_tuple %s21, %s22
  %s24 = sld [smem:[#allocation0]]
  $region157: #{tpu_custom_call.1} parent=0
    _
  %s26 = ssub.s32 1, %s24
  %s27 = scalar_select 0, %s26, %s24
  $region1: #{tpu_custom_call.1} parent=0
    #allocation4 [shape = 'u8[8192]{0}', space=vmem, size = 0x2000, scoped, tag = 'input window, operand 5, single buffered']
    #allocation5 [shape = 's32[2]{0}', space=sflag, size = 0x8, scoped, tag = 'scoped memory for tpu_custom_call.1']
    #allocation6 [shape = 's32[2]{0}', space=sflag, size = 0x8, scoped, tag = 'scoped memory for tpu_custom_call.1']
    #allocation7 [shape = 'u8[512]{0}', space=vmem, size = 0x400, scoped, tag = 'input window, operand 6, single buffered']
    #allocation8 [shape = 's32[1]{0}', space=sflag, size = 0x4, scoped, tag = 'scoped memory for tpu_custom_call.1']
    #allocation9 [shape = 'u8[8192]{0}', space=vmem, size = 0x2000, scoped, tag = 'input window, operand 7, single buffered']
    #allocation10 [shape = 'u8[512]{0}', space=vmem, size = 0x400, scoped, tag = 'input window, operand 8, single buffered']
    #allocation11 [shape = 's32[1]{0}', space=sflag, size = 0x4, scoped, tag = 'scoped memory for tpu_custom_call.1']
    #allocation12 [shape = 'u8[2048]{0}', space=vmem, size = 0x800, scoped, tag = 'input window, operand 10, single buffered']
    #allocation13 [shape = 'u8[512]{0}', space=vmem, size = 0x400, scoped, tag = 'input window, operand 12, single buffered']
    #allocation14 [shape = 's32[1]{0}', space=sflag, size = 0x4, scoped, tag = 'scoped memory for tpu_custom_call.1']
    #allocation15 [shape = 'u8[512]{0}', space=vmem, size = 0x400, scoped, tag = 'input window, operand 13, single buffered']
    #allocation16 [shape = 'u8[8192]{0}', space=vmem, size = 0x2000, scoped, tag = 'output window, operand 0']
    #allocation17 [shape = 'u8[32768]{0}', space=vmem, size = 0x8000, scoped, tag = 'output window, operand 1']
    #allocation18 [shape = 's32[2]{0}', space=sflag, size = 0x8, scoped, tag = 'scoped memory for tpu_custom_call.1']
    %28 = vsyncpa [#allocation5], 0
    %29 = vsyncpa [#allocation8], 0
    %30 = vsyncpa [#allocation11], 0
    %31 = vsyncpa [#allocation14], 0
    %32 = vsyncpa [#allocation6], 0
    %s33 = scalar_lea.sflag [#allocation6], 1
    %34 = vsyncpa %s33, 0
    %35 = vsyncpa [#allocation18], 0
    %s36 = scalar_lea.sflag [#allocation18], 1
    %37 = vsyncpa %s36, 0
    loop: start=0, step=1, limit=4
    $region2: #{tpu_custom_call.1} parent=1 // loop_pre_header
      _
    $region3: #{tpu_custom_call.1} parent=1 // loop_header
      %s39 = sphi 0, %s43
      %p40 = scmp.ge.s32.totalorder %s39, 4
      %s46 = sphi 0, %s58
      %s47 = sphi 0, %s54
      %s48 = sphi 0, %s46
      %s49 = sphi 0, %s47
      %s50 = sphi 0, %s48
      %s51 = sphi 0, %s49
      %s63 = sphi 0, %s65
      %s66 = sphi 0, %s63
      %s67 = sphi 0, %s66
      %s83 = sphi 0, %s67
      %s89 = sphi 0, %s91
      %s92 = sphi 0, %s89
      %s93 = sphi 0, %s92
      %s109 = sphi 0, %s93
      %s117 = sphi 0, %s119
      %s120 = sphi 0, %s117
      %s121 = sphi 0, %s120
      %s137 = sphi 0, %s121
      %s141 = sphi 0, %s141
      %s143 = sphi 0, %s141
      %s144 = sphi 0, %s143
      %s158 = sphi 0, %s144
      %s162 = sphi 0, %s162
      %s164 = sphi 0, %s162
      %s165 = sphi 0, %s164
      %s179 = sphi 0, %s165
      %s183 = sphi 0, %s183
      %s185 = sphi 0, %s183
      %s186 = sphi 0, %s185
      %s200 = sphi 0, %s186
      %s204 = sphi 0, %s204
      %s206 = sphi 0, %s204
      %s207 = sphi 0, %s206
      %s221 = sphi 0, %s207
      %s225 = sphi 0, %s225
      %s227 = sphi 0, %s225
      %s228 = sphi 0, %s227
      %s242 = sphi 0, %s228
      %s246 = sphi 0, %s246
      %s248 = sphi 0, %s246
      %s249 = sphi 0, %s248
      %s263 = sphi 0, %s249
      %s267 = sphi 0, %s267
      %s269 = sphi 0, %s267
      %s270 = sphi 0, %s269
      %s284 = sphi 0, %s270
      %s288 = sphi 0, %s288
      %s290 = sphi 0, %s288
      %s291 = sphi 0, %s290
      %s305 = sphi 0, %s291
      %s309 = sphi 0, %s309
      %s311 = sphi 0, %s309
      %s312 = sphi 0, %s311
      %s326 = sphi 0, %s312
      %s330 = sphi 0, %s330
      %s332 = sphi 0, %s330
      %s333 = sphi 0, %s332
      %s347 = sphi 0, %s333
      %s351 = sphi 0, %s351
      %s353 = sphi 0, %s351
      %s354 = sphi 0, %s353
      %s368 = sphi 0, %s354
      %s372 = sphi 0, %s372
      %s374 = sphi 0, %s372
      %s375 = sphi 0, %s374
      %s389 = sphi 0, %s375
      %s393 = sphi 0, %s393
      %s395 = sphi 0, %s393
      %s396 = sphi 0, %s395
      %s410 = sphi 0, %s396
      %s414 = sphi 0, %s414
      %s416 = sphi 0, %s414
      %s417 = sphi 0, %s416
      %s431 = sphi 0, %s417
      %s435 = sphi 0, %s435
      %s437 = sphi 0, %s435
      %s438 = sphi 0, %s437
      %s452 = sphi 0, %s438
      %s456 = sphi 0, %s456
      %s458 = sphi 0, %s456
      %s459 = sphi 0, %s458
      %s473 = sphi 0, %s459
      %s477 = sphi 0, %s477
      %s479 = sphi 0, %s477
      %s480 = sphi 0, %s479
      %s494 = sphi 0, %s480
      %s498 = sphi 0, %s498
      %s500 = sphi 0, %s498
      %s501 = sphi 0, %s500
      %s515 = sphi 0, %s501
      %s523 = sphi 0, %s525
      %s526 = sphi 0, %s523
      %s527 = sphi 0, %s526
      %s543 = sphi 0, %s527
      %s551 = sphi 0, %s553
      %s554 = sphi 0, %s551
      %s555 = sphi 0, %s554
      %s571 = sphi 0, %s555
    $region4: #{tpu_custom_call.1} parent=1 // loop_header_branch
      %42 = sbr.rel (%p40) target = $region8
    $region5: #{tpu_custom_call.1} parent=1 // loop_body
      %s44 = ssub.s32 %s39, 1
      %s45 = ssub.s32 %s39, 2
      %s52 = sadd.s32 1, %s47
      %p53 = scmp.ge.s32.totalorder %s52, 1
      %s54 = scalar_select %p53, 0, %s52
      %s55 = sadd.s32 1, %s46
      %s56 = scalar_select %p53, %s55, %s46
      %p57 = scmp.ge.s32.totalorder %s56, 2
      %s58 = scalar_select %p57, 0, %s56
      %s59 = ssub.s32 %s46, %s58
      %s60 = ssub.s32 %s47, %s54
      %s61 = sor.u32 %s59, %s60
      %p62 = scmp.eq.s32.totalorder %s61, 0
      %s64 = sadd.s32 %s63, 1
      %s65 = scalar_select %p62, %s63, %s64
      %p68 = pneg %p62
      %p69 = scmp.eq.s32.totalorder %s39, 1
      %p70 = por %p68, %p69
      %p71 = scmp.ne.s32.totalorder %s63, %s66
      %p72 = scmp.eq.s32.totalorder %s39, 0
      %p73 = por %p71, %p72
      %p74 = scmp.ne.s32.totalorder %s63, %s66
      %p75 = scmp.eq.s32.totalorder %s44, 1
      %p76 = por %p74, %p75
      %p77 = scmp.ne.s32.totalorder %s66, %s67
      %p78 = scmp.eq.s32.totalorder %s44, 0
      %p79 = por %p77, %p78
      %p80 = scmp.ne.s32.totalorder %s66, %s67
      %p81 = scmp.eq.s32.totalorder %s45, 1
      %p82 = por %p80, %p81
      %p84 = scmp.ne.s32.totalorder %s67, %s83
      %p85 = scmp.eq.s32.totalorder %s45, 0
      %p86 = por %p84, %p85
      %s87 = ssub.s32 %s46, %s58
      %p88 = scmp.eq.s32.totalorder %s87, 0
      %s90 = sadd.s32 %s89, 1
      %s91 = scalar_select %p88, %s89, %s90
      %p94 = pneg %p88
      %p95 = scmp.eq.s32.totalorder %s39, 1
      %p96 = por %p94, %p95
      %p97 = scmp.ne.s32.totalorder %s89, %s92
      %p98 = scmp.eq.s32.totalorder %s39, 0
      %p99 = por %p97, %p98
      %p100 = scmp.ne.s32.totalorder %s89, %s92
      %p101 = scmp.eq.s32.totalorder %s44, 1
      %p102 = por %p100, %p101
      %p103 = scmp.ne.s32.totalorder %s92, %s93
      %p104 = scmp.eq.s32.totalorder %s44, 0
      %p105 = por %p103, %p104
      %p106 = scmp.ne.s32.totalorder %s92, %s93
      %p107 = scmp.eq.s32.totalorder %s45, 1
      %p108 = por %p106, %p107
      %p110 = scmp.ne.s32.totalorder %s93, %s109
      %p111 = scmp.eq.s32.totalorder %s45, 0
      %p112 = por %p110, %p111
      %s113 = ssub.s32 %s46, %s58
      %s114 = ssub.s32 %s47, %s54
      %s115 = sor.u32 %s113, %s114
      %p116 = scmp.eq.s32.totalorder %s115, 0
      %s118 = sadd.s32 %s117, 1
      %s119 = scalar_select %p116, %s117, %s118
      %p122 = pneg %p116
      %p123 = scmp.eq.s32.totalorder %s39, 1
      %p124 = por %p122, %p123
      %p125 = scmp.ne.s32.totalorder %s117, %s120
      %p126 = scmp.eq.s32.totalorder %s39, 0
      %p127 = por %p125, %p126
      %p128 = scmp.ne.s32.totalorder %s117, %s120
      %p129 = scmp.eq.s32.totalorder %s44, 1
      %p130 = por %p128, %p129
      %p131 = scmp.ne.s32.totalorder %s120, %s121
      %p132 = scmp.eq.s32.totalorder %s44, 0
      %p133 = por %p131, %p132
      %p134 = scmp.ne.s32.totalorder %s120, %s121
      %p135 = scmp.eq.s32.totalorder %s45, 1
      %p136 = por %p134, %p135
      %p138 = scmp.ne.s32.totalorder %s121, %s137
      %p139 = scmp.eq.s32.totalorder %s45, 0
      %p140 = por %p138, %p139
      %s142 = sadd.s32 %s141, 1
      %p145 = scmp.eq.s32.totalorder %s39, 1
      %p146 = scmp.ne.s32.totalorder %s141, %s143
      %p147 = scmp.eq.s32.totalorder %s39, 0
      %p148 = por %p146, %p147
      %p149 = scmp.ne.s32.totalorder %s141, %s143
      %p150 = scmp.eq.s32.totalorder %s44, 1
      %p151 = por %p149, %p150
      %p152 = scmp.ne.s32.totalorder %s143, %s144
      %p153 = scmp.eq.s32.totalorder %s44, 0
      %p154 = por %p152, %p153
      %p155 = scmp.ne.s32.totalorder %s143, %s144
      %p156 = scmp.eq.s32.totalorder %s45, 1
      %p157 = por %p155, %p156
      %p159 = scmp.ne.s32.totalorder %s144, %s158
      %p160 = scmp.eq.s32.totalorder %s45, 0
      %p161 = por %p159, %p160
      %s163 = sadd.s32 %s162, 1
      %p166 = scmp.eq.s32.totalorder %s39, 1
      %p167 = scmp.ne.s32.totalorder %s162, %s164
      %p168 = scmp.eq.s32.totalorder %s39, 0
      %p169 = por %p167, %p168
      %p170 = scmp.ne.s32.totalorder %s162, %s164
      %p171 = scmp.eq.s32.totalorder %s44, 1
      %p172 = por %p170, %p171
      %p173 = scmp.ne.s32.totalorder %s164, %s165
      %p174 = scmp.eq.s32.totalorder %s44, 0
      %p175 = por %p173, %p174
      %p176 = scmp.ne.s32.totalorder %s164, %s165
      %p177 = scmp.eq.s32.totalorder %s45, 1
      %p178 = por %p176, %p177
      %p180 = scmp.ne.s32.totalorder %s165, %s179
      %p181 = scmp.eq.s32.totalorder %s45, 0
      %p182 = por %p180, %p181
      %s184 = sadd.s32 %s183, 1
      %p187 = scmp.eq.s32.totalorder %s39, 1
      %p188 = scmp.ne.s32.totalorder %s183, %s185
      %p189 = scmp.eq.s32.totalorder %s39, 0
      %p190 = por %p188, %p189
      %p191 = scmp.ne.s32.totalorder %s183, %s185
      %p192 = scmp.eq.s32.totalorder %s44, 1
      %p193 = por %p191, %p192
      %p194 = scmp.ne.s32.totalorder %s185, %s186
      %p195 = scmp.eq.s32.totalorder %s44, 0
      %p196 = por %p194, %p195
      %p197 = scmp.ne.s32.totalorder %s185, %s186
      %p198 = scmp.eq.s32.totalorder %s45, 1
      %p199 = por %p197, %p198
      %p201 = scmp.ne.s32.totalorder %s186, %s200
      %p202 = scmp.eq.s32.totalorder %s45, 0
      %p203 = por %p201, %p202
      %s205 = sadd.s32 %s204, 1
      %p208 = scmp.eq.s32.totalorder %s39, 1
      %p209 = scmp.ne.s32.totalorder %s204, %s206
      %p210 = scmp.eq.s32.totalorder %s39, 0
      %p211 = por %p209, %p210
      %p212 = scmp.ne.s32.totalorder %s204, %s206
      %p213 = scmp.eq.s32.totalorder %s44, 1
      %p214 = por %p212, %p213
      %p215 = scmp.ne.s32.totalorder %s206, %s207
      %p216 = scmp.eq.s32.totalorder %s44, 0
      %p217 = por %p215, %p216
      %p218 = scmp.ne.s32.totalorder %s206, %s207
      %p219 = scmp.eq.s32.totalorder %s45, 1
      %p220 = por %p218, %p219
      %p222 = scmp.ne.s32.totalorder %s207, %s221
      %p223 = scmp.eq.s32.totalorder %s45, 0
      %p224 = por %p222, %p223
      %s226 = sadd.s32 %s225, 1
      %p229 = scmp.eq.s32.totalorder %s39, 1
      %p230 = scmp.ne.s32.totalorder %s225, %s227
      %p231 = scmp.eq.s32.totalorder %s39, 0
      %p232 = por %p230, %p231
      %p233 = scmp.ne.s32.totalorder %s225, %s227
      %p234 = scmp.eq.s32.totalorder %s44, 1
      %p235 = por %p233, %p234
      %p236 = scmp.ne.s32.totalorder %s227, %s228
      %p237 = scmp.eq.s32.totalorder %s44, 0
      %p238 = por %p236, %p237
      %p239 = scmp.ne.s32.totalorder %s227, %s228
      %p240 = scmp.eq.s32.totalorder %s45, 1
      %p241 = por %p239, %p240
      %p243 = scmp.ne.s32.totalorder %s228, %s242
      %p244 = scmp.eq.s32.totalorder %s45, 0
      %p245 = por %p243, %p244
      %s247 = sadd.s32 %s246, 1
      %p250 = scmp.eq.s32.totalorder %s39, 1
      %p251 = scmp.ne.s32.totalorder %s246, %s248
      %p252 = scmp.eq.s32.totalorder %s39, 0
      %p253 = por %p251, %p252
      %p254 = scmp.ne.s32.totalorder %s246, %s248
      %p255 = scmp.eq.s32.totalorder %s44, 1
      %p256 = por %p254, %p255
      %p257 = scmp.ne.s32.totalorder %s248, %s249
      %p258 = scmp.eq.s32.totalorder %s44, 0
      %p259 = por %p257, %p258
      %p260 = scmp.ne.s32.totalorder %s248, %s249
      %p261 = scmp.eq.s32.totalorder %s45, 1
      %p262 = por %p260, %p261
      %p264 = scmp.ne.s32.totalorder %s249, %s263
      %p265 = scmp.eq.s32.totalorder %s45, 0
      %p266 = por %p264, %p265
      %s268 = sadd.s32 %s267, 1
      %p271 = scmp.eq.s32.totalorder %s39, 1
      %p272 = scmp.ne.s32.totalorder %s267, %s269
      %p273 = scmp.eq.s32.totalorder %s39, 0
      %p274 = por %p272, %p273
      %p275 = scmp.ne.s32.totalorder %s267, %s269
      %p276 = scmp.eq.s32.totalorder %s44, 1
      %p277 = por %p275, %p276
      %p278 = scmp.ne.s32.totalorder %s269, %s270
      %p279 = scmp.eq.s32.totalorder %s44, 0
      %p280 = por %p278, %p279
      %p281 = scmp.ne.s32.totalorder %s269, %s270
      %p282 = scmp.eq.s32.totalorder %s45, 1
      %p283 = por %p281, %p282
      %p285 = scmp.ne.s32.totalorder %s270, %s284
      %p286 = scmp.eq.s32.totalorder %s45, 0
      %p287 = por %p285, %p286
      %s289 = sadd.s32 %s288, 1
      %p292 = scmp.eq.s32.totalorder %s39, 1
      %p293 = scmp.ne.s32.totalorder %s288, %s290
      %p294 = scmp.eq.s32.totalorder %s39, 0
      %p295 = por %p293, %p294
      %p296 = scmp.ne.s32.totalorder %s288, %s290
      %p297 = scmp.eq.s32.totalorder %s44, 1
      %p298 = por %p296, %p297
      %p299 = scmp.ne.s32.totalorder %s290, %s291
      %p300 = scmp.eq.s32.totalorder %s44, 0
      %p301 = por %p299, %p300
      %p302 = scmp.ne.s32.totalorder %s290, %s291
      %p303 = scmp.eq.s32.totalorder %s45, 1
      %p304 = por %p302, %p303
      %p306 = scmp.ne.s32.totalorder %s291, %s305
      %p307 = scmp.eq.s32.totalorder %s45, 0
      %p308 = por %p306, %p307
      %s310 = sadd.s32 %s309, 1
      %p313 = scmp.eq.s32.totalorder %s39, 1
      %p314 = scmp.ne.s32.totalorder %s309, %s311
      %p315 = scmp.eq.s32.totalorder %s39, 0
      %p316 = por %p314, %p315
      %p317 = scmp.ne.s32.totalorder %s309, %s311
      %p318 = scmp.eq.s32.totalorder %s44, 1
      %p319 = por %p317, %p318
      %p320 = scmp.ne.s32.totalorder %s311, %s312
      %p321 = scmp.eq.s32.totalorder %s44, 0
      %p322 = por %p320, %p321
      %p323 = scmp.ne.s32.totalorder %s311, %s312
      %p324 = scmp.eq.s32.totalorder %s45, 1
      %p325 = por %p323, %p324
      %p327 = scmp.ne.s32.totalorder %s312, %s326
      %p328 = scmp.eq.s32.totalorder %s45, 0
      %p329 = por %p327, %p328
      %s331 = sadd.s32 %s330, 1
      %p334 = scmp.eq.s32.totalorder %s39, 1
      %p335 = scmp.ne.s32.totalorder %s330, %s332
      %p336 = scmp.eq.s32.totalorder %s39, 0
      %p337 = por %p335, %p336
      %p338 = scmp.ne.s32.totalorder %s330, %s332
      %p339 = scmp.eq.s32.totalorder %s44, 1
      %p340 = por %p338, %p339
      %p341 = scmp.ne.s32.totalorder %s332, %s333
      %p342 = scmp.eq.s32.totalorder %s44, 0
      %p343 = por %p341, %p342
      %p344 = scmp.ne.s32.totalorder %s332, %s333
      %p345 = scmp.eq.s32.totalorder %s45, 1
      %p346 = por %p344, %p345
      %p348 = scmp.ne.s32.totalorder %s333, %s347
      %p349 = scmp.eq.s32.totalorder %s45, 0
      %p350 = por %p348, %p349
      %s352 = sadd.s32 %s351, 1
      %p355 = scmp.eq.s32.totalorder %s39, 1
      %p356 = scmp.ne.s32.totalorder %s351, %s353
      %p357 = scmp.eq.s32.totalorder %s39, 0
      %p358 = por %p356, %p357
      %p359 = scmp.ne.s32.totalorder %s351, %s353
      %p360 = scmp.eq.s32.totalorder %s44, 1
      %p361 = por %p359, %p360
      %p362 = scmp.ne.s32.totalorder %s353, %s354
      %p363 = scmp.eq.s32.totalorder %s44, 0
      %p364 = por %p362, %p363
      %p365 = scmp.ne.s32.totalorder %s353, %s354
      %p366 = scmp.eq.s32.totalorder %s45, 1
      %p367 = por %p365, %p366
      %p369 = scmp.ne.s32.totalorder %s354, %s368
      %p370 = scmp.eq.s32.totalorder %s45, 0
      %p371 = por %p369, %p370
      %s373 = sadd.s32 %s372, 1
      %p376 = scmp.eq.s32.totalorder %s39, 1
      %p377 = scmp.ne.s32.totalorder %s372, %s374
      %p378 = scmp.eq.s32.totalorder %s39, 0
      %p379 = por %p377, %p378
      %p380 = scmp.ne.s32.totalorder %s372, %s374
      %p381 = scmp.eq.s32.totalorder %s44, 1
      %p382 = por %p380, %p381
      %p383 = scmp.ne.s32.totalorder %s374, %s375
      %p384 = scmp.eq.s32.totalorder %s44, 0
      %p385 = por %p383, %p384
      %p386 = scmp.ne.s32.totalorder %s374, %s375
      %p387 = scmp.eq.s32.totalorder %s45, 1
      %p388 = por %p386, %p387
      %p390 = scmp.ne.s32.totalorder %s375, %s389
      %p391 = scmp.eq.s32.totalorder %s45, 0
      %p392 = por %p390, %p391
      %s394 = sadd.s32 %s393, 1
      %p397 = scmp.eq.s32.totalorder %s39, 1
      %p398 = scmp.ne.s32.totalorder %s393, %s395
      %p399 = scmp.eq.s32.totalorder %s39, 0
      %p400 = por %p398, %p399
      %p401 = scmp.ne.s32.totalorder %s393, %s395
      %p402 = scmp.eq.s32.totalorder %s44, 1
      %p403 = por %p401, %p402
      %p404 = scmp.ne.s32.totalorder %s395, %s396
      %p405 = scmp.eq.s32.totalorder %s44, 0
      %p406 = por %p404, %p405
      %p407 = scmp.ne.s32.totalorder %s395, %s396
      %p408 = scmp.eq.s32.totalorder %s45, 1
      %p409 = por %p407, %p408
      %p411 = scmp.ne.s32.totalorder %s396, %s410
      %p412 = scmp.eq.s32.totalorder %s45, 0
      %p413 = por %p411, %p412
      %s415 = sadd.s32 %s414, 1
      %p418 = scmp.eq.s32.totalorder %s39, 1
      %p419 = scmp.ne.s32.totalorder %s414, %s416
      %p420 = scmp.eq.s32.totalorder %s39, 0
      %p421 = por %p419, %p420
      %p422 = scmp.ne.s32.totalorder %s414, %s416
      %p423 = scmp.eq.s32.totalorder %s44, 1
      %p424 = por %p422, %p423
      %p425 = scmp.ne.s32.totalorder %s416, %s417
      %p426 = scmp.eq.s32.totalorder %s44, 0
      %p427 = por %p425, %p426
      %p428 = scmp.ne.s32.totalorder %s416, %s417
      %p429 = scmp.eq.s32.totalorder %s45, 1
      %p430 = por %p428, %p429
      %p432 = scmp.ne.s32.totalorder %s417, %s431
      %p433 = scmp.eq.s32.totalorder %s45, 0
      %p434 = por %p432, %p433
      %s436 = sadd.s32 %s435, 1
      %p439 = scmp.eq.s32.totalorder %s39, 1
      %p440 = scmp.ne.s32.totalorder %s435, %s437
      %p441 = scmp.eq.s32.totalorder %s39, 0
      %p442 = por %p440, %p441
      %p443 = scmp.ne.s32.totalorder %s435, %s437
      %p444 = scmp.eq.s32.totalorder %s44, 1
      %p445 = por %p443, %p444
      %p446 = scmp.ne.s32.totalorder %s437, %s438
      %p447 = scmp.eq.s32.totalorder %s44, 0
      %p448 = por %p446, %p447
      %p449 = scmp.ne.s32.totalorder %s437, %s438
      %p450 = scmp.eq.s32.totalorder %s45, 1
      %p451 = por %p449, %p450
      %p453 = scmp.ne.s32.totalorder %s438, %s452
      %p454 = scmp.eq.s32.totalorder %s45, 0
      %p455 = por %p453, %p454
      %s457 = sadd.s32 %s456, 1
      %p460 = scmp.eq.s32.totalorder %s39, 1
      %p461 = scmp.ne.s32.totalorder %s456, %s458
      %p462 = scmp.eq.s32.totalorder %s39, 0
      %p463 = por %p461, %p462
      %p464 = scmp.ne.s32.totalorder %s456, %s458
      %p465 = scmp.eq.s32.totalorder %s44, 1
      %p466 = por %p464, %p465
      %p467 = scmp.ne.s32.totalorder %s458, %s459
      %p468 = scmp.eq.s32.totalorder %s44, 0
      %p469 = por %p467, %p468
      %p470 = scmp.ne.s32.totalorder %s458, %s459
      %p471 = scmp.eq.s32.totalorder %s45, 1
      %p472 = por %p470, %p471
      %p474 = scmp.ne.s32.totalorder %s459, %s473
      %p475 = scmp.eq.s32.totalorder %s45, 0
      %p476 = por %p474, %p475
      %s478 = sadd.s32 %s477, 1
      %p481 = scmp.eq.s32.totalorder %s39, 1
      %p482 = scmp.ne.s32.totalorder %s477, %s479
      %p483 = scmp.eq.s32.totalorder %s39, 0
      %p484 = por %p482, %p483
      %p485 = scmp.ne.s32.totalorder %s477, %s479
      %p486 = scmp.eq.s32.totalorder %s44, 1
      %p487 = por %p485, %p486
      %p488 = scmp.ne.s32.totalorder %s479, %s480
      %p489 = scmp.eq.s32.totalorder %s44, 0
      %p490 = por %p488, %p489
      %p491 = scmp.ne.s32.totalorder %s479, %s480
      %p492 = scmp.eq.s32.totalorder %s45, 1
      %p493 = por %p491, %p492
      %p495 = scmp.ne.s32.totalorder %s480, %s494
      %p496 = scmp.eq.s32.totalorder %s45, 0
      %p497 = por %p495, %p496
      %s499 = sadd.s32 %s498, 1
      %p502 = scmp.eq.s32.totalorder %s39, 1
      %p503 = scmp.ne.s32.totalorder %s498, %s500
      %p504 = scmp.eq.s32.totalorder %s39, 0
      %p505 = por %p503, %p504
      %p506 = scmp.ne.s32.totalorder %s498, %s500
      %p507 = scmp.eq.s32.totalorder %s44, 1
      %p508 = por %p506, %p507
      %p509 = scmp.ne.s32.totalorder %s500, %s501
      %p510 = scmp.eq.s32.totalorder %s44, 0
      %p511 = por %p509, %p510
      %p512 = scmp.ne.s32.totalorder %s500, %s501
      %p513 = scmp.eq.s32.totalorder %s45, 1
      %p514 = por %p512, %p513
      %p516 = scmp.ne.s32.totalorder %s501, %s515
      %p517 = scmp.eq.s32.totalorder %s45, 0
      %p518 = por %p516, %p517
      %s519 = ssub.s32 %s46, %s58
      %s520 = ssub.s32 %s47, %s54
      %s521 = sor.u32 %s519, %s520
      %p522 = scmp.eq.s32.totalorder %s521, 0
      %s524 = sadd.s32 %s523, 1
      %s525 = scalar_select %p522, %s523, %s524
      %p528 = pneg %p522
      %p529 = scmp.eq.s32.totalorder %s39, 1
      %p530 = por %p528, %p529
      %p531 = scmp.ne.s32.totalorder %s523, %s526
      %p532 = scmp.eq.s32.totalorder %s39, 0
      %p533 = por %p531, %p532
      %p534 = scmp.ne.s32.totalorder %s523, %s526
      %p535 = scmp.eq.s32.totalorder %s44, 1
      %p536 = por %p534, %p535
      %p537 = scmp.ne.s32.totalorder %s526, %s527
      %p538 = scmp.eq.s32.totalorder %s44, 0
      %p539 = por %p537, %p538
      %p540 = scmp.ne.s32.totalorder %s526, %s527
      %p541 = scmp.eq.s32.totalorder %s45, 1
      %p542 = por %p540, %p541
      %p544 = scmp.ne.s32.totalorder %s527, %s543
      %p545 = scmp.eq.s32.totalorder %s45, 0
      %p546 = por %p544, %p545
      %s547 = ssub.s32 %s46, %s58
      %s548 = ssub.s32 %s47, %s54
      %s549 = sor.u32 %s547, %s548
      %p550 = scmp.eq.s32.totalorder %s549, 0
      %s552 = sadd.s32 %s551, 1
      %s553 = scalar_select %p550, %s551, %s552
      %p556 = pneg %p550
      %p557 = scmp.eq.s32.totalorder %s39, 1
      %p558 = por %p556, %p557
      %p559 = scmp.ne.s32.totalorder %s551, %s554
      %p560 = scmp.eq.s32.totalorder %s39, 0
      %p561 = por %p559, %p560
      %p562 = scmp.ne.s32.totalorder %s551, %s554
      %p563 = scmp.eq.s32.totalorder %s44, 1
      %p564 = por %p562, %p563
      %p565 = scmp.ne.s32.totalorder %s554, %s555
      %p566 = scmp.eq.s32.totalorder %s44, 0
      %p567 = por %p565, %p566
      %p568 = scmp.ne.s32.totalorder %s554, %s555
      %p569 = scmp.eq.s32.totalorder %s45, 1
      %p570 = por %p568, %p569
      %p572 = scmp.ne.s32.totalorder %s555, %s571
      %p573 = scmp.eq.s32.totalorder %s45, 0
      %p574 = por %p572, %p573
      %p575 = scmp.le.s32.totalorder 1, %s39
      %p576 = scmp.lt.s32.totalorder %s39, 3
      %p577 = pnand %p575, %p576
      %p578 = pneg %p577
      // Predicated region
      $region9: #{tpu_custom_call.1} parent=5 // pred_check
        _
      $region10: #{tpu_custom_call.1} parent=5 // pred_check_branch
        %580 = sbr.rel (%p577) target = $region12
      $region11: #{tpu_custom_call.1} parent=5 // pred_region
        %s581 = ssub.s32 %s39, 1
        // Predicated region
        $region13: #{tpu_custom_call.1} parent=11 // pred_check
          %p582 = pneg %p154
        $region14: #{tpu_custom_call.1} parent=11 // pred_check_branch
          %584 = sbr.rel (%p582) target = $region16
        $region15: #{tpu_custom_call.1} parent=11 // pred_region
          _
        $region16: #{tpu_custom_call.1} parent=11 // pred_fallthru
          _
        // Predicated region
        $region17: #{tpu_custom_call.1} parent=11 // pred_check
          %p585 = pneg %p175
        $region18: #{tpu_custom_call.1} parent=11 // pred_check_branch
          %587 = sbr.rel (%p585) target = $region20
        $region19: #{tpu_custom_call.1} parent=11 // pred_region
          _
        $region20: #{tpu_custom_call.1} parent=11 // pred_fallthru
          _
        // Predicated region
        $region21: #{tpu_custom_call.1} parent=11 // pred_check
          %p588 = pneg %p196
        $region22: #{tpu_custom_call.1} parent=11 // pred_check_branch
          %590 = sbr.rel (%p588) target = $region24
        $region23: #{tpu_custom_call.1} parent=11 // pred_region
          %s592 = ssub.s32 256, 256
          %593 = vsyncadd [#allocation5], %s592
          %s594 = sshll.u32 [#allocation4], 4
          %s595 = int_to_ptr.vmem [resolvable:$true] %s594
          %600 = dma.hbm_to_vmem [thread:$0]  %s5, 256, %s595, [#allocation5], 64, 64, 4
        $region24: #{tpu_custom_call.1} parent=11 // pred_fallthru
          _
        // Predicated region
        $region25: #{tpu_custom_call.1} parent=11 // pred_check
          %p601 = pneg %p217
        $region26: #{tpu_custom_call.1} parent=11 // pred_check_branch
          %603 = sbr.rel (%p601) target = $region28
        $region27: #{tpu_custom_call.1} parent=11 // pred_region
          %s605 = ssub.s32 16, 16
          %606 = vsyncadd [#allocation8], %s605
          %s608 = sshll.u32 [#allocation7], 4
          %s609 = int_to_ptr.vmem [resolvable:$true] %s608
          %611 = dma.hbm_to_vmem [thread:$0]  %s6, 16, %s609, [#allocation8]
        $region28: #{tpu_custom_call.1} parent=11 // pred_fallthru
          _
        // Predicated region
        $region29: #{tpu_custom_call.1} parent=11 // pred_check
          %p612 = pneg %p238
        $region30: #{tpu_custom_call.1} parent=11 // pred_check_branch
          %614 = sbr.rel (%p612) target = $region32
        $region31: #{tpu_custom_call.1} parent=11 // pred_region
          %s616 = ssub.s32 256, 256
          %617 = vsyncadd [#allocation8], %s616
          %s618 = sshll.u32 [#allocation9], 4
          %s619 = int_to_ptr.vmem [resolvable:$true] %s618
          %624 = dma.hbm_to_vmem [thread:$0]  %s7, 256, %s619, [#allocation8], 64, 64, 4
        $region32: #{tpu_custom_call.1} parent=11 // pred_fallthru
          _
        // Predicated region
        $region33: #{tpu_custom_call.1} parent=11 // pred_check
          %p625 = pneg %p259
        $region34: #{tpu_custom_call.1} parent=11 // pred_check_branch
          %627 = sbr.rel (%p625) target = $region36
        $region35: #{tpu_custom_call.1} parent=11 // pred_region
          %s629 = ssub.s32 16, 16
          %630 = vsyncadd [#allocation11], %s629
          %s632 = sshll.u32 [#allocation10], 4
          %s633 = int_to_ptr.vmem [resolvable:$true] %s632
          %635 = dma.hbm_to_vmem [thread:$0]  %s8, 16, %s633, [#allocation11]
        $region36: #{tpu_custom_call.1} parent=11 // pred_fallthru
          _
        // Predicated region
        $region37: #{tpu_custom_call.1} parent=11 // pred_check
          %p636 = pneg %p280
        $region38: #{tpu_custom_call.1} parent=11 // pred_check_branch
          %638 = sbr.rel (%p636) target = $region40
        $region39: #{tpu_custom_call.1} parent=11 // pred_region
          _
        $region40: #{tpu_custom_call.1} parent=11 // pred_fallthru
          _
        // Predicated region
        $region41: #{tpu_custom_call.1} parent=11 // pred_check
          %p639 = pneg %p301
        $region42: #{tpu_custom_call.1} parent=11 // pred_check_branch
          %641 = sbr.rel (%p639) target = $region44
        $region43: #{tpu_custom_call.1} parent=11 // pred_region
          %s643 = ssub.s32 64, 64
          %644 = vsyncadd [#allocation11], %s643
          %s645 = sshll.u32 [#allocation12], 4
          %s646 = int_to_ptr.vmem [resolvable:$true] %s645
          %651 = dma.hbm_to_vmem [thread:$0]  %s10, 64, %s646, [#allocation11], 16, 16, 1
        $region44: #{tpu_custom_call.1} parent=11 // pred_fallthru
          _
        // Predicated region
        $region45: #{tpu_custom_call.1} parent=11 // pred_check
          %p652 = pneg %p322
        $region46: #{tpu_custom_call.1} parent=11 // pred_check_branch
          %654 = sbr.rel (%p652) target = $region48
        $region47: #{tpu_custom_call.1} parent=11 // pred_region
          _
        $region48: #{tpu_custom_call.1} parent=11 // pred_fallthru
          _
        // Predicated region
        $region49: #{tpu_custom_call.1} parent=11 // pred_check
          %p655 = pneg %p343
        $region50: #{tpu_custom_call.1} parent=11 // pred_check_branch
          %657 = sbr.rel (%p655) target = $region52
        $region51: #{tpu_custom_call.1} parent=11 // pred_region
          %s659 = ssub.s32 16, 16
          %660 = vsyncadd [#allocation14], %s659
          %s662 = sshll.u32 [#allocation13], 4
          %s663 = int_to_ptr.vmem [resolvable:$true] %s662
          %665 = dma.hbm_to_vmem [thread:$0]  %s12, 16, %s663, [#allocation14]
        $region52: #{tpu_custom_call.1} parent=11 // pred_fallthru
          _
        // Predicated region
        $region53: #{tpu_custom_call.1} parent=11 // pred_check
          %p666 = pneg %p364
        $region54: #{tpu_custom_call.1} parent=11 // pred_check_branch
          %668 = sbr.rel (%p666) target = $region56
        $region55: #{tpu_custom_call.1} parent=11 // pred_region
          %s670 = ssub.s32 16, 16
          %671 = vsyncadd [#allocation14], %s670
          %s673 = sshll.u32 [#allocation15], 4
          %s674 = int_to_ptr.vmem [resolvable:$true] %s673
          %676 = dma.hbm_to_vmem [thread:$0]  %s13, 16, %s674, [#allocation14]
        $region56: #{tpu_custom_call.1} parent=11 // pred_fallthru
          _
        // Predicated region
        $region57: #{tpu_custom_call.1} parent=11 // pred_check
          %p677 = pneg %p385
        $region58: #{tpu_custom_call.1} parent=11 // pred_check_branch
          %679 = sbr.rel (%p677) target = $region60
        $region59: #{tpu_custom_call.1} parent=11 // pred_region
          _
        $region60: #{tpu_custom_call.1} parent=11 // pred_fallthru
          _
        // Predicated region
        $region61: #{tpu_custom_call.1} parent=11 // pred_check
          %p680 = pneg %p406
        $region62: #{tpu_custom_call.1} parent=11 // pred_check_branch
          %682 = sbr.rel (%p680) target = $region64
        $region63: #{tpu_custom_call.1} parent=11 // pred_region
          _
        $region64: #{tpu_custom_call.1} parent=11 // pred_fallthru
          _
        // Predicated region
        $region65: #{tpu_custom_call.1} parent=11 // pred_check
          %p683 = pneg %p427
        $region66: #{tpu_custom_call.1} parent=11 // pred_check_branch
          %685 = sbr.rel (%p683) target = $region68
        $region67: #{tpu_custom_call.1} parent=11 // pred_region
          _
        $region68: #{tpu_custom_call.1} parent=11 // pred_fallthru
          _
        // Predicated region
        $region69: #{tpu_custom_call.1} parent=11 // pred_check
          %p686 = pneg %p448
        $region70: #{tpu_custom_call.1} parent=11 // pred_check_branch
          %688 = sbr.rel (%p686) target = $region72
        $region71: #{tpu_custom_call.1} parent=11 // pred_region
          _
        $region72: #{tpu_custom_call.1} parent=11 // pred_fallthru
          _
        // Predicated region
        $region73: #{tpu_custom_call.1} parent=11 // pred_check
          %p689 = pneg %p469
        $region74: #{tpu_custom_call.1} parent=11 // pred_check_branch
          %691 = sbr.rel (%p689) target = $region76
        $region75: #{tpu_custom_call.1} parent=11 // pred_region
          _
        $region76: #{tpu_custom_call.1} parent=11 // pred_fallthru
          _
        // Predicated region
        $region77: #{tpu_custom_call.1} parent=11 // pred_check
          %p692 = pneg %p490
        $region78: #{tpu_custom_call.1} parent=11 // pred_check_branch
          %694 = sbr.rel (%p692) target = $region80
        $region79: #{tpu_custom_call.1} parent=11 // pred_region
          _
        $region80: #{tpu_custom_call.1} parent=11 // pred_fallthru
          _
        // Predicated region
        $region81: #{tpu_custom_call.1} parent=11 // pred_check
          %p695 = pneg %p511
        $region82: #{tpu_custom_call.1} parent=11 // pred_check_branch
          %697 = sbr.rel (%p695) target = $region84
        $region83: #{tpu_custom_call.1} parent=11 // pred_region
          _
        $region84: #{tpu_custom_call.1} parent=11 // pred_fallthru
          _
      $region12: #{tpu_custom_call.1} parent=5 // pred_fallthru
        _
      %p698 = scmp.lt.s32.totalorder %s39, 2
      // Predicated region
      $region85: #{tpu_custom_call.1} parent=5 // pred_check
        %p699 = pneg %p698
      $region86: #{tpu_custom_call.1} parent=5 // pred_check_branch
        %701 = sbr.rel (%p699) target = $region88
      $region87: #{tpu_custom_call.1} parent=5 // pred_region
        // Predicated region
        $region89: #{tpu_custom_call.1} parent=87 // pred_check
          %p702 = pneg %p73
        $region90: #{tpu_custom_call.1} parent=87 // pred_check_branch
          %704 = sbr.rel (%p702) target = $region92
        $region91: #{tpu_custom_call.1} parent=87 // pred_region
          %p705 = scmp.lt.s32.totalorder %s46, 1
          %s706 = scalar_select %p705, %s46, 1
          %p707 = scmp.lt.s32.totalorder %s47, 0
          %s708 = scalar_select %p707, %s47, 0
          %s709 = sadd.s32 %s708, %s706
          %s710 = smul.addr %s709, 8
          %s711 = scalar_lea.vmem %s0, %s710
        $region92: #{tpu_custom_call.1} parent=87 // pred_fallthru
          _
        // Predicated region
        $region93: #{tpu_custom_call.1} parent=87 // pred_check
          %p712 = pneg %p99
        $region94: #{tpu_custom_call.1} parent=87 // pred_check_branch
          %714 = sbr.rel (%p712) target = $region96
        $region95: #{tpu_custom_call.1} parent=87 // pred_region
          %p715 = scmp.lt.s32.totalorder %s46, 1
          %s716 = scalar_select %p715, %s46, 1
          %s717 = smul.addr %s716, 8
          %s718 = scalar_lea.vmem %s1, %s717
        $region96: #{tpu_custom_call.1} parent=87 // pred_fallthru
          _
        // Predicated region
        $region97: #{tpu_custom_call.1} parent=87 // pred_check
          %p719 = pneg %p127
        $region98: #{tpu_custom_call.1} parent=87 // pred_check_branch
          %721 = sbr.rel (%p719) target = $region100
        $region99: #{tpu_custom_call.1} parent=87 // pred_region
          %s722 = smul.u32 8, %s47
          %p723 = scmp.lt.s32.totalorder %s46, 1
          %s724 = scalar_select %p723, %s46, 1
          %p725 = scmp.lt.s32.totalorder %s722, 7
          %s726 = scalar_select %p725, %s722, 7
          %s727 = smul.addr %s724, 8
          %s728 = sadd.s32 %s726, %s727
          %s729 = smul.addr %s728, 4
          %s730 = scalar_lea.vmem %s2, %s729
          %s731 = smul.u32 8, %s47
        $region100: #{tpu_custom_call.1} parent=87 // pred_fallthru
          _
      $region88: #{tpu_custom_call.1} parent=5 // pred_fallthru
        _
      %p732 = scmp.le.s32.totalorder 1, %s39
      %p733 = scmp.lt.s32.totalorder %s39, 3
      %p734 = pnand %p732, %p733
      %p735 = pneg %p734
      // Predicated region
      $region101: #{tpu_custom_call.1} parent=5 // pred_check
        _
      $region102: #{tpu_custom_call.1} parent=5 // pred_check_branch
        %737 = sbr.rel (%p734) target = $region104
      $region103: #{tpu_custom_call.1} parent=5 // pred_region
        %s738 = ssub.s32 %s39, 1
        // Predicated region
        $region105: #{tpu_custom_call.1} parent=103 // pred_check
          %p739 = pneg %p196
        $region106: #{tpu_custom_call.1} parent=103 // pred_check_branch
          %741 = sbr.rel (%p739) target = $region108
        $region107: #{tpu_custom_call.1} parent=103 // pred_region
          %742 = dma.done [#allocation5], 256
        $region108: #{tpu_custom_call.1} parent=103 // pred_fallthru
          _
        // Predicated region
        $region109: #{tpu_custom_call.1} parent=103 // pred_check
          %p743 = pneg %p217
        $region110: #{tpu_custom_call.1} parent=103 // pred_check_branch
          %745 = sbr.rel (%p743) target = $region112
        $region111: #{tpu_custom_call.1} parent=103 // pred_region
          %746 = dma.done [#allocation8], 16
        $region112: #{tpu_custom_call.1} parent=103 // pred_fallthru
          _
        // Predicated region
        $region113: #{tpu_custom_call.1} parent=103 // pred_check
          %p747 = pneg %p238
        $region114: #{tpu_custom_call.1} parent=103 // pred_check_branch
          %749 = sbr.rel (%p747) target = $region116
        $region115: #{tpu_custom_call.1} parent=103 // pred_region
          %750 = dma.done [#allocation8], 256
        $region116: #{tpu_custom_call.1} parent=103 // pred_fallthru
          _
        // Predicated region
        $region117: #{tpu_custom_call.1} parent=103 // pred_check
          %p751 = pneg %p259
        $region118: #{tpu_custom_call.1} parent=103 // pred_check_branch
          %753 = sbr.rel (%p751) target = $region120
        $region119: #{tpu_custom_call.1} parent=103 // pred_region
          %754 = dma.done [#allocation11], 16
        $region120: #{tpu_custom_call.1} parent=103 // pred_fallthru
          _
        // Predicated region
        $region121: #{tpu_custom_call.1} parent=103 // pred_check
          %p755 = pneg %p301
        $region122: #{tpu_custom_call.1} parent=103 // pred_check_branch
          %757 = sbr.rel (%p755) target = $region124
        $region123: #{tpu_custom_call.1} parent=103 // pred_region
          %758 = dma.done [#allocation11], 64
        $region124: #{tpu_custom_call.1} parent=103 // pred_fallthru
          _
        // Predicated region
        $region125: #{tpu_custom_call.1} parent=103 // pred_check
          %p759 = pneg %p343
        $region126: #{tpu_custom_call.1} parent=103 // pred_check_branch
          %761 = sbr.rel (%p759) target = $region128
        $region127: #{tpu_custom_call.1} parent=103 // pred_region
          %762 = dma.done [#allocation14], 16
        $region128: #{tpu_custom_call.1} parent=103 // pred_fallthru
          _
        // Predicated region
        $region129: #{tpu_custom_call.1} parent=103 // pred_check
          %p763 = pneg %p364
        $region130: #{tpu_custom_call.1} parent=103 // pred_check_branch
          %765 = sbr.rel (%p763) target = $region132
        $region131: #{tpu_custom_call.1} parent=103 // pred_region
          %766 = dma.done [#allocation14], 16
        $region132: #{tpu_custom_call.1} parent=103 // pred_fallthru
          _
        %p767 = scmp.lt.s32.totalorder %s48, 1
        %s768 = scalar_select %p767, %s48, 1
        %p769 = scmp.lt.s32.totalorder %s49, 0
        %s770 = scalar_select %p769, %s49, 0
        %s771 = sadd.s32 %s770, %s768
        %s772 = smul.addr %s771, 8
        %s773 = scalar_lea.vmem %s0, %s772
        %p774 = pneg %p79
        %p775 = pneg %p76
        %p776 = scmp.lt.s32.totalorder %s48, 1
        %s777 = scalar_select %p776, %s48, 1
        %s778 = smul.addr %s777, 8
        %s779 = scalar_lea.vmem %s1, %s778
        %p780 = pneg %p105
        %p781 = pneg %p102
        %s782 = smul.u32 8, %s49
        %p783 = scmp.lt.s32.totalorder %s48, 1
        %s784 = scalar_select %p783, %s48, 1
        %p785 = scmp.lt.s32.totalorder %s782, 7
        %s786 = scalar_select %p785, %s782, 7
        %s787 = smul.addr %s784, 8
        %s788 = sadd.s32 %s786, %s787
        %s789 = smul.addr %s788, 4
        %s790 = scalar_lea.vmem %s2, %s789
        %p791 = pneg %p133
        %p792 = pneg %p130
        %p793 = pneg %p154
        %p794 = pneg %p151
        %p795 = pneg %p175
        %p796 = pneg %p172
        %p797 = pneg %p196
        %p798 = pneg %p193
        %p799 = pneg %p217
        %p800 = pneg %p214
        %p801 = pneg %p238
        %p802 = pneg %p235
        %p803 = pneg %p259
        %p804 = pneg %p256
        %p805 = pneg %p280
        %p806 = pneg %p277
        %p807 = pneg %p301
        %p808 = pneg %p298
        %p809 = pneg %p322
        %p810 = pneg %p319
        %p811 = pneg %p343
        %p812 = pneg %p340
        %p813 = pneg %p364
        %p814 = pneg %p361
        %p815 = pneg %p385
        %p816 = pneg %p382
        %p817 = pneg %p406
        %p818 = pneg %p403
        %p819 = pneg %p427
        %p820 = pneg %p424
        %p821 = pneg %p448
        %p822 = pneg %p445
        %p823 = pneg %p469
        %p824 = pneg %p466
        %p825 = pneg %p490
        %p826 = pneg %p487
        %p827 = pneg %p511
        %p828 = pneg %p508
        %p829 = pneg %p539
        %p830 = pneg %p536
        %s831 = sand.u32 %s526, 1
        %s832 = scalar_lea.sflag [#allocation6], %s831
        %s833 = sand.u32 %s526, 1
        %s834 = smul.addr %s833, 8
        %s835 = scalar_lea.vmem [#allocation16], %s834
        %p836 = pneg %p567
        %p837 = pneg %p564
        %s838 = sand.u32 %s554, 1
        %s839 = scalar_lea.sflag [#allocation18], %s838
        %s840 = sand.u32 %s554, 1
        %s841 = smul.addr %s840, 32
        %s842 = scalar_lea.vmem [#allocation17], %s841
        %p843 = scmp.lt.s32.totalorder %s48, 1
        %s844 = scalar_select %p843, %s48, 1
        %p845 = scmp.lt.s32.totalorder %s49, 0
        %s846 = scalar_select %p845, %s49, 0
        %s847 = sadd.s32 %s846, %s844
        %s848 = smul.addr %s847, 8
        %s849 = scalar_lea.vmem %s0, %s848
        %p850 = scmp.lt.s32.totalorder %s48, 1
        %s851 = scalar_select %p850, %s48, 1
        %s852 = smul.addr %s851, 8
        %s853 = scalar_lea.vmem %s1, %s852
        %s854 = smul.u32 8, %s49
        %p855 = scmp.lt.s32.totalorder %s48, 1
        %s856 = scalar_select %p855, %s48, 1
        %p857 = scmp.lt.s32.totalorder %s854, 7
        %s858 = scalar_select %p857, %s854, 7
        %s859 = smul.addr %s856, 8
        %s860 = sadd.s32 %s858, %s859
        %s861 = smul.addr %s860, 4
        %s862 = scalar_lea.vmem %s2, %s861
        %s863 = smul.u32 8, %s49
        %v865 = vld [vmem:[%s849] sm:$0xff]
        %p866 = scmp.eq.s32.totalorder %s49, 0
        // Predicated region
        $region133: #{tpu_custom_call.1} parent=103 // pred_check
          %p867 = pneg %p866
        $region134: #{tpu_custom_call.1} parent=103 // pred_check_branch
          %869 = sbr.rel (%p867) target = $region136
        $region135: #{tpu_custom_call.1} parent=103 // pred_region
          %v870 = vld [vmem:[%s853] sm:$0xff]
          %v871 = vpack.c.bf16 %v870, %v870
          %v872 = vld [vmem:[#allocation4] sm:$0xf]
          %v873 = vld [vmem:[#allocation4 + $0x4] sm:$0xf]
          %v874 = vld [vmem:[#allocation4 + $0x8] sm:$0xf]
          %v875 = vld [vmem:[#allocation4 + $0xc] sm:$0xf]
          %v876 = vld [vmem:[#allocation7] sm:$0x1]
          %v878 = vlaneseq
          %v879 = vshrl.u32 %v878, 7
          %v880 = vsub.s32 0, %v879
          %v881 = vrot.slane %v876, %v880
          %v887 = vunpack.c.l.b16 %v872
          %v888 = vunpack.c.l.b16 %v873
          %v889 = vunpack.c.l.b16 %v874
          %v890 = vunpack.c.l.b16 %v875
          %v891 = vpack.c.b16 %v888, %v887
          %v892 = vpack.c.b16 %v890, %v889
          %vm895 = vcmask 261120
          %v897 = vsel %vm895, %v871, 0
          %899 = vmatprep.subr.bf16.mxu0 0
          %900 = vmatpush1.bf16.msra.mxu0 %v891
          %901 = vmatprep.subr.bf16.mxu0 0
          %902 = vmatpush1.bf16.msra.mxu0 %v892
          %903 = vmatprep.subr.bf16.mxu0 0
          %904 = vmatpush1.bf16.msra.mxu0 0
          %905 = vmatprep.subr.bf16.mxu0 0
          %906 = vmatpush1.bf16.msra.mxu0 0
          %907 = vmatprep.subr.bf16.mxu0 0
          %908 = vmatpush1.bf16.msra.mxu0 0
          %909 = vmatprep.subr.bf16.mxu0 0
          %910 = vmatpush1.bf16.msra.mxu0 0
          %911 = vmatprep.subr.bf16.mxu0 0
          %912 = vmatpush1.bf16.msra.mxu0 0
          %913 = vmatprep.subr.bf16.mxu0 0
          %914 = vmatpush1.bf16.msra.mxu0 0
          %915 = vmatprep.subr.bf16.mxu0 0
          %916 = vmatpush1.bf16.msra.mxu0 0
          %917 = vmatprep.subr.bf16.mxu0 0
          %918 = vmatpush1.bf16.msra.mxu0 0
          %919 = vmatprep.subr.bf16.mxu0 0
          %920 = vmatpush1.bf16.msra.mxu0 0
          %921 = vmatprep.subr.bf16.mxu0 0
          %922 = vmatpush1.bf16.msra.mxu0 0
          %923 = vmatprep.subr.bf16.mxu0 0
          %924 = vmatpush1.bf16.msra.mxu0 0
          %925 = vmatprep.subr.bf16.mxu0 0
          %926 = vmatpush1.bf16.msra.mxu0 0
          %927 = vmatprep.subr.bf16.mxu0 0
          %928 = vmatpush1.bf16.msra.mxu0 0
          %929 = vmatprep.subr.bf16.mxu0 0
          %930 = vmatpush1.bf16.msra.mxu0 0
          %931 = vmatprep.mubr.bf16.mxu0 0
          %932 = vmatmul.mubr.bf16.gmra.mrb[0].mxu0 %v897
          %v933 = vpop.f32.mrb[0].mxu0
          %v934 = vadd.f32 %v881, %v933
          %v935 = vpop.f32.mrb[0].mxu0
          %v936 = vpop.f32.mrb[0].mxu0
          %v937 = vpop.f32.mrb[0].mxu0
          %938 = vdwg.mxu0
          %v939 = vld [vmem:[#allocation9] sm:$0xf]
          %v940 = vld [vmem:[#allocation9 + $0x4] sm:$0xf]
          %v941 = vld [vmem:[#allocation9 + $0x8] sm:$0xf]
          %v942 = vld [vmem:[#allocation9 + $0xc] sm:$0xf]
          %v943 = vld [vmem:[#allocation10] sm:$0x1]
          %v945 = vlaneseq
          %v946 = vshrl.u32 %v945, 7
          %v947 = vsub.s32 0, %v946
          %v948 = vrot.slane %v943, %v947
          %v954 = vunpack.c.l.b16 %v939
          %v955 = vunpack.c.l.b16 %v940
          %v956 = vunpack.c.l.b16 %v941
          %v957 = vunpack.c.l.b16 %v942
          %v958 = vpack.c.b16 %v955, %v954
          %v959 = vpack.c.b16 %v957, %v956
          %962 = vmatprep.subr.bf16.mxu0 0
          %963 = vmatpush1.bf16.msra.mxu0 %v958
          %964 = vmatprep.subr.bf16.mxu0 0
          %965 = vmatpush1.bf16.msra.mxu0 %v959
          %966 = vmatprep.subr.bf16.mxu0 0
          %967 = vmatpush1.bf16.msra.mxu0 0
          %968 = vmatprep.subr.bf16.mxu0 0
          %969 = vmatpush1.bf16.msra.mxu0 0
          %970 = vmatprep.subr.bf16.mxu0 0
          %971 = vmatpush1.bf16.msra.mxu0 0
          %972 = vmatprep.subr.bf16.mxu0 0
          %973 = vmatpush1.bf16.msra.mxu0 0
          %974 = vmatprep.subr.bf16.mxu0 0
          %975 = vmatpush1.bf16.msra.mxu0 0
          %976 = vmatprep.subr.bf16.mxu0 0
          %977 = vmatpush1.bf16.msra.mxu0 0
          %978 = vmatprep.subr.bf16.mxu0 0
          %979 = vmatpush1.bf16.msra.mxu0 0
          %980 = vmatprep.subr.bf16.mxu0 0
          %981 = vmatpush1.bf16.msra.mxu0 0
          %982 = vmatprep.subr.bf16.mxu0 0
          %983 = vmatpush1.bf16.msra.mxu0 0
          %984 = vmatprep.subr.bf16.mxu0 0
          %985 = vmatpush1.bf16.msra.mxu0 0
          %986 = vmatprep.subr.bf16.mxu0 0
          %987 = vmatpush1.bf16.msra.mxu0 0
          %988 = vmatprep.subr.bf16.mxu0 0
          %989 = vmatpush1.bf16.msra.mxu0 0
          %990 = vmatprep.subr.bf16.mxu0 0
          %991 = vmatpush1.bf16.msra.mxu0 0
          %992 = vmatprep.subr.bf16.mxu0 0
          %993 = vmatpush1.bf16.msra.mxu0 0
          %994 = vmatprep.mubr.bf16.mxu0 0
          %995 = vmatmul.mubr.bf16.gmra.mrb[0].mxu0 %v897
          %v996 = vpop.f32.mrb[0].mxu0
          %v997 = vadd.f32 %v948, %v996
          %v998 = vpop.f32.mrb[0].mxu0
          %v999 = vpop.f32.mrb[0].mxu0
          %v1000 = vpop.f32.mrb[0].mxu0
          %1001 = vdwg.mxu0
          %1003 = vrot.lane.b32.xlu0 %v934, 120
          %v1004 = vpop.permute.xlu0 %1003
          %1006 = vrot.lane.b32.xlu0 %v934, 112
          %v1007 = vpop.permute.xlu0 %1006
          %1009 = vrot.lane.b32.xlu0 %v934, 104
          %v1010 = vpop.permute.xlu0 %1009
          %v1012 = vpack.c.bf16 %v934, %v934
          %v1013 = vpack.c.bf16 %v1004, %v1004
          %v1014 = vpack.c.bf16 %v1007, %v1007
          %v1015 = vpack.c.bf16 %v1010, %v1010
          %vm1016 = vcmask 60416
          %1017 = vst.msk [vmem:[#allocation2] sm:$0xf] %vm1016, %v1012
          %1018 = vst.msk [vmem:[#allocation2 + $0x4] sm:$0xf] %vm1016, %v1013
          %1019 = vst.msk [vmem:[#allocation2 + $0x8] sm:$0xf] %vm1016, %v1014
          %1020 = vst.msk [vmem:[#allocation2 + $0xc] sm:$0xf] %vm1016, %v1015
          %1022 = vrot.lane.b32.xlu0 %v997, 120
          %v1023 = vpop.permute.xlu0 %1022
          %1025 = vrot.lane.b32.xlu0 %v997, 112
          %v1026 = vpop.permute.xlu0 %1025
          %1028 = vrot.lane.b32.xlu0 %v997, 104
          %v1029 = vpop.permute.xlu0 %1028
          %v1031 = vpack.c.bf16 %v997, %v997
          %v1032 = vpack.c.bf16 %v1023, %v1023
          %v1033 = vpack.c.bf16 %v1026, %v1026
          %v1034 = vpack.c.bf16 %v1029, %v1029
          %1035 = vst.msk [vmem:[#allocation3] sm:$0xf] %vm1016, %v1031
          %1036 = vst.msk [vmem:[#allocation3 + $0x4] sm:$0xf] %vm1016, %v1032
          %1037 = vst.msk [vmem:[#allocation3 + $0x8] sm:$0xf] %vm1016, %v1033
          %1038 = vst.msk [vmem:[#allocation3 + $0xc] sm:$0xf] %vm1016, %v1034
        $region136: #{tpu_custom_call.1} parent=103 // pred_fallthru
          _
        %v1039 = vpack.c.bf16 %v865, %v865
        %v1040 = vld [vmem:[%s3] sm:$0xf]
        %v1041 = vld [vmem:[%s3 + $0x4] sm:$0xf]
        %v1042 = vld [vmem:[%s3 + $0x8] sm:$0xf]
        %v1043 = vld [vmem:[%s3 + $0xc] sm:$0xf]
        %v1044 = vld [vmem:[%s4] sm:$0x1]
        %v1046 = vlaneseq
        %v1047 = vshrl.u32 %v1046, 7
        %v1048 = vsub.s32 0, %v1047
        %v1049 = vrot.slane %v1044, %v1048
        %v1055 = vunpack.c.l.b16 %v1040
        %v1056 = vunpack.c.l.b16 %v1041
        %v1057 = vunpack.c.l.b16 %v1042
        %v1058 = vunpack.c.l.b16 %v1043
        %v1059 = vpack.c.b16 %v1056, %v1055
        %v1060 = vpack.c.b16 %v1058, %v1057
        %vm1063 = vcmask 261120
        %v1065 = vsel %vm1063, %v1039, 0
        %1067 = vmatprep.subr.bf16.mxu0 0
        %1068 = vmatpush1.bf16.msra.mxu0 %v1059
        %1069 = vmatprep.subr.bf16.mxu0 0
        %1070 = vmatpush1.bf16.msra.mxu0 %v1060
        %1071 = vmatprep.subr.bf16.mxu0 0
        %1072 = vmatpush1.bf16.msra.mxu0 0
        %1073 = vmatprep.subr.bf16.mxu0 0
        %1074 = vmatpush1.bf16.msra.mxu0 0
        %1075 = vmatprep.subr.bf16.mxu0 0
        %1076 = vmatpush1.bf16.msra.mxu0 0
        %1077 = vmatprep.subr.bf16.mxu0 0
        %1078 = vmatpush1.bf16.msra.mxu0 0
        %1079 = vmatprep.subr.bf16.mxu0 0
        %1080 = vmatpush1.bf16.msra.mxu0 0
        %1081 = vmatprep.subr.bf16.mxu0 0
        %1082 = vmatpush1.bf16.msra.mxu0 0
        %1083 = vmatprep.subr.bf16.mxu0 0
        %1084 = vmatpush1.bf16.msra.mxu0 0
        %1085 = vmatprep.subr.bf16.mxu0 0
        %1086 = vmatpush1.bf16.msra.mxu0 0
        %1087 = vmatprep.subr.bf16.mxu0 0
        %1088 = vmatpush1.bf16.msra.mxu0 0
        %1089 = vmatprep.subr.bf16.mxu0 0
        %1090 = vmatpush1.bf16.msra.mxu0 0
        %1091 = vmatprep.subr.bf16.mxu0 0
        %1092 = vmatpush1.bf16.msra.mxu0 0
        %1093 = vmatprep.subr.bf16.mxu0 0
        %1094 = vmatpush1.bf16.msra.mxu0 0
        %1095 = vmatprep.subr.bf16.mxu0 0
        %1096 = vmatpush1.bf16.msra.mxu0 0
        %1097 = vmatprep.subr.bf16.mxu0 0
        %1098 = vmatpush1.bf16.msra.mxu0 0
        %1099 = vmatprep.mubr.bf16.mxu0 0
        %1100 = vmatmul.mubr.bf16.gmra.mrb[0].mxu0 %v1065
        %v1101 = vpop.f32.mrb[0].mxu0
        %v1102 = vadd.f32 %v1049, %v1101
        %v1103 = vpop.f32.mrb[0].mxu0
        %v1104 = vpop.f32.mrb[0].mxu0
        %v1105 = vpop.f32.mrb[0].mxu0
        %1106 = vdwg.mxu0
        %1108 = vrot.lane.b32.xlu0 %v1102, 120
        %v1109 = vpop.permute.xlu0 %1108
        %1111 = vrot.lane.b32.xlu0 %v1102, 112
        %v1112 = vpop.permute.xlu0 %1111
        %1114 = vrot.lane.b32.xlu0 %v1102, 104
        %v1115 = vpop.permute.xlu0 %1114
        %v1117 = vpack.c.bf16 %v1102, %v1102
        %v1118 = vpack.c.bf16 %v1109, %v1109
        %v1119 = vpack.c.bf16 %v1112, %v1112
        %v1120 = vpack.c.bf16 %v1115, %v1115
        %v1121 = vld [vmem:[#allocation2] sm:$0xf]
        %v1122 = vld [vmem:[#allocation2 + $0x4] sm:$0xf]
        %v1123 = vld [vmem:[#allocation2 + $0x8] sm:$0xf]
        %v1124 = vld [vmem:[#allocation2 + $0xc] sm:$0xf]
        %v1125 = vld [vmem:[%s9] sm:$0xf]
        %v1126 = vld [vmem:[%s9 + $0x4] sm:$0xf]
        %v1127 = vld [vmem:[%s9 + $0x8] sm:$0xf]
        %v1128 = vld [vmem:[%s9 + $0xc] sm:$0xf]
        %v1129 = vld [vmem:[%s9 + $0x10] sm:$0xf]
        %v1130 = vld [vmem:[%s9 + $0x14] sm:$0xf]
        %v1131 = vld [vmem:[%s9 + $0x18] sm:$0xf]
        %v1132 = vld [vmem:[%s9 + $0x1c] sm:$0xf]
        %v1133 = vld [vmem:[%s9 + $0x20] sm:$0xf]
        %v1134 = vld [vmem:[%s9 + $0x24] sm:$0xf]
        %v1135 = vld [vmem:[%s9 + $0x28] sm:$0xf]
        %v1136 = vld [vmem:[%s9 + $0x2c] sm:$0xf]
        %v1137 = vld [vmem:[%s9 + $0x30] sm:$0xf]
        %v1138 = vld [vmem:[%s9 + $0x34] sm:$0xf]
        %v1139 = vld [vmem:[%s9 + $0x38] sm:$0xf]
        %v1140 = vld [vmem:[%s9 + $0x3c] sm:$0xf]
        %v1145 = vunpack.c.l.b16 %v1125
        %v1146 = vunpack.c.l.b16 %v1126
        %v1147 = vunpack.c.l.b16 %v1127
        %v1148 = vunpack.c.l.b16 %v1128
        %v1149 = vpack.c.b16 %v1146, %v1145
        %v1150 = vpack.c.b16 %v1148, %v1147
        %vm1151 = vcmask 64512
        %v1153 = vsel %vm1151, %v1117, 0
        %v1156 = vsel %vm1151, %v1149, 0
        %v1159 = vsel %vm1151, %v1150, 0
        %1161 = vmatprep.subr.bf16.mxu0 0
        %1162 = vmatpush1.bf16.xpose.msra.mxu0 %v1156
        %1163 = vmatprep.subr.bf16.mxu0 0
        %1164 = vmatpush1.bf16.xpose.msra.mxu0 %v1159
        %1165 = vmatprep.subr.bf16.mxu0 0
        %1166 = vmatpush1.bf16.xpose.msra.mxu0 0
        %1167 = vmatprep.subr.bf16.mxu0 0
        %1168 = vmatpush1.bf16.xpose.msra.mxu0 0
        %1169 = vmatprep.subr.bf16.mxu0 0
        %1170 = vmatpush1.bf16.xpose.msra.mxu0 0
        %1171 = vmatprep.subr.bf16.mxu0 0
        %1172 = vmatpush1.bf16.xpose.msra.mxu0 0
        %1173 = vmatprep.subr.bf16.mxu0 0
        %1174 = vmatpush1.bf16.xpose.msra.mxu0 0
        %1175 = vmatprep.subr.bf16.mxu0 0
        %1176 = vmatpush1.bf16.xpose.msra.mxu0 0
        %1177 = vmatprep.subr.bf16.mxu0 0
        %1178 = vmatpush1.bf16.xpose.msra.mxu0 0
        %1179 = vmatprep.subr.bf16.mxu0 0
        %1180 = vmatpush1.bf16.xpose.msra.mxu0 0
        %1181 = vmatprep.subr.bf16.mxu0 0
        %1182 = vmatpush1.bf16.xpose.msra.mxu0 0
        %1183 = vmatprep.subr.bf16.mxu0 0
        %1184 = vmatpush1.bf16.xpose.msra.mxu0 0
        %1185 = vmatprep.subr.bf16.mxu0 0
        %1186 = vmatpush1.bf16.xpose.msra.mxu0 0
        %1187 = vmatprep.subr.bf16.mxu0 0
        %1188 = vmatpush1.bf16.xpose.msra.mxu0 0
        %1189 = vmatprep.subr.bf16.mxu0 0
        %1190 = vmatpush1.bf16.xpose.msra.mxu0 0
        %1191 = vmatprep.subr.bf16.mxu0 0
        %1192 = vmatpush1.bf16.xpose.msra.mxu0 0
        %1193 = vmatprep.mubr.bf16.mxu0 0
        %1194 = vmatmul.mubr.bf16.gmra.mrb[0].mxu0 %v1153
        %v1195 = vpop.f32.mrb[0].mxu0
        %v1196 = vadd.f32 0.0, %v1195
        %v1197 = vpop.f32.mrb[0].mxu0
        %v1198 = vpop.f32.mrb[0].mxu0
        %v1199 = vpop.f32.mrb[0].mxu0
        %1200 = vdwg.mxu0
        %v1205 = vunpack.c.l.b16 %v1129
        %v1206 = vunpack.c.l.b16 %v1130
        %v1207 = vunpack.c.l.b16 %v1131
        %v1208 = vunpack.c.l.b16 %v1132
        %v1209 = vpack.c.b16 %v1206, %v1205
        %v1210 = vpack.c.b16 %v1208, %v1207
        %v1212 = vsel %vm1151, %v1118, 0
        %v1215 = vsel %vm1151, %v1209, 0
        %v1218 = vsel %vm1151, %v1210, 0
        %1220 = vmatprep.subr.bf16.mxu0 0
        %1221 = vmatpush1.bf16.xpose.msra.mxu0 %v1215
        %1222 = vmatprep.subr.bf16.mxu0 0
        %1223 = vmatpush1.bf16.xpose.msra.mxu0 %v1218
        %1224 = vmatprep.subr.bf16.mxu0 0
        %1225 = vmatpush1.bf16.xpose.msra.mxu0 0
        %1226 = vmatprep.subr.bf16.mxu0 0
        %1227 = vmatpush1.bf16.xpose.msra.mxu0 0
        %1228 = vmatprep.subr.bf16.mxu0 0
        %1229 = vmatpush1.bf16.xpose.msra.mxu0 0
        %1230 = vmatprep.subr.bf16.mxu0 0
        %1231 = vmatpush1.bf16.xpose.msra.mxu0 0
        %1232 = vmatprep.subr.bf16.mxu0 0
        %1233 = vmatpush1.bf16.xpose.msra.mxu0 0
        %1234 = vmatprep.subr.bf16.mxu0 0
        %1235 = vmatpush1.bf16.xpose.msra.mxu0 0
        %1236 = vmatprep.subr.bf16.mxu0 0
        %1237 = vmatpush1.bf16.xpose.msra.mxu0 0
        %1238 = vmatprep.subr.bf16.mxu0 0
        %1239 = vmatpush1.bf16.xpose.msra.mxu0 0
        %1240 = vmatprep.subr.bf16.mxu0 0
        %1241 = vmatpush1.bf16.xpose.msra.mxu0 0
        %1242 = vmatprep.subr.bf16.mxu0 0
        %1243 = vmatpush1.bf16.xpose.msra.mxu0 0
        %1244 = vmatprep.subr.bf16.mxu0 0
        %1245 = vmatpush1.bf16.xpose.msra.mxu0 0
        %1246 = vmatprep.subr.bf16.mxu0 0
        %1247 = vmatpush1.bf16.xpose.msra.mxu0 0
        %1248 = vmatprep.subr.bf16.mxu0 0
        %1249 = vmatpush1.bf16.xpose.msra.mxu0 0
        %1250 = vmatprep.subr.bf16.mxu0 0
        %1251 = vmatpush1.bf16.xpose.msra.mxu0 0
        %1252 = vmatprep.mubr.bf16.mxu0 0
        %1253 = vmatmul.mubr.bf16.gmra.mrb[0].mxu0 %v1212
        %v1254 = vpop.f32.mrb[0].mxu0
        %v1255 = vadd.f32 0.0, %v1254
        %v1256 = vpop.f32.mrb[0].mxu0
        %v1257 = vpop.f32.mrb[0].mxu0
        %v1258 = vpop.f32.mrb[0].mxu0
        %1259 = vdwg.mxu0
        %v1264 = vunpack.c.l.b16 %v1133
        %v1265 = vunpack.c.l.b16 %v1134
        %v1266 = vunpack.c.l.b16 %v1135
        %v1267 = vunpack.c.l.b16 %v1136
        %v1268 = vpack.c.b16 %v1265, %v1264
        %v1269 = vpack.c.b16 %v1267, %v1266
        %v1271 = vsel %vm1151, %v1119, 0
        %v1274 = vsel %vm1151, %v1268, 0
        %v1277 = vsel %vm1151, %v1269, 0
        %1279 = vmatprep.subr.bf16.mxu0 0
        %1280 = vmatpush1.bf16.xpose.msra.mxu0 %v1274
        %1281 = vmatprep.subr.bf16.mxu0 0
        %1282 = vmatpush1.bf16.xpose.msra.mxu0 %v1277
        %1283 = vmatprep.subr.bf16.mxu0 0
        %1284 = vmatpush1.bf16.xpose.msra.mxu0 0
        %1285 = vmatprep.subr.bf16.mxu0 0
        %1286 = vmatpush1.bf16.xpose.msra.mxu0 0
        %1287 = vmatprep.subr.bf16.mxu0 0
        %1288 = vmatpush1.bf16.xpose.msra.mxu0 0
        %1289 = vmatprep.subr.bf16.mxu0 0
        %1290 = vmatpush1.bf16.xpose.msra.mxu0 0
        %1291 = vmatprep.subr.bf16.mxu0 0
        %1292 = vmatpush1.bf16.xpose.msra.mxu0 0
        %1293 = vmatprep.subr.bf16.mxu0 0
        %1294 = vmatpush1.bf16.xpose.msra.mxu0 0
        %1295 = vmatprep.subr.bf16.mxu0 0
        %1296 = vmatpush1.bf16.xpose.msra.mxu0 0
        %1297 = vmatprep.subr.bf16.mxu0 0
        %1298 = vmatpush1.bf16.xpose.msra.mxu0 0
        %1299 = vmatprep.subr.bf16.mxu0 0
        %1300 = vmatpush1.bf16.xpose.msra.mxu0 0
        %1301 = vmatprep.subr.bf16.mxu0 0
        %1302 = vmatpush1.bf16.xpose.msra.mxu0 0
        %1303 = vmatprep.subr.bf16.mxu0 0
        %1304 = vmatpush1.bf16.xpose.msra.mxu0 0
        %1305 = vmatprep.subr.bf16.mxu0 0
        %1306 = vmatpush1.bf16.xpose.msra.mxu0 0
        %1307 = vmatprep.subr.bf16.mxu0 0
        %1308 = vmatpush1.bf16.xpose.msra.mxu0 0
        %1309 = vmatprep.subr.bf16.mxu0 0
        %1310 = vmatpush1.bf16.xpose.msra.mxu0 0
        %1311 = vmatprep.mubr.bf16.mxu0 0
        %1312 = vmatmul.mubr.bf16.gmra.mrb[0].mxu0 %v1271
        %v1313 = vpop.f32.mrb[0].mxu0
        %v1314 = vadd.f32 0.0, %v1313
        %v1315 = vpop.f32.mrb[0].mxu0
        %v1316 = vpop.f32.mrb[0].mxu0
        %v1317 = vpop.f32.mrb[0].mxu0
        %1318 = vdwg.mxu0
        %v1323 = vunpack.c.l.b16 %v1137
        %v1324 = vunpack.c.l.b16 %v1138
        %v1325 = vunpack.c.l.b16 %v1139
        %v1326 = vunpack.c.l.b16 %v1140
        %v1327 = vpack.c.b16 %v1324, %v1323
        %v1328 = vpack.c.b16 %v1326, %v1325
        %v1330 = vsel %vm1151, %v1120, 0
        %v1333 = vsel %vm1151, %v1327, 0
        %v1336 = vsel %vm1151, %v1328, 0
        %1338 = vmatprep.subr.bf16.mxu0 0
        %1339 = vmatpush1.bf16.xpose.msra.mxu0 %v1333
        %1340 = vmatprep.subr.bf16.mxu0 0
        %1341 = vmatpush1.bf16.xpose.msra.mxu0 %v1336
        %1342 = vmatprep.subr.bf16.mxu0 0
        %1343 = vmatpush1.bf16.xpose.msra.mxu0 0
        %1344 = vmatprep.subr.bf16.mxu0 0
        %1345 = vmatpush1.bf16.xpose.msra.mxu0 0
        %1346 = vmatprep.subr.bf16.mxu0 0
        %1347 = vmatpush1.bf16.xpose.msra.mxu0 0
        %1348 = vmatprep.subr.bf16.mxu0 0
        %1349 = vmatpush1.bf16.xpose.msra.mxu0 0
        %1350 = vmatprep.subr.bf16.mxu0 0
        %1351 = vmatpush1.bf16.xpose.msra.mxu0 0
        %1352 = vmatprep.subr.bf16.mxu0 0
        %1353 = vmatpush1.bf16.xpose.msra.mxu0 0
        %1354 = vmatprep.subr.bf16.mxu0 0
        %1355 = vmatpush1.bf16.xpose.msra.mxu0 0
        %1356 = vmatprep.subr.bf16.mxu0 0
        %1357 = vmatpush1.bf16.xpose.msra.mxu0 0
        %1358 = vmatprep.subr.bf16.mxu0 0
        %1359 = vmatpush1.bf16.xpose.msra.mxu0 0
        %1360 = vmatprep.subr.bf16.mxu0 0
        %1361 = vmatpush1.bf16.xpose.msra.mxu0 0
        %1362 = vmatprep.subr.bf16.mxu0 0
        %1363 = vmatpush1.bf16.xpose.msra.mxu0 0
        %1364 = vmatprep.subr.bf16.mxu0 0
        %1365 = vmatpush1.bf16.xpose.msra.mxu0 0
        %1366 = vmatprep.subr.bf16.mxu0 0
        %1367 = vmatpush1.bf16.xpose.msra.mxu0 0
        %1368 = vmatprep.subr.bf16.mxu0 0
        %1369 = vmatpush1.bf16.xpose.msra.mxu0 0
        %1370 = vmatprep.mubr.bf16.mxu0 0
        %1371 = vmatmul.mubr.bf16.gmra.mrb[0].mxu0 %v1330
        %v1372 = vpop.f32.mrb[0].mxu0
        %v1373 = vadd.f32 0.0, %v1372
        %v1374 = vpop.f32.mrb[0].mxu0
        %v1375 = vpop.f32.mrb[0].mxu0
        %v1376 = vpop.f32.mrb[0].mxu0
        %1377 = vdwg.mxu0
        %v1378 = vpack.c.bf16 %v1196, %v1196
        %v1379 = vpack.c.bf16 %v1255, %v1255
        %v1380 = vpack.c.bf16 %v1314, %v1314
        %v1381 = vpack.c.bf16 %v1373, %v1373
        %v1382 = vld [vmem:[%s862] sm:$0xf]
        %v1383 = vld [vmem:[%s862 + $0x4] sm:$0xf]
        %v1384 = vld [vmem:[%s862 + $0x8] sm:$0xf]
        %v1385 = vld [vmem:[%s862 + $0xc] sm:$0xf]
        %v1386 = vld [vmem:[%s862 + $0x10] sm:$0xf]
        %v1387 = vld [vmem:[%s862 + $0x14] sm:$0xf]
        %v1388 = vld [vmem:[%s862 + $0x18] sm:$0xf]
        %v1389 = vld [vmem:[%s862 + $0x1c] sm:$0xf]
        %1390 = vxpose.xlu0.c.b16.start [1/8] %v1378, 128
        %1391 = vxpose.xlu0.c.b16.cont [2/8] 0, 128
        %1392 = vxpose.xlu0.c.b16.cont [3/8] 0, 128
        %1393 = vxpose.xlu0.c.b16.cont [4/8] 0, 128
        %1394 = vxpose.xlu0.c.b16.cont [5/8] 0, 128
        %1395 = vxpose.xlu0.c.b16.cont [6/8] 0, 128
        %1396 = vxpose.xlu0.c.b16.cont [7/8] 0, 128
        %1397 = vxpose.xlu0.c.b16.end [8/8] 0, 128
        %v1398 = vpop.trf.xlu0
        %v1399 = vpop.trf.xlu0
        %v1400 = vpop.trf.xlu0
        %v1401 = vpop.trf.xlu0
        %v1402 = vpop.trf.xlu0
        %v1403 = vpop.trf.xlu0
        %v1404 = vpop.trf.xlu0
        %v1405 = vpop.trf.xlu0
        %1406 = vxpose.xlu0.c.b16.start [1/8] %v1379, 128
        %1407 = vxpose.xlu0.c.b16.cont [2/8] 0, 128
        %1408 = vxpose.xlu0.c.b16.cont [3/8] 0, 128
        %1409 = vxpose.xlu0.c.b16.cont [4/8] 0, 128
        %1410 = vxpose.xlu0.c.b16.cont [5/8] 0, 128
        %1411 = vxpose.xlu0.c.b16.cont [6/8] 0, 128
        %1412 = vxpose.xlu0.c.b16.cont [7/8] 0, 128
        %1413 = vxpose.xlu0.c.b16.end [8/8] 0, 128
        %v1414 = vpop.trf.xlu0
        %v1415 = vpop.trf.xlu0
        %v1416 = vpop.trf.xlu0
        %v1417 = vpop.trf.xlu0
        %v1418 = vpop.trf.xlu0
        %v1419 = vpop.trf.xlu0
        %v1420 = vpop.trf.xlu0
        %v1421 = vpop.trf.xlu0
        %1422 = vxpose.xlu0.c.b16.start [1/8] %v1380, 128
        %1423 = vxpose.xlu0.c.b16.cont [2/8] 0, 128
        %1424 = vxpose.xlu0.c.b16.cont [3/8] 0, 128
        %1425 = vxpose.xlu0.c.b16.cont [4/8] 0, 128
        %1426 = vxpose.xlu0.c.b16.cont [5/8] 0, 128
        %1427 = vxpose.xlu0.c.b16.cont [6/8] 0, 128
        %1428 = vxpose.xlu0.c.b16.cont [7/8] 0, 128
        %1429 = vxpose.xlu0.c.b16.end [8/8] 0, 128
        %v1430 = vpop.trf.xlu0
        %v1431 = vpop.trf.xlu0
        %v1432 = vpop.trf.xlu0
        %v1433 = vpop.trf.xlu0
        %v1434 = vpop.trf.xlu0
        %v1435 = vpop.trf.xlu0
        %v1436 = vpop.trf.xlu0
        %v1437 = vpop.trf.xlu0
        %1438 = vxpose.xlu0.c.b16.start [1/8] %v1381, 128
        %1439 = vxpose.xlu0.c.b16.cont [2/8] 0, 128
        %1440 = vxpose.xlu0.c.b16.cont [3/8] 0, 128
        %1441 = vxpose.xlu0.c.b16.cont [4/8] 0, 128
        %1442 = vxpose.xlu0.c.b16.cont [5/8] 0, 128
        %1443 = vxpose.xlu0.c.b16.cont [6/8] 0, 128
        %1444 = vxpose.xlu0.c.b16.cont [7/8] 0, 128
        %1445 = vxpose.xlu0.c.b16.end [8/8] 0, 128
        %v1446 = vpop.trf.xlu0
        %v1447 = vpop.trf.xlu0
        %v1448 = vpop.trf.xlu0
        %v1449 = vpop.trf.xlu0
        %v1450 = vpop.trf.xlu0
        %v1451 = vpop.trf.xlu0
        %v1452 = vpop.trf.xlu0
        %v1453 = vpop.trf.xlu0
        %v1456 = vpack.i.b16 %v1414, %v1398
        %v1458 = vshrl.u32 %v1398, 16
        %v1459 = vshrl.u32 %v1414, 16
        %v1460 = vpack.i.b16 %v1459, %v1458
        %v1464 = vpack.i.b16 %v1446, %v1430
        %v1466 = vshrl.u32 %v1430, 16
        %v1467 = vshrl.u32 %v1446, 16
        %v1468 = vpack.i.b16 %v1467, %v1466
        %v1471 = vpack.i.b16 0, 0
        %v1473 = vshrl.u32 0, 16
        %v1474 = vpack.i.b16 %v1473, %v1473
        %v1478 = vpack.i.b16 %v1415, %v1399
        %v1480 = vshrl.u32 %v1399, 16
        %v1481 = vshrl.u32 %v1415, 16
        %v1482 = vpack.i.b16 %v1481, %v1480
        %v1486 = vpack.i.b16 %v1447, %v1431
        %v1488 = vshrl.u32 %v1431, 16
        %v1489 = vshrl.u32 %v1447, 16
        %v1490 = vpack.i.b16 %v1489, %v1488
        %v1492 = vcombine.high %v1456, %v1471
        %v1494 = vunpack.c.l.s4 1983009808
        %v1495 = vunpack.c.0.s8 %v1494
        %v1496 = vlaneseq
        %v1497 = vshrl.u32 %v1496, 7
        %v1498 = vsub.s32 %v1495, %v1497
        %v1499 = vrot.slane %v1456, %v1498
        %v1501 = vunpack.c.l.s4 1983009808
        %v1502 = vunpack.c.0.s8 %v1501
        %v1503 = vlaneseq
        %v1504 = vshrl.u32 %v1503, 7
        %v1505 = vsub.s32 %v1502, %v1504
        %v1506 = vrot.slane %v1492, %v1505
        %v1507 = vcombine.high %v1464, %v1471
        %v1509 = vunpack.c.l.s4 1983009808
        %v1510 = vunpack.c.0.s8 %v1509
        %v1511 = vlaneseq
        %v1512 = vshrl.u32 %v1511, 7
        %v1513 = vsub.s32 %v1510, %v1512
        %v1514 = vrot.slane %v1464, %v1513
        %v1516 = vunpack.c.l.s4 1983009808
        %v1517 = vunpack.c.0.s8 %v1516
        %v1518 = vlaneseq
        %v1519 = vshrl.u32 %v1518, 7
        %v1520 = vsub.s32 %v1517, %v1519
        %v1521 = vrot.slane %v1507, %v1520
        %v1522 = vcombine.low %v1499, %v1514
        %v1523 = vcombine.high %v1499, %v1514
        %v1525 = vunpack.c.l.s4 1934713408
        %v1526 = vunpack.c.0.s8 %v1525
        %v1527 = vlaneseq
        %v1528 = vshrl.u32 %v1527, 7
        %v1529 = vsub.s32 %v1526, %v1528
        %v1530 = vrot.slane %v1522, %v1529
        %v1532 = vunpack.c.l.s4 1934713408
        %v1533 = vunpack.c.0.s8 %v1532
        %v1534 = vlaneseq
        %v1535 = vshrl.u32 %v1534, 7
        %v1536 = vsub.s32 %v1533, %v1535
        %v1537 = vrot.slane %v1523, %v1536
        %v1538 = vcombine.low %v1506, %v1521
        %v1539 = vcombine.high %v1506, %v1521
        %v1541 = vunpack.c.l.s4 1934713408
        %v1542 = vunpack.c.0.s8 %v1541
        %v1543 = vlaneseq
        %v1544 = vshrl.u32 %v1543, 7
        %v1545 = vsub.s32 %v1542, %v1544
        %v1546 = vrot.slane %v1538, %v1545
        %v1548 = vunpack.c.l.s4 1934713408
        %v1549 = vunpack.c.0.s8 %v1548
        %v1550 = vlaneseq
        %v1551 = vshrl.u32 %v1550, 7
        %v1552 = vsub.s32 %v1549, %v1551
        %v1553 = vrot.slane %v1539, %v1552
        %v1554 = vcombine.high %v1530, 0
        %v1555 = vcombine.high %v1537, 0
        %v1556 = vcombine.high %v1546, 0
        %v1557 = vcombine.high %v1553, 0
        %v1558 = vcombine.high %v1460, %v1474
        %v1560 = vunpack.c.l.s4 1983009808
        %v1561 = vunpack.c.0.s8 %v1560
        %v1562 = vlaneseq
        %v1563 = vshrl.u32 %v1562, 7
        %v1564 = vsub.s32 %v1561, %v1563
        %v1565 = vrot.slane %v1460, %v1564
        %v1567 = vunpack.c.l.s4 1983009808
        %v1568 = vunpack.c.0.s8 %v1567
        %v1569 = vlaneseq
        %v1570 = vshrl.u32 %v1569, 7
        %v1571 = vsub.s32 %v1568, %v1570
        %v1572 = vrot.slane %v1558, %v1571
        %v1573 = vcombine.high %v1468, %v1474
        %v1575 = vunpack.c.l.s4 1983009808
        %v1576 = vunpack.c.0.s8 %v1575
        %v1577 = vlaneseq
        %v1578 = vshrl.u32 %v1577, 7
        %v1579 = vsub.s32 %v1576, %v1578
        %v1580 = vrot.slane %v1468, %v1579
        %v1582 = vunpack.c.l.s4 1983009808
        %v1583 = vunpack.c.0.s8 %v1582
        %v1584 = vlaneseq
        %v1585 = vshrl.u32 %v1584, 7
        %v1586 = vsub.s32 %v1583, %v1585
        %v1587 = vrot.slane %v1573, %v1586
        %v1588 = vcombine.low %v1565, %v1580
        %v1589 = vcombine.high %v1565, %v1580
        %v1591 = vunpack.c.l.s4 1934713408
        %v1592 = vunpack.c.0.s8 %v1591
        %v1593 = vlaneseq
        %v1594 = vshrl.u32 %v1593, 7
        %v1595 = vsub.s32 %v1592, %v1594
        %v1596 = vrot.slane %v1588, %v1595
        %v1598 = vunpack.c.l.s4 1934713408
        %v1599 = vunpack.c.0.s8 %v1598
        %v1600 = vlaneseq
        %v1601 = vshrl.u32 %v1600, 7
        %v1602 = vsub.s32 %v1599, %v1601
        %v1603 = vrot.slane %v1589, %v1602
        %v1604 = vcombine.low %v1572, %v1587
        %v1605 = vcombine.high %v1572, %v1587
        %v1607 = vunpack.c.l.s4 1934713408
        %v1608 = vunpack.c.0.s8 %v1607
        %v1609 = vlaneseq
        %v1610 = vshrl.u32 %v1609, 7
        %v1611 = vsub.s32 %v1608, %v1610
        %v1612 = vrot.slane %v1604, %v1611
        %v1614 = vunpack.c.l.s4 1934713408
        %v1615 = vunpack.c.0.s8 %v1614
        %v1616 = vlaneseq
        %v1617 = vshrl.u32 %v1616, 7
        %v1618 = vsub.s32 %v1615, %v1617
        %v1619 = vrot.slane %v1605, %v1618
        %v1620 = vcombine.high %v1596, 0
        %v1621 = vcombine.high %v1603, 0
        %v1622 = vcombine.high %v1612, 0
        %v1623 = vcombine.high %v1619, 0
        %v1624 = vcombine.high %v1478, %v1471
        %v1626 = vunpack.c.l.s4 1983009808
        %v1627 = vunpack.c.0.s8 %v1626
        %v1628 = vlaneseq
        %v1629 = vshrl.u32 %v1628, 7
        %v1630 = vsub.s32 %v1627, %v1629
        %v1631 = vrot.slane %v1478, %v1630
        %v1633 = vunpack.c.l.s4 1983009808
        %v1634 = vunpack.c.0.s8 %v1633
        %v1635 = vlaneseq
        %v1636 = vshrl.u32 %v1635, 7
        %v1637 = vsub.s32 %v1634, %v1636
        %v1638 = vrot.slane %v1624, %v1637
        %v1639 = vcombine.high %v1486, %v1471
        %v1641 = vunpack.c.l.s4 1983009808
        %v1642 = vunpack.c.0.s8 %v1641
        %v1643 = vlaneseq
        %v1644 = vshrl.u32 %v1643, 7
        %v1645 = vsub.s32 %v1642, %v1644
        %v1646 = vrot.slane %v1486, %v1645
        %v1648 = vunpack.c.l.s4 1983009808
        %v1649 = vunpack.c.0.s8 %v1648
        %v1650 = vlaneseq
        %v1651 = vshrl.u32 %v1650, 7
        %v1652 = vsub.s32 %v1649, %v1651
        %v1653 = vrot.slane %v1639, %v1652
        %v1654 = vcombine.low %v1631, %v1646
        %v1655 = vcombine.high %v1631, %v1646
        %v1657 = vunpack.c.l.s4 1934713408
        %v1658 = vunpack.c.0.s8 %v1657
        %v1659 = vlaneseq
        %v1660 = vshrl.u32 %v1659, 7
        %v1661 = vsub.s32 %v1658, %v1660
        %v1662 = vrot.slane %v1654, %v1661
        %v1664 = vunpack.c.l.s4 1934713408
        %v1665 = vunpack.c.0.s8 %v1664
        %v1666 = vlaneseq
        %v1667 = vshrl.u32 %v1666, 7
        %v1668 = vsub.s32 %v1665, %v1667
        %v1669 = vrot.slane %v1655, %v1668
        %v1670 = vcombine.low %v1638, %v1653
        %v1671 = vcombine.high %v1638, %v1653
        %v1673 = vunpack.c.l.s4 1934713408
        %v1674 = vunpack.c.0.s8 %v1673
        %v1675 = vlaneseq
        %v1676 = vshrl.u32 %v1675, 7
        %v1677 = vsub.s32 %v1674, %v1676
        %v1678 = vrot.slane %v1670, %v1677
        %v1680 = vunpack.c.l.s4 1934713408
        %v1681 = vunpack.c.0.s8 %v1680
        %v1682 = vlaneseq
        %v1683 = vshrl.u32 %v1682, 7
        %v1684 = vsub.s32 %v1681, %v1683
        %v1685 = vrot.slane %v1671, %v1684
        %v1686 = vcombine.high %v1662, 0
        %v1687 = vcombine.high %v1669, 0
        %v1688 = vcombine.high %v1678, 0
        %v1689 = vcombine.high %v1685, 0
        %v1690 = vcombine.high %v1482, %v1474
        %v1692 = vunpack.c.l.s4 1983009808
        %v1693 = vunpack.c.0.s8 %v1692
        %v1694 = vlaneseq
        %v1695 = vshrl.u32 %v1694, 7
        %v1696 = vsub.s32 %v1693, %v1695
        %v1697 = vrot.slane %v1482, %v1696
        %v1699 = vunpack.c.l.s4 1983009808
        %v1700 = vunpack.c.0.s8 %v1699
        %v1701 = vlaneseq
        %v1702 = vshrl.u32 %v1701, 7
        %v1703 = vsub.s32 %v1700, %v1702
        %v1704 = vrot.slane %v1690, %v1703
        %v1705 = vcombine.high %v1490, %v1474
        %v1707 = vunpack.c.l.s4 1983009808
        %v1708 = vunpack.c.0.s8 %v1707
        %v1709 = vlaneseq
        %v1710 = vshrl.u32 %v1709, 7
        %v1711 = vsub.s32 %v1708, %v1710
        %v1712 = vrot.slane %v1490, %v1711
        %v1714 = vunpack.c.l.s4 1983009808
        %v1715 = vunpack.c.0.s8 %v1714
        %v1716 = vlaneseq
        %v1717 = vshrl.u32 %v1716, 7
        %v1718 = vsub.s32 %v1715, %v1717
        %v1719 = vrot.slane %v1705, %v1718
        %v1720 = vcombine.low %v1697, %v1712
        %v1721 = vcombine.high %v1697, %v1712
        %v1723 = vunpack.c.l.s4 1934713408
        %v1724 = vunpack.c.0.s8 %v1723
        %v1725 = vlaneseq
        %v1726 = vshrl.u32 %v1725, 7
        %v1727 = vsub.s32 %v1724, %v1726
        %v1728 = vrot.slane %v1720, %v1727
        %v1730 = vunpack.c.l.s4 1934713408
        %v1731 = vunpack.c.0.s8 %v1730
        %v1732 = vlaneseq
        %v1733 = vshrl.u32 %v1732, 7
        %v1734 = vsub.s32 %v1731, %v1733
        %v1735 = vrot.slane %v1721, %v1734
        %v1736 = vcombine.low %v1704, %v1719
        %v1737 = vcombine.high %v1704, %v1719
        %v1739 = vunpack.c.l.s4 1934713408
        %v1740 = vunpack.c.0.s8 %v1739
        %v1741 = vlaneseq
        %v1742 = vshrl.u32 %v1741, 7
        %v1743 = vsub.s32 %v1740, %v1742
        %v1744 = vrot.slane %v1736, %v1743
        %v1746 = vunpack.c.l.s4 1934713408
        %v1747 = vunpack.c.0.s8 %v1746
        %v1748 = vlaneseq
        %v1749 = vshrl.u32 %v1748, 7
        %v1750 = vsub.s32 %v1747, %v1749
        %v1751 = vrot.slane %v1737, %v1750
        %v1752 = vcombine.high %v1728, 0
        %v1753 = vcombine.high %v1735, 0
        %v1754 = vcombine.high %v1744, 0
        %v1755 = vcombine.high %v1751, 0
        %1756 = vxpose.xlu0.c.b16.start [1/8] %v1530, 128
        %1757 = vxpose.xlu0.c.b16.cont [2/8] 0, 128
        %1758 = vxpose.xlu0.c.b16.cont [3/8] 0, 128
        %1759 = vxpose.xlu0.c.b16.cont [4/8] 0, 128
        %1760 = vxpose.xlu0.c.b16.cont [5/8] 0, 128
        %1761 = vxpose.xlu0.c.b16.cont [6/8] 0, 128
        %1762 = vxpose.xlu0.c.b16.cont [7/8] 0, 128
        %1763 = vxpose.xlu0.c.b16.end [8/8] 0, 128
        %v1764 = vpop.trf.xlu0
        %v1765 = vpop.trf.xlu0
        %v1766 = vpop.trf.xlu0
        %v1767 = vpop.trf.xlu0
        %v1768 = vpop.trf.xlu0
        %v1769 = vpop.trf.xlu0
        %v1770 = vpop.trf.xlu0
        %v1771 = vpop.trf.xlu0
        %1772 = vxpose.xlu0.c.b16.start [1/8] %v1596, 128
        %1773 = vxpose.xlu0.c.b16.cont [2/8] 0, 128
        %1774 = vxpose.xlu0.c.b16.cont [3/8] 0, 128
        %1775 = vxpose.xlu0.c.b16.cont [4/8] 0, 128
        %1776 = vxpose.xlu0.c.b16.cont [5/8] 0, 128
        %1777 = vxpose.xlu0.c.b16.cont [6/8] 0, 128
        %1778 = vxpose.xlu0.c.b16.cont [7/8] 0, 128
        %1779 = vxpose.xlu0.c.b16.end [8/8] 0, 128
        %v1780 = vpop.trf.xlu0
        %v1781 = vpop.trf.xlu0
        %v1782 = vpop.trf.xlu0
        %v1783 = vpop.trf.xlu0
        %v1784 = vpop.trf.xlu0
        %v1785 = vpop.trf.xlu0
        %v1786 = vpop.trf.xlu0
        %v1787 = vpop.trf.xlu0
        %1788 = vxpose.xlu0.c.b16.start [1/8] %v1554, 128
        %1789 = vxpose.xlu0.c.b16.cont [2/8] 0, 128
        %1790 = vxpose.xlu0.c.b16.cont [3/8] 0, 128
        %1791 = vxpose.xlu0.c.b16.cont [4/8] 0, 128
        %1792 = vxpose.xlu0.c.b16.cont [5/8] 0, 128
        %1793 = vxpose.xlu0.c.b16.cont [6/8] 0, 128
        %1794 = vxpose.xlu0.c.b16.cont [7/8] 0, 128
        %1795 = vxpose.xlu0.c.b16.end [8/8] 0, 128
        %v1796 = vpop.trf.xlu0
        %v1797 = vpop.trf.xlu0
        %v1798 = vpop.trf.xlu0
        %v1799 = vpop.trf.xlu0
        %v1800 = vpop.trf.xlu0
        %v1801 = vpop.trf.xlu0
        %v1802 = vpop.trf.xlu0
        %v1803 = vpop.trf.xlu0
        %1804 = vxpose.xlu0.c.b16.start [1/8] %v1620, 128
        %1805 = vxpose.xlu0.c.b16.cont [2/8] 0, 128
        %1806 = vxpose.xlu0.c.b16.cont [3/8] 0, 128
        %1807 = vxpose.xlu0.c.b16.cont [4/8] 0, 128
        %1808 = vxpose.xlu0.c.b16.cont [5/8] 0, 128
        %1809 = vxpose.xlu0.c.b16.cont [6/8] 0, 128
        %1810 = vxpose.xlu0.c.b16.cont [7/8] 0, 128
        %1811 = vxpose.xlu0.c.b16.end [8/8] 0, 128
        %v1812 = vpop.trf.xlu0
        %v1813 = vpop.trf.xlu0
        %v1814 = vpop.trf.xlu0
        %v1815 = vpop.trf.xlu0
        %v1816 = vpop.trf.xlu0
        %v1817 = vpop.trf.xlu0
        %v1818 = vpop.trf.xlu0
        %v1819 = vpop.trf.xlu0
        %1820 = vxpose.xlu0.c.b16.start [1/8] %v1537, 128
        %1821 = vxpose.xlu0.c.b16.cont [2/8] 0, 128
        %1822 = vxpose.xlu0.c.b16.cont [3/8] 0, 128
        %1823 = vxpose.xlu0.c.b16.cont [4/8] 0, 128
        %1824 = vxpose.xlu0.c.b16.cont [5/8] 0, 128
        %1825 = vxpose.xlu0.c.b16.cont [6/8] 0, 128
        %1826 = vxpose.xlu0.c.b16.cont [7/8] 0, 128
        %1827 = vxpose.xlu0.c.b16.end [8/8] 0, 128
        %v1828 = vpop.trf.xlu0
        %v1829 = vpop.trf.xlu0
        %v1830 = vpop.trf.xlu0
        %v1831 = vpop.trf.xlu0
        %v1832 = vpop.trf.xlu0
        %v1833 = vpop.trf.xlu0
        %v1834 = vpop.trf.xlu0
        %v1835 = vpop.trf.xlu0
        %1836 = vxpose.xlu0.c.b16.start [1/8] %v1603, 128
        %1837 = vxpose.xlu0.c.b16.cont [2/8] 0, 128
        %1838 = vxpose.xlu0.c.b16.cont [3/8] 0, 128
        %1839 = vxpose.xlu0.c.b16.cont [4/8] 0, 128
        %1840 = vxpose.xlu0.c.b16.cont [5/8] 0, 128
        %1841 = vxpose.xlu0.c.b16.cont [6/8] 0, 128
        %1842 = vxpose.xlu0.c.b16.cont [7/8] 0, 128
        %1843 = vxpose.xlu0.c.b16.end [8/8] 0, 128
        %v1844 = vpop.trf.xlu0
        %v1845 = vpop.trf.xlu0
        %v1846 = vpop.trf.xlu0
        %v1847 = vpop.trf.xlu0
        %v1848 = vpop.trf.xlu0
        %v1849 = vpop.trf.xlu0
        %v1850 = vpop.trf.xlu0
        %v1851 = vpop.trf.xlu0
        %1852 = vxpose.xlu0.c.b16.start [1/8] %v1555, 128
        %1853 = vxpose.xlu0.c.b16.cont [2/8] 0, 128
        %1854 = vxpose.xlu0.c.b16.cont [3/8] 0, 128
        %1855 = vxpose.xlu0.c.b16.cont [4/8] 0, 128
        %1856 = vxpose.xlu0.c.b16.cont [5/8] 0, 128
        %1857 = vxpose.xlu0.c.b16.cont [6/8] 0, 128
        %1858 = vxpose.xlu0.c.b16.cont [7/8] 0, 128
        %1859 = vxpose.xlu0.c.b16.end [8/8] 0, 128
        %v1860 = vpop.trf.xlu0
        %v1861 = vpop.trf.xlu0
        %v1862 = vpop.trf.xlu0
        %v1863 = vpop.trf.xlu0
        %v1864 = vpop.trf.xlu0
        %v1865 = vpop.trf.xlu0
        %v1866 = vpop.trf.xlu0
        %v1867 = vpop.trf.xlu0
        %1868 = vxpose.xlu0.c.b16.start [1/8] %v1621, 128
        %1869 = vxpose.xlu0.c.b16.cont [2/8] 0, 128
        %1870 = vxpose.xlu0.c.b16.cont [3/8] 0, 128
        %1871 = vxpose.xlu0.c.b16.cont [4/8] 0, 128
        %1872 = vxpose.xlu0.c.b16.cont [5/8] 0, 128
        %1873 = vxpose.xlu0.c.b16.cont [6/8] 0, 128
        %1874 = vxpose.xlu0.c.b16.cont [7/8] 0, 128
        %1875 = vxpose.xlu0.c.b16.end [8/8] 0, 128
        %v1876 = vpop.trf.xlu0
        %v1877 = vpop.trf.xlu0
        %v1878 = vpop.trf.xlu0
        %v1879 = vpop.trf.xlu0
        %v1880 = vpop.trf.xlu0
        %v1881 = vpop.trf.xlu0
        %v1882 = vpop.trf.xlu0
        %v1883 = vpop.trf.xlu0
        %1884 = vxpose.xlu0.c.b16.start [1/8] %v1546, 128
        %1885 = vxpose.xlu0.c.b16.cont [2/8] 0, 128
        %1886 = vxpose.xlu0.c.b16.cont [3/8] 0, 128
        %1887 = vxpose.xlu0.c.b16.cont [4/8] 0, 128
        %1888 = vxpose.xlu0.c.b16.cont [5/8] 0, 128
        %1889 = vxpose.xlu0.c.b16.cont [6/8] 0, 128
        %1890 = vxpose.xlu0.c.b16.cont [7/8] 0, 128
        %1891 = vxpose.xlu0.c.b16.end [8/8] 0, 128
        %v1892 = vpop.trf.xlu0
        %v1893 = vpop.trf.xlu0
        %v1894 = vpop.trf.xlu0
        %v1895 = vpop.trf.xlu0
        %v1896 = vpop.trf.xlu0
        %v1897 = vpop.trf.xlu0
        %v1898 = vpop.trf.xlu0
        %v1899 = vpop.trf.xlu0
        %1900 = vxpose.xlu0.c.b16.start [1/8] %v1612, 128
        %1901 = vxpose.xlu0.c.b16.cont [2/8] 0, 128
        %1902 = vxpose.xlu0.c.b16.cont [3/8] 0, 128
        %1903 = vxpose.xlu0.c.b16.cont [4/8] 0, 128
        %1904 = vxpose.xlu0.c.b16.cont [5/8] 0, 128
        %1905 = vxpose.xlu0.c.b16.cont [6/8] 0, 128
        %1906 = vxpose.xlu0.c.b16.cont [7/8] 0, 128
        %1907 = vxpose.xlu0.c.b16.end [8/8] 0, 128
        %v1908 = vpop.trf.xlu0
        %v1909 = vpop.trf.xlu0
        %v1910 = vpop.trf.xlu0
        %v1911 = vpop.trf.xlu0
        %v1912 = vpop.trf.xlu0
        %v1913 = vpop.trf.xlu0
        %v1914 = vpop.trf.xlu0
        %v1915 = vpop.trf.xlu0
        %1916 = vxpose.xlu0.c.b16.start [1/8] %v1556, 128
        %1917 = vxpose.xlu0.c.b16.cont [2/8] 0, 128
        %1918 = vxpose.xlu0.c.b16.cont [3/8] 0, 128
        %1919 = vxpose.xlu0.c.b16.cont [4/8] 0, 128
        %1920 = vxpose.xlu0.c.b16.cont [5/8] 0, 128
        %1921 = vxpose.xlu0.c.b16.cont [6/8] 0, 128
        %1922 = vxpose.xlu0.c.b16.cont [7/8] 0, 128
        %1923 = vxpose.xlu0.c.b16.end [8/8] 0, 128
        %v1924 = vpop.trf.xlu0
        %v1925 = vpop.trf.xlu0
        %v1926 = vpop.trf.xlu0
        %v1927 = vpop.trf.xlu0
        %v1928 = vpop.trf.xlu0
        %v1929 = vpop.trf.xlu0
        %v1930 = vpop.trf.xlu0
        %v1931 = vpop.trf.xlu0
        %1932 = vxpose.xlu0.c.b16.start [1/8] %v1622, 128
        %1933 = vxpose.xlu0.c.b16.cont [2/8] 0, 128
        %1934 = vxpose.xlu0.c.b16.cont [3/8] 0, 128
        %1935 = vxpose.xlu0.c.b16.cont [4/8] 0, 128
        %1936 = vxpose.xlu0.c.b16.cont [5/8] 0, 128
        %1937 = vxpose.xlu0.c.b16.cont [6/8] 0, 128
        %1938 = vxpose.xlu0.c.b16.cont [7/8] 0, 128
        %1939 = vxpose.xlu0.c.b16.end [8/8] 0, 128
        %v1940 = vpop.trf.xlu0
        %v1941 = vpop.trf.xlu0
        %v1942 = vpop.trf.xlu0
        %v1943 = vpop.trf.xlu0
        %v1944 = vpop.trf.xlu0
        %v1945 = vpop.trf.xlu0
        %v1946 = vpop.trf.xlu0
        %v1947 = vpop.trf.xlu0
        %1948 = vxpose.xlu0.c.b16.start [1/8] %v1553, 128
        %1949 = vxpose.xlu0.c.b16.cont [2/8] 0, 128
        %1950 = vxpose.xlu0.c.b16.cont [3/8] 0, 128
        %1951 = vxpose.xlu0.c.b16.cont [4/8] 0, 128
        %1952 = vxpose.xlu0.c.b16.cont [5/8] 0, 128
        %1953 = vxpose.xlu0.c.b16.cont [6/8] 0, 128
        %1954 = vxpose.xlu0.c.b16.cont [7/8] 0, 128
        %1955 = vxpose.xlu0.c.b16.end [8/8] 0, 128
        %v1956 = vpop.trf.xlu0
        %v1957 = vpop.trf.xlu0
        %v1958 = vpop.trf.xlu0
        %v1959 = vpop.trf.xlu0
        %v1960 = vpop.trf.xlu0
        %v1961 = vpop.trf.xlu0
        %v1962 = vpop.trf.xlu0
        %v1963 = vpop.trf.xlu0
        %1964 = vxpose.xlu0.c.b16.start [1/8] %v1619, 128
        %1965 = vxpose.xlu0.c.b16.cont [2/8] 0, 128
        %1966 = vxpose.xlu0.c.b16.cont [3/8] 0, 128
        %1967 = vxpose.xlu0.c.b16.cont [4/8] 0, 128
        %1968 = vxpose.xlu0.c.b16.cont [5/8] 0, 128
        %1969 = vxpose.xlu0.c.b16.cont [6/8] 0, 128
        %1970 = vxpose.xlu0.c.b16.cont [7/8] 0, 128
        %1971 = vxpose.xlu0.c.b16.end [8/8] 0, 128
        %v1972 = vpop.trf.xlu0
        %v1973 = vpop.trf.xlu0
        %v1974 = vpop.trf.xlu0
        %v1975 = vpop.trf.xlu0
        %v1976 = vpop.trf.xlu0
        %v1977 = vpop.trf.xlu0
        %v1978 = vpop.trf.xlu0
        %v1979 = vpop.trf.xlu0
        %1980 = vxpose.xlu0.c.b16.start [1/8] %v1557, 128
        %1981 = vxpose.xlu0.c.b16.cont [2/8] 0, 128
        %1982 = vxpose.xlu0.c.b16.cont [3/8] 0, 128
        %1983 = vxpose.xlu0.c.b16.cont [4/8] 0, 128
        %1984 = vxpose.xlu0.c.b16.cont [5/8] 0, 128
        %1985 = vxpose.xlu0.c.b16.cont [6/8] 0, 128
        %1986 = vxpose.xlu0.c.b16.cont [7/8] 0, 128
        %1987 = vxpose.xlu0.c.b16.end [8/8] 0, 128
        %v1988 = vpop.trf.xlu0
        %v1989 = vpop.trf.xlu0
        %v1990 = vpop.trf.xlu0
        %v1991 = vpop.trf.xlu0
        %v1992 = vpop.trf.xlu0
        %v1993 = vpop.trf.xlu0
        %v1994 = vpop.trf.xlu0
        %v1995 = vpop.trf.xlu0
        %1996 = vxpose.xlu0.c.b16.start [1/8] %v1623, 128
        %1997 = vxpose.xlu0.c.b16.cont [2/8] 0, 128
        %1998 = vxpose.xlu0.c.b16.cont [3/8] 0, 128
        %1999 = vxpose.xlu0.c.b16.cont [4/8] 0, 128
        %2000 = vxpose.xlu0.c.b16.cont [5/8] 0, 128
        %2001 = vxpose.xlu0.c.b16.cont [6/8] 0, 128
        %2002 = vxpose.xlu0.c.b16.cont [7/8] 0, 128
        %2003 = vxpose.xlu0.c.b16.end [8/8] 0, 128
        %v2004 = vpop.trf.xlu0
        %v2005 = vpop.trf.xlu0
        %v2006 = vpop.trf.xlu0
        %v2007 = vpop.trf.xlu0
        %v2008 = vpop.trf.xlu0
        %v2009 = vpop.trf.xlu0
        %v2010 = vpop.trf.xlu0
        %v2011 = vpop.trf.xlu0
        %2012 = vxpose.xlu0.c.b16.start [1/8] %v1662, 128
        %2013 = vxpose.xlu0.c.b16.cont [2/8] 0, 128
        %2014 = vxpose.xlu0.c.b16.cont [3/8] 0, 128
        %2015 = vxpose.xlu0.c.b16.cont [4/8] 0, 128
        %2016 = vxpose.xlu0.c.b16.cont [5/8] 0, 128
        %2017 = vxpose.xlu0.c.b16.cont [6/8] 0, 128
        %2018 = vxpose.xlu0.c.b16.cont [7/8] 0, 128
        %2019 = vxpose.xlu0.c.b16.end [8/8] 0, 128
        %v2020 = vpop.trf.xlu0
        %v2021 = vpop.trf.xlu0
        %v2022 = vpop.trf.xlu0
        %v2023 = vpop.trf.xlu0
        %v2024 = vpop.trf.xlu0
        %v2025 = vpop.trf.xlu0
        %v2026 = vpop.trf.xlu0
        %v2027 = vpop.trf.xlu0
        %2028 = vxpose.xlu0.c.b16.start [1/8] %v1728, 128
        %2029 = vxpose.xlu0.c.b16.cont [2/8] 0, 128
        %2030 = vxpose.xlu0.c.b16.cont [3/8] 0, 128
        %2031 = vxpose.xlu0.c.b16.cont [4/8] 0, 128
        %2032 = vxpose.xlu0.c.b16.cont [5/8] 0, 128
        %2033 = vxpose.xlu0.c.b16.cont [6/8] 0, 128
        %2034 = vxpose.xlu0.c.b16.cont [7/8] 0, 128
        %2035 = vxpose.xlu0.c.b16.end [8/8] 0, 128
        %v2036 = vpop.trf.xlu0
        %v2037 = vpop.trf.xlu0
        %v2038 = vpop.trf.xlu0
        %v2039 = vpop.trf.xlu0
        %v2040 = vpop.trf.xlu0
        %v2041 = vpop.trf.xlu0
        %v2042 = vpop.trf.xlu0
        %v2043 = vpop.trf.xlu0
        %2044 = vxpose.xlu0.c.b16.start [1/8] %v1686, 128
        %2045 = vxpose.xlu0.c.b16.cont [2/8] 0, 128
        %2046 = vxpose.xlu0.c.b16.cont [3/8] 0, 128
        %2047 = vxpose.xlu0.c.b16.cont [4/8] 0, 128
        %2048 = vxpose.xlu0.c.b16.cont [5/8] 0, 128
        %2049 = vxpose.xlu0.c.b16.cont [6/8] 0, 128
        %2050 = vxpose.xlu0.c.b16.cont [7/8] 0, 128
        %2051 = vxpose.xlu0.c.b16.end [8/8] 0, 128
        %v2052 = vpop.trf.xlu0
        %v2053 = vpop.trf.xlu0
        %v2054 = vpop.trf.xlu0
        %v2055 = vpop.trf.xlu0
        %v2056 = vpop.trf.xlu0
        %v2057 = vpop.trf.xlu0
        %v2058 = vpop.trf.xlu0
        %v2059 = vpop.trf.xlu0
        %2060 = vxpose.xlu0.c.b16.start [1/8] %v1752, 128
        %2061 = vxpose.xlu0.c.b16.cont [2/8] 0, 128
        %2062 = vxpose.xlu0.c.b16.cont [3/8] 0, 128
        %2063 = vxpose.xlu0.c.b16.cont [4/8] 0, 128
        %2064 = vxpose.xlu0.c.b16.cont [5/8] 0, 128
        %2065 = vxpose.xlu0.c.b16.cont [6/8] 0, 128
        %2066 = vxpose.xlu0.c.b16.cont [7/8] 0, 128
        %2067 = vxpose.xlu0.c.b16.end [8/8] 0, 128
        %v2068 = vpop.trf.xlu0
        %v2069 = vpop.trf.xlu0
        %v2070 = vpop.trf.xlu0
        %v2071 = vpop.trf.xlu0
        %v2072 = vpop.trf.xlu0
        %v2073 = vpop.trf.xlu0
        %v2074 = vpop.trf.xlu0
        %v2075 = vpop.trf.xlu0
        %2076 = vxpose.xlu0.c.b16.start [1/8] %v1669, 128
        %2077 = vxpose.xlu0.c.b16.cont [2/8] 0, 128
        %2078 = vxpose.xlu0.c.b16.cont [3/8] 0, 128
        %2079 = vxpose.xlu0.c.b16.cont [4/8] 0, 128
        %2080 = vxpose.xlu0.c.b16.cont [5/8] 0, 128
        %2081 = vxpose.xlu0.c.b16.cont [6/8] 0, 128
        %2082 = vxpose.xlu0.c.b16.cont [7/8] 0, 128
        %2083 = vxpose.xlu0.c.b16.end [8/8] 0, 128
        %v2084 = vpop.trf.xlu0
        %v2085 = vpop.trf.xlu0
        %v2086 = vpop.trf.xlu0
        %v2087 = vpop.trf.xlu0
        %v2088 = vpop.trf.xlu0
        %v2089 = vpop.trf.xlu0
        %v2090 = vpop.trf.xlu0
        %v2091 = vpop.trf.xlu0
        %2092 = vxpose.xlu0.c.b16.start [1/8] %v1735, 128
        %2093 = vxpose.xlu0.c.b16.cont [2/8] 0, 128
        %2094 = vxpose.xlu0.c.b16.cont [3/8] 0, 128
        %2095 = vxpose.xlu0.c.b16.cont [4/8] 0, 128
        %2096 = vxpose.xlu0.c.b16.cont [5/8] 0, 128
        %2097 = vxpose.xlu0.c.b16.cont [6/8] 0, 128
        %2098 = vxpose.xlu0.c.b16.cont [7/8] 0, 128
        %2099 = vxpose.xlu0.c.b16.end [8/8] 0, 128
        %v2100 = vpop.trf.xlu0
        %v2101 = vpop.trf.xlu0
        %v2102 = vpop.trf.xlu0
        %v2103 = vpop.trf.xlu0
        %v2104 = vpop.trf.xlu0
        %v2105 = vpop.trf.xlu0
        %v2106 = vpop.trf.xlu0
        %v2107 = vpop.trf.xlu0
        %2108 = vxpose.xlu0.c.b16.start [1/8] %v1687, 128
        %2109 = vxpose.xlu0.c.b16.cont [2/8] 0, 128
        %2110 = vxpose.xlu0.c.b16.cont [3/8] 0, 128
        %2111 = vxpose.xlu0.c.b16.cont [4/8] 0, 128
        %2112 = vxpose.xlu0.c.b16.cont [5/8] 0, 128
        %2113 = vxpose.xlu0.c.b16.cont [6/8] 0, 128
        %2114 = vxpose.xlu0.c.b16.cont [7/8] 0, 128
        %2115 = vxpose.xlu0.c.b16.end [8/8] 0, 128
        %v2116 = vpop.trf.xlu0
        %v2117 = vpop.trf.xlu0
        %v2118 = vpop.trf.xlu0
        %v2119 = vpop.trf.xlu0
        %v2120 = vpop.trf.xlu0
        %v2121 = vpop.trf.xlu0
        %v2122 = vpop.trf.xlu0
        %v2123 = vpop.trf.xlu0
        %2124 = vxpose.xlu0.c.b16.start [1/8] %v1753, 128
        %2125 = vxpose.xlu0.c.b16.cont [2/8] 0, 128
        %2126 = vxpose.xlu0.c.b16.cont [3/8] 0, 128
        %2127 = vxpose.xlu0.c.b16.cont [4/8] 0, 128
        %2128 = vxpose.xlu0.c.b16.cont [5/8] 0, 128
        %2129 = vxpose.xlu0.c.b16.cont [6/8] 0, 128
        %2130 = vxpose.xlu0.c.b16.cont [7/8] 0, 128
        %2131 = vxpose.xlu0.c.b16.end [8/8] 0, 128
        %v2132 = vpop.trf.xlu0
        %v2133 = vpop.trf.xlu0
        %v2134 = vpop.trf.xlu0
        %v2135 = vpop.trf.xlu0
        %v2136 = vpop.trf.xlu0
        %v2137 = vpop.trf.xlu0
        %v2138 = vpop.trf.xlu0
        %v2139 = vpop.trf.xlu0
        %2140 = vxpose.xlu0.c.b16.start [1/8] %v1678, 128
        %2141 = vxpose.xlu0.c.b16.cont [2/8] 0, 128
        %2142 = vxpose.xlu0.c.b16.cont [3/8] 0, 128
        %2143 = vxpose.xlu0.c.b16.cont [4/8] 0, 128
        %2144 = vxpose.xlu0.c.b16.cont [5/8] 0, 128
        %2145 = vxpose.xlu0.c.b16.cont [6/8] 0, 128
        %2146 = vxpose.xlu0.c.b16.cont [7/8] 0, 128
        %2147 = vxpose.xlu0.c.b16.end [8/8] 0, 128
        %v2148 = vpop.trf.xlu0
        %v2149 = vpop.trf.xlu0
        %v2150 = vpop.trf.xlu0
        %v2151 = vpop.trf.xlu0
        %v2152 = vpop.trf.xlu0
        %v2153 = vpop.trf.xlu0
        %v2154 = vpop.trf.xlu0
        %v2155 = vpop.trf.xlu0
        %2156 = vxpose.xlu0.c.b16.start [1/8] %v1744, 128
        %2157 = vxpose.xlu0.c.b16.cont [2/8] 0, 128
        %2158 = vxpose.xlu0.c.b16.cont [3/8] 0, 128
        %2159 = vxpose.xlu0.c.b16.cont [4/8] 0, 128
        %2160 = vxpose.xlu0.c.b16.cont [5/8] 0, 128
        %2161 = vxpose.xlu0.c.b16.cont [6/8] 0, 128
        %2162 = vxpose.xlu0.c.b16.cont [7/8] 0, 128
        %2163 = vxpose.xlu0.c.b16.end [8/8] 0, 128
        %v2164 = vpop.trf.xlu0
        %v2165 = vpop.trf.xlu0
        %v2166 = vpop.trf.xlu0
        %v2167 = vpop.trf.xlu0
        %v2168 = vpop.trf.xlu0
        %v2169 = vpop.trf.xlu0
        %v2170 = vpop.trf.xlu0
        %v2171 = vpop.trf.xlu0
        %2172 = vxpose.xlu0.c.b16.start [1/8] %v1688, 128
        %2173 = vxpose.xlu0.c.b16.cont [2/8] 0, 128
        %2174 = vxpose.xlu0.c.b16.cont [3/8] 0, 128
        %2175 = vxpose.xlu0.c.b16.cont [4/8] 0, 128
        %2176 = vxpose.xlu0.c.b16.cont [5/8] 0, 128
        %2177 = vxpose.xlu0.c.b16.cont [6/8] 0, 128
        %2178 = vxpose.xlu0.c.b16.cont [7/8] 0, 128
        %2179 = vxpose.xlu0.c.b16.end [8/8] 0, 128
        %v2180 = vpop.trf.xlu0
        %v2181 = vpop.trf.xlu0
        %v2182 = vpop.trf.xlu0
        %v2183 = vpop.trf.xlu0
        %v2184 = vpop.trf.xlu0
        %v2185 = vpop.trf.xlu0
        %v2186 = vpop.trf.xlu0
        %v2187 = vpop.trf.xlu0
        %2188 = vxpose.xlu0.c.b16.start [1/8] %v1754, 128
        %2189 = vxpose.xlu0.c.b16.cont [2/8] 0, 128
        %2190 = vxpose.xlu0.c.b16.cont [3/8] 0, 128
        %2191 = vxpose.xlu0.c.b16.cont [4/8] 0, 128
        %2192 = vxpose.xlu0.c.b16.cont [5/8] 0, 128
        %2193 = vxpose.xlu0.c.b16.cont [6/8] 0, 128
        %2194 = vxpose.xlu0.c.b16.cont [7/8] 0, 128
        %2195 = vxpose.xlu0.c.b16.end [8/8] 0, 128
        %v2196 = vpop.trf.xlu0
        %v2197 = vpop.trf.xlu0
        %v2198 = vpop.trf.xlu0
        %v2199 = vpop.trf.xlu0
        %v2200 = vpop.trf.xlu0
        %v2201 = vpop.trf.xlu0
        %v2202 = vpop.trf.xlu0
        %v2203 = vpop.trf.xlu0
        %2204 = vxpose.xlu0.c.b16.start [1/8] %v1685, 128
        %2205 = vxpose.xlu0.c.b16.cont [2/8] 0, 128
        %2206 = vxpose.xlu0.c.b16.cont [3/8] 0, 128
        %2207 = vxpose.xlu0.c.b16.cont [4/8] 0, 128
        %2208 = vxpose.xlu0.c.b16.cont [5/8] 0, 128
        %2209 = vxpose.xlu0.c.b16.cont [6/8] 0, 128
        %2210 = vxpose.xlu0.c.b16.cont [7/8] 0, 128
        %2211 = vxpose.xlu0.c.b16.end [8/8] 0, 128
        %v2212 = vpop.trf.xlu0
        %v2213 = vpop.trf.xlu0
        %v2214 = vpop.trf.xlu0
        %v2215 = vpop.trf.xlu0
        %v2216 = vpop.trf.xlu0
        %v2217 = vpop.trf.xlu0
        %v2218 = vpop.trf.xlu0
        %v2219 = vpop.trf.xlu0
        %2220 = vxpose.xlu0.c.b16.start [1/8] %v1751, 128
        %2221 = vxpose.xlu0.c.b16.cont [2/8] 0, 128
        %2222 = vxpose.xlu0.c.b16.cont [3/8] 0, 128
        %2223 = vxpose.xlu0.c.b16.cont [4/8] 0, 128
        %2224 = vxpose.xlu0.c.b16.cont [5/8] 0, 128
        %2225 = vxpose.xlu0.c.b16.cont [6/8] 0, 128
        %2226 = vxpose.xlu0.c.b16.cont [7/8] 0, 128
        %2227 = vxpose.xlu0.c.b16.end [8/8] 0, 128
        %v2228 = vpop.trf.xlu0
        %v2229 = vpop.trf.xlu0
        %v2230 = vpop.trf.xlu0
        %v2231 = vpop.trf.xlu0
        %v2232 = vpop.trf.xlu0
        %v2233 = vpop.trf.xlu0
        %v2234 = vpop.trf.xlu0
        %v2235 = vpop.trf.xlu0
        %2236 = vxpose.xlu0.c.b16.start [1/8] %v1689, 128
        %2237 = vxpose.xlu0.c.b16.cont [2/8] 0, 128
        %2238 = vxpose.xlu0.c.b16.cont [3/8] 0, 128
        %2239 = vxpose.xlu0.c.b16.cont [4/8] 0, 128
        %2240 = vxpose.xlu0.c.b16.cont [5/8] 0, 128
        %2241 = vxpose.xlu0.c.b16.cont [6/8] 0, 128
        %2242 = vxpose.xlu0.c.b16.cont [7/8] 0, 128
        %2243 = vxpose.xlu0.c.b16.end [8/8] 0, 128
        %v2244 = vpop.trf.xlu0
        %v2245 = vpop.trf.xlu0
        %v2246 = vpop.trf.xlu0
        %v2247 = vpop.trf.xlu0
        %v2248 = vpop.trf.xlu0
        %v2249 = vpop.trf.xlu0
        %v2250 = vpop.trf.xlu0
        %v2251 = vpop.trf.xlu0
        %2252 = vxpose.xlu0.c.b16.start [1/8] %v1755, 128
        %2253 = vxpose.xlu0.c.b16.cont [2/8] 0, 128
        %2254 = vxpose.xlu0.c.b16.cont [3/8] 0, 128
        %2255 = vxpose.xlu0.c.b16.cont [4/8] 0, 128
        %2256 = vxpose.xlu0.c.b16.cont [5/8] 0, 128
        %2257 = vxpose.xlu0.c.b16.cont [6/8] 0, 128
        %2258 = vxpose.xlu0.c.b16.cont [7/8] 0, 128
        %2259 = vxpose.xlu0.c.b16.end [8/8] 0, 128
        %v2260 = vpop.trf.xlu0
        %v2261 = vpop.trf.xlu0
        %v2262 = vpop.trf.xlu0
        %v2263 = vpop.trf.xlu0
        %v2264 = vpop.trf.xlu0
        %v2265 = vpop.trf.xlu0
        %v2266 = vpop.trf.xlu0
        %v2267 = vpop.trf.xlu0
        %v2268 = vcombine.low %v1764, %v1828
        %v2270 = vunpack.c.l.s4 1983009808
        %v2271 = vunpack.c.0.s8 %v2270
        %v2272 = vlaneseq
        %v2273 = vshrl.u32 %v2272, 7
        %v2274 = vsub.s32 %v2271, %v2273
        %v2275 = vrot.slane %v2268, %v2274
        %v2276 = vcombine.low %v1796, %v1860
        %v2278 = vunpack.c.l.s4 1983009808
        %v2279 = vunpack.c.0.s8 %v2278
        %v2280 = vlaneseq
        %v2281 = vshrl.u32 %v2280, 7
        %v2282 = vsub.s32 %v2279, %v2281
        %v2283 = vrot.slane %v2276, %v2282
        %v2284 = vcombine.low %v1892, %v1956
        %v2286 = vunpack.c.l.s4 1983009808
        %v2287 = vunpack.c.0.s8 %v2286
        %v2288 = vlaneseq
        %v2289 = vshrl.u32 %v2288, 7
        %v2290 = vsub.s32 %v2287, %v2289
        %v2291 = vrot.slane %v2284, %v2290
        %v2292 = vcombine.low %v1924, %v1988
        %v2294 = vunpack.c.l.s4 1983009808
        %v2295 = vunpack.c.0.s8 %v2294
        %v2296 = vlaneseq
        %v2297 = vshrl.u32 %v2296, 7
        %v2298 = vsub.s32 %v2295, %v2297
        %v2299 = vrot.slane %v2292, %v2298
        %v2300 = vcombine.low %v2275, %v2283
        %v2301 = vcombine.high %v2275, %v2283
        %v2303 = vunpack.c.l.s4 1934713408
        %v2304 = vunpack.c.0.s8 %v2303
        %v2305 = vlaneseq
        %v2306 = vshrl.u32 %v2305, 7
        %v2307 = vsub.s32 %v2304, %v2306
        %v2308 = vrot.slane %v2300, %v2307
        %v2310 = vunpack.c.l.s4 1934713408
        %v2311 = vunpack.c.0.s8 %v2310
        %v2312 = vlaneseq
        %v2313 = vshrl.u32 %v2312, 7
        %v2314 = vsub.s32 %v2311, %v2313
        %v2315 = vrot.slane %v2301, %v2314
        %v2316 = vcombine.low %v2291, %v2299
        %v2317 = vcombine.high %v2291, %v2299
        %v2319 = vunpack.c.l.s4 1934713408
        %v2320 = vunpack.c.0.s8 %v2319
        %v2321 = vlaneseq
        %v2322 = vshrl.u32 %v2321, 7
        %v2323 = vsub.s32 %v2320, %v2322
        %v2324 = vrot.slane %v2316, %v2323
        %v2326 = vunpack.c.l.s4 1934713408
        %v2327 = vunpack.c.0.s8 %v2326
        %v2328 = vlaneseq
        %v2329 = vshrl.u32 %v2328, 7
        %v2330 = vsub.s32 %v2327, %v2329
        %v2331 = vrot.slane %v2317, %v2330
        %v2332 = vcombine.low %v2308, %v2324
        %v2333 = vcombine.high %v2308, %v2324
        %v2334 = vcombine.low %v2315, %v2331
        %v2335 = vcombine.high %v2315, %v2331
        %v2336 = vcombine.low %v1780, %v1844
        %v2338 = vunpack.c.l.s4 1983009808
        %v2339 = vunpack.c.0.s8 %v2338
        %v2340 = vlaneseq
        %v2341 = vshrl.u32 %v2340, 7
        %v2342 = vsub.s32 %v2339, %v2341
        %v2343 = vrot.slane %v2336, %v2342
        %v2344 = vcombine.low %v1812, %v1876
        %v2346 = vunpack.c.l.s4 1983009808
        %v2347 = vunpack.c.0.s8 %v2346
        %v2348 = vlaneseq
        %v2349 = vshrl.u32 %v2348, 7
        %v2350 = vsub.s32 %v2347, %v2349
        %v2351 = vrot.slane %v2344, %v2350
        %v2352 = vcombine.low %v1908, %v1972
        %v2354 = vunpack.c.l.s4 1983009808
        %v2355 = vunpack.c.0.s8 %v2354
        %v2356 = vlaneseq
        %v2357 = vshrl.u32 %v2356, 7
        %v2358 = vsub.s32 %v2355, %v2357
        %v2359 = vrot.slane %v2352, %v2358
        %v2360 = vcombine.low %v1940, %v2004
        %v2362 = vunpack.c.l.s4 1983009808
        %v2363 = vunpack.c.0.s8 %v2362
        %v2364 = vlaneseq
        %v2365 = vshrl.u32 %v2364, 7
        %v2366 = vsub.s32 %v2363, %v2365
        %v2367 = vrot.slane %v2360, %v2366
        %v2368 = vcombine.low %v2343, %v2351
        %v2369 = vcombine.high %v2343, %v2351
        %v2371 = vunpack.c.l.s4 1934713408
        %v2372 = vunpack.c.0.s8 %v2371
        %v2373 = vlaneseq
        %v2374 = vshrl.u32 %v2373, 7
        %v2375 = vsub.s32 %v2372, %v2374
        %v2376 = vrot.slane %v2368, %v2375
        %v2378 = vunpack.c.l.s4 1934713408
        %v2379 = vunpack.c.0.s8 %v2378
        %v2380 = vlaneseq
        %v2381 = vshrl.u32 %v2380, 7
        %v2382 = vsub.s32 %v2379, %v2381
        %v2383 = vrot.slane %v2369, %v2382
        %v2384 = vcombine.low %v2359, %v2367
        %v2385 = vcombine.high %v2359, %v2367
        %v2387 = vunpack.c.l.s4 1934713408
        %v2388 = vunpack.c.0.s8 %v2387
        %v2389 = vlaneseq
        %v2390 = vshrl.u32 %v2389, 7
        %v2391 = vsub.s32 %v2388, %v2390
        %v2392 = vrot.slane %v2384, %v2391
        %v2394 = vunpack.c.l.s4 1934713408
        %v2395 = vunpack.c.0.s8 %v2394
        %v2396 = vlaneseq
        %v2397 = vshrl.u32 %v2396, 7
        %v2398 = vsub.s32 %v2395, %v2397
        %v2399 = vrot.slane %v2385, %v2398
        %v2400 = vcombine.low %v2376, %v2392
        %v2401 = vcombine.high %v2376, %v2392
        %v2402 = vcombine.low %v2383, %v2399
        %v2403 = vcombine.high %v2383, %v2399
        %v2404 = vcombine.low %v2020, %v2084
        %v2406 = vunpack.c.l.s4 1983009808
        %v2407 = vunpack.c.0.s8 %v2406
        %v2408 = vlaneseq
        %v2409 = vshrl.u32 %v2408, 7
        %v2410 = vsub.s32 %v2407, %v2409
        %v2411 = vrot.slane %v2404, %v2410
        %v2412 = vcombine.low %v2052, %v2116
        %v2414 = vunpack.c.l.s4 1983009808
        %v2415 = vunpack.c.0.s8 %v2414
        %v2416 = vlaneseq
        %v2417 = vshrl.u32 %v2416, 7
        %v2418 = vsub.s32 %v2415, %v2417
        %v2419 = vrot.slane %v2412, %v2418
        %v2420 = vcombine.low %v2148, %v2212
        %v2422 = vunpack.c.l.s4 1983009808
        %v2423 = vunpack.c.0.s8 %v2422
        %v2424 = vlaneseq
        %v2425 = vshrl.u32 %v2424, 7
        %v2426 = vsub.s32 %v2423, %v2425
        %v2427 = vrot.slane %v2420, %v2426
        %v2428 = vcombine.low %v2180, %v2244
        %v2430 = vunpack.c.l.s4 1983009808
        %v2431 = vunpack.c.0.s8 %v2430
        %v2432 = vlaneseq
        %v2433 = vshrl.u32 %v2432, 7
        %v2434 = vsub.s32 %v2431, %v2433
        %v2435 = vrot.slane %v2428, %v2434
        %v2436 = vcombine.low %v2411, %v2419
        %v2437 = vcombine.high %v2411, %v2419
        %v2439 = vunpack.c.l.s4 1934713408
        %v2440 = vunpack.c.0.s8 %v2439
        %v2441 = vlaneseq
        %v2442 = vshrl.u32 %v2441, 7
        %v2443 = vsub.s32 %v2440, %v2442
        %v2444 = vrot.slane %v2436, %v2443
        %v2446 = vunpack.c.l.s4 1934713408
        %v2447 = vunpack.c.0.s8 %v2446
        %v2448 = vlaneseq
        %v2449 = vshrl.u32 %v2448, 7
        %v2450 = vsub.s32 %v2447, %v2449
        %v2451 = vrot.slane %v2437, %v2450
        %v2452 = vcombine.low %v2427, %v2435
        %v2453 = vcombine.high %v2427, %v2435
        %v2455 = vunpack.c.l.s4 1934713408
        %v2456 = vunpack.c.0.s8 %v2455
        %v2457 = vlaneseq
        %v2458 = vshrl.u32 %v2457, 7
        %v2459 = vsub.s32 %v2456, %v2458
        %v2460 = vrot.slane %v2452, %v2459
        %v2462 = vunpack.c.l.s4 1934713408
        %v2463 = vunpack.c.0.s8 %v2462
        %v2464 = vlaneseq
        %v2465 = vshrl.u32 %v2464, 7
        %v2466 = vsub.s32 %v2463, %v2465
        %v2467 = vrot.slane %v2453, %v2466
        %v2468 = vcombine.low %v2444, %v2460
        %v2469 = vcombine.high %v2444, %v2460
        %v2470 = vcombine.low %v2451, %v2467
        %v2471 = vcombine.high %v2451, %v2467
        %v2472 = vcombine.low %v2036, %v2100
        %v2474 = vunpack.c.l.s4 1983009808
        %v2475 = vunpack.c.0.s8 %v2474
        %v2476 = vlaneseq
        %v2477 = vshrl.u32 %v2476, 7
        %v2478 = vsub.s32 %v2475, %v2477
        %v2479 = vrot.slane %v2472, %v2478
        %v2480 = vcombine.low %v2068, %v2132
        %v2482 = vunpack.c.l.s4 1983009808
        %v2483 = vunpack.c.0.s8 %v2482
        %v2484 = vlaneseq
        %v2485 = vshrl.u32 %v2484, 7
        %v2486 = vsub.s32 %v2483, %v2485
        %v2487 = vrot.slane %v2480, %v2486
        %v2488 = vcombine.low %v2164, %v2228
        %v2490 = vunpack.c.l.s4 1983009808
        %v2491 = vunpack.c.0.s8 %v2490
        %v2492 = vlaneseq
        %v2493 = vshrl.u32 %v2492, 7
        %v2494 = vsub.s32 %v2491, %v2493
        %v2495 = vrot.slane %v2488, %v2494
        %v2496 = vcombine.low %v2196, %v2260
        %v2498 = vunpack.c.l.s4 1983009808
        %v2499 = vunpack.c.0.s8 %v2498
        %v2500 = vlaneseq
        %v2501 = vshrl.u32 %v2500, 7
        %v2502 = vsub.s32 %v2499, %v2501
        %v2503 = vrot.slane %v2496, %v2502
        %v2504 = vcombine.low %v2479, %v2487
        %v2505 = vcombine.high %v2479, %v2487
        %v2507 = vunpack.c.l.s4 1934713408
        %v2508 = vunpack.c.0.s8 %v2507
        %v2509 = vlaneseq
        %v2510 = vshrl.u32 %v2509, 7
        %v2511 = vsub.s32 %v2508, %v2510
        %v2512 = vrot.slane %v2504, %v2511
        %v2514 = vunpack.c.l.s4 1934713408
        %v2515 = vunpack.c.0.s8 %v2514
        %v2516 = vlaneseq
        %v2517 = vshrl.u32 %v2516, 7
        %v2518 = vsub.s32 %v2515, %v2517
        %v2519 = vrot.slane %v2505, %v2518
        %v2520 = vcombine.low %v2495, %v2503
        %v2521 = vcombine.high %v2495, %v2503
        %v2523 = vunpack.c.l.s4 1934713408
        %v2524 = vunpack.c.0.s8 %v2523
        %v2525 = vlaneseq
        %v2526 = vshrl.u32 %v2525, 7
        %v2527 = vsub.s32 %v2524, %v2526
        %v2528 = vrot.slane %v2520, %v2527
        %v2530 = vunpack.c.l.s4 1934713408
        %v2531 = vunpack.c.0.s8 %v2530
        %v2532 = vlaneseq
        %v2533 = vshrl.u32 %v2532, 7
        %v2534 = vsub.s32 %v2531, %v2533
        %v2535 = vrot.slane %v2521, %v2534
        %v2536 = vcombine.low %v2512, %v2528
        %v2537 = vcombine.high %v2512, %v2528
        %v2538 = vcombine.low %v2519, %v2535
        %v2539 = vcombine.high %v2519, %v2535
        %v2542 = vpack.i.b16 %v2400, %v2332
        %v2544 = vshrl.u32 %v2332, 16
        %v2545 = vshrl.u32 %v2400, 16
        %v2546 = vpack.i.b16 %v2545, %v2544
        %v2550 = vpack.i.b16 %v2401, %v2333
        %v2552 = vshrl.u32 %v2333, 16
        %v2553 = vshrl.u32 %v2401, 16
        %v2554 = vpack.i.b16 %v2553, %v2552
        %v2558 = vpack.i.b16 %v2402, %v2334
        %v2560 = vshrl.u32 %v2334, 16
        %v2561 = vshrl.u32 %v2402, 16
        %v2562 = vpack.i.b16 %v2561, %v2560
        %v2566 = vpack.i.b16 %v2403, %v2335
        %v2568 = vshrl.u32 %v2335, 16
        %v2569 = vshrl.u32 %v2403, 16
        %v2570 = vpack.i.b16 %v2569, %v2568
        %v2574 = vpack.i.b16 %v2536, %v2468
        %v2576 = vshrl.u32 %v2468, 16
        %v2577 = vshrl.u32 %v2536, 16
        %v2578 = vpack.i.b16 %v2577, %v2576
        %v2582 = vpack.i.b16 %v2537, %v2469
        %v2584 = vshrl.u32 %v2469, 16
        %v2585 = vshrl.u32 %v2537, 16
        %v2586 = vpack.i.b16 %v2585, %v2584
        %v2590 = vpack.i.b16 %v2538, %v2470
        %v2592 = vshrl.u32 %v2470, 16
        %v2593 = vshrl.u32 %v2538, 16
        %v2594 = vpack.i.b16 %v2593, %v2592
        %v2598 = vpack.i.b16 %v2539, %v2471
        %v2600 = vshrl.u32 %v2471, 16
        %v2601 = vshrl.u32 %v2539, 16
        %v2602 = vpack.i.b16 %v2601, %v2600
        %v2605 = vsel %vm1063, %v1382, 0
        %2607 = vmatprep.subr.bf16.mxu0 0
        %2608 = vmatpush1.bf16.msra.mxu0 %v2542
        %2609 = vmatprep.subr.bf16.mxu0 0
        %2610 = vmatpush1.bf16.msra.mxu0 %v2574
        %2611 = vmatprep.subr.bf16.mxu0 0
        %2612 = vmatpush1.bf16.msra.mxu0 0
        %2613 = vmatprep.subr.bf16.mxu0 0
        %2614 = vmatpush1.bf16.msra.mxu0 0
        %2615 = vmatprep.subr.bf16.mxu0 0
        %2616 = vmatpush1.bf16.msra.mxu0 0
        %2617 = vmatprep.subr.bf16.mxu0 0
        %2618 = vmatpush1.bf16.msra.mxu0 0
        %2619 = vmatprep.subr.bf16.mxu0 0
        %2620 = vmatpush1.bf16.msra.mxu0 0
        %2621 = vmatprep.subr.bf16.mxu0 0
        %2622 = vmatpush1.bf16.msra.mxu0 0
        %2623 = vmatprep.subr.bf16.mxu0 0
        %2624 = vmatpush1.bf16.msra.mxu0 0
        %2625 = vmatprep.subr.bf16.mxu0 0
        %2626 = vmatpush1.bf16.msra.mxu0 0
        %2627 = vmatprep.subr.bf16.mxu0 0
        %2628 = vmatpush1.bf16.msra.mxu0 0
        %2629 = vmatprep.subr.bf16.mxu0 0
        %2630 = vmatpush1.bf16.msra.mxu0 0
        %2631 = vmatprep.subr.bf16.mxu0 0
        %2632 = vmatpush1.bf16.msra.mxu0 0
        %2633 = vmatprep.subr.bf16.mxu0 0
        %2634 = vmatpush1.bf16.msra.mxu0 0
        %2635 = vmatprep.subr.bf16.mxu0 0
        %2636 = vmatpush1.bf16.msra.mxu0 0
        %2637 = vmatprep.subr.bf16.mxu0 0
        %2638 = vmatpush1.bf16.msra.mxu0 0
        %2639 = vmatprep.mubr.bf16.mxu0 0
        %2640 = vmatmul.mubr.bf16.gmra.mrb[0].mxu0 %v2605
        %v2641 = vpop.f32.mrb[0].mxu0
        %v2642 = vadd.f32 0.0, %v2641
        %v2643 = vpop.f32.mrb[0].mxu0
        %v2644 = vpop.f32.mrb[0].mxu0
        %v2645 = vpop.f32.mrb[0].mxu0
        %2646 = vdwg.mxu0
        %v2648 = vsel %vm1063, %v1383, 0
        %2650 = vmatprep.subr.bf16.mxu0 0
        %2651 = vmatpush1.bf16.msra.mxu0 %v2546
        %2652 = vmatprep.subr.bf16.mxu0 0
        %2653 = vmatpush1.bf16.msra.mxu0 %v2578
        %2654 = vmatprep.subr.bf16.mxu0 0
        %2655 = vmatpush1.bf16.msra.mxu0 0
        %2656 = vmatprep.subr.bf16.mxu0 0
        %2657 = vmatpush1.bf16.msra.mxu0 0
        %2658 = vmatprep.subr.bf16.mxu0 0
        %2659 = vmatpush1.bf16.msra.mxu0 0
        %2660 = vmatprep.subr.bf16.mxu0 0
        %2661 = vmatpush1.bf16.msra.mxu0 0
        %2662 = vmatprep.subr.bf16.mxu0 0
        %2663 = vmatpush1.bf16.msra.mxu0 0
        %2664 = vmatprep.subr.bf16.mxu0 0
        %2665 = vmatpush1.bf16.msra.mxu0 0
        %2666 = vmatprep.subr.bf16.mxu0 0
        %2667 = vmatpush1.bf16.msra.mxu0 0
        %2668 = vmatprep.subr.bf16.mxu0 0
        %2669 = vmatpush1.bf16.msra.mxu0 0
        %2670 = vmatprep.subr.bf16.mxu0 0
        %2671 = vmatpush1.bf16.msra.mxu0 0
        %2672 = vmatprep.subr.bf16.mxu0 0
        %2673 = vmatpush1.bf16.msra.mxu0 0
        %2674 = vmatprep.subr.bf16.mxu0 0
        %2675 = vmatpush1.bf16.msra.mxu0 0
        %2676 = vmatprep.subr.bf16.mxu0 0
        %2677 = vmatpush1.bf16.msra.mxu0 0
        %2678 = vmatprep.subr.bf16.mxu0 0
        %2679 = vmatpush1.bf16.msra.mxu0 0
        %2680 = vmatprep.subr.bf16.mxu0 0
        %2681 = vmatpush1.bf16.msra.mxu0 0
        %2682 = vmatprep.mubr.bf16.mxu0 0
        %2683 = vmatmul.mubr.bf16.gmra.mrb[0].mxu0 %v2648
        %v2684 = vpop.f32.mrb[0].mxu0
        %v2685 = vadd.f32 0.0, %v2684
        %v2686 = vpop.f32.mrb[0].mxu0
        %v2687 = vpop.f32.mrb[0].mxu0
        %v2688 = vpop.f32.mrb[0].mxu0
        %2689 = vdwg.mxu0
        %v2691 = vsel %vm1063, %v1384, 0
        %2693 = vmatprep.subr.bf16.mxu0 0
        %2694 = vmatpush1.bf16.msra.mxu0 %v2550
        %2695 = vmatprep.subr.bf16.mxu0 0
        %2696 = vmatpush1.bf16.msra.mxu0 %v2582
        %2697 = vmatprep.subr.bf16.mxu0 0
        %2698 = vmatpush1.bf16.msra.mxu0 0
        %2699 = vmatprep.subr.bf16.mxu0 0
        %2700 = vmatpush1.bf16.msra.mxu0 0
        %2701 = vmatprep.subr.bf16.mxu0 0
        %2702 = vmatpush1.bf16.msra.mxu0 0
        %2703 = vmatprep.subr.bf16.mxu0 0
        %2704 = vmatpush1.bf16.msra.mxu0 0
        %2705 = vmatprep.subr.bf16.mxu0 0
        %2706 = vmatpush1.bf16.msra.mxu0 0
        %2707 = vmatprep.subr.bf16.mxu0 0
        %2708 = vmatpush1.bf16.msra.mxu0 0
        %2709 = vmatprep.subr.bf16.mxu0 0
        %2710 = vmatpush1.bf16.msra.mxu0 0
        %2711 = vmatprep.subr.bf16.mxu0 0
        %2712 = vmatpush1.bf16.msra.mxu0 0
        %2713 = vmatprep.subr.bf16.mxu0 0
        %2714 = vmatpush1.bf16.msra.mxu0 0
        %2715 = vmatprep.subr.bf16.mxu0 0
        %2716 = vmatpush1.bf16.msra.mxu0 0
        %2717 = vmatprep.subr.bf16.mxu0 0
        %2718 = vmatpush1.bf16.msra.mxu0 0
        %2719 = vmatprep.subr.bf16.mxu0 0
        %2720 = vmatpush1.bf16.msra.mxu0 0
        %2721 = vmatprep.subr.bf16.mxu0 0
        %2722 = vmatpush1.bf16.msra.mxu0 0
        %2723 = vmatprep.subr.bf16.mxu0 0
        %2724 = vmatpush1.bf16.msra.mxu0 0
        %2725 = vmatprep.mubr.bf16.mxu0 0
        %2726 = vmatmul.mubr.bf16.gmra.mrb[0].mxu0 %v2691
        %v2727 = vpop.f32.mrb[0].mxu0
        %v2728 = vadd.f32 0.0, %v2727
        %v2729 = vpop.f32.mrb[0].mxu0
        %v2730 = vpop.f32.mrb[0].mxu0
        %v2731 = vpop.f32.mrb[0].mxu0
        %2732 = vdwg.mxu0
        %v2734 = vsel %vm1063, %v1385, 0
        %2736 = vmatprep.subr.bf16.mxu0 0
        %2737 = vmatpush1.bf16.msra.mxu0 %v2554
        %2738 = vmatprep.subr.bf16.mxu0 0
        %2739 = vmatpush1.bf16.msra.mxu0 %v2586
        %2740 = vmatprep.subr.bf16.mxu0 0
        %2741 = vmatpush1.bf16.msra.mxu0 0
        %2742 = vmatprep.subr.bf16.mxu0 0
        %2743 = vmatpush1.bf16.msra.mxu0 0
        %2744 = vmatprep.subr.bf16.mxu0 0
        %2745 = vmatpush1.bf16.msra.mxu0 0
        %2746 = vmatprep.subr.bf16.mxu0 0
        %2747 = vmatpush1.bf16.msra.mxu0 0
        %2748 = vmatprep.subr.bf16.mxu0 0
        %2749 = vmatpush1.bf16.msra.mxu0 0
        %2750 = vmatprep.subr.bf16.mxu0 0
        %2751 = vmatpush1.bf16.msra.mxu0 0
        %2752 = vmatprep.subr.bf16.mxu0 0
        %2753 = vmatpush1.bf16.msra.mxu0 0
        %2754 = vmatprep.subr.bf16.mxu0 0
        %2755 = vmatpush1.bf16.msra.mxu0 0
        %2756 = vmatprep.subr.bf16.mxu0 0
        %2757 = vmatpush1.bf16.msra.mxu0 0
        %2758 = vmatprep.subr.bf16.mxu0 0
        %2759 = vmatpush1.bf16.msra.mxu0 0
        %2760 = vmatprep.subr.bf16.mxu0 0
        %2761 = vmatpush1.bf16.msra.mxu0 0
        %2762 = vmatprep.subr.bf16.mxu0 0
        %2763 = vmatpush1.bf16.msra.mxu0 0
        %2764 = vmatprep.subr.bf16.mxu0 0
        %2765 = vmatpush1.bf16.msra.mxu0 0
        %2766 = vmatprep.subr.bf16.mxu0 0
        %2767 = vmatpush1.bf16.msra.mxu0 0
        %2768 = vmatprep.mubr.bf16.mxu0 0
        %2769 = vmatmul.mubr.bf16.gmra.mrb[0].mxu0 %v2734
        %v2770 = vpop.f32.mrb[0].mxu0
        %v2771 = vadd.f32 0.0, %v2770
        %v2772 = vpop.f32.mrb[0].mxu0
        %v2773 = vpop.f32.mrb[0].mxu0
        %v2774 = vpop.f32.mrb[0].mxu0
        %2775 = vdwg.mxu0
        %v2777 = vsel %vm1063, %v1386, 0
        %2779 = vmatprep.subr.bf16.mxu0 0
        %2780 = vmatpush1.bf16.msra.mxu0 %v2558
        %2781 = vmatprep.subr.bf16.mxu0 0
        %2782 = vmatpush1.bf16.msra.mxu0 %v2590
        %2783 = vmatprep.subr.bf16.mxu0 0
        %2784 = vmatpush1.bf16.msra.mxu0 0
        %2785 = vmatprep.subr.bf16.mxu0 0
        %2786 = vmatpush1.bf16.msra.mxu0 0
        %2787 = vmatprep.subr.bf16.mxu0 0
        %2788 = vmatpush1.bf16.msra.mxu0 0
        %2789 = vmatprep.subr.bf16.mxu0 0
        %2790 = vmatpush1.bf16.msra.mxu0 0
        %2791 = vmatprep.subr.bf16.mxu0 0
        %2792 = vmatpush1.bf16.msra.mxu0 0
        %2793 = vmatprep.subr.bf16.mxu0 0
        %2794 = vmatpush1.bf16.msra.mxu0 0
        %2795 = vmatprep.subr.bf16.mxu0 0
        %2796 = vmatpush1.bf16.msra.mxu0 0
        %2797 = vmatprep.subr.bf16.mxu0 0
        %2798 = vmatpush1.bf16.msra.mxu0 0
        %2799 = vmatprep.subr.bf16.mxu0 0
        %2800 = vmatpush1.bf16.msra.mxu0 0
        %2801 = vmatprep.subr.bf16.mxu0 0
        %2802 = vmatpush1.bf16.msra.mxu0 0
        %2803 = vmatprep.subr.bf16.mxu0 0
        %2804 = vmatpush1.bf16.msra.mxu0 0
        %2805 = vmatprep.subr.bf16.mxu0 0
        %2806 = vmatpush1.bf16.msra.mxu0 0
        %2807 = vmatprep.subr.bf16.mxu0 0
        %2808 = vmatpush1.bf16.msra.mxu0 0
        %2809 = vmatprep.subr.bf16.mxu0 0
        %2810 = vmatpush1.bf16.msra.mxu0 0
        %2811 = vmatprep.mubr.bf16.mxu0 0
        %2812 = vmatmul.mubr.bf16.gmra.mrb[0].mxu0 %v2777
        %v2813 = vpop.f32.mrb[0].mxu0
        %v2814 = vadd.f32 0.0, %v2813
        %v2815 = vpop.f32.mrb[0].mxu0
        %v2816 = vpop.f32.mrb[0].mxu0
        %v2817 = vpop.f32.mrb[0].mxu0
        %2818 = vdwg.mxu0
        %v2820 = vsel %vm1063, %v1387, 0
        %2822 = vmatprep.subr.bf16.mxu0 0
        %2823 = vmatpush1.bf16.msra.mxu0 %v2562
        %2824 = vmatprep.subr.bf16.mxu0 0
        %2825 = vmatpush1.bf16.msra.mxu0 %v2594
        %2826 = vmatprep.subr.bf16.mxu0 0
        %2827 = vmatpush1.bf16.msra.mxu0 0
        %2828 = vmatprep.subr.bf16.mxu0 0
        %2829 = vmatpush1.bf16.msra.mxu0 0
        %2830 = vmatprep.subr.bf16.mxu0 0
        %2831 = vmatpush1.bf16.msra.mxu0 0
        %2832 = vmatprep.subr.bf16.mxu0 0
        %2833 = vmatpush1.bf16.msra.mxu0 0
        %2834 = vmatprep.subr.bf16.mxu0 0
        %2835 = vmatpush1.bf16.msra.mxu0 0
        %2836 = vmatprep.subr.bf16.mxu0 0
        %2837 = vmatpush1.bf16.msra.mxu0 0
        %2838 = vmatprep.subr.bf16.mxu0 0
        %2839 = vmatpush1.bf16.msra.mxu0 0
        %2840 = vmatprep.subr.bf16.mxu0 0
        %2841 = vmatpush1.bf16.msra.mxu0 0
        %2842 = vmatprep.subr.bf16.mxu0 0
        %2843 = vmatpush1.bf16.msra.mxu0 0
        %2844 = vmatprep.subr.bf16.mxu0 0
        %2845 = vmatpush1.bf16.msra.mxu0 0
        %2846 = vmatprep.subr.bf16.mxu0 0
        %2847 = vmatpush1.bf16.msra.mxu0 0
        %2848 = vmatprep.subr.bf16.mxu0 0
        %2849 = vmatpush1.bf16.msra.mxu0 0
        %2850 = vmatprep.subr.bf16.mxu0 0
        %2851 = vmatpush1.bf16.msra.mxu0 0
        %2852 = vmatprep.subr.bf16.mxu0 0
        %2853 = vmatpush1.bf16.msra.mxu0 0
        %2854 = vmatprep.mubr.bf16.mxu0 0
        %2855 = vmatmul.mubr.bf16.gmra.mrb[0].mxu0 %v2820
        %v2856 = vpop.f32.mrb[0].mxu0
        %v2857 = vadd.f32 0.0, %v2856
        %v2858 = vpop.f32.mrb[0].mxu0
        %v2859 = vpop.f32.mrb[0].mxu0
        %v2860 = vpop.f32.mrb[0].mxu0
        %2861 = vdwg.mxu0
        %v2863 = vsel %vm1063, %v1388, 0
        %2865 = vmatprep.subr.bf16.mxu0 0
        %2866 = vmatpush1.bf16.msra.mxu0 %v2566
        %2867 = vmatprep.subr.bf16.mxu0 0
        %2868 = vmatpush1.bf16.msra.mxu0 %v2598
        %2869 = vmatprep.subr.bf16.mxu0 0
        %2870 = vmatpush1.bf16.msra.mxu0 0
        %2871 = vmatprep.subr.bf16.mxu0 0
        %2872 = vmatpush1.bf16.msra.mxu0 0
        %2873 = vmatprep.subr.bf16.mxu0 0
        %2874 = vmatpush1.bf16.msra.mxu0 0
        %2875 = vmatprep.subr.bf16.mxu0 0
        %2876 = vmatpush1.bf16.msra.mxu0 0
        %2877 = vmatprep.subr.bf16.mxu0 0
        %2878 = vmatpush1.bf16.msra.mxu0 0
        %2879 = vmatprep.subr.bf16.mxu0 0
        %2880 = vmatpush1.bf16.msra.mxu0 0
        %2881 = vmatprep.subr.bf16.mxu0 0
        %2882 = vmatpush1.bf16.msra.mxu0 0
        %2883 = vmatprep.subr.bf16.mxu0 0
        %2884 = vmatpush1.bf16.msra.mxu0 0
        %2885 = vmatprep.subr.bf16.mxu0 0
        %2886 = vmatpush1.bf16.msra.mxu0 0
        %2887 = vmatprep.subr.bf16.mxu0 0
        %2888 = vmatpush1.bf16.msra.mxu0 0
        %2889 = vmatprep.subr.bf16.mxu0 0
        %2890 = vmatpush1.bf16.msra.mxu0 0
        %2891 = vmatprep.subr.bf16.mxu0 0
        %2892 = vmatpush1.bf16.msra.mxu0 0
        %2893 = vmatprep.subr.bf16.mxu0 0
        %2894 = vmatpush1.bf16.msra.mxu0 0
        %2895 = vmatprep.subr.bf16.mxu0 0
        %2896 = vmatpush1.bf16.msra.mxu0 0
        %2897 = vmatprep.mubr.bf16.mxu0 0
        %2898 = vmatmul.mubr.bf16.gmra.mrb[0].mxu0 %v2863
        %v2899 = vpop.f32.mrb[0].mxu0
        %v2900 = vadd.f32 0.0, %v2899
        %v2901 = vpop.f32.mrb[0].mxu0
        %v2902 = vpop.f32.mrb[0].mxu0
        %v2903 = vpop.f32.mrb[0].mxu0
        %2904 = vdwg.mxu0
        %v2906 = vsel %vm1063, %v1389, 0
        %2908 = vmatprep.subr.bf16.mxu0 0
        %2909 = vmatpush1.bf16.msra.mxu0 %v2570
        %2910 = vmatprep.subr.bf16.mxu0 0
        %2911 = vmatpush1.bf16.msra.mxu0 %v2602
        %2912 = vmatprep.subr.bf16.mxu0 0
        %2913 = vmatpush1.bf16.msra.mxu0 0
        %2914 = vmatprep.subr.bf16.mxu0 0
        %2915 = vmatpush1.bf16.msra.mxu0 0
        %2916 = vmatprep.subr.bf16.mxu0 0
        %2917 = vmatpush1.bf16.msra.mxu0 0
        %2918 = vmatprep.subr.bf16.mxu0 0
        %2919 = vmatpush1.bf16.msra.mxu0 0
        %2920 = vmatprep.subr.bf16.mxu0 0
        %2921 = vmatpush1.bf16.msra.mxu0 0
        %2922 = vmatprep.subr.bf16.mxu0 0
        %2923 = vmatpush1.bf16.msra.mxu0 0
        %2924 = vmatprep.subr.bf16.mxu0 0
        %2925 = vmatpush1.bf16.msra.mxu0 0
        %2926 = vmatprep.subr.bf16.mxu0 0
        %2927 = vmatpush1.bf16.msra.mxu0 0
        %2928 = vmatprep.subr.bf16.mxu0 0
        %2929 = vmatpush1.bf16.msra.mxu0 0
        %2930 = vmatprep.subr.bf16.mxu0 0
        %2931 = vmatpush1.bf16.msra.mxu0 0
        %2932 = vmatprep.subr.bf16.mxu0 0
        %2933 = vmatpush1.bf16.msra.mxu0 0
        %2934 = vmatprep.subr.bf16.mxu0 0
        %2935 = vmatpush1.bf16.msra.mxu0 0
        %2936 = vmatprep.subr.bf16.mxu0 0
        %2937 = vmatpush1.bf16.msra.mxu0 0
        %2938 = vmatprep.subr.bf16.mxu0 0
        %2939 = vmatpush1.bf16.msra.mxu0 0
        %2940 = vmatprep.mubr.bf16.mxu0 0
        %2941 = vmatmul.mubr.bf16.gmra.mrb[0].mxu0 %v2906
        %v2942 = vpop.f32.mrb[0].mxu0
        %v2943 = vadd.f32 0.0, %v2942
        %v2944 = vpop.f32.mrb[0].mxu0
        %v2945 = vpop.f32.mrb[0].mxu0
        %v2946 = vpop.f32.mrb[0].mxu0
        %2947 = vdwg.mxu0
        %2948 = vxpose.xlu0.b32.start [1/16] %v2642, 128
        %2949 = vxpose.xlu0.b32.cont [2/16] 0.0, 128
        %2950 = vxpose.xlu0.b32.cont [3/16] 0.0, 128
        %2951 = vxpose.xlu0.b32.cont [4/16] 0.0, 128
        %2952 = vxpose.xlu0.b32.cont [5/16] 0.0, 128
        %2953 = vxpose.xlu0.b32.cont [6/16] 0.0, 128
        %2954 = vxpose.xlu0.b32.cont [7/16] 0.0, 128
        %2955 = vxpose.xlu0.b32.cont [8/16] 0.0, 128
        %2956 = vxpose.xlu0.b32.cont [9/16] 0.0, 128
        %2957 = vxpose.xlu0.b32.cont [10/16] 0.0, 128
        %2958 = vxpose.xlu0.b32.cont [11/16] 0.0, 128
        %2959 = vxpose.xlu0.b32.cont [12/16] 0.0, 128
        %2960 = vxpose.xlu0.b32.cont [13/16] 0.0, 128
        %2961 = vxpose.xlu0.b32.cont [14/16] 0.0, 128
        %2962 = vxpose.xlu0.b32.cont [15/16] 0.0, 128
        %2963 = vxpose.xlu0.b32.end [16/16] 0.0, 128
        %v2964 = vpop.trf.xlu0
        %v2965 = vpop.trf.xlu0
        %v2966 = vpop.trf.xlu0
        %v2967 = vpop.trf.xlu0
        %v2968 = vpop.trf.xlu0
        %v2969 = vpop.trf.xlu0
        %v2970 = vpop.trf.xlu0
        %v2971 = vpop.trf.xlu0
        %v2972 = vpop.trf.xlu0
        %v2973 = vpop.trf.xlu0
        %v2974 = vpop.trf.xlu0
        %v2975 = vpop.trf.xlu0
        %v2976 = vpop.trf.xlu0
        %v2977 = vpop.trf.xlu0
        %v2978 = vpop.trf.xlu0
        %v2979 = vpop.trf.xlu0
        %2980 = vxpose.xlu0.b32.start [1/16] %v2685, 128
        %2981 = vxpose.xlu0.b32.cont [2/16] 0.0, 128
        %2982 = vxpose.xlu0.b32.cont [3/16] 0.0, 128
        %2983 = vxpose.xlu0.b32.cont [4/16] 0.0, 128
        %2984 = vxpose.xlu0.b32.cont [5/16] 0.0, 128
        %2985 = vxpose.xlu0.b32.cont [6/16] 0.0, 128
        %2986 = vxpose.xlu0.b32.cont [7/16] 0.0, 128
        %2987 = vxpose.xlu0.b32.cont [8/16] 0.0, 128
        %2988 = vxpose.xlu0.b32.cont [9/16] 0.0, 128
        %2989 = vxpose.xlu0.b32.cont [10/16] 0.0, 128
        %2990 = vxpose.xlu0.b32.cont [11/16] 0.0, 128
        %2991 = vxpose.xlu0.b32.cont [12/16] 0.0, 128
        %2992 = vxpose.xlu0.b32.cont [13/16] 0.0, 128
        %2993 = vxpose.xlu0.b32.cont [14/16] 0.0, 128
        %2994 = vxpose.xlu0.b32.cont [15/16] 0.0, 128
        %2995 = vxpose.xlu0.b32.end [16/16] 0.0, 128
        %v2996 = vpop.trf.xlu0
        %v2997 = vpop.trf.xlu0
        %v2998 = vpop.trf.xlu0
        %v2999 = vpop.trf.xlu0
        %v3000 = vpop.trf.xlu0
        %v3001 = vpop.trf.xlu0
        %v3002 = vpop.trf.xlu0
        %v3003 = vpop.trf.xlu0
        %v3004 = vpop.trf.xlu0
        %v3005 = vpop.trf.xlu0
        %v3006 = vpop.trf.xlu0
        %v3007 = vpop.trf.xlu0
        %v3008 = vpop.trf.xlu0
        %v3009 = vpop.trf.xlu0
        %v3010 = vpop.trf.xlu0
        %v3011 = vpop.trf.xlu0
        %3012 = vxpose.xlu0.b32.start [1/16] %v2728, 128
        %3013 = vxpose.xlu0.b32.cont [2/16] 0.0, 128
        %3014 = vxpose.xlu0.b32.cont [3/16] 0.0, 128
        %3015 = vxpose.xlu0.b32.cont [4/16] 0.0, 128
        %3016 = vxpose.xlu0.b32.cont [5/16] 0.0, 128
        %3017 = vxpose.xlu0.b32.cont [6/16] 0.0, 128
        %3018 = vxpose.xlu0.b32.cont [7/16] 0.0, 128
        %3019 = vxpose.xlu0.b32.cont [8/16] 0.0, 128
        %3020 = vxpose.xlu0.b32.cont [9/16] 0.0, 128
        %3021 = vxpose.xlu0.b32.cont [10/16] 0.0, 128
        %3022 = vxpose.xlu0.b32.cont [11/16] 0.0, 128
        %3023 = vxpose.xlu0.b32.cont [12/16] 0.0, 128
        %3024 = vxpose.xlu0.b32.cont [13/16] 0.0, 128
        %3025 = vxpose.xlu0.b32.cont [14/16] 0.0, 128
        %3026 = vxpose.xlu0.b32.cont [15/16] 0.0, 128
        %3027 = vxpose.xlu0.b32.end [16/16] 0.0, 128
        %v3028 = vpop.trf.xlu0
        %v3029 = vpop.trf.xlu0
        %v3030 = vpop.trf.xlu0
        %v3031 = vpop.trf.xlu0
        %v3032 = vpop.trf.xlu0
        %v3033 = vpop.trf.xlu0
        %v3034 = vpop.trf.xlu0
        %v3035 = vpop.trf.xlu0
        %v3036 = vpop.trf.xlu0
        %v3037 = vpop.trf.xlu0
        %v3038 = vpop.trf.xlu0
        %v3039 = vpop.trf.xlu0
        %v3040 = vpop.trf.xlu0
        %v3041 = vpop.trf.xlu0
        %v3042 = vpop.trf.xlu0
        %v3043 = vpop.trf.xlu0
        %3044 = vxpose.xlu0.b32.start [1/16] %v2771, 128
        %3045 = vxpose.xlu0.b32.cont [2/16] 0.0, 128
        %3046 = vxpose.xlu0.b32.cont [3/16] 0.0, 128
        %3047 = vxpose.xlu0.b32.cont [4/16] 0.0, 128
        %3048 = vxpose.xlu0.b32.cont [5/16] 0.0, 128
        %3049 = vxpose.xlu0.b32.cont [6/16] 0.0, 128
        %3050 = vxpose.xlu0.b32.cont [7/16] 0.0, 128
        %3051 = vxpose.xlu0.b32.cont [8/16] 0.0, 128
        %3052 = vxpose.xlu0.b32.cont [9/16] 0.0, 128
        %3053 = vxpose.xlu0.b32.cont [10/16] 0.0, 128
        %3054 = vxpose.xlu0.b32.cont [11/16] 0.0, 128
        %3055 = vxpose.xlu0.b32.cont [12/16] 0.0, 128
        %3056 = vxpose.xlu0.b32.cont [13/16] 0.0, 128
        %3057 = vxpose.xlu0.b32.cont [14/16] 0.0, 128
        %3058 = vxpose.xlu0.b32.cont [15/16] 0.0, 128
        %3059 = vxpose.xlu0.b32.end [16/16] 0.0, 128
        %v3060 = vpop.trf.xlu0
        %v3061 = vpop.trf.xlu0
        %v3062 = vpop.trf.xlu0
        %v3063 = vpop.trf.xlu0
        %v3064 = vpop.trf.xlu0
        %v3065 = vpop.trf.xlu0
        %v3066 = vpop.trf.xlu0
        %v3067 = vpop.trf.xlu0
        %v3068 = vpop.trf.xlu0
        %v3069 = vpop.trf.xlu0
        %v3070 = vpop.trf.xlu0
        %v3071 = vpop.trf.xlu0
        %v3072 = vpop.trf.xlu0
        %v3073 = vpop.trf.xlu0
        %v3074 = vpop.trf.xlu0
        %v3075 = vpop.trf.xlu0
        %3076 = vxpose.xlu0.b32.start [1/16] %v2814, 128
        %3077 = vxpose.xlu0.b32.cont [2/16] 0.0, 128
        %3078 = vxpose.xlu0.b32.cont [3/16] 0.0, 128
        %3079 = vxpose.xlu0.b32.cont [4/16] 0.0, 128
        %3080 = vxpose.xlu0.b32.cont [5/16] 0.0, 128
        %3081 = vxpose.xlu0.b32.cont [6/16] 0.0, 128
        %3082 = vxpose.xlu0.b32.cont [7/16] 0.0, 128
        %3083 = vxpose.xlu0.b32.cont [8/16] 0.0, 128
        %3084 = vxpose.xlu0.b32.cont [9/16] 0.0, 128
        %3085 = vxpose.xlu0.b32.cont [10/16] 0.0, 128
        %3086 = vxpose.xlu0.b32.cont [11/16] 0.0, 128
        %3087 = vxpose.xlu0.b32.cont [12/16] 0.0, 128
        %3088 = vxpose.xlu0.b32.cont [13/16] 0.0, 128
        %3089 = vxpose.xlu0.b32.cont [14/16] 0.0, 128
        %3090 = vxpose.xlu0.b32.cont [15/16] 0.0, 128
        %3091 = vxpose.xlu0.b32.end [16/16] 0.0, 128
        %v3092 = vpop.trf.xlu0
        %v3093 = vpop.trf.xlu0
        %v3094 = vpop.trf.xlu0
        %v3095 = vpop.trf.xlu0
        %v3096 = vpop.trf.xlu0
        %v3097 = vpop.trf.xlu0
        %v3098 = vpop.trf.xlu0
        %v3099 = vpop.trf.xlu0
        %v3100 = vpop.trf.xlu0
        %v3101 = vpop.trf.xlu0
        %v3102 = vpop.trf.xlu0
        %v3103 = vpop.trf.xlu0
        %v3104 = vpop.trf.xlu0
        %v3105 = vpop.trf.xlu0
        %v3106 = vpop.trf.xlu0
        %v3107 = vpop.trf.xlu0
        %3108 = vxpose.xlu0.b32.start [1/16] %v2857, 128
        %3109 = vxpose.xlu0.b32.cont [2/16] 0.0, 128
        %3110 = vxpose.xlu0.b32.cont [3/16] 0.0, 128
        %3111 = vxpose.xlu0.b32.cont [4/16] 0.0, 128
        %3112 = vxpose.xlu0.b32.cont [5/16] 0.0, 128
        %3113 = vxpose.xlu0.b32.cont [6/16] 0.0, 128
        %3114 = vxpose.xlu0.b32.cont [7/16] 0.0, 128
        %3115 = vxpose.xlu0.b32.cont [8/16] 0.0, 128
        %3116 = vxpose.xlu0.b32.cont [9/16] 0.0, 128
        %3117 = vxpose.xlu0.b32.cont [10/16] 0.0, 128
        %3118 = vxpose.xlu0.b32.cont [11/16] 0.0, 128
        %3119 = vxpose.xlu0.b32.cont [12/16] 0.0, 128
        %3120 = vxpose.xlu0.b32.cont [13/16] 0.0, 128
        %3121 = vxpose.xlu0.b32.cont [14/16] 0.0, 128
        %3122 = vxpose.xlu0.b32.cont [15/16] 0.0, 128
        %3123 = vxpose.xlu0.b32.end [16/16] 0.0, 128
        %v3124 = vpop.trf.xlu0
        %v3125 = vpop.trf.xlu0
        %v3126 = vpop.trf.xlu0
        %v3127 = vpop.trf.xlu0
        %v3128 = vpop.trf.xlu0
        %v3129 = vpop.trf.xlu0
        %v3130 = vpop.trf.xlu0
        %v3131 = vpop.trf.xlu0
        %v3132 = vpop.trf.xlu0
        %v3133 = vpop.trf.xlu0
        %v3134 = vpop.trf.xlu0
        %v3135 = vpop.trf.xlu0
        %v3136 = vpop.trf.xlu0
        %v3137 = vpop.trf.xlu0
        %v3138 = vpop.trf.xlu0
        %v3139 = vpop.trf.xlu0
        %3140 = vxpose.xlu0.b32.start [1/16] %v2900, 128
        %3141 = vxpose.xlu0.b32.cont [2/16] 0.0, 128
        %3142 = vxpose.xlu0.b32.cont [3/16] 0.0, 128
        %3143 = vxpose.xlu0.b32.cont [4/16] 0.0, 128
        %3144 = vxpose.xlu0.b32.cont [5/16] 0.0, 128
        %3145 = vxpose.xlu0.b32.cont [6/16] 0.0, 128
        %3146 = vxpose.xlu0.b32.cont [7/16] 0.0, 128
        %3147 = vxpose.xlu0.b32.cont [8/16] 0.0, 128
        %3148 = vxpose.xlu0.b32.cont [9/16] 0.0, 128
        %3149 = vxpose.xlu0.b32.cont [10/16] 0.0, 128
        %3150 = vxpose.xlu0.b32.cont [11/16] 0.0, 128
        %3151 = vxpose.xlu0.b32.cont [12/16] 0.0, 128
        %3152 = vxpose.xlu0.b32.cont [13/16] 0.0, 128
        %3153 = vxpose.xlu0.b32.cont [14/16] 0.0, 128
        %3154 = vxpose.xlu0.b32.cont [15/16] 0.0, 128
        %3155 = vxpose.xlu0.b32.end [16/16] 0.0, 128
        %v3156 = vpop.trf.xlu0
        %v3157 = vpop.trf.xlu0
        %v3158 = vpop.trf.xlu0
        %v3159 = vpop.trf.xlu0
        %v3160 = vpop.trf.xlu0
        %v3161 = vpop.trf.xlu0
        %v3162 = vpop.trf.xlu0
        %v3163 = vpop.trf.xlu0
        %v3164 = vpop.trf.xlu0
        %v3165 = vpop.trf.xlu0
        %v3166 = vpop.trf.xlu0
        %v3167 = vpop.trf.xlu0
        %v3168 = vpop.trf.xlu0
        %v3169 = vpop.trf.xlu0
        %v3170 = vpop.trf.xlu0
        %v3171 = vpop.trf.xlu0
        %3172 = vxpose.xlu0.b32.start [1/16] %v2943, 128
        %3173 = vxpose.xlu0.b32.cont [2/16] 0.0, 128
        %3174 = vxpose.xlu0.b32.cont [3/16] 0.0, 128
        %3175 = vxpose.xlu0.b32.cont [4/16] 0.0, 128
        %3176 = vxpose.xlu0.b32.cont [5/16] 0.0, 128
        %3177 = vxpose.xlu0.b32.cont [6/16] 0.0, 128
        %3178 = vxpose.xlu0.b32.cont [7/16] 0.0, 128
        %3179 = vxpose.xlu0.b32.cont [8/16] 0.0, 128
        %3180 = vxpose.xlu0.b32.cont [9/16] 0.0, 128
        %3181 = vxpose.xlu0.b32.cont [10/16] 0.0, 128
        %3182 = vxpose.xlu0.b32.cont [11/16] 0.0, 128
        %3183 = vxpose.xlu0.b32.cont [12/16] 0.0, 128
        %3184 = vxpose.xlu0.b32.cont [13/16] 0.0, 128
        %3185 = vxpose.xlu0.b32.cont [14/16] 0.0, 128
        %3186 = vxpose.xlu0.b32.cont [15/16] 0.0, 128
        %3187 = vxpose.xlu0.b32.end [16/16] 0.0, 128
        %v3188 = vpop.trf.xlu0
        %v3189 = vpop.trf.xlu0
        %v3190 = vpop.trf.xlu0
        %v3191 = vpop.trf.xlu0
        %v3192 = vpop.trf.xlu0
        %v3193 = vpop.trf.xlu0
        %v3194 = vpop.trf.xlu0
        %v3195 = vpop.trf.xlu0
        %v3196 = vpop.trf.xlu0
        %v3197 = vpop.trf.xlu0
        %v3198 = vpop.trf.xlu0
        %v3199 = vpop.trf.xlu0
        %v3200 = vpop.trf.xlu0
        %v3201 = vpop.trf.xlu0
        %v3202 = vpop.trf.xlu0
        %v3203 = vpop.trf.xlu0
        %v3204 = vcombine.low %v2964, %v3028
        %v3206 = vunpack.c.l.s4 1983009808
        %v3207 = vunpack.c.0.s8 %v3206
        %v3208 = vlaneseq
        %v3209 = vshrl.u32 %v3208, 7
        %v3210 = vsub.s32 %v3207, %v3209
        %v3211 = vrot.slane %v3204, %v3210
        %v3212 = vcombine.low %v2996, %v3060
        %v3214 = vunpack.c.l.s4 1983009808
        %v3215 = vunpack.c.0.s8 %v3214
        %v3216 = vlaneseq
        %v3217 = vshrl.u32 %v3216, 7
        %v3218 = vsub.s32 %v3215, %v3217
        %v3219 = vrot.slane %v3212, %v3218
        %v3220 = vcombine.low %v3092, %v3156
        %v3222 = vunpack.c.l.s4 1983009808
        %v3223 = vunpack.c.0.s8 %v3222
        %v3224 = vlaneseq
        %v3225 = vshrl.u32 %v3224, 7
        %v3226 = vsub.s32 %v3223, %v3225
        %v3227 = vrot.slane %v3220, %v3226
        %v3228 = vcombine.low %v3124, %v3188
        %v3230 = vunpack.c.l.s4 1983009808
        %v3231 = vunpack.c.0.s8 %v3230
        %v3232 = vlaneseq
        %v3233 = vshrl.u32 %v3232, 7
        %v3234 = vsub.s32 %v3231, %v3233
        %v3235 = vrot.slane %v3228, %v3234
        %v3236 = vcombine.low %v3211, %v3219
        %v3237 = vcombine.high %v3211, %v3219
        %v3239 = vunpack.c.l.s4 1934713408
        %v3240 = vunpack.c.0.s8 %v3239
        %v3241 = vlaneseq
        %v3242 = vshrl.u32 %v3241, 7
        %v3243 = vsub.s32 %v3240, %v3242
        %v3244 = vrot.slane %v3236, %v3243
        %v3246 = vunpack.c.l.s4 1934713408
        %v3247 = vunpack.c.0.s8 %v3246
        %v3248 = vlaneseq
        %v3249 = vshrl.u32 %v3248, 7
        %v3250 = vsub.s32 %v3247, %v3249
        %v3251 = vrot.slane %v3237, %v3250
        %v3252 = vcombine.low %v3227, %v3235
        %v3253 = vcombine.high %v3227, %v3235
        %v3255 = vunpack.c.l.s4 1934713408
        %v3256 = vunpack.c.0.s8 %v3255
        %v3257 = vlaneseq
        %v3258 = vshrl.u32 %v3257, 7
        %v3259 = vsub.s32 %v3256, %v3258
        %v3260 = vrot.slane %v3252, %v3259
        %v3262 = vunpack.c.l.s4 1934713408
        %v3263 = vunpack.c.0.s8 %v3262
        %v3264 = vlaneseq
        %v3265 = vshrl.u32 %v3264, 7
        %v3266 = vsub.s32 %v3263, %v3265
        %v3267 = vrot.slane %v3253, %v3266
        %v3268 = vcombine.low %v3244, %v3260
        %v3269 = vcombine.high %v3244, %v3260
        %v3270 = vcombine.low %v3251, %v3267
        %v3271 = vcombine.high %v3251, %v3267
        %v3272 = vld [vmem:[#allocation12] sm:$0x1]
        %v3273 = vld [vmem:[#allocation12 + $0x1] sm:$0x1]
        %v3274 = vld [vmem:[#allocation12 + $0x2] sm:$0x1]
        %v3275 = vld [vmem:[#allocation12 + $0x3] sm:$0x1]
        %v3280 = vlaneseq
        %v3281 = vshrl.u32 %v3280, 7
        %v3282 = vsub.s32 0, %v3281
        %v3283 = vrot.slane %v3272, %v3282
        %v3284 = vlaneseq
        %v3285 = vshrl.u32 %v3284, 7
        %v3286 = vsub.s32 0, %v3285
        %v3287 = vrot.slane %v3273, %v3286
        %v3288 = vlaneseq
        %v3289 = vshrl.u32 %v3288, 7
        %v3290 = vsub.s32 0, %v3289
        %v3291 = vrot.slane %v3274, %v3290
        %v3292 = vlaneseq
        %v3293 = vshrl.u32 %v3292, 7
        %v3294 = vsub.s32 0, %v3293
        %v3295 = vrot.slane %v3275, %v3294
        %v3300 = vmul.f32 %v1102, %v3283
        %v3301 = vmul.f32 %v1109, %v3287
        %v3302 = vmul.f32 %v1112, %v3291
        %v3303 = vmul.f32 %v1115, %v3295
        %v3304 = vsel %vm1151, %v3300, 0.0
        %3305 = vadd.xlane.f32.xlu0 %v3304
        %v3306 = vpop.xlane.xlu0 %3305
        %v3307 = vsel %vm1151, %v3301, 0.0
        %3308 = vadd.xlane.f32.xlu0 %v3307
        %v3309 = vpop.xlane.xlu0 %3308
        %v3310 = vsel %vm1151, %v3302, 0.0
        %3311 = vadd.xlane.f32.xlu0 %v3310
        %v3312 = vpop.xlane.xlu0 %3311
        %v3313 = vsel %vm1151, %v3303, 0.0
        %3314 = vadd.xlane.f32.xlu0 %v3313
        %v3315 = vpop.xlane.xlu0 %3314
        %v3317 = vsel %vm1151, %v1121, 0
        %3319 = vmatprep.subr.bf16.mxu0 0
        %3320 = vmatpush1.bf16.xpose.msra.mxu0 %v3317
        %3321 = vmatprep.subr.bf16.mxu0 0
        %3322 = vmatpush1.bf16.xpose.msra.mxu0 0
        %3323 = vmatprep.subr.bf16.mxu0 0
        %3324 = vmatpush1.bf16.xpose.msra.mxu0 0
        %3325 = vmatprep.subr.bf16.mxu0 0
        %3326 = vmatpush1.bf16.xpose.msra.mxu0 0
        %3327 = vmatprep.subr.bf16.mxu0 0
        %3328 = vmatpush1.bf16.xpose.msra.mxu0 0
        %3329 = vmatprep.subr.bf16.mxu0 0
        %3330 = vmatpush1.bf16.xpose.msra.mxu0 0
        %3331 = vmatprep.subr.bf16.mxu0 0
        %3332 = vmatpush1.bf16.xpose.msra.mxu0 0
        %3333 = vmatprep.subr.bf16.mxu0 0
        %3334 = vmatpush1.bf16.xpose.msra.mxu0 0
        %3335 = vmatprep.subr.bf16.mxu0 0
        %3336 = vmatpush1.bf16.xpose.msra.mxu0 0
        %3337 = vmatprep.subr.bf16.mxu0 0
        %3338 = vmatpush1.bf16.xpose.msra.mxu0 0
        %3339 = vmatprep.subr.bf16.mxu0 0
        %3340 = vmatpush1.bf16.xpose.msra.mxu0 0
        %3341 = vmatprep.subr.bf16.mxu0 0
        %3342 = vmatpush1.bf16.xpose.msra.mxu0 0
        %3343 = vmatprep.subr.bf16.mxu0 0
        %3344 = vmatpush1.bf16.xpose.msra.mxu0 0
        %3345 = vmatprep.subr.bf16.mxu0 0
        %3346 = vmatpush1.bf16.xpose.msra.mxu0 0
        %3347 = vmatprep.subr.bf16.mxu0 0
        %3348 = vmatpush1.bf16.xpose.msra.mxu0 0
        %3349 = vmatprep.subr.bf16.mxu0 0
        %3350 = vmatpush1.bf16.xpose.msra.mxu0 0
        %3351 = vmatprep.mubr.bf16.mxu0 0
        %3352 = vmatmul.mubr.bf16.gmra.mrb[0].mxu0 %v1153
        %v3353 = vpop.f32.mrb[0].mxu0
        %v3354 = vadd.f32 %v3268, %v3353
        %v3355 = vpop.f32.mrb[0].mxu0
        %v3356 = vpop.f32.mrb[0].mxu0
        %v3357 = vpop.f32.mrb[0].mxu0
        %3358 = vdwg.mxu0
        %v3360 = vsel %vm1151, %v1122, 0
        %3362 = vmatprep.subr.bf16.mxu0 0
        %3363 = vmatpush1.bf16.xpose.msra.mxu0 %v3360
        %3364 = vmatprep.subr.bf16.mxu0 0
        %3365 = vmatpush1.bf16.xpose.msra.mxu0 0
        %3366 = vmatprep.subr.bf16.mxu0 0
        %3367 = vmatpush1.bf16.xpose.msra.mxu0 0
        %3368 = vmatprep.subr.bf16.mxu0 0
        %3369 = vmatpush1.bf16.xpose.msra.mxu0 0
        %3370 = vmatprep.subr.bf16.mxu0 0
        %3371 = vmatpush1.bf16.xpose.msra.mxu0 0
        %3372 = vmatprep.subr.bf16.mxu0 0
        %3373 = vmatpush1.bf16.xpose.msra.mxu0 0
        %3374 = vmatprep.subr.bf16.mxu0 0
        %3375 = vmatpush1.bf16.xpose.msra.mxu0 0
        %3376 = vmatprep.subr.bf16.mxu0 0
        %3377 = vmatpush1.bf16.xpose.msra.mxu0 0
        %3378 = vmatprep.subr.bf16.mxu0 0
        %3379 = vmatpush1.bf16.xpose.msra.mxu0 0
        %3380 = vmatprep.subr.bf16.mxu0 0
        %3381 = vmatpush1.bf16.xpose.msra.mxu0 0
        %3382 = vmatprep.subr.bf16.mxu0 0
        %3383 = vmatpush1.bf16.xpose.msra.mxu0 0
        %3384 = vmatprep.subr.bf16.mxu0 0
        %3385 = vmatpush1.bf16.xpose.msra.mxu0 0
        %3386 = vmatprep.subr.bf16.mxu0 0
        %3387 = vmatpush1.bf16.xpose.msra.mxu0 0
        %3388 = vmatprep.subr.bf16.mxu0 0
        %3389 = vmatpush1.bf16.xpose.msra.mxu0 0
        %3390 = vmatprep.subr.bf16.mxu0 0
        %3391 = vmatpush1.bf16.xpose.msra.mxu0 0
        %3392 = vmatprep.subr.bf16.mxu0 0
        %3393 = vmatpush1.bf16.xpose.msra.mxu0 0
        %3394 = vmatprep.mubr.bf16.mxu0 0
        %3395 = vmatmul.mubr.bf16.gmra.mrb[0].mxu0 %v1212
        %v3396 = vpop.f32.mrb[0].mxu0
        %v3397 = vadd.f32 %v3269, %v3396
        %v3398 = vpop.f32.mrb[0].mxu0
        %v3399 = vpop.f32.mrb[0].mxu0
        %v3400 = vpop.f32.mrb[0].mxu0
        %3401 = vdwg.mxu0
        %v3403 = vsel %vm1151, %v1123, 0
        %3405 = vmatprep.subr.bf16.mxu0 0
        %3406 = vmatpush1.bf16.xpose.msra.mxu0 %v3403
        %3407 = vmatprep.subr.bf16.mxu0 0
        %3408 = vmatpush1.bf16.xpose.msra.mxu0 0
        %3409 = vmatprep.subr.bf16.mxu0 0
        %3410 = vmatpush1.bf16.xpose.msra.mxu0 0
        %3411 = vmatprep.subr.bf16.mxu0 0
        %3412 = vmatpush1.bf16.xpose.msra.mxu0 0
        %3413 = vmatprep.subr.bf16.mxu0 0
        %3414 = vmatpush1.bf16.xpose.msra.mxu0 0
        %3415 = vmatprep.subr.bf16.mxu0 0
        %3416 = vmatpush1.bf16.xpose.msra.mxu0 0
        %3417 = vmatprep.subr.bf16.mxu0 0
        %3418 = vmatpush1.bf16.xpose.msra.mxu0 0
        %3419 = vmatprep.subr.bf16.mxu0 0
        %3420 = vmatpush1.bf16.xpose.msra.mxu0 0
        %3421 = vmatprep.subr.bf16.mxu0 0
        %3422 = vmatpush1.bf16.xpose.msra.mxu0 0
        %3423 = vmatprep.subr.bf16.mxu0 0
        %3424 = vmatpush1.bf16.xpose.msra.mxu0 0
        %3425 = vmatprep.subr.bf16.mxu0 0
        %3426 = vmatpush1.bf16.xpose.msra.mxu0 0
        %3427 = vmatprep.subr.bf16.mxu0 0
        %3428 = vmatpush1.bf16.xpose.msra.mxu0 0
        %3429 = vmatprep.subr.bf16.mxu0 0
        %3430 = vmatpush1.bf16.xpose.msra.mxu0 0
        %3431 = vmatprep.subr.bf16.mxu0 0
        %3432 = vmatpush1.bf16.xpose.msra.mxu0 0
        %3433 = vmatprep.subr.bf16.mxu0 0
        %3434 = vmatpush1.bf16.xpose.msra.mxu0 0
        %3435 = vmatprep.subr.bf16.mxu0 0
        %3436 = vmatpush1.bf16.xpose.msra.mxu0 0
        %3437 = vmatprep.mubr.bf16.mxu0 0
        %3438 = vmatmul.mubr.bf16.gmra.mrb[0].mxu0 %v1271
        %v3439 = vpop.f32.mrb[0].mxu0
        %v3440 = vadd.f32 %v3270, %v3439
        %v3441 = vpop.f32.mrb[0].mxu0
        %v3442 = vpop.f32.mrb[0].mxu0
        %v3443 = vpop.f32.mrb[0].mxu0
        %3444 = vdwg.mxu0
        %v3446 = vsel %vm1151, %v1124, 0
        %3448 = vmatprep.subr.bf16.mxu0 0
        %3449 = vmatpush1.bf16.xpose.msra.mxu0 %v3446
        %3450 = vmatprep.subr.bf16.mxu0 0
        %3451 = vmatpush1.bf16.xpose.msra.mxu0 0
        %3452 = vmatprep.subr.bf16.mxu0 0
        %3453 = vmatpush1.bf16.xpose.msra.mxu0 0
        %3454 = vmatprep.subr.bf16.mxu0 0
        %3455 = vmatpush1.bf16.xpose.msra.mxu0 0
        %3456 = vmatprep.subr.bf16.mxu0 0
        %3457 = vmatpush1.bf16.xpose.msra.mxu0 0
        %3458 = vmatprep.subr.bf16.mxu0 0
        %3459 = vmatpush1.bf16.xpose.msra.mxu0 0
        %3460 = vmatprep.subr.bf16.mxu0 0
        %3461 = vmatpush1.bf16.xpose.msra.mxu0 0
        %3462 = vmatprep.subr.bf16.mxu0 0
        %3463 = vmatpush1.bf16.xpose.msra.mxu0 0
        %3464 = vmatprep.subr.bf16.mxu0 0
        %3465 = vmatpush1.bf16.xpose.msra.mxu0 0
        %3466 = vmatprep.subr.bf16.mxu0 0
        %3467 = vmatpush1.bf16.xpose.msra.mxu0 0
        %3468 = vmatprep.subr.bf16.mxu0 0
        %3469 = vmatpush1.bf16.xpose.msra.mxu0 0
        %3470 = vmatprep.subr.bf16.mxu0 0
        %3471 = vmatpush1.bf16.xpose.msra.mxu0 0
        %3472 = vmatprep.subr.bf16.mxu0 0
        %3473 = vmatpush1.bf16.xpose.msra.mxu0 0
        %3474 = vmatprep.subr.bf16.mxu0 0
        %3475 = vmatpush1.bf16.xpose.msra.mxu0 0
        %3476 = vmatprep.subr.bf16.mxu0 0
        %3477 = vmatpush1.bf16.xpose.msra.mxu0 0
        %3478 = vmatprep.subr.bf16.mxu0 0
        %3479 = vmatpush1.bf16.xpose.msra.mxu0 0
        %3480 = vmatprep.mubr.bf16.mxu0 0
        %3481 = vmatmul.mubr.bf16.gmra.mrb[0].mxu0 %v1330
        %v3482 = vpop.f32.mrb[0].mxu0
        %v3483 = vadd.f32 %v3271, %v3482
        %v3484 = vpop.f32.mrb[0].mxu0
        %v3485 = vpop.f32.mrb[0].mxu0
        %v3486 = vpop.f32.mrb[0].mxu0
        %3487 = vdwg.mxu0
        %v3488 = vadd.f32 %v3354, %v3306
        %v3489 = vadd.f32 %v3397, %v3309
        %v3490 = vadd.f32 %v3440, %v3312
        %v3491 = vadd.f32 %v3483, %v3315
        %v3492 = vmul.f32 %v3488, 0.35355338
        %v3493 = vmul.f32 %v3489, 0.35355338
        %v3494 = vmul.f32 %v3490, 0.35355338
        %v3495 = vmul.f32 %v3491, 0.35355338
        %v3496 = vsel %vm1151, %v3492, -inf
        %3497 = vmax.xlane.f32.xlu0 %v3496
        %v3498 = vpop.xlane.xlu0 %3497
        %v3499 = vsel %vm1151, %v3493, -inf
        %3500 = vmax.xlane.f32.xlu0 %v3499
        %v3501 = vpop.xlane.xlu0 %3500
        %v3502 = vsel %vm1151, %v3494, -inf
        %3503 = vmax.xlane.f32.xlu0 %v3502
        %v3504 = vpop.xlane.xlu0 %3503
        %v3505 = vsel %vm1151, %v3495, -inf
        %3506 = vmax.xlane.f32.xlu0 %v3505
        %v3507 = vpop.xlane.xlu0 %3506
        %v3508 = vsub.f32 %v3492, %v3498
        %v3509 = vsub.f32 %v3493, %v3501
        %v3510 = vsub.f32 %v3494, %v3504
        %v3511 = vsub.f32 %v3495, %v3507
        %v3512 = vmul.f32 %v3508, 1.442695
        %v3513 = vpow.pop %v3512
        %v3514 = vmul.f32 %v3509, 1.442695
        %v3515 = vpow.pop %v3514
        %v3516 = vmul.f32 %v3510, 1.442695
        %v3517 = vpow.pop %v3516
        %v3518 = vmul.f32 %v3511, 1.442695
        %v3519 = vpow.pop %v3518
        %v3520 = vsel %vm1151, %v3513, 0.0
        %3521 = vadd.xlane.f32.xlu0 %v3520
        %v3522 = vpop.xlane.xlu0 %3521
        %v3523 = vsel %vm1151, %v3515, 0.0
        %3524 = vadd.xlane.f32.xlu0 %v3523
        %v3525 = vpop.xlane.xlu0 %3524
        %v3526 = vsel %vm1151, %v3517, 0.0
        %3527 = vadd.xlane.f32.xlu0 %v3526
        %v3528 = vpop.xlane.xlu0 %3527
        %v3529 = vsel %vm1151, %v3519, 0.0
        %3530 = vadd.xlane.f32.xlu0 %v3529
        %v3531 = vpop.xlane.xlu0 %3530
        %v3532 = vrcp.pop %v3522
        %v3533 = vrcp.pop %v3525
        %v3534 = vrcp.pop %v3528
        %v3535 = vrcp.pop %v3531
        %v3536 = vmul.f32 %v3513, %v3532
        %v3537 = vmul.f32 %v3515, %v3533
        %v3538 = vmul.f32 %v3517, %v3534
        %v3539 = vmul.f32 %v3519, %v3535
        %3540 = vst.msk [vmem:[%s842] sm:$0xff] %vm1151, %v3536
        %3541 = vst.msk [vmem:[%s842 + $0x8] sm:$0xff] %vm1151, %v3537
        %3542 = vst.msk [vmem:[%s842 + $0x10] sm:$0xff] %vm1151, %v3538
        %3543 = vst.msk [vmem:[%s842 + $0x18] sm:$0xff] %vm1151, %v3539
        %v3544 = vpack.c.bf16 %v3536, %v3536
        %v3545 = vpack.c.bf16 %v3537, %v3537
        %v3546 = vpack.c.bf16 %v3538, %v3538
        %v3547 = vpack.c.bf16 %v3539, %v3539
        %v3548 = vld [vmem:[#allocation3] sm:$0xf]
        %v3549 = vld [vmem:[#allocation3 + $0x4] sm:$0xf]
        %v3550 = vld [vmem:[#allocation3 + $0x8] sm:$0xf]
        %v3551 = vld [vmem:[#allocation3 + $0xc] sm:$0xf]
        %v3553 = vsel %vm1151, %v3544, 0
        %vm3555 = vcmask 1043456
        %v3557 = vsel %vm3555, %v3548, 0
        %3559 = vmatprep.subr.bf16.mxu0 0
        %3560 = vmatpush1.bf16.msra.mxu0 %v3557
        %3561 = vmatprep.subr.bf16.mxu0 0
        %3562 = vmatpush1.bf16.msra.mxu0 0
        %3563 = vmatprep.subr.bf16.mxu0 0
        %3564 = vmatpush1.bf16.msra.mxu0 0
        %3565 = vmatprep.subr.bf16.mxu0 0
        %3566 = vmatpush1.bf16.msra.mxu0 0
        %3567 = vmatprep.subr.bf16.mxu0 0
        %3568 = vmatpush1.bf16.msra.mxu0 0
        %3569 = vmatprep.subr.bf16.mxu0 0
        %3570 = vmatpush1.bf16.msra.mxu0 0
        %3571 = vmatprep.subr.bf16.mxu0 0
        %3572 = vmatpush1.bf16.msra.mxu0 0
        %3573 = vmatprep.subr.bf16.mxu0 0
        %3574 = vmatpush1.bf16.msra.mxu0 0
        %3575 = vmatprep.subr.bf16.mxu0 0
        %3576 = vmatpush1.bf16.msra.mxu0 0
        %3577 = vmatprep.subr.bf16.mxu0 0
        %3578 = vmatpush1.bf16.msra.mxu0 0
        %3579 = vmatprep.subr.bf16.mxu0 0
        %3580 = vmatpush1.bf16.msra.mxu0 0
        %3581 = vmatprep.subr.bf16.mxu0 0
        %3582 = vmatpush1.bf16.msra.mxu0 0
        %3583 = vmatprep.subr.bf16.mxu0 0
        %3584 = vmatpush1.bf16.msra.mxu0 0
        %3585 = vmatprep.subr.bf16.mxu0 0
        %3586 = vmatpush1.bf16.msra.mxu0 0
        %3587 = vmatprep.subr.bf16.mxu0 0
        %3588 = vmatpush1.bf16.msra.mxu0 0
        %3589 = vmatprep.subr.bf16.mxu0 0
        %3590 = vmatpush1.bf16.msra.mxu0 0
        %3591 = vmatprep.mubr.bf16.mxu0 0
        %3592 = vmatmul.mubr.bf16.gmra.mrb[0].mxu0 %v3553
        %v3593 = vpop.f32.mrb[0].mxu0
        %v3594 = vadd.f32 0.0, %v3593
        %v3595 = vpop.f32.mrb[0].mxu0
        %v3596 = vpop.f32.mrb[0].mxu0
        %v3597 = vpop.f32.mrb[0].mxu0
        %3598 = vdwg.mxu0
        %v3600 = vsel %vm1151, %v3545, 0
        %v3603 = vsel %vm3555, %v3549, 0
        %3605 = vmatprep.subr.bf16.mxu0 0
        %3606 = vmatpush1.bf16.msra.mxu0 %v3603
        %3607 = vmatprep.subr.bf16.mxu0 0
        %3608 = vmatpush1.bf16.msra.mxu0 0
        %3609 = vmatprep.subr.bf16.mxu0 0
        %3610 = vmatpush1.bf16.msra.mxu0 0
        %3611 = vmatprep.subr.bf16.mxu0 0
        %3612 = vmatpush1.bf16.msra.mxu0 0
        %3613 = vmatprep.subr.bf16.mxu0 0
        %3614 = vmatpush1.bf16.msra.mxu0 0
        %3615 = vmatprep.subr.bf16.mxu0 0
        %3616 = vmatpush1.bf16.msra.mxu0 0
        %3617 = vmatprep.subr.bf16.mxu0 0
        %3618 = vmatpush1.bf16.msra.mxu0 0
        %3619 = vmatprep.subr.bf16.mxu0 0
        %3620 = vmatpush1.bf16.msra.mxu0 0
        %3621 = vmatprep.subr.bf16.mxu0 0
        %3622 = vmatpush1.bf16.msra.mxu0 0
        %3623 = vmatprep.subr.bf16.mxu0 0
        %3624 = vmatpush1.bf16.msra.mxu0 0
        %3625 = vmatprep.subr.bf16.mxu0 0
        %3626 = vmatpush1.bf16.msra.mxu0 0
        %3627 = vmatprep.subr.bf16.mxu0 0
        %3628 = vmatpush1.bf16.msra.mxu0 0
        %3629 = vmatprep.subr.bf16.mxu0 0
        %3630 = vmatpush1.bf16.msra.mxu0 0
        %3631 = vmatprep.subr.bf16.mxu0 0
        %3632 = vmatpush1.bf16.msra.mxu0 0
        %3633 = vmatprep.subr.bf16.mxu0 0
        %3634 = vmatpush1.bf16.msra.mxu0 0
        %3635 = vmatprep.subr.bf16.mxu0 0
        %3636 = vmatpush1.bf16.msra.mxu0 0
        %3637 = vmatprep.mubr.bf16.mxu0 0
        %3638 = vmatmul.mubr.bf16.gmra.mrb[0].mxu0 %v3600
        %v3639 = vpop.f32.mrb[0].mxu0
        %v3640 = vadd.f32 0.0, %v3639
        %v3641 = vpop.f32.mrb[0].mxu0
        %v3642 = vpop.f32.mrb[0].mxu0
        %v3643 = vpop.f32.mrb[0].mxu0
        %3644 = vdwg.mxu0
        %v3646 = vsel %vm1151, %v3546, 0
        %v3649 = vsel %vm3555, %v3550, 0
        %3651 = vmatprep.subr.bf16.mxu0 0
        %3652 = vmatpush1.bf16.msra.mxu0 %v3649
        %3653 = vmatprep.subr.bf16.mxu0 0
        %3654 = vmatpush1.bf16.msra.mxu0 0
        %3655 = vmatprep.subr.bf16.mxu0 0
        %3656 = vmatpush1.bf16.msra.mxu0 0
        %3657 = vmatprep.subr.bf16.mxu0 0
        %3658 = vmatpush1.bf16.msra.mxu0 0
        %3659 = vmatprep.subr.bf16.mxu0 0
        %3660 = vmatpush1.bf16.msra.mxu0 0
        %3661 = vmatprep.subr.bf16.mxu0 0
        %3662 = vmatpush1.bf16.msra.mxu0 0
        %3663 = vmatprep.subr.bf16.mxu0 0
        %3664 = vmatpush1.bf16.msra.mxu0 0
        %3665 = vmatprep.subr.bf16.mxu0 0
        %3666 = vmatpush1.bf16.msra.mxu0 0
        %3667 = vmatprep.subr.bf16.mxu0 0
        %3668 = vmatpush1.bf16.msra.mxu0 0
        %3669 = vmatprep.subr.bf16.mxu0 0
        %3670 = vmatpush1.bf16.msra.mxu0 0
        %3671 = vmatprep.subr.bf16.mxu0 0
        %3672 = vmatpush1.bf16.msra.mxu0 0
        %3673 = vmatprep.subr.bf16.mxu0 0
        %3674 = vmatpush1.bf16.msra.mxu0 0
        %3675 = vmatprep.subr.bf16.mxu0 0
        %3676 = vmatpush1.bf16.msra.mxu0 0
        %3677 = vmatprep.subr.bf16.mxu0 0
        %3678 = vmatpush1.bf16.msra.mxu0 0
        %3679 = vmatprep.subr.bf16.mxu0 0
        %3680 = vmatpush1.bf16.msra.mxu0 0
        %3681 = vmatprep.subr.bf16.mxu0 0
        %3682 = vmatpush1.bf16.msra.mxu0 0
        %3683 = vmatprep.mubr.bf16.mxu0 0
        %3684 = vmatmul.mubr.bf16.gmra.mrb[0].mxu0 %v3646
        %v3685 = vpop.f32.mrb[0].mxu0
        %v3686 = vadd.f32 0.0, %v3685
        %v3687 = vpop.f32.mrb[0].mxu0
        %v3688 = vpop.f32.mrb[0].mxu0
        %v3689 = vpop.f32.mrb[0].mxu0
        %3690 = vdwg.mxu0
        %v3692 = vsel %vm1151, %v3547, 0
        %v3695 = vsel %vm3555, %v3551, 0
        %3697 = vmatprep.subr.bf16.mxu0 0
        %3698 = vmatpush1.bf16.msra.mxu0 %v3695
        %3699 = vmatprep.subr.bf16.mxu0 0
        %3700 = vmatpush1.bf16.msra.mxu0 0
        %3701 = vmatprep.subr.bf16.mxu0 0
        %3702 = vmatpush1.bf16.msra.mxu0 0
        %3703 = vmatprep.subr.bf16.mxu0 0
        %3704 = vmatpush1.bf16.msra.mxu0 0
        %3705 = vmatprep.subr.bf16.mxu0 0
        %3706 = vmatpush1.bf16.msra.mxu0 0
        %3707 = vmatprep.subr.bf16.mxu0 0
        %3708 = vmatpush1.bf16.msra.mxu0 0
        %3709 = vmatprep.subr.bf16.mxu0 0
        %3710 = vmatpush1.bf16.msra.mxu0 0
        %3711 = vmatprep.subr.bf16.mxu0 0
        %3712 = vmatpush1.bf16.msra.mxu0 0
        %3713 = vmatprep.subr.bf16.mxu0 0
        %3714 = vmatpush1.bf16.msra.mxu0 0
        %3715 = vmatprep.subr.bf16.mxu0 0
        %3716 = vmatpush1.bf16.msra.mxu0 0
        %3717 = vmatprep.subr.bf16.mxu0 0
        %3718 = vmatpush1.bf16.msra.mxu0 0
        %3719 = vmatprep.subr.bf16.mxu0 0
        %3720 = vmatpush1.bf16.msra.mxu0 0
        %3721 = vmatprep.subr.bf16.mxu0 0
        %3722 = vmatpush1.bf16.msra.mxu0 0
        %3723 = vmatprep.subr.bf16.mxu0 0
        %3724 = vmatpush1.bf16.msra.mxu0 0
        %3725 = vmatprep.subr.bf16.mxu0 0
        %3726 = vmatpush1.bf16.msra.mxu0 0
        %3727 = vmatprep.subr.bf16.mxu0 0
        %3728 = vmatpush1.bf16.msra.mxu0 0
        %3729 = vmatprep.mubr.bf16.mxu0 0
        %3730 = vmatmul.mubr.bf16.gmra.mrb[0].mxu0 %v3692
        %v3731 = vpop.f32.mrb[0].mxu0
        %v3732 = vadd.f32 0.0, %v3731
        %v3733 = vpop.f32.mrb[0].mxu0
        %v3734 = vpop.f32.mrb[0].mxu0
        %v3735 = vpop.f32.mrb[0].mxu0
        %3736 = vdwg.mxu0
        %3738 = vrot.lane.b32.xlu0 %v3640, 8
        %v3739 = vpop.permute.xlu0 %3738
        %3742 = vrot.lane.b32.xlu0 %v3686, 16
        %v3743 = vpop.permute.xlu0 %3742
        %3746 = vrot.lane.b32.xlu0 %v3732, 24
        %v3747 = vpop.permute.xlu0 %3746
        %v3749 = vsel %vm1151, %v3594, %v3739
        %vm3750 = vcmask 130048
        %v3751 = vsel %vm3750, %v3749, %v3743
        %vm3752 = vcmask 195584
        %v3753 = vsel %vm3752, %v3751, %v3747
        %v3754 = vpack.c.bf16 %v3753, %v3753
        %v3755 = vld [vmem:[%s11] sm:$0xf]
        %v3756 = vld [vmem:[%s11 + $0x4] sm:$0xf]
        %v3757 = vld [vmem:[%s11 + $0x8] sm:$0xf]
        %v3758 = vld [vmem:[%s11 + $0xc] sm:$0xf]
        %v3759 = vld [vmem:[#allocation13] sm:$0x1]
        %v3761 = vlaneseq
        %v3762 = vshrl.u32 %v3761, 7
        %v3763 = vsub.s32 0, %v3762
        %v3764 = vrot.slane %v3759, %v3763
        %v3770 = vunpack.c.l.b16 %v3755
        %v3771 = vunpack.c.l.b16 %v3756
        %v3772 = vunpack.c.l.b16 %v3757
        %v3773 = vunpack.c.l.b16 %v3758
        %v3774 = vpack.c.b16 %v3771, %v3770
        %v3775 = vpack.c.b16 %v3773, %v3772
        %v3779 = vsel %vm1063, %v3754, 0
        %3781 = vmatprep.subr.bf16.mxu0 0
        %3782 = vmatpush1.bf16.msra.mxu0 %v3774
        %3783 = vmatprep.subr.bf16.mxu0 0
        %3784 = vmatpush1.bf16.msra.mxu0 %v3775
        %3785 = vmatprep.subr.bf16.mxu0 0
        %3786 = vmatpush1.bf16.msra.mxu0 0
        %3787 = vmatprep.subr.bf16.mxu0 0
        %3788 = vmatpush1.bf16.msra.mxu0 0
        %3789 = vmatprep.subr.bf16.mxu0 0
        %3790 = vmatpush1.bf16.msra.mxu0 0
        %3791 = vmatprep.subr.bf16.mxu0 0
        %3792 = vmatpush1.bf16.msra.mxu0 0
        %3793 = vmatprep.subr.bf16.mxu0 0
        %3794 = vmatpush1.bf16.msra.mxu0 0
        %3795 = vmatprep.subr.bf16.mxu0 0
        %3796 = vmatpush1.bf16.msra.mxu0 0
        %3797 = vmatprep.subr.bf16.mxu0 0
        %3798 = vmatpush1.bf16.msra.mxu0 0
        %3799 = vmatprep.subr.bf16.mxu0 0
        %3800 = vmatpush1.bf16.msra.mxu0 0
        %3801 = vmatprep.subr.bf16.mxu0 0
        %3802 = vmatpush1.bf16.msra.mxu0 0
        %3803 = vmatprep.subr.bf16.mxu0 0
        %3804 = vmatpush1.bf16.msra.mxu0 0
        %3805 = vmatprep.subr.bf16.mxu0 0
        %3806 = vmatpush1.bf16.msra.mxu0 0
        %3807 = vmatprep.subr.bf16.mxu0 0
        %3808 = vmatpush1.bf16.msra.mxu0 0
        %3809 = vmatprep.subr.bf16.mxu0 0
        %3810 = vmatpush1.bf16.msra.mxu0 0
        %3811 = vmatprep.subr.bf16.mxu0 0
        %3812 = vmatpush1.bf16.msra.mxu0 0
        %3813 = vmatprep.mubr.bf16.mxu0 0
        %3814 = vmatmul.mubr.bf16.gmra.mrb[0].mxu0 %v3779
        %v3815 = vpop.f32.mrb[0].mxu0
        %v3816 = vadd.f32 %v3764, %v3815
        %v3817 = vpop.f32.mrb[0].mxu0
        %v3818 = vpop.f32.mrb[0].mxu0
        %v3819 = vpop.f32.mrb[0].mxu0
        %3820 = vdwg.mxu0
        %v3821 = vadd.f32 %v3816, %v865
        %v3822 = vld [vmem:[#allocation15] sm:$0x1]
        %v3823 = vld [vmem:[%s14] sm:$0x1]
        %v3824 = vsel %vm1063, %v3821, 0.0
        %3825 = vadd.xlane.f32.xlu0 %v3824
        %v3826 = vpop.xlane.xlu0 %3825
        %v3827 = vrcp.pop 32.0
        %v3828 = vmul.f32 %v3826, %v3827
        %v3829 = vsub.f32 %v3821, %v3828
        %v3830 = vmul.f32 %v3829, %v3829
        %v3831 = vsel %vm1063, %v3830, 0.0
        %3832 = vadd.xlane.f32.xlu0 %v3831
        %v3833 = vpop.xlane.xlu0 %3832
        %v3834 = vmul.f32 %v3833, %v3827
        %v3835 = vadd.f32 %v3834, 1e-05
        %v3836 = vrsqrt.pop %v3835
        %v3837 = vmul.f32 %v3829, %v3836
        %v3839 = vlaneseq
        %v3840 = vshrl.u32 %v3839, 7
        %v3841 = vsub.s32 0, %v3840
        %v3842 = vrot.slane %v3822, %v3841
        %v3844 = vmul.f32 %v3837, %v3842
        %v3846 = vlaneseq
        %v3847 = vshrl.u32 %v3846, 7
        %v3848 = vsub.s32 0, %v3847
        %v3849 = vrot.slane %v3823, %v3848
        %v3851 = vadd.f32 %v3844, %v3849
        %v3852 = vpack.c.bf16 %v3851, %v3851
        %v3853 = vld [vmem:[%s15] sm:$0xf]
        %v3854 = vld [vmem:[%s15 + $0x4] sm:$0xf]
        %v3855 = vld [vmem:[%s15 + $0x8] sm:$0xf]
        %v3856 = vld [vmem:[%s15 + $0xc] sm:$0xf]
        %v3857 = vld [vmem:[%s16] sm:$0x1]
        %v3859 = vlaneseq
        %v3860 = vshrl.u32 %v3859, 7
        %v3861 = vsub.s32 0, %v3860
        %v3862 = vrot.slane %v3857, %v3861
        %v3868 = vunpack.c.l.b16 %v3853
        %v3869 = vunpack.c.l.b16 %v3854
        %v3870 = vunpack.c.l.b16 %v3855
        %v3871 = vunpack.c.l.b16 %v3856
        %v3872 = vpack.c.b16 %v3869, %v3868
        %v3873 = vpack.c.b16 %v3871, %v3870
        %v3877 = vsel %vm1063, %v3852, 0
        %3879 = vmatprep.subr.bf16.mxu0 0
        %3880 = vmatpush1.bf16.msra.mxu0 %v3872
        %3881 = vmatprep.subr.bf16.mxu0 0
        %3882 = vmatpush1.bf16.msra.mxu0 %v3873
        %3883 = vmatprep.subr.bf16.mxu0 0
        %3884 = vmatpush1.bf16.msra.mxu0 0
        %3885 = vmatprep.subr.bf16.mxu0 0
        %3886 = vmatpush1.bf16.msra.mxu0 0
        %3887 = vmatprep.subr.bf16.mxu0 0
        %3888 = vmatpush1.bf16.msra.mxu0 0
        %3889 = vmatprep.subr.bf16.mxu0 0
        %3890 = vmatpush1.bf16.msra.mxu0 0
        %3891 = vmatprep.subr.bf16.mxu0 0
        %3892 = vmatpush1.bf16.msra.mxu0 0
        %3893 = vmatprep.subr.bf16.mxu0 0
        %3894 = vmatpush1.bf16.msra.mxu0 0
        %3895 = vmatprep.subr.bf16.mxu0 0
        %3896 = vmatpush1.bf16.msra.mxu0 0
        %3897 = vmatprep.subr.bf16.mxu0 0
        %3898 = vmatpush1.bf16.msra.mxu0 0
        %3899 = vmatprep.subr.bf16.mxu0 0
        %3900 = vmatpush1.bf16.msra.mxu0 0
        %3901 = vmatprep.subr.bf16.mxu0 0
        %3902 = vmatpush1.bf16.msra.mxu0 0
        %3903 = vmatprep.subr.bf16.mxu0 0
        %3904 = vmatpush1.bf16.msra.mxu0 0
        %3905 = vmatprep.subr.bf16.mxu0 0
        %3906 = vmatpush1.bf16.msra.mxu0 0
        %3907 = vmatprep.subr.bf16.mxu0 0
        %3908 = vmatpush1.bf16.msra.mxu0 0
        %3909 = vmatprep.subr.bf16.mxu0 0
        %3910 = vmatpush1.bf16.msra.mxu0 0
        %3911 = vmatprep.mubr.bf16.mxu0 0
        %3912 = vmatmul.mubr.bf16.gmra.mrb[0].mxu0 %v3877
        %v3913 = vpop.f32.mrb[0].mxu0
        %v3914 = vadd.f32 %v3862, %v3913
        %v3915 = vpop.f32.mrb[0].mxu0
        %v3916 = vpop.f32.mrb[0].mxu0
        %v3917 = vpop.f32.mrb[0].mxu0
        %3918 = vdwg.mxu0
        %v3919 = vmax.f32 %v3914, 0.0
        %v3920 = vpack.c.bf16 %v3919, %v3919
        %v3921 = vld [vmem:[%s17] sm:$0xf]
        %v3922 = vld [vmem:[%s17 + $0x4] sm:$0xf]
        %v3923 = vld [vmem:[%s17 + $0x8] sm:$0xf]
        %v3924 = vld [vmem:[%s17 + $0xc] sm:$0xf]
        %v3925 = vld [vmem:[%s17 + $0x10] sm:$0xf]
        %v3926 = vld [vmem:[%s17 + $0x14] sm:$0xf]
        %v3927 = vld [vmem:[%s17 + $0x18] sm:$0xf]
        %v3928 = vld [vmem:[%s17 + $0x1c] sm:$0xf]
        %v3929 = vld [vmem:[%s18] sm:$0x1]
        %v3931 = vlaneseq
        %v3932 = vshrl.u32 %v3931, 7
        %v3933 = vsub.s32 0, %v3932
        %v3934 = vrot.slane %v3929, %v3933
        %v3944 = vunpack.c.l.b16 %v3921
        %v3945 = vunpack.c.l.b16 %v3922
        %v3946 = vunpack.c.l.b16 %v3923
        %v3947 = vunpack.c.l.b16 %v3924
        %v3948 = vunpack.c.l.b16 %v3925
        %v3949 = vunpack.c.l.b16 %v3926
        %v3950 = vunpack.c.l.b16 %v3927
        %v3951 = vunpack.c.l.b16 %v3928
        %v3952 = vpack.c.b16 %v3945, %v3944
        %v3953 = vpack.c.b16 %v3947, %v3946
        %v3954 = vpack.c.b16 %v3949, %v3948
        %v3955 = vpack.c.b16 %v3951, %v3950
        %vm3960 = vcmask 523264
        %v3962 = vsel %vm3960, %v3920, 0
        %3964 = vmatprep.subr.bf16.mxu0 0
        %3965 = vmatpush1.bf16.msra.mxu0 %v3952
        %3966 = vmatprep.subr.bf16.mxu0 0
        %3967 = vmatpush1.bf16.msra.mxu0 %v3953
        %3968 = vmatprep.subr.bf16.mxu0 0
        %3969 = vmatpush1.bf16.msra.mxu0 %v3954
        %3970 = vmatprep.subr.bf16.mxu0 0
        %3971 = vmatpush1.bf16.msra.mxu0 %v3955
        %3972 = vmatprep.subr.bf16.mxu0 0
        %3973 = vmatpush1.bf16.msra.mxu0 0
        %3974 = vmatprep.subr.bf16.mxu0 0
        %3975 = vmatpush1.bf16.msra.mxu0 0
        %3976 = vmatprep.subr.bf16.mxu0 0
        %3977 = vmatpush1.bf16.msra.mxu0 0
        %3978 = vmatprep.subr.bf16.mxu0 0
        %3979 = vmatpush1.bf16.msra.mxu0 0
        %3980 = vmatprep.subr.bf16.mxu0 0
        %3981 = vmatpush1.bf16.msra.mxu0 0
        %3982 = vmatprep.subr.bf16.mxu0 0
        %3983 = vmatpush1.bf16.msra.mxu0 0
        %3984 = vmatprep.subr.bf16.mxu0 0
        %3985 = vmatpush1.bf16.msra.mxu0 0
        %3986 = vmatprep.subr.bf16.mxu0 0
        %3987 = vmatpush1.bf16.msra.mxu0 0
        %3988 = vmatprep.subr.bf16.mxu0 0
        %3989 = vmatpush1.bf16.msra.mxu0 0
        %3990 = vmatprep.subr.bf16.mxu0 0
        %3991 = vmatpush1.bf16.msra.mxu0 0
        %3992 = vmatprep.subr.bf16.mxu0 0
        %3993 = vmatpush1.bf16.msra.mxu0 0
        %3994 = vmatprep.subr.bf16.mxu0 0
        %3995 = vmatpush1.bf16.msra.mxu0 0
        %3996 = vmatprep.mubr.bf16.mxu0 0
        %3997 = vmatmul.mubr.bf16.gmra.mrb[0].mxu0 %v3962
        %v3998 = vpop.f32.mrb[0].mxu0
        %v3999 = vadd.f32 %v3934, %v3998
        %v4000 = vpop.f32.mrb[0].mxu0
        %v4001 = vpop.f32.mrb[0].mxu0
        %v4002 = vpop.f32.mrb[0].mxu0
        %4003 = vdwg.mxu0
        %v4004 = vadd.f32 %v3851, %v3999
        %v4005 = vld [vmem:[%s19] sm:$0x1]
        %v4006 = vld [vmem:[%s20] sm:$0x1]
        %v4007 = vsel %vm1063, %v4004, 0.0
        %4008 = vadd.xlane.f32.xlu0 %v4007
        %v4009 = vpop.xlane.xlu0 %4008
        %v4010 = vmul.f32 %v4009, %v3827
        %v4011 = vsub.f32 %v4004, %v4010
        %v4012 = vmul.f32 %v4011, %v4011
        %v4013 = vsel %vm1063, %v4012, 0.0
        %4014 = vadd.xlane.f32.xlu0 %v4013
        %v4015 = vpop.xlane.xlu0 %4014
        %v4016 = vmul.f32 %v4015, %v3827
        %v4017 = vadd.f32 %v4016, 1e-05
        %v4018 = vrsqrt.pop %v4017
        %v4019 = vmul.f32 %v4011, %v4018
        %v4021 = vlaneseq
        %v4022 = vshrl.u32 %v4021, 7
        %v4023 = vsub.s32 0, %v4022
        %v4024 = vrot.slane %v4005, %v4023
        %v4026 = vmul.f32 %v4019, %v4024
        %v4028 = vlaneseq
        %v4029 = vshrl.u32 %v4028, 7
        %v4030 = vsub.s32 0, %v4029
        %v4031 = vrot.slane %v4006, %v4030
        %v4033 = vadd.f32 %v4026, %v4031
        %4034 = vst.msk [vmem:[%s835] sm:$0xff] %vm1063, %v4033
        %s4035 = sand.u32 %s526, 1
        %s4036 = scalar_lea.sflag [#allocation6], %s4035
        %s4037 = sand.u32 %s526, 1
        %s4038 = smul.addr %s4037, 8
        %s4039 = scalar_lea.vmem [#allocation16], %s4038
        %s4040 = sand.u32 %s554, 1
        %s4041 = scalar_lea.sflag [#allocation18], %s4040
        %s4042 = sand.u32 %s554, 1
        %s4043 = smul.addr %s4042, 32
        %s4044 = scalar_lea.vmem [#allocation17], %s4043
        // Predicated region
        $region137: #{tpu_custom_call.1} parent=103 // pred_check
          %p4045 = pneg %p536
        $region138: #{tpu_custom_call.1} parent=103 // pred_check_branch
          %4047 = sbr.rel (%p4045) target = $region140
        $region139: #{tpu_custom_call.1} parent=103 // pred_region
          %s4049 = ssub.s32 128, 128
          %4050 = vsyncadd %s4036, %s4049
          %s4051 = sadd.s32 %s49, %s48
          %s4052 = smul.addr %s4051, 128
          %s4053 = scalar_lea.hbm %s21, %s4052
          %s4055 = sshll.u32 %s4039, 4
          %s4056 = int_to_ptr.vmem [resolvable:$true] %s4055
          %4058 = dma.vmem_to_hbm [thread:$0]  %s4056, 128, %s4053, %s4036
        $region140: #{tpu_custom_call.1} parent=103 // pred_fallthru
          _
        // Predicated region
        $region141: #{tpu_custom_call.1} parent=103 // pred_check
          %p4059 = pneg %p564
        $region142: #{tpu_custom_call.1} parent=103 // pred_check_branch
          %4061 = sbr.rel (%p4059) target = $region144
        $region143: #{tpu_custom_call.1} parent=103 // pred_region
          %s4063 = ssub.s32 512, 512
          %4064 = vsyncadd %s4041, %s4063
          %s4065 = smul.addr %s48, 4
          %s4066 = sadd.s32 %s49, %s4065
          %s4067 = smul.addr %s4066, 128
          %s4068 = scalar_lea.hbm %s22, %s4067
          %s4069 = sshll.u32 %s4044, 4
          %s4070 = int_to_ptr.vmem [resolvable:$true] %s4069
          %4075 = dma.vmem_to_hbm [thread:$0]  %s4070, 512, %s4068, %s4041, 128, 128, 8
        $region144: #{tpu_custom_call.1} parent=103 // pred_fallthru
          _
      $region104: #{tpu_custom_call.1} parent=5 // pred_fallthru
        _
      %p4076 = scmp.le.s32.totalorder 2, %s39
      // Predicated region
      $region145: #{tpu_custom_call.1} parent=5 // pred_check
        %p4077 = pneg %p4076
      $region146: #{tpu_custom_call.1} parent=5 // pred_check_branch
        %4079 = sbr.rel (%p4077) target = $region148
      $region147: #{tpu_custom_call.1} parent=5 // pred_region
        %s4080 = ssub.s32 %s39, 2
        // Predicated region
        $region149: #{tpu_custom_call.1} parent=147 // pred_check
          %p4081 = pneg %p542
        $region150: #{tpu_custom_call.1} parent=147 // pred_check_branch
          %4083 = sbr.rel (%p4081) target = $region152
        $region151: #{tpu_custom_call.1} parent=147 // pred_region
          %s4084 = sand.u32 %s527, 1
          %s4085 = scalar_lea.sflag [#allocation6], %s4084
          %s4086 = sand.u32 %s527, 1
          %s4087 = smul.addr %s4086, 8
          %s4088 = scalar_lea.vmem [#allocation16], %s4087
          %4089 = dma.done %s4085, 128
        $region152: #{tpu_custom_call.1} parent=147 // pred_fallthru
          _
        // Predicated region
        $region153: #{tpu_custom_call.1} parent=147 // pred_check
          %p4090 = pneg %p570
        $region154: #{tpu_custom_call.1} parent=147 // pred_check_branch
          %4092 = sbr.rel (%p4090) target = $region156
        $region155: #{tpu_custom_call.1} parent=147 // pred_region
          %s4093 = sand.u32 %s555, 1
          %s4094 = scalar_lea.sflag [#allocation18], %s4093
          %s4095 = sand.u32 %s555, 1
          %s4096 = smul.addr %s4095, 32
          %s4097 = scalar_lea.vmem [#allocation17], %s4096
          %4098 = dma.done %s4094, 512
        $region156: #{tpu_custom_call.1} parent=147 // pred_fallthru
          _
      $region148: #{tpu_custom_call.1} parent=5 // pred_fallthru
        _
    $region6: #{tpu_custom_call.1} parent=1 // loop_footer
      %s43 = sadd.s32 1, %s39
    $region7: #{tpu_custom_call.1} parent=1 // loop_footer_branch
      %38 = sbr.rel target = $region3
    $region8: #{tpu_custom_call.1} parent=1 // loop_exit
      _
    %4099 = vsyncpa [#allocation5], 1
    %s4100 = scalar_lea.sflag [#allocation5], 1
    %4101 = vsyncpa %s4100, 1
    %4102 = vsyncpa [#allocation8], 1
    %4103 = vsyncpa [#allocation11], 1
    %4104 = vsyncpa [#allocation14], 1
    %4105 = vsyncpa [#allocation6], 1
    %s4106 = scalar_lea.sflag [#allocation6], 1
    %4107 = vsyncpa %s4106, 1
    %4108 = vsyncpa [#allocation18], 1
    %s4109 = scalar_lea.sflag [#allocation18], 1
    %4110 = vsyncpa %s4109, 1

</llo_original>
